<compile_context>
chip_gen: v7x
topology: tpu7x:2x2x1
jax: 0.10.0
libtpu: 0.0.40
codegen_flags: <defaults>
</compile_context>

<pallas_src>
import math
from functools import partial

import jax
import jax.numpy as jnp
from jax.experimental import pallas as pl
from jax.experimental.pallas import tpu as pltpu

EPS = 1e-5                       # PyTorch BatchNorm default eps
_VMEM_LIMIT = 48 * 1024 * 1024   # explicit scoped-VMEM budget (safe on v5e/v6e/v7x)


# ----------------------------------------------------------------------------
# Pallas kernels
# ----------------------------------------------------------------------------
def _mm_affine_kernel(a_ref, b_ref, s_ref, t_ref, o_ref, *, relu):
    """Tiled matmul, f32 accumulation in the resident output block, fused
    BN-affine (+ optional ReLU) epilogue.  Grid = (m_tiles, n_tiles, k_tiles)."""
    @pl.when(pl.program_id(2) == 0)
    def _zero():
        o_ref[...] = jnp.zeros_like(o_ref)

    o_ref[...] += jnp.dot(a_ref[...], b_ref[...],
                          preferred_element_type=jnp.float32)

    @pl.when(pl.program_id(2) == pl.num_programs(2) - 1)
    def _epilogue():
        y = o_ref[...] * s_ref[...] + t_ref[...]
        if relu:
            y = jnp.maximum(y, 0.0)
        o_ref[...] = y


def _mm_affine_res_kernel(a_ref, b_ref, s_ref, t_ref, r_ref, o_ref):
    """Bottleneck tail: relu(conv*scale + shift + residual), fused epilogue."""
    @pl.when(pl.program_id(2) == 0)
    def _zero():
        o_ref[...] = jnp.zeros_like(o_ref)

    o_ref[...] += jnp.dot(a_ref[...], b_ref[...],
                          preferred_element_type=jnp.float32)

    @pl.when(pl.program_id(2) == pl.num_programs(2) - 1)
    def _epilogue():
        y = o_ref[...] * s_ref[...] + t_ref[...] + r_ref[...]
        o_ref[...] = jnp.maximum(y, 0.0)


def _mm_stats_kernel(a_ref, b_ref, o_ref, sum_ref, sq_ref):
    """Tiled matmul whose epilogue also accumulates per-channel sum / sum-of-
    squares (training-mode BatchNorm).  Grid = (n_tiles, m_tiles, k_tiles):
    the stats block (1, tn) depends only on the outermost (column) axis, so it
    stays resident while all row tiles accumulate into it."""
    i = pl.program_id(1)            # row-tile index (reduced into the stats)
    k = pl.program_id(2)            # contraction-tile index

    @pl.when(k == 0)
    def _zero_acc():
        o_ref[...] = jnp.zeros_like(o_ref)

    @pl.when(jnp.logical_and(i == 0, k == 0))
    def _zero_stats():
        sum_ref[...] = jnp.zeros_like(sum_ref)
        sq_ref[...] = jnp.zeros_like(sq_ref)

    o_ref[...] += jnp.dot(a_ref[...], b_ref[...],
                          preferred_element_type=jnp.float32)

    @pl.when(k == pl.num_programs(2) - 1)
    def _accumulate_stats():
        acc = o_ref[...]
        # Zero-padded rows (M rounding) contribute exactly 0 to both sums, so
        # dividing by the true row count later gives correct batch statistics.
        sum_ref[...] += jnp.sum(acc, axis=0, keepdims=True)
        sq_ref[...] += jnp.sum(acc * acc, axis=0, keepdims=True)


def _affine_kernel(x_ref, s_ref, t_ref, o_ref, *, relu):
    """Row-tiled y = x*scale + shift (+ReLU) — used after training-mode stats."""
    y = x_ref[...] * s_ref[...] + t_ref[...]
    if relu:
        y = jnp.maximum(y, 0.0)
    o_ref[...] = y


def _affine_res_relu_kernel(x_ref, s_ref, t_ref, r_ref, o_ref):
    """Row-tiled relu(x*scale + shift + residual) — bottleneck tail (training)."""
    o_ref[...] = jnp.maximum(x_ref[...] * s_ref[...] + t_ref[...] + r_ref[...], 0.0)


# ----------------------------------------------------------------------------
# Tiling helpers / Pallas wrappers
# ----------------------------------------------------------------------------
def _round_up(v, m):
    return (v + m - 1) // m * m


def _pad2(x, rows, cols):
    pr, pc = rows - x.shape[0], cols - x.shape[1]
    if pr or pc:
        x = jnp.pad(x, ((0, pr), (0, pc)))
    return x


def _mm_tiles(M, N, K):
    """Pick (tm, tn, tk) and padded sizes.  Per-step live VMEM stays at a few
    MiB so it fits v7x's 64 MiB (and default scoped limits)."""
    Np = _round_up(N, 128)
    tn = 256 if Np % 256 == 0 else 128
    Kp = _round_up(K, 128)
    tk = next(t for t in (512, 384, 256, 128) if Kp % t == 0)
    if M >= 512:
        tm = 512
    elif M >= 256:
        tm = 256
    else:
        tm = _round_up(M, 8)
    Mp = _round_up(M, tm)
    return tm, tn, tk, Mp, Np, Kp


def _mm_fused(a, b, scale, shift, residual=None, relu=False):
    """(M,K)@(K,N) with bf16 MXU inputs / f32 accumulation and a fused
    affine (+residual/+ReLU) epilogue.  Returns float32 (M, N)."""
    M, K = a.shape
    _, N = b.shape
    tm, tn, tk, Mp, Np, Kp = _mm_tiles(M, N, K)
    a_p = _pad2(a.astype(jnp.bfloat16), Mp, Kp)
    b_p = _pad2(b.astype(jnp.bfloat16), Kp, Np)
    s_p = _pad2(scale.reshape(1, N).astype(jnp.float32), 1, Np)
    t_p = _pad2(shift.reshape(1, N).astype(jnp.float32), 1, Np)

    in_specs = [pl.BlockSpec((tm, tk), lambda i, j, k: (i, k)),
                pl.BlockSpec((tk, tn), lambda i, j, k: (k, j)),
                pl.BlockSpec((1, tn), lambda i, j, k: (0, j)),
                pl.BlockSpec((1, tn), lambda i, j, k: (0, j))]
    args = [a_p, b_p, s_p, t_p]
    if residual is not None:
        in_specs.append(pl.BlockSpec((tm, tn), lambda i, j, k: (i, j)))
        args.append(_pad2(residual.astype(jnp.float32), Mp, Np))
        kernel = _mm_affine_res_kernel          # residual branch always ReLUs
    else:
        kernel = partial(_mm_affine_kernel, relu=relu)

    out = pl.pallas_call(
        kernel,
        out_shape=jax.ShapeDtypeStruct((Mp, Np), jnp.float32),
        grid_spec=pltpu.PrefetchScalarGridSpec(
            num_scalar_prefetch=0,
            grid=(Mp // tm, Np // tn, Kp // tk),
            in_specs=in_specs,
            out_specs=pl.BlockSpec((tm, tn), lambda i, j, k: (i, j))),
        compiler_params=pltpu.CompilerParams(
            dimension_semantics=("parallel", "parallel", "arbitrary"),
            vmem_limit_bytes=_VMEM_LIMIT),
    )(*args)
    if (Mp, Np) != (M, N):
        out = out[:M, :N]
    return out


def _mm_stats(a, b):
    """Matmul returning (conv_out f32, per-channel sum, per-channel sum-of-sq)."""
    M, K = a.shape
    _, N = b.shape
    tm, tn, tk, Mp, Np, Kp = _mm_tiles(M, N, K)
    a_p = _pad2(a.astype(jnp.bfloat16), Mp, Kp)
    b_p = _pad2(b.astype(jnp.bfloat16), Kp, Np)

    out, sums, sqs = pl.pallas_call(
        _mm_stats_kernel,
        out_shape=(jax.ShapeDtypeStruct((Mp, Np), jnp.float32),
                   jax.ShapeDtypeStruct((1, Np), jnp.float32),
                   jax.ShapeDtypeStruct((1, Np), jnp.float32)),
        grid_spec=pltpu.PrefetchScalarGridSpec(
            num_scalar_prefetch=0,
            grid=(Np // tn, Mp // tm, Kp // tk),          # (j, i, k)
            in_specs=[pl.BlockSpec((tm, tk), lambda j, i, k: (i, k)),
                      pl.BlockSpec((tk, tn), lambda j, i, k: (k, j))],
            out_specs=(pl.BlockSpec((tm, tn), lambda j, i, k: (i, j)),
                       pl.BlockSpec((1, tn), lambda j, i, k: (0, j)),
                       pl.BlockSpec((1, tn), lambda j, i, k: (0, j)))),
        compiler_params=pltpu.CompilerParams(
            dimension_semantics=("parallel", "arbitrary", "arbitrary"),
            vmem_limit_bytes=_VMEM_LIMIT),
    )(a_p, b_p)

    total, total_sq = sums[0, :N], sqs[0, :N]
    if (Mp, Np) != (M, N):
        out = out[:M, :N]
    return out, total, total_sq


def _row_block(m):
    for rb in (2048, 1024, 512, 256, 128, 64, 32, 16, 8):
        if m % rb == 0:
            return rb
    return m                                  # full-dim block (always legal)


def _affine(x2d, scale, shift, residual=None, relu=False):
    """Row-tiled BN affine (+residual/+ReLU) for the training path."""
    M, C = x2d.shape
    rb = _row_block(M)
    s2 = scale.reshape(1, C).astype(jnp.float32)
    t2 = shift.reshape(1, C).astype(jnp.float32)
    in_specs = [pl.BlockSpec((rb, C), lambda i: (i, 0)),
                pl.BlockSpec((1, C), lambda i: (0, 0)),
                pl.BlockSpec((1, C), lambda i: (0, 0))]
    args = [x2d, s2, t2]
    if residual is not None:
        in_specs.append(pl.BlockSpec((rb, C), lambda i: (i, 0)))
        args.append(residual.astype(jnp.float32))
        kernel = _affine_res_relu_kernel
    else:
        kernel = partial(_affine_kernel, relu=relu)
    return pl.pallas_call(
        kernel,
        out_shape=jax.ShapeDtypeStruct((M, C), jnp.float32),
        grid_spec=pltpu.PrefetchScalarGridSpec(
            num_scalar_prefetch=0, grid=(M // rb,),
            in_specs=in_specs,
            out_specs=pl.BlockSpec((rb, C), lambda i: (i, 0))),
        compiler_params=pltpu.CompilerParams(
            dimension_semantics=("parallel",),
            vmem_limit_bytes=_VMEM_LIMIT),
    )(*args)


# ----------------------------------------------------------------------------
# Conv (per frame) + BatchNorm fused op
# ----------------------------------------------------------------------------
def _im2col(x, kh, kw, stride, pad):
    n, h, w, c = x.shape
    if pad:
        x = jnp.pad(x, ((0, 0), (pad, pad), (pad, pad), (0, 0)))
    oh = (h + 2 * pad - kh) // stride + 1
    ow = (w + 2 * pad - kw) // stride + 1
    cols = [x[:, i:i + stride * oh:stride, j:j + stride * ow:stride, :]
            for i in range(kh) for j in range(kw)]
    patches = jnp.concatenate(cols, axis=-1)          # (n, oh, ow, kh*kw*c)
    return patches.reshape(n * oh * ow, kh * kw * c), oh, ow


def _conv_inputs(x4d, kh, kw, stride, pad):
    n, h, w, c = x4d.shape
    if kh == 1 and kw == 1 and pad == 0:              # 1x1 conv: no im2col
        xs = x4d[:, ::stride, ::stride, :]
        oh, ow = xs.shape[1], xs.shape[2]
        return xs.reshape(n * oh * ow, c), oh, ow
    return _im2col(x4d, kh, kw, stride, pad)


def fused_conv_bn(x4d, w, bn, *, stride, pad, training, relu, residual2d=None):
    """Per-frame Conv2d + BatchNorm + optional residual add + optional ReLU.

    Returns (out2d float32 of shape (n*oh*ow, cout), (n, oh, ow))."""
    kh, kw, cin, cout = w.shape
    n = x4d.shape[0]
    patches, oh, ow = _conv_inputs(x4d, kh, kw, stride, pad)
    w2d = w.reshape(kh * kw * cin, cout)

    if training:
        # Batch stats accumulated inside the matmul epilogue; one extra
        # row-tiled pass applies the affine (+ residual + ReLU).
        conv, total, total_sq = _mm_stats(patches, w2d)
        m = conv.shape[0]
        mean = total / m
        var = jnp.maximum(total_sq / m - mean * mean, 0.0)   # biased variance
        # TODO(synk): E[x^2]-E[x]^2 can cancel for very large row counts; a
        # two-pass/Welford reduction would cost an extra HBM read of conv out.
        scale = bn['g'] * jax.lax.rsqrt(var + EPS)
        shift = bn['b'] - mean * scale
        out = _affine(conv, scale, shift, residual=residual2d, relu=relu)
    else:
        # Eval mode: running stats known ahead of time -> fully fused epilogue.
        scale = bn['g'] * jax.lax.rsqrt(bn['rv'] + EPS)
        shift = bn['b'] - bn['rm'] * scale
        out = _mm_fused(patches, w2d, scale, shift,
                        residual=residual2d, relu=relu)
    return out, (n, oh, ow)


# ----------------------------------------------------------------------------
# Bottleneck3d forward (time_dim=1 inflation -> per-frame 2D bottleneck)
# ----------------------------------------------------------------------------
def bottleneck3d_forward(params, x, *, stride, training=True):
    """x: (B, C, T, H, W) -> (B, planes*4, T, H/stride, W/stride)."""
    b, c, t, h, w = x.shape
    act = jnp.transpose(x, (0, 2, 3, 4, 1)).reshape(b * t, h, w, c)

    out, (n, h1, w1) = fused_conv_bn(act, params['conv1_w'], params['bn1'],
                                     stride=1, pad=0, training=training, relu=True)
    out, (n, h2, w2) = fused_conv_bn(out.reshape(n, h1, w1, -1),
                                     params['conv2_w'], params['bn2'],
                                     stride=stride, pad=1, training=training, relu=True)
    if 'down_w' in params:
        res, _ = fused_conv_bn(act, params['down_w'], params['down_bn'],
                               stride=stride, pad=0, training=training, relu=False)
    else:
        res = act.reshape(n * h * w, c)
    out, _ = fused_conv_bn(out.reshape(n, h2, w2, -1),
                           params['conv3_w'], params['bn3'],
                           stride=1, pad=0, training=training, relu=True,
                           residual2d=res)
    cout = params['conv3_w'].shape[-1]
    out5d = out.reshape(b, t, h2, w2, cout)
    return jnp.transpose(out5d, (0, 4, 1, 2, 3))


# jit the whole forward so XLA fuses the transpose/pad/im2col glue between the
# Pallas calls and there is a single dispatch.
bottleneck3d_forward_jit = jax.jit(bottleneck3d_forward,
                                   static_argnames=("stride", "training"))


# ----------------------------------------------------------------------------
# Deterministic parameter construction
# ----------------------------------------------------------------------------
def init_bottleneck_params(seed, inplanes, planes, stride, expansion=4):
    key = jax.random.PRNGKey(seed)
    ks = iter(jax.random.split(key, 8))

    def conv_w(k, kh, kw, ci, co):
        std = math.sqrt(2.0 / (kh * kw * co))        # kaiming fan_out
        return std * jax.random.normal(k, (kh, kw, ci, co), jnp.float32)

    def bn_p(cn):
        return dict(g=jnp.ones((cn,), jnp.float32), b=jnp.zeros((cn,), jnp.float32),
                    rm=jnp.zeros((cn,), jnp.float32), rv=jnp.ones((cn,), jnp.float32))

    p = dict(conv1_w=conv_w(next(ks), 1, 1, inplanes, planes), bn1=bn_p(planes),
             conv2_w=conv_w(next(ks), 3, 3, planes, planes), bn2=bn_p(planes),
             conv3_w=conv_w(next(ks), 1, 1, planes, planes * expansion),
             bn3=bn_p(planes * expansion))
    if stride != 1 or inplanes != planes * expansion:
        p['down_w'] = conv_w(next(ks), 1, 1, inplanes, planes * expansion)
        p['down_bn'] = bn_p(planes * expansion)
    return p
    # TODO(synk): inflate.* weight-inflation helpers and running-stat momentum
    # updates are construction-time / stateful bookkeeping; not modeled.


# ----------------------------------------------------------------------------
# Pure-JAX (XLA) reference for correctness checking
# ----------------------------------------------------------------------------
def _ref_conv(x4d, w, stride, pad):
    return jax.lax.conv_general_dilated(
        x4d.astype(jnp.bfloat16), w.astype(jnp.bfloat16),
        window_strides=(stride, stride),
        padding=[(pad, pad), (pad, pad)],
        dimension_numbers=('NHWC', 'HWIO', 'NHWC'),
        preferred_element_type=jnp.float32)


def _ref_bn(x, bn, training, relu=False):
    if training:
        mean = jnp.mean(x, axis=(0, 1, 2))
        var = jnp.var(x, axis=(0, 1, 2))
    else:
        mean, var = bn['rm'], bn['rv']
    y = (x - mean) * jax.lax.rsqrt(var + EPS) * bn['g'] + bn['b']
    return jnp.maximum(y, 0.0) if relu else y


def bottleneck3d_reference(params, x, stride, training=True):
    b, c, t, h, w = x.shape
    act = jnp.transpose(x, (0, 2, 3, 4, 1)).reshape(b * t, h, w, c)
    out = _ref_bn(_ref_conv(act, params['conv1_w'], 1, 0), params['bn1'], training, True)
    out = _ref_bn(_ref_conv(out, params['conv2_w'], stride, 1), params['bn2'], training, True)
    out = _ref_bn(_ref_conv(out, params['conv3_w'], 1, 0), params['bn3'], training, False)
    if 'down_w' in params:
        res = _ref_bn(_ref_conv(act, params['down_w'], stride, 0),
                      params['down_bn'], training, False)
    else:
        res = act
    out = jnp.maximum(out + res, 0.0)
    oh, ow, co = out.shape[1], out.shape[2], out.shape[3]
    return jnp.transpose(out.reshape(b, t, oh, ow, co), (0, 4, 1, 2, 3))


def _rel_err(a, b):
    return float(jnp.max(jnp.abs(a - b)) / (float(jnp.max(jnp.abs(b))) + 1e-6))


# ----------------------------------------------------------------------------
if __name__ == "__main__":
    # Small layer2-style block with downsample (covers all conv/BN paths).
    B, T, H, W = 2, 2, 16, 16
    inplanes, planes, stride = 128, 64, 2
    params = init_bottleneck_params(0, inplanes, planes, stride)
    x = jax.random.normal(jax.random.PRNGKey(0), (B, inplanes, T, H, W), jnp.float32)

    # training-mode forward (module default state): batch statistics
    out_train = bottleneck3d_forward_jit(params, x, stride=stride, training=True)
    ref_train = bottleneck3d_reference(params, x, stride, training=True)
    jax.block_until_ready((out_train, ref_train))
    assert out_train.shape == (B, planes * 4, T, H // stride, W // stride)
    rel_t = _rel_err(out_train, ref_train)
    assert rel_t < 5e-2, f"training-mode mismatch vs reference: {rel_t}"

    # eval-mode forward: running statistics, fully fused epilogue
    out_eval = bottleneck3d_forward_jit(params, x, stride=stride, training=False)
    ref_eval = bottleneck3d_reference(params, x, stride, training=False)
    jax.block_until_ready((out_eval, ref_eval))
    assert out_eval.shape == (B, planes * 4, T, H // stride, W // stride)
    rel_e = _rel_err(out_eval, ref_eval)
    assert rel_e < 5e-2, f"eval-mode mismatch vs reference: {rel_e}"
    assert bool(jnp.all(jnp.isfinite(out_eval)))

    print("KERNEL_OK")
</pallas_src>

<mosaic_0001>
module attributes {stable_mosaic.version = 11 : i64} {
  func.func @_mm_stats_kernel(%arg0: i32, %arg1: i32, %arg2: i32, %arg3: memref<512x128xbf16, #tpu.memory_space<vmem>>, %arg4: memref<128x128xbf16, #tpu.memory_space<vmem>>, %arg5: memref<512x128xf32, #tpu.memory_space<vmem>>, %arg6: memref<1x128xf32, #tpu.memory_space<vmem>>, %arg7: memref<1x128xf32, #tpu.memory_space<vmem>>) attributes {dimension_semantics = [#tpu.dimension_semantics<parallel>, #tpu.dimension_semantics<arbitrary>, #tpu.dimension_semantics<arbitrary>], iteration_bounds = array<i64: 1, 2, 1>, scalar_prefetch = 0 : i64, scratch_operands = 0 : i64, tpu.core_type = #tpu.core_type<tc>, window_params = [{transform_indices = @transform_0, window_bounds = array<i64: 512, 128>}, {transform_indices = @transform_1, window_bounds = array<i64: 128, 128>}, {transform_indices = @transform_2, window_bounds = array<i64: 512, 128>}, {transform_indices = @transform_3, window_bounds = array<i64: 1, 128>}, {transform_indices = @transform_4, window_bounds = array<i64: 1, 128>}]} {
    %c0_i32 = arith.constant 0 : i32
    %0 = arith.cmpi eq, %arg2, %c0_i32 : i32
    %1 = arith.extui %0 : i1 to i32
    %c0_i32_0 = arith.constant 0 : i32
    %2 = arith.cmpi ne, %1, %c0_i32_0 : i32
    scf.if %2 {
      %cst_13 = arith.constant 0.000000e+00 : f32
      %17 = vector.broadcast %cst_13 : f32 to vector<512x128xf32>
      %c0_14 = arith.constant 0 : index
      %c0_15 = arith.constant 0 : index
      %18 = vector.load %arg5[%c0_14, %c0_15] : memref<512x128xf32, #tpu.memory_space<vmem>>, vector<512x128xf32>
      tpu.vector_store %arg5[%c0_14, %c0_15], %17 {strides = array<i32>} : memref<512x128xf32, #tpu.memory_space<vmem>>, vector<512x128xf32>,
    } else {
    }
    %c0_i32_1 = arith.constant 0 : i32
    %3 = arith.cmpi eq, %arg1, %c0_i32_1 : i32
    %c0_i32_2 = arith.constant 0 : i32
    %4 = arith.cmpi eq, %arg2, %c0_i32_2 : i32
    %5 = arith.andi %3, %4 : i1
    %6 = arith.extui %5 : i1 to i32
    %c0_i32_3 = arith.constant 0 : i32
    %7 = arith.cmpi ne, %6, %c0_i32_3 : i32
    scf.if %7 {
      %cst_13 = arith.constant 0.000000e+00 : f32
      %17 = vector.broadcast %cst_13 : f32 to vector<1x128xf32>
      %c0_14 = arith.constant 0 : index
      %c0_15 = arith.constant 0 : index
      %18 = vector.load %arg6[%c0_14, %c0_15] : memref<1x128xf32, #tpu.memory_space<vmem>>, vector<1x128xf32>
      tpu.vector_store %arg6[%c0_14, %c0_15], %17 {strides = array<i32>} : memref<1x128xf32, #tpu.memory_space<vmem>>, vector<1x128xf32>,
      %cst_16 = arith.constant 0.000000e+00 : f32
      %19 = vector.broadcast %cst_16 : f32 to vector<1x128xf32>
      %c0_17 = arith.constant 0 : index
      %c0_18 = arith.constant 0 : index
      %20 = vector.load %arg7[%c0_17, %c0_18] : memref<1x128xf32, #tpu.memory_space<vmem>>, vector<1x128xf32>
      tpu.vector_store %arg7[%c0_17, %c0_18], %19 {strides = array<i32>} : memref<1x128xf32, #tpu.memory_space<vmem>>, vector<1x128xf32>,
    } else {
    }
    %c0 = arith.constant 0 : index
    %c0_4 = arith.constant 0 : index
    %8 = vector.load %arg5[%c0, %c0_4] : memref<512x128xf32, #tpu.memory_space<vmem>>, vector<512x128xf32>
    %c0_5 = arith.constant 0 : index
    %c0_6 = arith.constant 0 : index
    %9 = vector.load %arg3[%c0_5, %c0_6] : memref<512x128xbf16, #tpu.memory_space<vmem>>, vector<512x128xbf16>
    %c0_7 = arith.constant 0 : index
    %c0_8 = arith.constant 0 : index
    %10 = vector.load %arg4[%c0_7, %c0_8] : memref<128x128xbf16, #tpu.memory_space<vmem>>, vector<128x128xbf16>
    %cst = arith.constant dense<0.000000e+00> : vector<512x128xf32>
    %11 = tpu.matmul %9, %10, %cst {dimension_numbers = #tpu.dot_dimension_numbers<[1], [0], [0], [1], [0, 0, 1, 1], [], []>} : vector<512x128xbf16>, vector<128x128xbf16>, vector<512x128xf32> -> vector<512x128xf32>
    %12 = arith.addf %8, %11 : vector<512x128xf32>
    %c0_9 = arith.constant 0 : index
    %c0_10 = arith.constant 0 : index
    %13 = vector.load %arg5[%c0_9, %c0_10] : memref<512x128xf32, #tpu.memory_space<vmem>>, vector<512x128xf32>
    tpu.vector_store %arg5[%c0_9, %c0_10], %12 {strides = array<i32>} : memref<512x128xf32, #tpu.memory_space<vmem>>, vector<512x128xf32>,
    %c0_i32_11 = arith.constant 0 : i32
    %14 = arith.cmpi eq, %arg2, %c0_i32_11 : i32
    %15 = arith.extui %14 : i1 to i32
    %c0_i32_12 = arith.constant 0 : i32
    %16 = arith.cmpi ne, %15, %c0_i32_12 : i32
    scf.if %16 {
      %c0_13 = arith.constant 0 : index
      %c0_14 = arith.constant 0 : index
      %17 = vector.load %arg5[%c0_13, %c0_14] : memref<512x128xf32, #tpu.memory_space<vmem>>, vector<512x128xf32>
      %c0_15 = arith.constant 0 : index
      %c0_16 = arith.constant 0 : index
      %18 = vector.load %arg6[%c0_15, %c0_16] : memref<1x128xf32, #tpu.memory_space<vmem>>, vector<1x128xf32>
      %cst_17 = arith.constant dense<0.000000e+00> : vector<128xf32>
      %19 = vector.multi_reduction <add>, %17, %cst_17 [0] : vector<512x128xf32> to vector<128xf32>
      %20 = vector.shape_cast %19 : vector<128xf32> to vector<1x128xf32>
      %21 = arith.addf %18, %20 : vector<1x128xf32>
      %c0_18 = arith.constant 0 : index
      %c0_19 = arith.constant 0 : index
      %22 = vector.load %arg6[%c0_18, %c0_19] : memref<1x128xf32, #tpu.memory_space<vmem>>, vector<1x128xf32>
      tpu.vector_store %arg6[%c0_18, %c0_19], %21 {strides = array<i32>} : memref<1x128xf32, #tpu.memory_space<vmem>>, vector<1x128xf32>,
      %c0_20 = arith.constant 0 : index
      %c0_21 = arith.constant 0 : index
      %23 = vector.load %arg7[%c0_20, %c0_21] : memref<1x128xf32, #tpu.memory_space<vmem>>, vector<1x128xf32>
      %24 = arith.mulf %17, %17 : vector<512x128xf32>
      %cst_22 = arith.constant dense<0.000000e+00> : vector<128xf32>
      %25 = vector.multi_reduction <add>, %24, %cst_22 [0] : vector<512x128xf32> to vector<128xf32>
      %26 = vector.shape_cast %25 : vector<128xf32> to vector<1x128xf32>
      %27 = arith.addf %23, %26 : vector<1x128xf32>
      %c0_23 = arith.constant 0 : index
      %c0_24 = arith.constant 0 : index
      %28 = vector.load %arg7[%c0_23, %c0_24] : memref<1x128xf32, #tpu.memory_space<vmem>>, vector<1x128xf32>
      tpu.vector_store %arg7[%c0_23, %c0_24], %27 {strides = array<i32>} : memref<1x128xf32, #tpu.memory_space<vmem>>, vector<1x128xf32>,
    } else {
    }
    return
  }
  func.func @transform_0(%arg0: i32, %arg1: i32, %arg2: i32) -> (i32, i32) {
    %c0_i32 = arith.constant 0 : i32
    return %arg1, %arg2 : i32, i32
  }
  func.func @transform_1(%arg0: i32, %arg1: i32, %arg2: i32) -> (i32, i32) {
    %c0_i32 = arith.constant 0 : i32
    return %arg2, %arg0 : i32, i32
  }
  func.func @transform_2(%arg0: i32, %arg1: i32, %arg2: i32) -> (i32, i32) {
    %c0_i32 = arith.constant 0 : i32
    return %arg1, %arg0 : i32, i32
  }
  func.func @transform_3(%arg0: i32, %arg1: i32, %arg2: i32) -> (i32, i32) {
    %c0_i32 = arith.constant 0 : i32
    %c0_i32_0 = arith.constant 0 : i32
    return %c0_i32, %arg0 : i32, i32
  }
  func.func @transform_4(%arg0: i32, %arg1: i32, %arg2: i32) -> (i32, i32) {
    %c0_i32 = arith.constant 0 : i32
    %c0_i32_0 = arith.constant 0 : i32
    return %c0_i32, %arg0 : i32, i32
  }
}

module attributes {stable_mosaic.version = 11 : i64} {
  func.func @_affine_kernel(%arg0: i32, %arg1: memref<1024x64xf32, #tpu.memory_space<vmem>>, %arg2: memref<1x64xf32, #tpu.memory_space<vmem>>, %arg3: memref<1x64xf32, #tpu.memory_space<vmem>>, %arg4: memref<1024x64xf32, #tpu.memory_space<vmem>>) attributes {dimension_semantics = [#tpu.dimension_semantics<parallel>], iteration_bounds = array<i64: 1>, scalar_prefetch = 0 : i64, scratch_operands = 0 : i64, tpu.core_type = #tpu.core_type<tc>, window_params = [{transform_indices = @transform_0, window_bounds = array<i64: 1024, 64>}, {pipeline_mode = #tpu.pipeline_mode<synchronous>, transform_indices = @transform_1, window_bounds = array<i64: 1, 64>}, {pipeline_mode = #tpu.pipeline_mode<synchronous>, transform_indices = @transform_2, window_bounds = array<i64: 1, 64>}, {transform_indices = @transform_3, window_bounds = array<i64: 1024, 64>}]} {
    %c0 = arith.constant 0 : index
    %c0_0 = arith.constant 0 : index
    %0 = vector.load %arg1[%c0, %c0_0] : memref<1024x64xf32, #tpu.memory_space<vmem>>, vector<1024x64xf32>
    %c0_1 = arith.constant 0 : index
    %c0_2 = arith.constant 0 : index
    %1 = vector.load %arg2[%c0_1, %c0_2] : memref<1x64xf32, #tpu.memory_space<vmem>>, vector<1x64xf32>
    %2 = vector.broadcast %1 : vector<1x64xf32> to vector<1024x64xf32>
    %3 = arith.mulf %0, %2 : vector<1024x64xf32>
    %c0_3 = arith.constant 0 : index
    %c0_4 = arith.constant 0 : index
    %4 = vector.load %arg3[%c0_3, %c0_4] : memref<1x64xf32, #tpu.memory_space<vmem>>, vector<1x64xf32>
    %5 = vector.broadcast %4 : vector<1x64xf32> to vector<1024x64xf32>
    %6 = arith.addf %3, %5 : vector<1024x64xf32>
    %cst = arith.constant 0.000000e+00 : f32
    %7 = vector.broadcast %cst : f32 to vector<1024x64xf32>
    %8 = arith.maximumf %6, %7 : vector<1024x64xf32>
    %c0_5 = arith.constant 0 : index
    %c0_6 = arith.constant 0 : index
    %9 = vector.load %arg4[%c0_5, %c0_6] : memref<1024x64xf32, #tpu.memory_space<vmem>>, vector<1024x64xf32>
    tpu.vector_store %arg4[%c0_5, %c0_6], %8 {strides = array<i32>} : memref<1024x64xf32, #tpu.memory_space<vmem>>, vector<1024x64xf32>,
    return
  }
  func.func @transform_0(%arg0: i32) -> (i32, i32) {
    %c0_i32 = arith.constant 0 : i32
    %c0_i32_0 = arith.constant 0 : i32
    return %arg0, %c0_i32 : i32, i32
  }
  func.func @transform_1(%arg0: i32) -> (i32, i32) {
    %c0_i32 = arith.constant 0 : i32
    %c0_i32_0 = arith.constant 0 : i32
    %c0_i32_1 = arith.constant 0 : i32
    return %c0_i32, %c0_i32_0 : i32, i32
  }
  func.func @transform_2(%arg0: i32) -> (i32, i32) {
    %c0_i32 = arith.constant 0 : i32
    %c0_i32_0 = arith.constant 0 : i32
    %c0_i32_1 = arith.constant 0 : i32
    return %c0_i32, %c0_i32_0 : i32, i32
  }
  func.func @transform_3(%arg0: i32) -> (i32, i32) {
    %c0_i32 = arith.constant 0 : i32
    %c0_i32_0 = arith.constant 0 : i32
    return %arg0, %c0_i32 : i32, i32
  }
}

module attributes {stable_mosaic.version = 11 : i64} {
  func.func @_mm_stats_kernel(%arg0: i32, %arg1: i32, %arg2: i32, %arg3: memref<256x128xbf16, #tpu.memory_space<vmem>>, %arg4: memref<128x128xbf16, #tpu.memory_space<vmem>>, %arg5: memref<256x128xf32, #tpu.memory_space<vmem>>, %arg6: memref<1x128xf32, #tpu.memory_space<vmem>>, %arg7: memref<1x128xf32, #tpu.memory_space<vmem>>) attributes {dimension_semantics = [#tpu.dimension_semantics<parallel>, #tpu.dimension_semantics<arbitrary>, #tpu.dimension_semantics<arbitrary>], iteration_bounds = array<i64: 1, 1, 5>, scalar_prefetch = 0 : i64, scratch_operands = 0 : i64, tpu.core_type = #tpu.core_type<tc>, window_params = [{transform_indices = @transform_0, window_bounds = array<i64: 256, 128>}, {transform_indices = @transform_1, window_bounds = array<i64: 128, 128>}, {transform_indices = @transform_2, window_bounds = array<i64: 256, 128>}, {transform_indices = @transform_3, window_bounds = array<i64: 1, 128>}, {transform_indices = @transform_4, window_bounds = array<i64: 1, 128>}]} {
    %c0_i32 = arith.constant 0 : i32
    %0 = arith.cmpi eq, %arg2, %c0_i32 : i32
    %1 = arith.extui %0 : i1 to i32
    %c0_i32_0 = arith.constant 0 : i32
    %2 = arith.cmpi ne, %1, %c0_i32_0 : i32
    scf.if %2 {
      %cst_12 = arith.constant 0.000000e+00 : f32
      %17 = vector.broadcast %cst_12 : f32 to vector<256x128xf32>
      %c0_13 = arith.constant 0 : index
      %c0_14 = arith.constant 0 : index
      %18 = vector.load %arg5[%c0_13, %c0_14] : memref<256x128xf32, #tpu.memory_space<vmem>>, vector<256x128xf32>
      tpu.vector_store %arg5[%c0_13, %c0_14], %17 {strides = array<i32>} : memref<256x128xf32, #tpu.memory_space<vmem>>, vector<256x128xf32>,
    } else {
    }
    %c0_i32_1 = arith.constant 0 : i32
    %3 = arith.cmpi eq, %arg1, %c0_i32_1 : i32
    %c0_i32_2 = arith.constant 0 : i32
    %4 = arith.cmpi eq, %arg2, %c0_i32_2 : i32
    %5 = arith.andi %3, %4 : i1
    %6 = arith.extui %5 : i1 to i32
    %c0_i32_3 = arith.constant 0 : i32
    %7 = arith.cmpi ne, %6, %c0_i32_3 : i32
    scf.if %7 {
      %cst_12 = arith.constant 0.000000e+00 : f32
      %17 = vector.broadcast %cst_12 : f32 to vector<1x128xf32>
      %c0_13 = arith.constant 0 : index
      %c0_14 = arith.constant 0 : index
      %18 = vector.load %arg6[%c0_13, %c0_14] : memref<1x128xf32, #tpu.memory_space<vmem>>, vector<1x128xf32>
      tpu.vector_store %arg6[%c0_13, %c0_14], %17 {strides = array<i32>} : memref<1x128xf32, #tpu.memory_space<vmem>>, vector<1x128xf32>,
      %cst_15 = arith.constant 0.000000e+00 : f32
      %19 = vector.broadcast %cst_15 : f32 to vector<1x128xf32>
      %c0_16 = arith.constant 0 : index
      %c0_17 = arith.constant 0 : index
      %20 = vector.load %arg7[%c0_16, %c0_17] : memref<1x128xf32, #tpu.memory_space<vmem>>, vector<1x128xf32>
      tpu.vector_store %arg7[%c0_16, %c0_17], %19 {strides = array<i32>} : memref<1x128xf32, #tpu.memory_space<vmem>>, vector<1x128xf32>,
    } else {
    }
    %c0 = arith.constant 0 : index
    %c0_4 = arith.constant 0 : index
    %8 = vector.load %arg5[%c0, %c0_4] : memref<256x128xf32, #tpu.memory_space<vmem>>, vector<256x128xf32>
    %c0_5 = arith.constant 0 : index
    %c0_6 = arith.constant 0 : index
    %9 = vector.load %arg3[%c0_5, %c0_6] : memref<256x128xbf16, #tpu.memory_space<vmem>>, vector<256x128xbf16>
    %c0_7 = arith.constant 0 : index
    %c0_8 = arith.constant 0 : index
    %10 = vector.load %arg4[%c0_7, %c0_8] : memref<128x128xbf16, #tpu.memory_space<vmem>>, vector<128x128xbf16>
    %cst = arith.constant dense<0.000000e+00> : vector<256x128xf32>
    %11 = tpu.matmul %9, %10, %cst {dimension_numbers = #tpu.dot_dimension_numbers<[1], [0], [0], [1], [0, 0, 1, 1], [], []>} : vector<256x128xbf16>, vector<128x128xbf16>, vector<256x128xf32> -> vector<256x128xf32>
    %12 = arith.addf %8, %11 : vector<256x128xf32>
    %c0_9 = arith.constant 0 : index
    %c0_10 = arith.constant 0 : index
    %13 = vector.load %arg5[%c0_9, %c0_10] : memref<256x128xf32, #tpu.memory_space<vmem>>, vector<256x128xf32>
    tpu.vector_store %arg5[%c0_9, %c0_10], %12 {strides = array<i32>} : memref<256x128xf32, #tpu.memory_space<vmem>>, vector<256x128xf32>,
    %c4_i32 = arith.constant 4 : i32
    %14 = arith.cmpi eq, %arg2, %c4_i32 : i32
    %15 = arith.extui %14 : i1 to i32
    %c0_i32_11 = arith.constant 0 : i32
    %16 = arith.cmpi ne, %15, %c0_i32_11 : i32
    scf.if %16 {
      %c0_12 = arith.constant 0 : index
      %c0_13 = arith.constant 0 : index
      %17 = vector.load %arg5[%c0_12, %c0_13] : memref<256x128xf32, #tpu.memory_space<vmem>>, vector<256x128xf32>
      %c0_14 = arith.constant 0 : index
      %c0_15 = arith.constant 0 : index
      %18 = vector.load %arg6[%c0_14, %c0_15] : memref<1x128xf32, #tpu.memory_space<vmem>>, vector<1x128xf32>
      %cst_16 = arith.constant dense<0.000000e+00> : vector<128xf32>
      %19 = vector.multi_reduction <add>, %17, %cst_16 [0] : vector<256x128xf32> to vector<128xf32>
      %20 = vector.shape_cast %19 : vector<128xf32> to vector<1x128xf32>
      %21 = arith.addf %18, %20 : vector<1x128xf32>
      %c0_17 = arith.constant 0 : index
      %c0_18 = arith.constant 0 : index
      %22 = vector.load %arg6[%c0_17, %c0_18] : memref<1x128xf32, #tpu.memory_space<vmem>>, vector<1x128xf32>
      tpu.vector_store %arg6[%c0_17, %c0_18], %21 {strides = array<i32>} : memref<1x128xf32, #tpu.memory_space<vmem>>, vector<1x128xf32>,
      %c0_19 = arith.constant 0 : index
      %c0_20 = arith.constant 0 : index
      %23 = vector.load %arg7[%c0_19, %c0_20] : memref<1x128xf32, #tpu.memory_space<vmem>>, vector<1x128xf32>
      %24 = arith.mulf %17, %17 : vector<256x128xf32>
      %cst_21 = arith.constant dense<0.000000e+00> : vector<128xf32>
      %25 = vector.multi_reduction <add>, %24, %cst_21 [0] : vector<256x128xf32> to vector<128xf32>
      %26 = vector.shape_cast %25 : vector<128xf32> to vector<1x128xf32>
      %27 = arith.addf %23, %26 : vector<1x128xf32>
      %c0_22 = arith.constant 0 : index
      %c0_23 = arith.constant 0 : index
      %28 = vector.load %arg7[%c0_22, %c0_23] : memref<1x128xf32, #tpu.memory_space<vmem>>, vector<1x128xf32>
      tpu.vector_store %arg7[%c0_22, %c0_23], %27 {strides = array<i32>} : memref<1x128xf32, #tpu.memory_space<vmem>>, vector<1x128xf32>,
    } else {
    }
    return
  }
  func.func @transform_0(%arg0: i32, %arg1: i32, %arg2: i32) -> (i32, i32) {
    %c0_i32 = arith.constant 0 : i32
    return %arg1, %arg2 : i32, i32
  }
  func.func @transform_1(%arg0: i32, %arg1: i32, %arg2: i32) -> (i32, i32) {
    %c0_i32 = arith.constant 0 : i32
    return %arg2, %arg0 : i32, i32
  }
  func.func @transform_2(%arg0: i32, %arg1: i32, %arg2: i32) -> (i32, i32) {
    %c0_i32 = arith.constant 0 : i32
    return %arg1, %arg0 : i32, i32
  }
  func.func @transform_3(%arg0: i32, %arg1: i32, %arg2: i32) -> (i32, i32) {
    %c0_i32 = arith.constant 0 : i32
    %c0_i32_0 = arith.constant 0 : i32
    return %c0_i32, %arg0 : i32, i32
  }
  func.func @transform_4(%arg0: i32, %arg1: i32, %arg2: i32) -> (i32, i32) {
    %c0_i32 = arith.constant 0 : i32
    %c0_i32_0 = arith.constant 0 : i32
    return %c0_i32, %arg0 : i32, i32
  }
}

module attributes {stable_mosaic.version = 11 : i64} {
  func.func @_affine_kernel(%arg0: i32, %arg1: memref<256x64xf32, #tpu.memory_space<vmem>>, %arg2: memref<1x64xf32, #tpu.memory_space<vmem>>, %arg3: memref<1x64xf32, #tpu.memory_space<vmem>>, %arg4: memref<256x64xf32, #tpu.memory_space<vmem>>) attributes {dimension_semantics = [#tpu.dimension_semantics<parallel>], iteration_bounds = array<i64: 1>, scalar_prefetch = 0 : i64, scratch_operands = 0 : i64, tpu.core_type = #tpu.core_type<tc>, window_params = [{transform_indices = @transform_0, window_bounds = array<i64: 256, 64>}, {pipeline_mode = #tpu.pipeline_mode<synchronous>, transform_indices = @transform_1, window_bounds = array<i64: 1, 64>}, {pipeline_mode = #tpu.pipeline_mode<synchronous>, transform_indices = @transform_2, window_bounds = array<i64: 1, 64>}, {transform_indices = @transform_3, window_bounds = array<i64: 256, 64>}]} {
    %c0 = arith.constant 0 : index
    %c0_0 = arith.constant 0 : index
    %0 = vector.load %arg1[%c0, %c0_0] : memref<256x64xf32, #tpu.memory_space<vmem>>, vector<256x64xf32>
    %c0_1 = arith.constant 0 : index
    %c0_2 = arith.constant 0 : index
    %1 = vector.load %arg2[%c0_1, %c0_2] : memref<1x64xf32, #tpu.memory_space<vmem>>, vector<1x64xf32>
    %2 = vector.broadcast %1 : vector<1x64xf32> to vector<256x64xf32>
    %3 = arith.mulf %0, %2 : vector<256x64xf32>
    %c0_3 = arith.constant 0 : index
    %c0_4 = arith.constant 0 : index
    %4 = vector.load %arg3[%c0_3, %c0_4] : memref<1x64xf32, #tpu.memory_space<vmem>>, vector<1x64xf32>
    %5 = vector.broadcast %4 : vector<1x64xf32> to vector<256x64xf32>
    %6 = arith.addf %3, %5 : vector<256x64xf32>
    %cst = arith.constant 0.000000e+00 : f32
    %7 = vector.broadcast %cst : f32 to vector<256x64xf32>
    %8 = arith.maximumf %6, %7 : vector<256x64xf32>
    %c0_5 = arith.constant 0 : index
    %c0_6 = arith.constant 0 : index
    %9 = vector.load %arg4[%c0_5, %c0_6] : memref<256x64xf32, #tpu.memory_space<vmem>>, vector<256x64xf32>
    tpu.vector_store %arg4[%c0_5, %c0_6], %8 {strides = array<i32>} : memref<256x64xf32, #tpu.memory_space<vmem>>, vector<256x64xf32>,
    return
  }
  func.func @transform_0(%arg0: i32) -> (i32, i32) {
    %c0_i32 = arith.constant 0 : i32
    %c0_i32_0 = arith.constant 0 : i32
    return %arg0, %c0_i32 : i32, i32
  }
  func.func @transform_1(%arg0: i32) -> (i32, i32) {
    %c0_i32 = arith.constant 0 : i32
    %c0_i32_0 = arith.constant 0 : i32
    %c0_i32_1 = arith.constant 0 : i32
    return %c0_i32, %c0_i32_0 : i32, i32
  }
  func.func @transform_2(%arg0: i32) -> (i32, i32) {
    %c0_i32 = arith.constant 0 : i32
    %c0_i32_0 = arith.constant 0 : i32
    %c0_i32_1 = arith.constant 0 : i32
    return %c0_i32, %c0_i32_0 : i32, i32
  }
  func.func @transform_3(%arg0: i32) -> (i32, i32) {
    %c0_i32 = arith.constant 0 : i32
    %c0_i32_0 = arith.constant 0 : i32
    return %arg0, %c0_i32 : i32, i32
  }
}

module attributes {stable_mosaic.version = 11 : i64} {
  func.func @_mm_stats_kernel(%arg0: i32, %arg1: i32, %arg2: i32, %arg3: memref<256x128xbf16, #tpu.memory_space<vmem>>, %arg4: memref<128x256xbf16, #tpu.memory_space<vmem>>, %arg5: memref<256x256xf32, #tpu.memory_space<vmem>>, %arg6: memref<1x256xf32, #tpu.memory_space<vmem>>, %arg7: memref<1x256xf32, #tpu.memory_space<vmem>>) attributes {dimension_semantics = [#tpu.dimension_semantics<parallel>, #tpu.dimension_semantics<arbitrary>, #tpu.dimension_semantics<arbitrary>], iteration_bounds = array<i64: 1, 1, 1>, scalar_prefetch = 0 : i64, scratch_operands = 0 : i64, tpu.core_type = #tpu.core_type<tc>, window_params = [{transform_indices = @transform_0, window_bounds = array<i64: 256, 128>}, {transform_indices = @transform_1, window_bounds = array<i64: 128, 256>}, {transform_indices = @transform_2, window_bounds = array<i64: 256, 256>}, {transform_indices = @transform_3, window_bounds = array<i64: 1, 256>}, {transform_indices = @transform_4, window_bounds = array<i64: 1, 256>}]} {
    %c0_i32 = arith.constant 0 : i32
    %0 = arith.cmpi eq, %arg2, %c0_i32 : i32
    %1 = arith.extui %0 : i1 to i32
    %c0_i32_0 = arith.constant 0 : i32
    %2 = arith.cmpi ne, %1, %c0_i32_0 : i32
    scf.if %2 {
      %cst_13 = arith.constant 0.000000e+00 : f32
      %17 = vector.broadcast %cst_13 : f32 to vector<256x256xf32>
      %c0_14 = arith.constant 0 : index
      %c0_15 = arith.constant 0 : index
      %18 = vector.load %arg5[%c0_14, %c0_15] : memref<256x256xf32, #tpu.memory_space<vmem>>, vector<256x256xf32>
      tpu.vector_store %arg5[%c0_14, %c0_15], %17 {strides = array<i32>} : memref<256x256xf32, #tpu.memory_space<vmem>>, vector<256x256xf32>,
    } else {
    }
    %c0_i32_1 = arith.constant 0 : i32
    %3 = arith.cmpi eq, %arg1, %c0_i32_1 : i32
    %c0_i32_2 = arith.constant 0 : i32
    %4 = arith.cmpi eq, %arg2, %c0_i32_2 : i32
    %5 = arith.andi %3, %4 : i1
    %6 = arith.extui %5 : i1 to i32
    %c0_i32_3 = arith.constant 0 : i32
    %7 = arith.cmpi ne, %6, %c0_i32_3 : i32
    scf.if %7 {
      %cst_13 = arith.constant 0.000000e+00 : f32
      %17 = vector.broadcast %cst_13 : f32 to vector<1x256xf32>
      %c0_14 = arith.constant 0 : index
      %c0_15 = arith.constant 0 : index
      %18 = vector.load %arg6[%c0_14, %c0_15] : memref<1x256xf32, #tpu.memory_space<vmem>>, vector<1x256xf32>
      tpu.vector_store %arg6[%c0_14, %c0_15], %17 {strides = array<i32>} : memref<1x256xf32, #tpu.memory_space<vmem>>, vector<1x256xf32>,
      %cst_16 = arith.constant 0.000000e+00 : f32
      %19 = vector.broadcast %cst_16 : f32 to vector<1x256xf32>
      %c0_17 = arith.constant 0 : index
      %c0_18 = arith.constant 0 : index
      %20 = vector.load %arg7[%c0_17, %c0_18] : memref<1x256xf32, #tpu.memory_space<vmem>>, vector<1x256xf32>
      tpu.vector_store %arg7[%c0_17, %c0_18], %19 {strides = array<i32>} : memref<1x256xf32, #tpu.memory_space<vmem>>, vector<1x256xf32>,
    } else {
    }
    %c0 = arith.constant 0 : index
    %c0_4 = arith.constant 0 : index
    %8 = vector.load %arg5[%c0, %c0_4] : memref<256x256xf32, #tpu.memory_space<vmem>>, vector<256x256xf32>
    %c0_5 = arith.constant 0 : index
    %c0_6 = arith.constant 0 : index
    %9 = vector.load %arg3[%c0_5, %c0_6] : memref<256x128xbf16, #tpu.memory_space<vmem>>, vector<256x128xbf16>
    %c0_7 = arith.constant 0 : index
    %c0_8 = arith.constant 0 : index
    %10 = vector.load %arg4[%c0_7, %c0_8] : memref<128x256xbf16, #tpu.memory_space<vmem>>, vector<128x256xbf16>
    %cst = arith.constant dense<0.000000e+00> : vector<256x256xf32>
    %11 = tpu.matmul %9, %10, %cst {dimension_numbers = #tpu.dot_dimension_numbers<[1], [0], [0], [1], [0, 0, 1, 1], [], []>} : vector<256x128xbf16>, vector<128x256xbf16>, vector<256x256xf32> -> vector<256x256xf32>
    %12 = arith.addf %8, %11 : vector<256x256xf32>
    %c0_9 = arith.constant 0 : index
    %c0_10 = arith.constant 0 : index
    %13 = vector.load %arg5[%c0_9, %c0_10] : memref<256x256xf32, #tpu.memory_space<vmem>>, vector<256x256xf32>
    tpu.vector_store %arg5[%c0_9, %c0_10], %12 {strides = array<i32>} : memref<256x256xf32, #tpu.memory_space<vmem>>, vector<256x256xf32>,
    %c0_i32_11 = arith.constant 0 : i32
    %14 = arith.cmpi eq, %arg2, %c0_i32_11 : i32
    %15 = arith.extui %14 : i1 to i32
    %c0_i32_12 = arith.constant 0 : i32
    %16 = arith.cmpi ne, %15, %c0_i32_12 : i32
    scf.if %16 {
      %c0_13 = arith.constant 0 : index
      %c0_14 = arith.constant 0 : index
      %17 = vector.load %arg5[%c0_13, %c0_14] : memref<256x256xf32, #tpu.memory_space<vmem>>, vector<256x256xf32>
      %c0_15 = arith.constant 0 : index
      %c0_16 = arith.constant 0 : index
      %18 = vector.load %arg6[%c0_15, %c0_16] : memref<1x256xf32, #tpu.memory_space<vmem>>, vector<1x256xf32>
      %cst_17 = arith.constant dense<0.000000e+00> : vector<256xf32>
      %19 = vector.multi_reduction <add>, %17, %cst_17 [0] : vector<256x256xf32> to vector<256xf32>
      %20 = vector.shape_cast %19 : vector<256xf32> to vector<1x256xf32>
      %21 = arith.addf %18, %20 : vector<1x256xf32>
      %c0_18 = arith.constant 0 : index
      %c0_19 = arith.constant 0 : index
      %22 = vector.load %arg6[%c0_18, %c0_19] : memref<1x256xf32, #tpu.memory_space<vmem>>, vector<1x256xf32>
      tpu.vector_store %arg6[%c0_18, %c0_19], %21 {strides = array<i32>} : memref<1x256xf32, #tpu.memory_space<vmem>>, vector<1x256xf32>,
      %c0_20 = arith.constant 0 : index
      %c0_21 = arith.constant 0 : index
      %23 = vector.load %arg7[%c0_20, %c0_21] : memref<1x256xf32, #tpu.memory_space<vmem>>, vector<1x256xf32>
      %24 = arith.mulf %17, %17 : vector<256x256xf32>
      %cst_22 = arith.constant dense<0.000000e+00> : vector<256xf32>
      %25 = vector.multi_reduction <add>, %24, %cst_22 [0] : vector<256x256xf32> to vector<256xf32>
      %26 = vector.shape_cast %25 : vector<256xf32> to vector<1x256xf32>
      %27 = arith.addf %23, %26 : vector<1x256xf32>
      %c0_23 = arith.constant 0 : index
      %c0_24 = arith.constant 0 : index
      %28 = vector.load %arg7[%c0_23, %c0_24] : memref<1x256xf32, #tpu.memory_space<vmem>>, vector<1x256xf32>
      tpu.vector_store %arg7[%c0_23, %c0_24], %27 {strides = array<i32>} : memref<1x256xf32, #tpu.memory_space<vmem>>, vector<1x256xf32>,
    } else {
    }
    return
  }
  func.func @transform_0(%arg0: i32, %arg1: i32, %arg2: i32) -> (i32, i32) {
    %c0_i32 = arith.constant 0 : i32
    return %arg1, %arg2 : i32, i32
  }
  func.func @transform_1(%arg0: i32, %arg1: i32, %arg2: i32) -> (i32, i32) {
    %c0_i32 = arith.constant 0 : i32
    return %arg2, %arg0 : i32, i32
  }
  func.func @transform_2(%arg0: i32, %arg1: i32, %arg2: i32) -> (i32, i32) {
    %c0_i32 = arith.constant 0 : i32
    return %arg1, %arg0 : i32, i32
  }
  func.func @transform_3(%arg0: i32, %arg1: i32, %arg2: i32) -> (i32, i32) {
    %c0_i32 = arith.constant 0 : i32
    %c0_i32_0 = arith.constant 0 : i32
    return %c0_i32, %arg0 : i32, i32
  }
  func.func @transform_4(%arg0: i32, %arg1: i32, %arg2: i32) -> (i32, i32) {
    %c0_i32 = arith.constant 0 : i32
    %c0_i32_0 = arith.constant 0 : i32
    return %c0_i32, %arg0 : i32, i32
  }
}

module attributes {stable_mosaic.version = 11 : i64} {
  func.func @_affine_kernel(%arg0: i32, %arg1: memref<256x256xf32, #tpu.memory_space<vmem>>, %arg2: memref<1x256xf32, #tpu.memory_space<vmem>>, %arg3: memref<1x256xf32, #tpu.memory_space<vmem>>, %arg4: memref<256x256xf32, #tpu.memory_space<vmem>>) attributes {dimension_semantics = [#tpu.dimension_semantics<parallel>], iteration_bounds = array<i64: 1>, scalar_prefetch = 0 : i64, scratch_operands = 0 : i64, tpu.core_type = #tpu.core_type<tc>, window_params = [{transform_indices = @transform_0, window_bounds = array<i64: 256, 256>}, {pipeline_mode = #tpu.pipeline_mode<synchronous>, transform_indices = @transform_1, window_bounds = array<i64: 1, 256>}, {pipeline_mode = #tpu.pipeline_mode<synchronous>, transform_indices = @transform_2, window_bounds = array<i64: 1, 256>}, {transform_indices = @transform_3, window_bounds = array<i64: 256, 256>}]} {
    %c0 = arith.constant 0 : index
    %c0_0 = arith.constant 0 : index
    %0 = vector.load %arg1[%c0, %c0_0] : memref<256x256xf32, #tpu.memory_space<vmem>>, vector<256x256xf32>
    %c0_1 = arith.constant 0 : index
    %c0_2 = arith.constant 0 : index
    %1 = vector.load %arg2[%c0_1, %c0_2] : memref<1x256xf32, #tpu.memory_space<vmem>>, vector<1x256xf32>
    %2 = vector.broadcast %1 : vector<1x256xf32> to vector<256x256xf32>
    %3 = arith.mulf %0, %2 : vector<256x256xf32>
    %c0_3 = arith.constant 0 : index
    %c0_4 = arith.constant 0 : index
    %4 = vector.load %arg3[%c0_3, %c0_4] : memref<1x256xf32, #tpu.memory_space<vmem>>, vector<1x256xf32>
    %5 = vector.broadcast %4 : vector<1x256xf32> to vector<256x256xf32>
    %6 = arith.addf %3, %5 : vector<256x256xf32>
    %c0_5 = arith.constant 0 : index
    %c0_6 = arith.constant 0 : index
    %7 = vector.load %arg4[%c0_5, %c0_6] : memref<256x256xf32, #tpu.memory_space<vmem>>, vector<256x256xf32>
    tpu.vector_store %arg4[%c0_5, %c0_6], %6 {strides = array<i32>} : memref<256x256xf32, #tpu.memory_space<vmem>>, vector<256x256xf32>,
    return
  }
  func.func @transform_0(%arg0: i32) -> (i32, i32) {
    %c0_i32 = arith.constant 0 : i32
    %c0_i32_0 = arith.constant 0 : i32
    return %arg0, %c0_i32 : i32, i32
  }
  func.func @transform_1(%arg0: i32) -> (i32, i32) {
    %c0_i32 = arith.constant 0 : i32
    %c0_i32_0 = arith.constant 0 : i32
    %c0_i32_1 = arith.constant 0 : i32
    return %c0_i32, %c0_i32_0 : i32, i32
  }
  func.func @transform_2(%arg0: i32) -> (i32, i32) {
    %c0_i32 = arith.constant 0 : i32
    %c0_i32_0 = arith.constant 0 : i32
    %c0_i32_1 = arith.constant 0 : i32
    return %c0_i32, %c0_i32_0 : i32, i32
  }
  func.func @transform_3(%arg0: i32) -> (i32, i32) {
    %c0_i32 = arith.constant 0 : i32
    %c0_i32_0 = arith.constant 0 : i32
    return %arg0, %c0_i32 : i32, i32
  }
}

module attributes {stable_mosaic.version = 11 : i64} {
  func.func @_affine_res_relu_kernel(%arg0: i32, %arg1: memref<256x256xf32, #tpu.memory_space<vmem>>, %arg2: memref<1x256xf32, #tpu.memory_space<vmem>>, %arg3: memref<1x256xf32, #tpu.memory_space<vmem>>, %arg4: memref<256x256xf32, #tpu.memory_space<vmem>>, %arg5: memref<256x256xf32, #tpu.memory_space<vmem>>) attributes {dimension_semantics = [#tpu.dimension_semantics<parallel>], iteration_bounds = array<i64: 1>, scalar_prefetch = 0 : i64, scratch_operands = 0 : i64, tpu.core_type = #tpu.core_type<tc>, window_params = [{transform_indices = @transform_0, window_bounds = array<i64: 256, 256>}, {pipeline_mode = #tpu.pipeline_mode<synchronous>, transform_indices = @transform_1, window_bounds = array<i64: 1, 256>}, {pipeline_mode = #tpu.pipeline_mode<synchronous>, transform_indices = @transform_2, window_bounds = array<i64: 1, 256>}, {transform_indices = @transform_3, window_bounds = array<i64: 256, 256>}, {transform_indices = @transform_4, window_bounds = array<i64: 256, 256>}]} {
    %c0 = arith.constant 0 : index
    %c0_0 = arith.constant 0 : index
    %0 = vector.load %arg1[%c0, %c0_0] : memref<256x256xf32, #tpu.memory_space<vmem>>, vector<256x256xf32>
    %c0_1 = arith.constant 0 : index
    %c0_2 = arith.constant 0 : index
    %1 = vector.load %arg2[%c0_1, %c0_2] : memref<1x256xf32, #tpu.memory_space<vmem>>, vector<1x256xf32>
    %2 = vector.broadcast %1 : vector<1x256xf32> to vector<256x256xf32>
    %3 = arith.mulf %0, %2 : vector<256x256xf32>
    %c0_3 = arith.constant 0 : index
    %c0_4 = arith.constant 0 : index
    %4 = vector.load %arg3[%c0_3, %c0_4] : memref<1x256xf32, #tpu.memory_space<vmem>>, vector<1x256xf32>
    %5 = vector.broadcast %4 : vector<1x256xf32> to vector<256x256xf32>
    %6 = arith.addf %3, %5 : vector<256x256xf32>
    %c0_5 = arith.constant 0 : index
    %c0_6 = arith.constant 0 : index
    %7 = vector.load %arg4[%c0_5, %c0_6] : memref<256x256xf32, #tpu.memory_space<vmem>>, vector<256x256xf32>
    %8 = arith.addf %6, %7 : vector<256x256xf32>
    %cst = arith.constant 0.000000e+00 : f32
    %9 = vector.broadcast %cst : f32 to vector<256x256xf32>
    %10 = arith.maximumf %8, %9 : vector<256x256xf32>
    %c0_7 = arith.constant 0 : index
    %c0_8 = arith.constant 0 : index
    %11 = vector.load %arg5[%c0_7, %c0_8] : memref<256x256xf32, #tpu.memory_space<vmem>>, vector<256x256xf32>
    tpu.vector_store %arg5[%c0_7, %c0_8], %10 {strides = array<i32>} : memref<256x256xf32, #tpu.memory_space<vmem>>, vector<256x256xf32>,
    return
  }
  func.func @transform_0(%arg0: i32) -> (i32, i32) {
    %c0_i32 = arith.constant 0 : i32
    %c0_i32_0 = arith.constant 0 : i32
    return %arg0, %c0_i32 : i32, i32
  }
  func.func @transform_1(%arg0: i32) -> (i32, i32) {
    %c0_i32 = arith.constant 0 : i32
    %c0_i32_0 = arith.constant 0 : i32
    %c0_i32_1 = arith.constant 0 : i32
    return %c0_i32, %c0_i32_0 : i32, i32
  }
  func.func @transform_2(%arg0: i32) -> (i32, i32) {
    %c0_i32 = arith.constant 0 : i32
    %c0_i32_0 = arith.constant 0 : i32
    %c0_i32_1 = arith.constant 0 : i32
    return %c0_i32, %c0_i32_0 : i32, i32
  }
  func.func @transform_3(%arg0: i32) -> (i32, i32) {
    %c0_i32 = arith.constant 0 : i32
    %c0_i32_0 = arith.constant 0 : i32
    return %arg0, %c0_i32 : i32, i32
  }
  func.func @transform_4(%arg0: i32) -> (i32, i32) {
    %c0_i32 = arith.constant 0 : i32
    %c0_i32_0 = arith.constant 0 : i32
    return %arg0, %c0_i32 : i32, i32
  }
}

</mosaic_0001>

<llo_original>
// kernel: bottleneck3d_forward.9
$region0: #{bottleneck3d_forward.9}
  #allocation0 [shape = 'u32[]', space=smem, size = 0x4, offset = 0x4, fixed_abs, tag = 'smem constant byte address 0x4 - core index']
  #allocation1 [shape = 'u32[144,128]{1,0:T(1,128)}', space=vmem, size = 0x12000, scoped, tag = 'internal scratch']
  %s0 = inlined_call_operand.vmem [shape: f32[1024,64], index: 0, kind: input, shape index: {}]
  %s1 = inlined_call_operand.vmem [shape: f32[1,64], index: 1, kind: input, shape index: {}]
  %s2 = inlined_call_operand.vmem [shape: f32[1,64], index: 2, kind: input, shape index: {}]
  %s3 = inlined_call_operand.vmem [shape: f32[1024,64], index: 3, kind: output, shape index: {}]
  %s4 = sld [smem:[#allocation0]]
  $region22: #{bottleneck3d_forward.9} parent=0
    _
  %s6 = ssub.s32 1, %s4
  %s7 = scalar_select 0, %s6, %s4
  // Predicated region
  $region2: #{bottleneck3d_forward.9} parent=0 // pred_check
    _
  $region3: #{bottleneck3d_forward.9} parent=0 // pred_check_branch
    %9 = sbr.rel (0) target = $region5
  $region4: #{bottleneck3d_forward.9} parent=0 // pred_region
    _
  $region5: #{bottleneck3d_forward.9} parent=0 // pred_fallthru
    _
  // Predicated region
  $region6: #{bottleneck3d_forward.9} parent=0 // pred_check
    _
  $region7: #{bottleneck3d_forward.9} parent=0 // pred_check_branch
    %11 = sbr.rel (0) target = $region9
  $region8: #{bottleneck3d_forward.9} parent=0 // pred_region
    _
  $region9: #{bottleneck3d_forward.9} parent=0 // pred_fallthru
    _
  // Predicated region
  $region10: #{bottleneck3d_forward.9} parent=0 // pred_check
    _
  $region11: #{bottleneck3d_forward.9} parent=0 // pred_check_branch
    %13 = sbr.rel (0) target = $region13
  $region12: #{bottleneck3d_forward.9} parent=0 // pred_region
    _
  $region13: #{bottleneck3d_forward.9} parent=0 // pred_fallthru
    _
  %v14 = vld [vmem:[%s0] sm:$0xff]
  %v15 = vld [vmem:[%s0 + $0x8] sm:$0xff]
  %v16 = vld [vmem:[%s0 + $0x10] sm:$0xff]
  %v17 = vld [vmem:[%s0 + $0x18] sm:$0xff]
  %v18 = vld [vmem:[%s0 + $0x20] sm:$0xff]
  %v19 = vld [vmem:[%s0 + $0x28] sm:$0xff]
  %v20 = vld [vmem:[%s0 + $0x30] sm:$0xff]
  %v21 = vld [vmem:[%s0 + $0x38] sm:$0xff]
  %v22 = vld [vmem:[%s0 + $0x40] sm:$0xff]
  %v23 = vld [vmem:[%s0 + $0x48] sm:$0xff]
  %v24 = vld [vmem:[%s0 + $0x50] sm:$0xff]
  %v25 = vld [vmem:[%s0 + $0x58] sm:$0xff]
  %v26 = vld [vmem:[%s0 + $0x60] sm:$0xff]
  %v27 = vld [vmem:[%s0 + $0x68] sm:$0xff]
  %v28 = vld [vmem:[%s0 + $0x70] sm:$0xff]
  %v29 = vld [vmem:[%s0 + $0x78] sm:$0xff]
  %v30 = vld [vmem:[%s0 + $0x80] sm:$0xff]
  %v31 = vld [vmem:[%s0 + $0x88] sm:$0xff]
  %v32 = vld [vmem:[%s0 + $0x90] sm:$0xff]
  %v33 = vld [vmem:[%s0 + $0x98] sm:$0xff]
  %v34 = vld [vmem:[%s0 + $0xa0] sm:$0xff]
  %v35 = vld [vmem:[%s0 + $0xa8] sm:$0xff]
  %v36 = vld [vmem:[%s0 + $0xb0] sm:$0xff]
  %v37 = vld [vmem:[%s0 + $0xb8] sm:$0xff]
  %v38 = vld [vmem:[%s0 + $0xc0] sm:$0xff]
  %v39 = vld [vmem:[%s0 + $0xc8] sm:$0xff]
  %v40 = vld [vmem:[%s0 + $0xd0] sm:$0xff]
  %v41 = vld [vmem:[%s0 + $0xd8] sm:$0xff]
  %v42 = vld [vmem:[%s0 + $0xe0] sm:$0xff]
  %v43 = vld [vmem:[%s0 + $0xe8] sm:$0xff]
  %v44 = vld [vmem:[%s0 + $0xf0] sm:$0xff]
  %v45 = vld [vmem:[%s0 + $0xf8] sm:$0xff]
  %v46 = vld [vmem:[%s0 + $0x100] sm:$0xff]
  %v47 = vld [vmem:[%s0 + $0x108] sm:$0xff]
  %v48 = vld [vmem:[%s0 + $0x110] sm:$0xff]
  %v49 = vld [vmem:[%s0 + $0x118] sm:$0xff]
  %v50 = vld [vmem:[%s0 + $0x120] sm:$0xff]
  %v51 = vld [vmem:[%s0 + $0x128] sm:$0xff]
  %v52 = vld [vmem:[%s0 + $0x130] sm:$0xff]
  %v53 = vld [vmem:[%s0 + $0x138] sm:$0xff]
  %v54 = vld [vmem:[%s0 + $0x140] sm:$0xff]
  %v55 = vld [vmem:[%s0 + $0x148] sm:$0xff]
  %v56 = vld [vmem:[%s0 + $0x150] sm:$0xff]
  %v57 = vld [vmem:[%s0 + $0x158] sm:$0xff]
  %v58 = vld [vmem:[%s0 + $0x160] sm:$0xff]
  %v59 = vld [vmem:[%s0 + $0x168] sm:$0xff]
  %v60 = vld [vmem:[%s0 + $0x170] sm:$0xff]
  %v61 = vld [vmem:[%s0 + $0x178] sm:$0xff]
  %v62 = vld [vmem:[%s0 + $0x180] sm:$0xff]
  %v63 = vld [vmem:[%s0 + $0x188] sm:$0xff]
  %v64 = vld [vmem:[%s0 + $0x190] sm:$0xff]
  %v65 = vld [vmem:[%s0 + $0x198] sm:$0xff]
  %v66 = vld [vmem:[%s0 + $0x1a0] sm:$0xff]
  %v67 = vld [vmem:[%s0 + $0x1a8] sm:$0xff]
  %v68 = vld [vmem:[%s0 + $0x1b0] sm:$0xff]
  %v69 = vld [vmem:[%s0 + $0x1b8] sm:$0xff]
  %v70 = vld [vmem:[%s0 + $0x1c0] sm:$0xff]
  %v71 = vld [vmem:[%s0 + $0x1c8] sm:$0xff]
  %v72 = vld [vmem:[%s0 + $0x1d0] sm:$0xff]
  %v73 = vld [vmem:[%s0 + $0x1d8] sm:$0xff]
  %v74 = vld [vmem:[%s0 + $0x1e0] sm:$0xff]
  %v75 = vld [vmem:[%s0 + $0x1e8] sm:$0xff]
  %v76 = vld [vmem:[%s0 + $0x1f0] sm:$0xff]
  %v77 = vld [vmem:[%s0 + $0x1f8] sm:$0xff]
  %v78 = vld [vmem:[%s0 + $0x200] sm:$0xff]
  %v79 = vld [vmem:[%s0 + $0x208] sm:$0xff]
  %v80 = vld [vmem:[%s0 + $0x210] sm:$0xff]
  %v81 = vld [vmem:[%s0 + $0x218] sm:$0xff]
  %v82 = vld [vmem:[%s0 + $0x220] sm:$0xff]
  %v83 = vld [vmem:[%s0 + $0x228] sm:$0xff]
  %v84 = vld [vmem:[%s0 + $0x230] sm:$0xff]
  %v85 = vld [vmem:[%s0 + $0x238] sm:$0xff]
  %v86 = vld [vmem:[%s0 + $0x240] sm:$0xff]
  %v87 = vld [vmem:[%s0 + $0x248] sm:$0xff]
  %v88 = vld [vmem:[%s0 + $0x250] sm:$0xff]
  %v89 = vld [vmem:[%s0 + $0x258] sm:$0xff]
  %v90 = vld [vmem:[%s0 + $0x260] sm:$0xff]
  %v91 = vld [vmem:[%s0 + $0x268] sm:$0xff]
  %v92 = vld [vmem:[%s0 + $0x270] sm:$0xff]
  %v93 = vld [vmem:[%s0 + $0x278] sm:$0xff]
  %v94 = vld [vmem:[%s0 + $0x280] sm:$0xff]
  %v95 = vld [vmem:[%s0 + $0x288] sm:$0xff]
  %v96 = vld [vmem:[%s0 + $0x290] sm:$0xff]
  %v97 = vld [vmem:[%s0 + $0x298] sm:$0xff]
  %v98 = vld [vmem:[%s0 + $0x2a0] sm:$0xff]
  %v99 = vld [vmem:[%s0 + $0x2a8] sm:$0xff]
  %v100 = vld [vmem:[%s0 + $0x2b0] sm:$0xff]
  %v101 = vld [vmem:[%s0 + $0x2b8] sm:$0xff]
  %v102 = vld [vmem:[%s0 + $0x2c0] sm:$0xff]
  %v103 = vld [vmem:[%s0 + $0x2c8] sm:$0xff]
  %v104 = vld [vmem:[%s0 + $0x2d0] sm:$0xff]
  %v105 = vld [vmem:[%s0 + $0x2d8] sm:$0xff]
  %v106 = vld [vmem:[%s0 + $0x2e0] sm:$0xff]
  %v107 = vld [vmem:[%s0 + $0x2e8] sm:$0xff]
  %v108 = vld [vmem:[%s0 + $0x2f0] sm:$0xff]
  %v109 = vld [vmem:[%s0 + $0x2f8] sm:$0xff]
  %v110 = vld [vmem:[%s0 + $0x300] sm:$0xff]
  %v111 = vld [vmem:[%s0 + $0x308] sm:$0xff]
  %v112 = vld [vmem:[%s0 + $0x310] sm:$0xff]
  %v113 = vld [vmem:[%s0 + $0x318] sm:$0xff]
  %v114 = vld [vmem:[%s0 + $0x320] sm:$0xff]
  %v115 = vld [vmem:[%s0 + $0x328] sm:$0xff]
  %v116 = vld [vmem:[%s0 + $0x330] sm:$0xff]
  %v117 = vld [vmem:[%s0 + $0x338] sm:$0xff]
  %v118 = vld [vmem:[%s0 + $0x340] sm:$0xff]
  %v119 = vld [vmem:[%s0 + $0x348] sm:$0xff]
  %v120 = vld [vmem:[%s0 + $0x350] sm:$0xff]
  %v121 = vld [vmem:[%s0 + $0x358] sm:$0xff]
  %v122 = vld [vmem:[%s0 + $0x360] sm:$0xff]
  %v123 = vld [vmem:[%s0 + $0x368] sm:$0xff]
  %v124 = vld [vmem:[%s0 + $0x370] sm:$0xff]
  %v125 = vld [vmem:[%s0 + $0x378] sm:$0xff]
  %v126 = vld [vmem:[%s0 + $0x380] sm:$0xff]
  %v127 = vld [vmem:[%s0 + $0x388] sm:$0xff]
  %v128 = vld [vmem:[%s0 + $0x390] sm:$0xff]
  %v129 = vld [vmem:[%s0 + $0x398] sm:$0xff]
  %v130 = vld [vmem:[%s0 + $0x3a0] sm:$0xff]
  %v131 = vld [vmem:[%s0 + $0x3a8] sm:$0xff]
  %v132 = vld [vmem:[%s0 + $0x3b0] sm:$0xff]
  %v133 = vld [vmem:[%s0 + $0x3b8] sm:$0xff]
  %v134 = vld [vmem:[%s0 + $0x3c0] sm:$0xff]
  %v135 = vld [vmem:[%s0 + $0x3c8] sm:$0xff]
  %v136 = vld [vmem:[%s0 + $0x3d0] sm:$0xff]
  %v137 = vld [vmem:[%s0 + $0x3d8] sm:$0xff]
  %v138 = vld [vmem:[%s0 + $0x3e0] sm:$0xff]
  %v139 = vld [vmem:[%s0 + $0x3e8] sm:$0xff]
  %v140 = vld [vmem:[%s0 + $0x3f0] sm:$0xff]
  %v141 = vld [vmem:[%s0 + $0x3f8] sm:$0xff]
  %v142 = vld [vmem:[%s1] sm:$0x1]
  %v144 = vlaneseq
  %v145 = vshrl.u32 %v144, 7
  %v146 = vsub.s32 0, %v145
  %v147 = vrot.slane %v142, %v146
  %v149 = vmul.f32 %v14, %v147
  %v150 = vmul.f32 %v15, %v147
  %v151 = vmul.f32 %v16, %v147
  %v152 = vmul.f32 %v17, %v147
  %v153 = vmul.f32 %v18, %v147
  %v154 = vmul.f32 %v19, %v147
  %v155 = vmul.f32 %v20, %v147
  %v156 = vmul.f32 %v21, %v147
  %v157 = vmul.f32 %v22, %v147
  %v158 = vmul.f32 %v23, %v147
  %v159 = vmul.f32 %v24, %v147
  %v160 = vmul.f32 %v25, %v147
  %v161 = vmul.f32 %v26, %v147
  %v162 = vmul.f32 %v27, %v147
  %v163 = vmul.f32 %v28, %v147
  %v164 = vmul.f32 %v29, %v147
  %v165 = vmul.f32 %v30, %v147
  %v166 = vmul.f32 %v31, %v147
  %v167 = vmul.f32 %v32, %v147
  %v168 = vmul.f32 %v33, %v147
  %v169 = vmul.f32 %v34, %v147
  %v170 = vmul.f32 %v35, %v147
  %v171 = vmul.f32 %v36, %v147
  %v172 = vmul.f32 %v37, %v147
  %v173 = vmul.f32 %v38, %v147
  %v174 = vmul.f32 %v39, %v147
  %v175 = vmul.f32 %v40, %v147
  %v176 = vmul.f32 %v41, %v147
  %v177 = vmul.f32 %v42, %v147
  %v178 = vmul.f32 %v43, %v147
  %v179 = vmul.f32 %v44, %v147
  %v180 = vmul.f32 %v45, %v147
  %v181 = vmul.f32 %v46, %v147
  %v182 = vmul.f32 %v47, %v147
  %v183 = vmul.f32 %v48, %v147
  %v184 = vmul.f32 %v49, %v147
  %v185 = vmul.f32 %v50, %v147
  %v186 = vmul.f32 %v51, %v147
  %v187 = vmul.f32 %v52, %v147
  %v188 = vmul.f32 %v53, %v147
  %v189 = vmul.f32 %v54, %v147
  %v190 = vmul.f32 %v55, %v147
  %v191 = vmul.f32 %v56, %v147
  %v192 = vmul.f32 %v57, %v147
  %v193 = vmul.f32 %v58, %v147
  %v194 = vmul.f32 %v59, %v147
  %v195 = vmul.f32 %v60, %v147
  %v196 = vmul.f32 %v61, %v147
  %v197 = vmul.f32 %v62, %v147
  %v198 = vmul.f32 %v63, %v147
  %v199 = vmul.f32 %v64, %v147
  %v200 = vmul.f32 %v65, %v147
  %v201 = vmul.f32 %v66, %v147
  %v202 = vmul.f32 %v67, %v147
  %v203 = vmul.f32 %v68, %v147
  %v204 = vmul.f32 %v69, %v147
  %v205 = vmul.f32 %v70, %v147
  %v206 = vmul.f32 %v71, %v147
  %v207 = vmul.f32 %v72, %v147
  %v208 = vmul.f32 %v73, %v147
  %v209 = vmul.f32 %v74, %v147
  %v210 = vmul.f32 %v75, %v147
  %v211 = vmul.f32 %v76, %v147
  %v212 = vmul.f32 %v77, %v147
  %v213 = vmul.f32 %v78, %v147
  %v214 = vmul.f32 %v79, %v147
  %v215 = vmul.f32 %v80, %v147
  %v216 = vmul.f32 %v81, %v147
  %v217 = vmul.f32 %v82, %v147
  %v218 = vmul.f32 %v83, %v147
  %v219 = vmul.f32 %v84, %v147
  %v220 = vmul.f32 %v85, %v147
  %v221 = vmul.f32 %v86, %v147
  %v222 = vmul.f32 %v87, %v147
  %v223 = vmul.f32 %v88, %v147
  %v224 = vmul.f32 %v89, %v147
  %v225 = vmul.f32 %v90, %v147
  %v226 = vmul.f32 %v91, %v147
  %v227 = vmul.f32 %v92, %v147
  %v228 = vmul.f32 %v93, %v147
  %v229 = vmul.f32 %v94, %v147
  %v230 = vmul.f32 %v95, %v147
  %v231 = vmul.f32 %v96, %v147
  %v232 = vmul.f32 %v97, %v147
  %v233 = vmul.f32 %v98, %v147
  %v234 = vmul.f32 %v99, %v147
  %v235 = vmul.f32 %v100, %v147
  %v236 = vmul.f32 %v101, %v147
  %v237 = vmul.f32 %v102, %v147
  %v238 = vmul.f32 %v103, %v147
  %v239 = vmul.f32 %v104, %v147
  %v240 = vmul.f32 %v105, %v147
  %v241 = vmul.f32 %v106, %v147
  %v242 = vmul.f32 %v107, %v147
  %v243 = vmul.f32 %v108, %v147
  %v244 = vmul.f32 %v109, %v147
  %v245 = vmul.f32 %v110, %v147
  %v246 = vmul.f32 %v111, %v147
  %v247 = vmul.f32 %v112, %v147
  %v248 = vmul.f32 %v113, %v147
  %v249 = vmul.f32 %v114, %v147
  %v250 = vmul.f32 %v115, %v147
  %v251 = vmul.f32 %v116, %v147
  %v252 = vmul.f32 %v117, %v147
  %v253 = vmul.f32 %v118, %v147
  %v254 = vmul.f32 %v119, %v147
  %v255 = vmul.f32 %v120, %v147
  %v256 = vmul.f32 %v121, %v147
  %v257 = vmul.f32 %v122, %v147
  %v258 = vmul.f32 %v123, %v147
  %v259 = vmul.f32 %v124, %v147
  %v260 = vmul.f32 %v125, %v147
  %v261 = vmul.f32 %v126, %v147
  %v262 = vmul.f32 %v127, %v147
  %v263 = vmul.f32 %v128, %v147
  %v264 = vmul.f32 %v129, %v147
  %v265 = vmul.f32 %v130, %v147
  %v266 = vmul.f32 %v131, %v147
  %v267 = vmul.f32 %v132, %v147
  %v268 = vmul.f32 %v133, %v147
  %v269 = vmul.f32 %v134, %v147
  %v270 = vmul.f32 %v135, %v147
  %v271 = vmul.f32 %v136, %v147
  %v272 = vmul.f32 %v137, %v147
  %v273 = vmul.f32 %v138, %v147
  %v274 = vmul.f32 %v139, %v147
  %v275 = vmul.f32 %v140, %v147
  %v276 = vmul.f32 %v141, %v147
  %v277 = vld [vmem:[%s2] sm:$0x1]
  %v279 = vlaneseq
  %v280 = vshrl.u32 %v279, 7
  %v281 = vsub.s32 0, %v280
  %v282 = vrot.slane %v277, %v281
  %v284 = vadd.f32 %v149, %v282
  %v285 = vadd.f32 %v150, %v282
  %v286 = vadd.f32 %v151, %v282
  %v287 = vadd.f32 %v152, %v282
  %v288 = vadd.f32 %v153, %v282
  %v289 = vadd.f32 %v154, %v282
  %v290 = vadd.f32 %v155, %v282
  %v291 = vadd.f32 %v156, %v282
  %v292 = vadd.f32 %v157, %v282
  %v293 = vadd.f32 %v158, %v282
  %v294 = vadd.f32 %v159, %v282
  %v295 = vadd.f32 %v160, %v282
  %v296 = vadd.f32 %v161, %v282
  %v297 = vadd.f32 %v162, %v282
  %v298 = vadd.f32 %v163, %v282
  %v299 = vadd.f32 %v164, %v282
  %v300 = vadd.f32 %v165, %v282
  %v301 = vadd.f32 %v166, %v282
  %v302 = vadd.f32 %v167, %v282
  %v303 = vadd.f32 %v168, %v282
  %v304 = vadd.f32 %v169, %v282
  %v305 = vadd.f32 %v170, %v282
  %v306 = vadd.f32 %v171, %v282
  %v307 = vadd.f32 %v172, %v282
  %v308 = vadd.f32 %v173, %v282
  %v309 = vadd.f32 %v174, %v282
  %v310 = vadd.f32 %v175, %v282
  %v311 = vadd.f32 %v176, %v282
  %v312 = vadd.f32 %v177, %v282
  %v313 = vadd.f32 %v178, %v282
  %v314 = vadd.f32 %v179, %v282
  %v315 = vadd.f32 %v180, %v282
  %v316 = vadd.f32 %v181, %v282
  %v317 = vadd.f32 %v182, %v282
  %v318 = vadd.f32 %v183, %v282
  %v319 = vadd.f32 %v184, %v282
  %v320 = vadd.f32 %v185, %v282
  %v321 = vadd.f32 %v186, %v282
  %v322 = vadd.f32 %v187, %v282
  %v323 = vadd.f32 %v188, %v282
  %v324 = vadd.f32 %v189, %v282
  %v325 = vadd.f32 %v190, %v282
  %v326 = vadd.f32 %v191, %v282
  %v327 = vadd.f32 %v192, %v282
  %v328 = vadd.f32 %v193, %v282
  %v329 = vadd.f32 %v194, %v282
  %v330 = vadd.f32 %v195, %v282
  %v331 = vadd.f32 %v196, %v282
  %v332 = vadd.f32 %v197, %v282
  %v333 = vadd.f32 %v198, %v282
  %v334 = vadd.f32 %v199, %v282
  %v335 = vadd.f32 %v200, %v282
  %v336 = vadd.f32 %v201, %v282
  %v337 = vadd.f32 %v202, %v282
  %v338 = vadd.f32 %v203, %v282
  %v339 = vadd.f32 %v204, %v282
  %v340 = vadd.f32 %v205, %v282
  %v341 = vadd.f32 %v206, %v282
  %v342 = vadd.f32 %v207, %v282
  %v343 = vadd.f32 %v208, %v282
  %v344 = vadd.f32 %v209, %v282
  %v345 = vadd.f32 %v210, %v282
  %v346 = vadd.f32 %v211, %v282
  %v347 = vadd.f32 %v212, %v282
  %v348 = vadd.f32 %v213, %v282
  %v349 = vadd.f32 %v214, %v282
  %v350 = vadd.f32 %v215, %v282
  %v351 = vadd.f32 %v216, %v282
  %v352 = vadd.f32 %v217, %v282
  %v353 = vadd.f32 %v218, %v282
  %v354 = vadd.f32 %v219, %v282
  %v355 = vadd.f32 %v220, %v282
  %v356 = vadd.f32 %v221, %v282
  %v357 = vadd.f32 %v222, %v282
  %v358 = vadd.f32 %v223, %v282
  %v359 = vadd.f32 %v224, %v282
  %v360 = vadd.f32 %v225, %v282
  %v361 = vadd.f32 %v226, %v282
  %v362 = vadd.f32 %v227, %v282
  %v363 = vadd.f32 %v228, %v282
  %v364 = vadd.f32 %v229, %v282
  %v365 = vadd.f32 %v230, %v282
  %v366 = vadd.f32 %v231, %v282
  %v367 = vadd.f32 %v232, %v282
  %v368 = vadd.f32 %v233, %v282
  %v369 = vadd.f32 %v234, %v282
  %v370 = vadd.f32 %v235, %v282
  %v371 = vadd.f32 %v236, %v282
  %v372 = vadd.f32 %v237, %v282
  %v373 = vadd.f32 %v238, %v282
  %v374 = vadd.f32 %v239, %v282
  %v375 = vadd.f32 %v240, %v282
  %v376 = vadd.f32 %v241, %v282
  %v377 = vadd.f32 %v242, %v282
  %v378 = vadd.f32 %v243, %v282
  %v379 = vadd.f32 %v244, %v282
  %v380 = vadd.f32 %v245, %v282
  %v381 = vadd.f32 %v246, %v282
  %v382 = vadd.f32 %v247, %v282
  %v383 = vadd.f32 %v248, %v282
  %v384 = vadd.f32 %v249, %v282
  %v385 = vadd.f32 %v250, %v282
  %v386 = vadd.f32 %v251, %v282
  %v387 = vadd.f32 %v252, %v282
  %v388 = vadd.f32 %v253, %v282
  %v389 = vadd.f32 %v254, %v282
  %v390 = vadd.f32 %v255, %v282
  %v391 = vadd.f32 %v256, %v282
  %v392 = vadd.f32 %v257, %v282
  %v393 = vadd.f32 %v258, %v282
  %v394 = vadd.f32 %v259, %v282
  %v395 = vadd.f32 %v260, %v282
  %v396 = vadd.f32 %v261, %v282
  %v397 = vadd.f32 %v262, %v282
  %v398 = vadd.f32 %v263, %v282
  %v399 = vadd.f32 %v264, %v282
  %v400 = vadd.f32 %v265, %v282
  %v401 = vadd.f32 %v266, %v282
  %v402 = vadd.f32 %v267, %v282
  %v403 = vadd.f32 %v268, %v282
  %v404 = vadd.f32 %v269, %v282
  %v405 = vadd.f32 %v270, %v282
  %v406 = vadd.f32 %v271, %v282
  %v407 = vadd.f32 %v272, %v282
  %v408 = vadd.f32 %v273, %v282
  %v409 = vadd.f32 %v274, %v282
  %v410 = vadd.f32 %v275, %v282
  %v411 = vadd.f32 %v276, %v282
  %v412 = vmax.f32 %v284, 0.0
  %v413 = vmax.f32 %v285, 0.0
  %v414 = vmax.f32 %v286, 0.0
  %v415 = vmax.f32 %v287, 0.0
  %v416 = vmax.f32 %v288, 0.0
  %v417 = vmax.f32 %v289, 0.0
  %v418 = vmax.f32 %v290, 0.0
  %v419 = vmax.f32 %v291, 0.0
  %v420 = vmax.f32 %v292, 0.0
  %v421 = vmax.f32 %v293, 0.0
  %v422 = vmax.f32 %v294, 0.0
  %v423 = vmax.f32 %v295, 0.0
  %v424 = vmax.f32 %v296, 0.0
  %v425 = vmax.f32 %v297, 0.0
  %v426 = vmax.f32 %v298, 0.0
  %v427 = vmax.f32 %v299, 0.0
  %v428 = vmax.f32 %v300, 0.0
  %v429 = vmax.f32 %v301, 0.0
  %v430 = vmax.f32 %v302, 0.0
  %v431 = vmax.f32 %v303, 0.0
  %v432 = vmax.f32 %v304, 0.0
  %v433 = vmax.f32 %v305, 0.0
  %v434 = vmax.f32 %v306, 0.0
  %v435 = vmax.f32 %v307, 0.0
  %v436 = vmax.f32 %v308, 0.0
  %v437 = vmax.f32 %v309, 0.0
  %v438 = vmax.f32 %v310, 0.0
  %v439 = vmax.f32 %v311, 0.0
  %v440 = vmax.f32 %v312, 0.0
  %v441 = vmax.f32 %v313, 0.0
  %v442 = vmax.f32 %v314, 0.0
  %v443 = vmax.f32 %v315, 0.0
  %v444 = vmax.f32 %v316, 0.0
  %v445 = vmax.f32 %v317, 0.0
  %v446 = vmax.f32 %v318, 0.0
  %v447 = vmax.f32 %v319, 0.0
  %v448 = vmax.f32 %v320, 0.0
  %v449 = vmax.f32 %v321, 0.0
  %v450 = vmax.f32 %v322, 0.0
  %v451 = vmax.f32 %v323, 0.0
  %v452 = vmax.f32 %v324, 0.0
  %v453 = vmax.f32 %v325, 0.0
  %v454 = vmax.f32 %v326, 0.0
  %v455 = vmax.f32 %v327, 0.0
  %v456 = vmax.f32 %v328, 0.0
  %v457 = vmax.f32 %v329, 0.0
  %v458 = vmax.f32 %v330, 0.0
  %v459 = vmax.f32 %v331, 0.0
  %v460 = vmax.f32 %v332, 0.0
  %v461 = vmax.f32 %v333, 0.0
  %v462 = vmax.f32 %v334, 0.0
  %v463 = vmax.f32 %v335, 0.0
  %v464 = vmax.f32 %v336, 0.0
  %v465 = vmax.f32 %v337, 0.0
  %v466 = vmax.f32 %v338, 0.0
  %v467 = vmax.f32 %v339, 0.0
  %v468 = vmax.f32 %v340, 0.0
  %v469 = vmax.f32 %v341, 0.0
  %v470 = vmax.f32 %v342, 0.0
  %v471 = vmax.f32 %v343, 0.0
  %v472 = vmax.f32 %v344, 0.0
  %v473 = vmax.f32 %v345, 0.0
  %v474 = vmax.f32 %v346, 0.0
  %v475 = vmax.f32 %v347, 0.0
  %v476 = vmax.f32 %v348, 0.0
  %v477 = vmax.f32 %v349, 0.0
  %v478 = vmax.f32 %v350, 0.0
  %v479 = vmax.f32 %v351, 0.0
  %v480 = vmax.f32 %v352, 0.0
  %v481 = vmax.f32 %v353, 0.0
  %v482 = vmax.f32 %v354, 0.0
  %v483 = vmax.f32 %v355, 0.0
  %v484 = vmax.f32 %v356, 0.0
  %v485 = vmax.f32 %v357, 0.0
  %v486 = vmax.f32 %v358, 0.0
  %v487 = vmax.f32 %v359, 0.0
  %v488 = vmax.f32 %v360, 0.0
  %v489 = vmax.f32 %v361, 0.0
  %v490 = vmax.f32 %v362, 0.0
  %v491 = vmax.f32 %v363, 0.0
  %v492 = vmax.f32 %v364, 0.0
  %v493 = vmax.f32 %v365, 0.0
  %v494 = vmax.f32 %v366, 0.0
  %v495 = vmax.f32 %v367, 0.0
  %v496 = vmax.f32 %v368, 0.0
  %v497 = vmax.f32 %v369, 0.0
  %v498 = vmax.f32 %v370, 0.0
  %v499 = vmax.f32 %v371, 0.0
  %v500 = vmax.f32 %v372, 0.0
  %v501 = vmax.f32 %v373, 0.0
  %v502 = vmax.f32 %v374, 0.0
  %v503 = vmax.f32 %v375, 0.0
  %v504 = vmax.f32 %v376, 0.0
  %v505 = vmax.f32 %v377, 0.0
  %v506 = vmax.f32 %v378, 0.0
  %v507 = vmax.f32 %v379, 0.0
  %v508 = vmax.f32 %v380, 0.0
  %v509 = vmax.f32 %v381, 0.0
  %v510 = vmax.f32 %v382, 0.0
  %v511 = vmax.f32 %v383, 0.0
  %v512 = vmax.f32 %v384, 0.0
  %v513 = vmax.f32 %v385, 0.0
  %v514 = vmax.f32 %v386, 0.0
  %v515 = vmax.f32 %v387, 0.0
  %v516 = vmax.f32 %v388, 0.0
  %v517 = vmax.f32 %v389, 0.0
  %v518 = vmax.f32 %v390, 0.0
  %v519 = vmax.f32 %v391, 0.0
  %v520 = vmax.f32 %v392, 0.0
  %v521 = vmax.f32 %v393, 0.0
  %v522 = vmax.f32 %v394, 0.0
  %v523 = vmax.f32 %v395, 0.0
  %v524 = vmax.f32 %v396, 0.0
  %v525 = vmax.f32 %v397, 0.0
  %v526 = vmax.f32 %v398, 0.0
  %v527 = vmax.f32 %v399, 0.0
  %v528 = vmax.f32 %v400, 0.0
  %v529 = vmax.f32 %v401, 0.0
  %v530 = vmax.f32 %v402, 0.0
  %v531 = vmax.f32 %v403, 0.0
  %v532 = vmax.f32 %v404, 0.0
  %v533 = vmax.f32 %v405, 0.0
  %v534 = vmax.f32 %v406, 0.0
  %v535 = vmax.f32 %v407, 0.0
  %v536 = vmax.f32 %v408, 0.0
  %v537 = vmax.f32 %v409, 0.0
  %v538 = vmax.f32 %v410, 0.0
  %v539 = vmax.f32 %v411, 0.0
  %vm540 = vcmask 523264
  %541 = vst.msk [vmem:[%s3] sm:$0xff] %vm540, %v412
  %542 = vst.msk [vmem:[%s3 + $0x8] sm:$0xff] %vm540, %v413
  %543 = vst.msk [vmem:[%s3 + $0x10] sm:$0xff] %vm540, %v414
  %544 = vst.msk [vmem:[%s3 + $0x18] sm:$0xff] %vm540, %v415
  %545 = vst.msk [vmem:[%s3 + $0x20] sm:$0xff] %vm540, %v416
  %546 = vst.msk [vmem:[%s3 + $0x28] sm:$0xff] %vm540, %v417
  %547 = vst.msk [vmem:[%s3 + $0x30] sm:$0xff] %vm540, %v418
  %548 = vst.msk [vmem:[%s3 + $0x38] sm:$0xff] %vm540, %v419
  %549 = vst.msk [vmem:[%s3 + $0x40] sm:$0xff] %vm540, %v420
  %550 = vst.msk [vmem:[%s3 + $0x48] sm:$0xff] %vm540, %v421
  %551 = vst.msk [vmem:[%s3 + $0x50] sm:$0xff] %vm540, %v422
  %552 = vst.msk [vmem:[%s3 + $0x58] sm:$0xff] %vm540, %v423
  %553 = vst.msk [vmem:[%s3 + $0x60] sm:$0xff] %vm540, %v424
  %554 = vst.msk [vmem:[%s3 + $0x68] sm:$0xff] %vm540, %v425
  %555 = vst.msk [vmem:[%s3 + $0x70] sm:$0xff] %vm540, %v426
  %556 = vst.msk [vmem:[%s3 + $0x78] sm:$0xff] %vm540, %v427
  %557 = vst.msk [vmem:[%s3 + $0x80] sm:$0xff] %vm540, %v428
  %558 = vst.msk [vmem:[%s3 + $0x88] sm:$0xff] %vm540, %v429
  %559 = vst.msk [vmem:[%s3 + $0x90] sm:$0xff] %vm540, %v430
  %560 = vst.msk [vmem:[%s3 + $0x98] sm:$0xff] %vm540, %v431
  %561 = vst.msk [vmem:[%s3 + $0xa0] sm:$0xff] %vm540, %v432
  %562 = vst.msk [vmem:[%s3 + $0xa8] sm:$0xff] %vm540, %v433
  %563 = vst.msk [vmem:[%s3 + $0xb0] sm:$0xff] %vm540, %v434
  %564 = vst.msk [vmem:[%s3 + $0xb8] sm:$0xff] %vm540, %v435
  %565 = vst.msk [vmem:[%s3 + $0xc0] sm:$0xff] %vm540, %v436
  %566 = vst.msk [vmem:[%s3 + $0xc8] sm:$0xff] %vm540, %v437
  %567 = vst.msk [vmem:[%s3 + $0xd0] sm:$0xff] %vm540, %v438
  %568 = vst.msk [vmem:[%s3 + $0xd8] sm:$0xff] %vm540, %v439
  %569 = vst.msk [vmem:[%s3 + $0xe0] sm:$0xff] %vm540, %v440
  %570 = vst.msk [vmem:[%s3 + $0xe8] sm:$0xff] %vm540, %v441
  %571 = vst.msk [vmem:[%s3 + $0xf0] sm:$0xff] %vm540, %v442
  %572 = vst.msk [vmem:[%s3 + $0xf8] sm:$0xff] %vm540, %v443
  %573 = vst.msk [vmem:[%s3 + $0x100] sm:$0xff] %vm540, %v444
  %574 = vst.msk [vmem:[%s3 + $0x108] sm:$0xff] %vm540, %v445
  %575 = vst.msk [vmem:[%s3 + $0x110] sm:$0xff] %vm540, %v446
  %576 = vst.msk [vmem:[%s3 + $0x118] sm:$0xff] %vm540, %v447
  %577 = vst.msk [vmem:[%s3 + $0x120] sm:$0xff] %vm540, %v448
  %578 = vst.msk [vmem:[%s3 + $0x128] sm:$0xff] %vm540, %v449
  %579 = vst.msk [vmem:[%s3 + $0x130] sm:$0xff] %vm540, %v450
  %580 = vst.msk [vmem:[%s3 + $0x138] sm:$0xff] %vm540, %v451
  %581 = vst.msk [vmem:[%s3 + $0x140] sm:$0xff] %vm540, %v452
  %582 = vst.msk [vmem:[%s3 + $0x148] sm:$0xff] %vm540, %v453
  %583 = vst.msk [vmem:[%s3 + $0x150] sm:$0xff] %vm540, %v454
  %584 = vst.msk [vmem:[%s3 + $0x158] sm:$0xff] %vm540, %v455
  %585 = vst.msk [vmem:[%s3 + $0x160] sm:$0xff] %vm540, %v456
  %586 = vst.msk [vmem:[%s3 + $0x168] sm:$0xff] %vm540, %v457
  %587 = vst.msk [vmem:[%s3 + $0x170] sm:$0xff] %vm540, %v458
  %588 = vst.msk [vmem:[%s3 + $0x178] sm:$0xff] %vm540, %v459
  %589 = vst.msk [vmem:[%s3 + $0x180] sm:$0xff] %vm540, %v460
  %590 = vst.msk [vmem:[%s3 + $0x188] sm:$0xff] %vm540, %v461
  %591 = vst.msk [vmem:[%s3 + $0x190] sm:$0xff] %vm540, %v462
  %592 = vst.msk [vmem:[%s3 + $0x198] sm:$0xff] %vm540, %v463
  %593 = vst.msk [vmem:[%s3 + $0x1a0] sm:$0xff] %vm540, %v464
  %594 = vst.msk [vmem:[%s3 + $0x1a8] sm:$0xff] %vm540, %v465
  %595 = vst.msk [vmem:[%s3 + $0x1b0] sm:$0xff] %vm540, %v466
  %596 = vst.msk [vmem:[%s3 + $0x1b8] sm:$0xff] %vm540, %v467
  %597 = vst.msk [vmem:[%s3 + $0x1c0] sm:$0xff] %vm540, %v468
  %598 = vst.msk [vmem:[%s3 + $0x1c8] sm:$0xff] %vm540, %v469
  %599 = vst.msk [vmem:[%s3 + $0x1d0] sm:$0xff] %vm540, %v470
  %600 = vst.msk [vmem:[%s3 + $0x1d8] sm:$0xff] %vm540, %v471
  %601 = vst.msk [vmem:[%s3 + $0x1e0] sm:$0xff] %vm540, %v472
  %602 = vst.msk [vmem:[%s3 + $0x1e8] sm:$0xff] %vm540, %v473
  %603 = vst.msk [vmem:[%s3 + $0x1f0] sm:$0xff] %vm540, %v474
  %604 = vst.msk [vmem:[%s3 + $0x1f8] sm:$0xff] %vm540, %v475
  %605 = vst.msk [vmem:[%s3 + $0x200] sm:$0xff] %vm540, %v476
  %606 = vst.msk [vmem:[%s3 + $0x208] sm:$0xff] %vm540, %v477
  %607 = vst.msk [vmem:[%s3 + $0x210] sm:$0xff] %vm540, %v478
  %608 = vst.msk [vmem:[%s3 + $0x218] sm:$0xff] %vm540, %v479
  %609 = vst.msk [vmem:[%s3 + $0x220] sm:$0xff] %vm540, %v480
  %610 = vst.msk [vmem:[%s3 + $0x228] sm:$0xff] %vm540, %v481
  %611 = vst.msk [vmem:[%s3 + $0x230] sm:$0xff] %vm540, %v482
  %612 = vst.msk [vmem:[%s3 + $0x238] sm:$0xff] %vm540, %v483
  %613 = vst.msk [vmem:[%s3 + $0x240] sm:$0xff] %vm540, %v484
  %614 = vst.msk [vmem:[%s3 + $0x248] sm:$0xff] %vm540, %v485
  %615 = vst.msk [vmem:[%s3 + $0x250] sm:$0xff] %vm540, %v486
  %616 = vst.msk [vmem:[%s3 + $0x258] sm:$0xff] %vm540, %v487
  %617 = vst.msk [vmem:[%s3 + $0x260] sm:$0xff] %vm540, %v488
  %618 = vst.msk [vmem:[%s3 + $0x268] sm:$0xff] %vm540, %v489
  %619 = vst.msk [vmem:[%s3 + $0x270] sm:$0xff] %vm540, %v490
  %620 = vst.msk [vmem:[%s3 + $0x278] sm:$0xff] %vm540, %v491
  %621 = vst.msk [vmem:[%s3 + $0x280] sm:$0xff] %vm540, %v492
  %622 = vst.msk [vmem:[%s3 + $0x288] sm:$0xff] %vm540, %v493
  %623 = vst.msk [vmem:[%s3 + $0x290] sm:$0xff] %vm540, %v494
  %624 = vst.msk [vmem:[%s3 + $0x298] sm:$0xff] %vm540, %v495
  %625 = vst.msk [vmem:[%s3 + $0x2a0] sm:$0xff] %vm540, %v496
  %626 = vst.msk [vmem:[%s3 + $0x2a8] sm:$0xff] %vm540, %v497
  %627 = vst.msk [vmem:[%s3 + $0x2b0] sm:$0xff] %vm540, %v498
  %628 = vst.msk [vmem:[%s3 + $0x2b8] sm:$0xff] %vm540, %v499
  %629 = vst.msk [vmem:[%s3 + $0x2c0] sm:$0xff] %vm540, %v500
  %630 = vst.msk [vmem:[%s3 + $0x2c8] sm:$0xff] %vm540, %v501
  %631 = vst.msk [vmem:[%s3 + $0x2d0] sm:$0xff] %vm540, %v502
  %632 = vst.msk [vmem:[%s3 + $0x2d8] sm:$0xff] %vm540, %v503
  %633 = vst.msk [vmem:[%s3 + $0x2e0] sm:$0xff] %vm540, %v504
  %634 = vst.msk [vmem:[%s3 + $0x2e8] sm:$0xff] %vm540, %v505
  %635 = vst.msk [vmem:[%s3 + $0x2f0] sm:$0xff] %vm540, %v506
  %636 = vst.msk [vmem:[%s3 + $0x2f8] sm:$0xff] %vm540, %v507
  %637 = vst.msk [vmem:[%s3 + $0x300] sm:$0xff] %vm540, %v508
  %638 = vst.msk [vmem:[%s3 + $0x308] sm:$0xff] %vm540, %v509
  %639 = vst.msk [vmem:[%s3 + $0x310] sm:$0xff] %vm540, %v510
  %640 = vst.msk [vmem:[%s3 + $0x318] sm:$0xff] %vm540, %v511
  %641 = vst.msk [vmem:[%s3 + $0x320] sm:$0xff] %vm540, %v512
  %642 = vst.msk [vmem:[%s3 + $0x328] sm:$0xff] %vm540, %v513
  %643 = vst.msk [vmem:[%s3 + $0x330] sm:$0xff] %vm540, %v514
  %644 = vst.msk [vmem:[%s3 + $0x338] sm:$0xff] %vm540, %v515
  %645 = vst.msk [vmem:[%s3 + $0x340] sm:$0xff] %vm540, %v516
  %646 = vst.msk [vmem:[%s3 + $0x348] sm:$0xff] %vm540, %v517
  %647 = vst.msk [vmem:[%s3 + $0x350] sm:$0xff] %vm540, %v518
  %648 = vst.msk [vmem:[%s3 + $0x358] sm:$0xff] %vm540, %v519
  %649 = vst.msk [vmem:[%s3 + $0x360] sm:$0xff] %vm540, %v520
  %650 = vst.msk [vmem:[%s3 + $0x368] sm:$0xff] %vm540, %v521
  %651 = vst.msk [vmem:[%s3 + $0x370] sm:$0xff] %vm540, %v522
  %652 = vst.msk [vmem:[%s3 + $0x378] sm:$0xff] %vm540, %v523
  %653 = vst.msk [vmem:[%s3 + $0x380] sm:$0xff] %vm540, %v524
  %654 = vst.msk [vmem:[%s3 + $0x388] sm:$0xff] %vm540, %v525
  %655 = vst.msk [vmem:[%s3 + $0x390] sm:$0xff] %vm540, %v526
  %656 = vst.msk [vmem:[%s3 + $0x398] sm:$0xff] %vm540, %v527
  %657 = vst.msk [vmem:[%s3 + $0x3a0] sm:$0xff] %vm540, %v528
  %658 = vst.msk [vmem:[%s3 + $0x3a8] sm:$0xff] %vm540, %v529
  %659 = vst.msk [vmem:[%s3 + $0x3b0] sm:$0xff] %vm540, %v530
  %660 = vst.msk [vmem:[%s3 + $0x3b8] sm:$0xff] %vm540, %v531
  %661 = vst.msk [vmem:[%s3 + $0x3c0] sm:$0xff] %vm540, %v532
  %662 = vst.msk [vmem:[%s3 + $0x3c8] sm:$0xff] %vm540, %v533
  %663 = vst.msk [vmem:[%s3 + $0x3d0] sm:$0xff] %vm540, %v534
  %664 = vst.msk [vmem:[%s3 + $0x3d8] sm:$0xff] %vm540, %v535
  %665 = vst.msk [vmem:[%s3 + $0x3e0] sm:$0xff] %vm540, %v536
  %666 = vst.msk [vmem:[%s3 + $0x3e8] sm:$0xff] %vm540, %v537
  %667 = vst.msk [vmem:[%s3 + $0x3f0] sm:$0xff] %vm540, %v538
  %668 = vst.msk [vmem:[%s3 + $0x3f8] sm:$0xff] %vm540, %v539
  // Predicated region
  $region14: #{bottleneck3d_forward.9} parent=0 // pred_check
    _
  $region15: #{bottleneck3d_forward.9} parent=0 // pred_check_branch
    %670 = sbr.rel (0) target = $region17
  $region16: #{bottleneck3d_forward.9} parent=0 // pred_region
    _
  $region17: #{bottleneck3d_forward.9} parent=0 // pred_fallthru
    _
  // Predicated region
  $region18: #{bottleneck3d_forward.9} parent=0 // pred_check
    _
  $region19: #{bottleneck3d_forward.9} parent=0 // pred_check_branch
    %672 = sbr.rel (0) target = $region21
  $region20: #{bottleneck3d_forward.9} parent=0 // pred_region
    _
  $region21: #{bottleneck3d_forward.9} parent=0 // pred_fallthru
    _

// kernel: bottleneck3d_forward.8
$region0: #{bottleneck3d_forward.8}
  #allocation0 [shape = 'u32[]', space=smem, size = 0x4, offset = 0x4, fixed_abs, tag = 'smem constant byte address 0x4 - core index']
  #allocation1 [shape = 'u32[144,128]{1,0:T(1,128)}', space=vmem, size = 0x12000, scoped, tag = 'internal scratch']
  %s0 = inlined_call_operand.vmem [shape: bf16[1024,128], index: 0, kind: input, shape index: {}]
  %s1 = inlined_call_operand.vmem [shape: bf16[128,128], index: 1, kind: input, shape index: {}]
  %s2 = inlined_call_operand.vmem [shape: f32[1024,128], index: 2, kind: output, shape index: {0}]
  %s3 = inlined_call_operand.vmem [shape: f32[1,128], index: 3, kind: output, shape index: {1}]
  %s4 = inlined_call_operand.vmem [shape: f32[1,128], index: 4, kind: output, shape index: {2}]
  %5 = xla_tuple %s2, %s3, %s4
  %s6 = sld [smem:[#allocation0]]
  $region69: #{bottleneck3d_forward.8} parent=0
    _
  %s8 = ssub.s32 1, %s6
  %s9 = scalar_select 0, %s8, %s6
  loop: start=0, step=1, limit=4
  $region2: #{bottleneck3d_forward.8} parent=0 // loop_pre_header
    _
  $region3: #{bottleneck3d_forward.8} parent=0 // loop_header
    %s11 = sphi 0, %s15
    %p12 = scmp.ge.s32.totalorder %s11, 4
    %s18 = sphi 0, %s37
    %s19 = sphi 0, %s33
    %s20 = sphi 0, %s29
    %s21 = sphi 0, %s18
    %s22 = sphi 0, %s19
    %s23 = sphi 0, %s20
    %s24 = sphi 0, %s21
    %s25 = sphi 0, %s22
    %s26 = sphi 0, %s23
    %s42 = sphi 0, %s44
    %s45 = sphi 0, %s42
    %s46 = sphi 0, %s45
    %s62 = sphi 0, %s46
    %s70 = sphi 0, %s72
    %s73 = sphi 0, %s70
    %s74 = sphi 0, %s73
    %s90 = sphi 0, %s74
    %s98 = sphi 0, %s100
    %s101 = sphi 0, %s98
    %s102 = sphi 0, %s101
    %s118 = sphi 0, %s102
    %s124 = sphi 0, %s126
    %s127 = sphi 0, %s124
    %s128 = sphi 0, %s127
    %s144 = sphi 0, %s128
    %s150 = sphi 0, %s152
    %s153 = sphi 0, %s150
    %s154 = sphi 0, %s153
    %s170 = sphi 0, %s154
  $region4: #{bottleneck3d_forward.8} parent=0 // loop_header_branch
    %14 = sbr.rel (%p12) target = $region8
  $region5: #{bottleneck3d_forward.8} parent=0 // loop_body
    %s16 = ssub.s32 %s11, 1
    %s17 = ssub.s32 %s11, 2
    %s27 = sadd.s32 1, %s20
    %p28 = scmp.ge.s32.totalorder %s27, 1
    %s29 = scalar_select %p28, 0, %s27
    %s30 = sadd.s32 1, %s19
    %s31 = scalar_select %p28, %s30, %s19
    %p32 = scmp.ge.s32.totalorder %s31, 2
    %s33 = scalar_select %p32, 0, %s31
    %s34 = sadd.s32 1, %s18
    %s35 = scalar_select %p32, %s34, %s18
    %p36 = scmp.ge.s32.totalorder %s35, 1
    %s37 = scalar_select %p36, 0, %s35
    %s38 = ssub.s32 %s19, %s33
    %s39 = ssub.s32 %s20, %s29
    %s40 = sor.u32 %s38, %s39
    %p41 = scmp.eq.s32.totalorder %s40, 0
    %s43 = sadd.s32 %s42, 1
    %s44 = scalar_select %p41, %s42, %s43
    %p47 = pneg %p41
    %p48 = scmp.eq.s32.totalorder %s11, 1
    %p49 = por %p47, %p48
    %p50 = scmp.ne.s32.totalorder %s42, %s45
    %p51 = scmp.eq.s32.totalorder %s11, 0
    %p52 = por %p50, %p51
    %p53 = scmp.ne.s32.totalorder %s42, %s45
    %p54 = scmp.eq.s32.totalorder %s16, 1
    %p55 = por %p53, %p54
    %p56 = scmp.ne.s32.totalorder %s45, %s46
    %p57 = scmp.eq.s32.totalorder %s16, 0
    %p58 = por %p56, %p57
    %p59 = scmp.ne.s32.totalorder %s45, %s46
    %p60 = scmp.eq.s32.totalorder %s17, 1
    %p61 = por %p59, %p60
    %p63 = scmp.ne.s32.totalorder %s46, %s62
    %p64 = scmp.eq.s32.totalorder %s17, 0
    %p65 = por %p63, %p64
    %s66 = ssub.s32 %s20, %s29
    %s67 = ssub.s32 %s18, %s37
    %s68 = sor.u32 %s66, %s67
    %p69 = scmp.eq.s32.totalorder %s68, 0
    %s71 = sadd.s32 %s70, 1
    %s72 = scalar_select %p69, %s70, %s71
    %p75 = pneg %p69
    %p76 = scmp.eq.s32.totalorder %s11, 1
    %p77 = por %p75, %p76
    %p78 = scmp.ne.s32.totalorder %s70, %s73
    %p79 = scmp.eq.s32.totalorder %s11, 0
    %p80 = por %p78, %p79
    %p81 = scmp.ne.s32.totalorder %s70, %s73
    %p82 = scmp.eq.s32.totalorder %s16, 1
    %p83 = por %p81, %p82
    %p84 = scmp.ne.s32.totalorder %s73, %s74
    %p85 = scmp.eq.s32.totalorder %s16, 0
    %p86 = por %p84, %p85
    %p87 = scmp.ne.s32.totalorder %s73, %s74
    %p88 = scmp.eq.s32.totalorder %s17, 1
    %p89 = por %p87, %p88
    %p91 = scmp.ne.s32.totalorder %s74, %s90
    %p92 = scmp.eq.s32.totalorder %s17, 0
    %p93 = por %p91, %p92
    %s94 = ssub.s32 %s19, %s33
    %s95 = ssub.s32 %s18, %s37
    %s96 = sor.u32 %s94, %s95
    %p97 = scmp.eq.s32.totalorder %s96, 0
    %s99 = sadd.s32 %s98, 1
    %s100 = scalar_select %p97, %s98, %s99
    %p103 = pneg %p97
    %p104 = scmp.eq.s32.totalorder %s11, 1
    %p105 = por %p103, %p104
    %p106 = scmp.ne.s32.totalorder %s98, %s101
    %p107 = scmp.eq.s32.totalorder %s11, 0
    %p108 = por %p106, %p107
    %p109 = scmp.ne.s32.totalorder %s98, %s101
    %p110 = scmp.eq.s32.totalorder %s16, 1
    %p111 = por %p109, %p110
    %p112 = scmp.ne.s32.totalorder %s101, %s102
    %p113 = scmp.eq.s32.totalorder %s16, 0
    %p114 = por %p112, %p113
    %p115 = scmp.ne.s32.totalorder %s101, %s102
    %p116 = scmp.eq.s32.totalorder %s17, 1
    %p117 = por %p115, %p116
    %p119 = scmp.ne.s32.totalorder %s102, %s118
    %p120 = scmp.eq.s32.totalorder %s17, 0
    %p121 = por %p119, %p120
    %s122 = ssub.s32 %s18, %s37
    %p123 = scmp.eq.s32.totalorder %s122, 0
    %s125 = sadd.s32 %s124, 1
    %s126 = scalar_select %p123, %s124, %s125
    %p129 = pneg %p123
    %p130 = scmp.eq.s32.totalorder %s11, 1
    %p131 = por %p129, %p130
    %p132 = scmp.ne.s32.totalorder %s124, %s127
    %p133 = scmp.eq.s32.totalorder %s11, 0
    %p134 = por %p132, %p133
    %p135 = scmp.ne.s32.totalorder %s124, %s127
    %p136 = scmp.eq.s32.totalorder %s16, 1
    %p137 = por %p135, %p136
    %p138 = scmp.ne.s32.totalorder %s127, %s128
    %p139 = scmp.eq.s32.totalorder %s16, 0
    %p140 = por %p138, %p139
    %p141 = scmp.ne.s32.totalorder %s127, %s128
    %p142 = scmp.eq.s32.totalorder %s17, 1
    %p143 = por %p141, %p142
    %p145 = scmp.ne.s32.totalorder %s128, %s144
    %p146 = scmp.eq.s32.totalorder %s17, 0
    %p147 = por %p145, %p146
    %s148 = ssub.s32 %s18, %s37
    %p149 = scmp.eq.s32.totalorder %s148, 0
    %s151 = sadd.s32 %s150, 1
    %s152 = scalar_select %p149, %s150, %s151
    %p155 = pneg %p149
    %p156 = scmp.eq.s32.totalorder %s11, 1
    %p157 = por %p155, %p156
    %p158 = scmp.ne.s32.totalorder %s150, %s153
    %p159 = scmp.eq.s32.totalorder %s11, 0
    %p160 = por %p158, %p159
    %p161 = scmp.ne.s32.totalorder %s150, %s153
    %p162 = scmp.eq.s32.totalorder %s16, 1
    %p163 = por %p161, %p162
    %p164 = scmp.ne.s32.totalorder %s153, %s154
    %p165 = scmp.eq.s32.totalorder %s16, 0
    %p166 = por %p164, %p165
    %p167 = scmp.ne.s32.totalorder %s153, %s154
    %p168 = scmp.eq.s32.totalorder %s17, 1
    %p169 = por %p167, %p168
    %p171 = scmp.ne.s32.totalorder %s154, %s170
    %p172 = scmp.eq.s32.totalorder %s17, 0
    %p173 = por %p171, %p172
    %p174 = scmp.le.s32.totalorder 1, %s11
    %p175 = scmp.lt.s32.totalorder %s11, 3
    %p176 = pnand %p174, %p175
    %p177 = pneg %p176
    // Predicated region
    $region9: #{bottleneck3d_forward.8} parent=5 // pred_check
      _
    $region10: #{bottleneck3d_forward.8} parent=5 // pred_check_branch
      %179 = sbr.rel (%p176) target = $region12
    $region11: #{bottleneck3d_forward.8} parent=5 // pred_region
      %s180 = ssub.s32 %s11, 1
      // Predicated region
      $region13: #{bottleneck3d_forward.8} parent=11 // pred_check
        %p181 = pneg %p86
      $region14: #{bottleneck3d_forward.8} parent=11 // pred_check_branch
        %183 = sbr.rel (%p181) target = $region16
      $region15: #{bottleneck3d_forward.8} parent=11 // pred_region
        %s184 = smul.u32 16, %s23
        %p185 = scmp.lt.s32.totalorder %s184, 15
        %s186 = scalar_select %p185, %s184, 15
        %p187 = scmp.lt.s32.totalorder %s21, 0
        %s188 = scalar_select %p187, %s21, 0
        %s189 = sadd.s32 %s188, %s186
        %s190 = smul.addr %s189, 4
        %s191 = scalar_lea.vmem %s1, %s190
        %s192 = smul.u32 16, %s23
      $region16: #{bottleneck3d_forward.8} parent=11 // pred_fallthru
        _
    $region12: #{bottleneck3d_forward.8} parent=5 // pred_fallthru
      _
    %p193 = scmp.lt.s32.totalorder %s11, 2
    // Predicated region
    $region17: #{bottleneck3d_forward.8} parent=5 // pred_check
      %p194 = pneg %p193
    $region18: #{bottleneck3d_forward.8} parent=5 // pred_check_branch
      %196 = sbr.rel (%p194) target = $region20
    $region19: #{bottleneck3d_forward.8} parent=5 // pred_region
      // Predicated region
      $region21: #{bottleneck3d_forward.8} parent=19 // pred_check
        %p197 = pneg %p52
      $region22: #{bottleneck3d_forward.8} parent=19 // pred_check_branch
        %199 = sbr.rel (%p197) target = $region24
      $region23: #{bottleneck3d_forward.8} parent=19 // pred_region
        %s200 = smul.u32 64, %s19
        %p201 = scmp.lt.s32.totalorder %s200, 127
        %s202 = scalar_select %p201, %s200, 127
        %p203 = scmp.lt.s32.totalorder %s20, 0
        %s204 = scalar_select %p203, %s20, 0
        %s205 = sadd.s32 %s204, %s202
        %s206 = smul.addr %s205, 4
        %s207 = scalar_lea.vmem %s0, %s206
        %s208 = smul.u32 64, %s19
      $region24: #{bottleneck3d_forward.8} parent=19 // pred_fallthru
        _
    $region20: #{bottleneck3d_forward.8} parent=5 // pred_fallthru
      _
    %p209 = scmp.le.s32.totalorder 1, %s11
    %p210 = scmp.lt.s32.totalorder %s11, 3
    %p211 = pnand %p209, %p210
    %p212 = pneg %p211
    // Predicated region
    $region25: #{bottleneck3d_forward.8} parent=5 // pred_check
      _
    $region26: #{bottleneck3d_forward.8} parent=5 // pred_check_branch
      %214 = sbr.rel (%p211) target = $region28
    $region27: #{bottleneck3d_forward.8} parent=5 // pred_region
      %s215 = ssub.s32 %s11, 1
      %s216 = smul.u32 64, %s22
      %p217 = scmp.lt.s32.totalorder %s216, 127
      %s218 = scalar_select %p217, %s216, 127
      %p219 = scmp.lt.s32.totalorder %s23, 0
      %s220 = scalar_select %p219, %s23, 0
      %s221 = sadd.s32 %s220, %s218
      %s222 = smul.addr %s221, 4
      %s223 = scalar_lea.vmem %s0, %s222
      %p224 = pneg %p58
      %p225 = pneg %p55
      %s226 = smul.u32 16, %s23
      %p227 = scmp.lt.s32.totalorder %s226, 15
      %s228 = scalar_select %p227, %s226, 15
      %p229 = scmp.lt.s32.totalorder %s21, 0
      %s230 = scalar_select %p229, %s21, 0
      %s231 = sadd.s32 %s230, %s228
      %s232 = smul.addr %s231, 4
      %s233 = scalar_lea.vmem %s1, %s232
      %p234 = pneg %p86
      %p235 = pneg %p83
      %p236 = pneg %p114
      %p237 = pneg %p111
      %s238 = smul.u32 64, %s22
      %p239 = scmp.lt.s32.totalorder %s238, 127
      %s240 = scalar_select %p239, %s238, 127
      %p241 = scmp.lt.s32.totalorder %s21, 0
      %s242 = scalar_select %p241, %s21, 0
      %s243 = sadd.s32 %s242, %s240
      %s244 = smul.addr %s243, 8
      %s245 = scalar_lea.vmem %s2, %s244
      %p246 = pneg %p140
      %p247 = pneg %p137
      %p248 = scmp.lt.s32.totalorder %s21, 0
      %s249 = scalar_select %p248, %s21, 0
      %s250 = scalar_lea.vmem %s3, %s249
      %p251 = pneg %p166
      %p252 = pneg %p163
      %p253 = scmp.lt.s32.totalorder %s21, 0
      %s254 = scalar_select %p253, %s21, 0
      %s255 = scalar_lea.vmem %s4, %s254
      %s256 = smul.u32 64, %s22
      %p257 = scmp.lt.s32.totalorder %s256, 127
      %s258 = scalar_select %p257, %s256, 127
      %p259 = scmp.lt.s32.totalorder %s23, 0
      %s260 = scalar_select %p259, %s23, 0
      %s261 = sadd.s32 %s260, %s258
      %s262 = smul.addr %s261, 4
      %s263 = scalar_lea.vmem %s0, %s262
      %s264 = smul.u32 64, %s22
      %s265 = smul.u32 16, %s23
      %p266 = scmp.lt.s32.totalorder %s265, 15
      %s267 = scalar_select %p266, %s265, 15
      %p268 = scmp.lt.s32.totalorder %s21, 0
      %s269 = scalar_select %p268, %s21, 0
      %s270 = sadd.s32 %s269, %s267
      %s271 = smul.addr %s270, 4
      %s272 = scalar_lea.vmem %s1, %s271
      %s273 = smul.u32 16, %s23
      %s274 = smul.u32 64, %s22
      %p275 = scmp.lt.s32.totalorder %s274, 127
      %s276 = scalar_select %p275, %s274, 127
      %p277 = scmp.lt.s32.totalorder %s21, 0
      %s278 = scalar_select %p277, %s21, 0
      %s279 = sadd.s32 %s278, %s276
      %s280 = smul.addr %s279, 8
      %s281 = scalar_lea.vmem %s2, %s280
      %s282 = smul.u32 64, %s22
      %p283 = scmp.lt.s32.totalorder %s21, 0
      %s284 = scalar_select %p283, %s21, 0
      %s285 = scalar_lea.vmem %s3, %s284
      %p286 = scmp.lt.s32.totalorder %s21, 0
      %s287 = scalar_select %p286, %s21, 0
      %s288 = scalar_lea.vmem %s4, %s287
      %p290 = scmp.eq.s32.totalorder %s23, 0
      // Predicated region
      $region29: #{bottleneck3d_forward.8} parent=27 // pred_check
        %p291 = pneg %p290
      $region30: #{bottleneck3d_forward.8} parent=27 // pred_check_branch
        %293 = sbr.rel (%p291) target = $region32
      $region31: #{bottleneck3d_forward.8} parent=27 // pred_region
        %294 = vst [vmem:[%s281] sm:$0xff] 0.0
        %295 = vst [vmem:[%s281 + $0x8] sm:$0xff] 0.0
        %296 = vst [vmem:[%s281 + $0x10] sm:$0xff] 0.0
        %297 = vst [vmem:[%s281 + $0x18] sm:$0xff] 0.0
        %298 = vst [vmem:[%s281 + $0x20] sm:$0xff] 0.0
        %299 = vst [vmem:[%s281 + $0x28] sm:$0xff] 0.0
        %300 = vst [vmem:[%s281 + $0x30] sm:$0xff] 0.0
        %301 = vst [vmem:[%s281 + $0x38] sm:$0xff] 0.0
        %302 = vst [vmem:[%s281 + $0x40] sm:$0xff] 0.0
        %303 = vst [vmem:[%s281 + $0x48] sm:$0xff] 0.0
        %304 = vst [vmem:[%s281 + $0x50] sm:$0xff] 0.0
        %305 = vst [vmem:[%s281 + $0x58] sm:$0xff] 0.0
        %306 = vst [vmem:[%s281 + $0x60] sm:$0xff] 0.0
        %307 = vst [vmem:[%s281 + $0x68] sm:$0xff] 0.0
        %308 = vst [vmem:[%s281 + $0x70] sm:$0xff] 0.0
        %309 = vst [vmem:[%s281 + $0x78] sm:$0xff] 0.0
        %310 = vst [vmem:[%s281 + $0x80] sm:$0xff] 0.0
        %311 = vst [vmem:[%s281 + $0x88] sm:$0xff] 0.0
        %312 = vst [vmem:[%s281 + $0x90] sm:$0xff] 0.0
        %313 = vst [vmem:[%s281 + $0x98] sm:$0xff] 0.0
        %314 = vst [vmem:[%s281 + $0xa0] sm:$0xff] 0.0
        %315 = vst [vmem:[%s281 + $0xa8] sm:$0xff] 0.0
        %316 = vst [vmem:[%s281 + $0xb0] sm:$0xff] 0.0
        %317 = vst [vmem:[%s281 + $0xb8] sm:$0xff] 0.0
        %318 = vst [vmem:[%s281 + $0xc0] sm:$0xff] 0.0
        %319 = vst [vmem:[%s281 + $0xc8] sm:$0xff] 0.0
        %320 = vst [vmem:[%s281 + $0xd0] sm:$0xff] 0.0
        %321 = vst [vmem:[%s281 + $0xd8] sm:$0xff] 0.0
        %322 = vst [vmem:[%s281 + $0xe0] sm:$0xff] 0.0
        %323 = vst [vmem:[%s281 + $0xe8] sm:$0xff] 0.0
        %324 = vst [vmem:[%s281 + $0xf0] sm:$0xff] 0.0
        %325 = vst [vmem:[%s281 + $0xf8] sm:$0xff] 0.0
        %326 = vst [vmem:[%s281 + $0x100] sm:$0xff] 0.0
        %327 = vst [vmem:[%s281 + $0x108] sm:$0xff] 0.0
        %328 = vst [vmem:[%s281 + $0x110] sm:$0xff] 0.0
        %329 = vst [vmem:[%s281 + $0x118] sm:$0xff] 0.0
        %330 = vst [vmem:[%s281 + $0x120] sm:$0xff] 0.0
        %331 = vst [vmem:[%s281 + $0x128] sm:$0xff] 0.0
        %332 = vst [vmem:[%s281 + $0x130] sm:$0xff] 0.0
        %333 = vst [vmem:[%s281 + $0x138] sm:$0xff] 0.0
        %334 = vst [vmem:[%s281 + $0x140] sm:$0xff] 0.0
        %335 = vst [vmem:[%s281 + $0x148] sm:$0xff] 0.0
        %336 = vst [vmem:[%s281 + $0x150] sm:$0xff] 0.0
        %337 = vst [vmem:[%s281 + $0x158] sm:$0xff] 0.0
        %338 = vst [vmem:[%s281 + $0x160] sm:$0xff] 0.0
        %339 = vst [vmem:[%s281 + $0x168] sm:$0xff] 0.0
        %340 = vst [vmem:[%s281 + $0x170] sm:$0xff] 0.0
        %341 = vst [vmem:[%s281 + $0x178] sm:$0xff] 0.0
        %342 = vst [vmem:[%s281 + $0x180] sm:$0xff] 0.0
        %343 = vst [vmem:[%s281 + $0x188] sm:$0xff] 0.0
        %344 = vst [vmem:[%s281 + $0x190] sm:$0xff] 0.0
        %345 = vst [vmem:[%s281 + $0x198] sm:$0xff] 0.0
        %346 = vst [vmem:[%s281 + $0x1a0] sm:$0xff] 0.0
        %347 = vst [vmem:[%s281 + $0x1a8] sm:$0xff] 0.0
        %348 = vst [vmem:[%s281 + $0x1b0] sm:$0xff] 0.0
        %349 = vst [vmem:[%s281 + $0x1b8] sm:$0xff] 0.0
        %350 = vst [vmem:[%s281 + $0x1c0] sm:$0xff] 0.0
        %351 = vst [vmem:[%s281 + $0x1c8] sm:$0xff] 0.0
        %352 = vst [vmem:[%s281 + $0x1d0] sm:$0xff] 0.0
        %353 = vst [vmem:[%s281 + $0x1d8] sm:$0xff] 0.0
        %354 = vst [vmem:[%s281 + $0x1e0] sm:$0xff] 0.0
        %355 = vst [vmem:[%s281 + $0x1e8] sm:$0xff] 0.0
        %356 = vst [vmem:[%s281 + $0x1f0] sm:$0xff] 0.0
        %357 = vst [vmem:[%s281 + $0x1f8] sm:$0xff] 0.0
      $region32: #{bottleneck3d_forward.8} parent=27 // pred_fallthru
        _
      %p358 = scmp.eq.s32.totalorder %s22, 0
      %p359 = pnand %p358, %p290
      %p360 = pneg %p359
      // Predicated region
      $region33: #{bottleneck3d_forward.8} parent=27 // pred_check
        _
      $region34: #{bottleneck3d_forward.8} parent=27 // pred_check_branch
        %362 = sbr.rel (%p359) target = $region36
      $region35: #{bottleneck3d_forward.8} parent=27 // pred_region
        %363 = vst [vmem:[%s285] sm:$0x1] 0.0
        %364 = vst [vmem:[%s288] sm:$0x1] 0.0
      $region36: #{bottleneck3d_forward.8} parent=27 // pred_fallthru
        _
      %v365 = vld [vmem:[%s281] sm:$0xff]
      %v366 = vld [vmem:[%s281 + $0x8] sm:$0xff]
      %v367 = vld [vmem:[%s281 + $0x10] sm:$0xff]
      %v368 = vld [vmem:[%s281 + $0x18] sm:$0xff]
      %v369 = vld [vmem:[%s281 + $0x20] sm:$0xff]
      %v370 = vld [vmem:[%s281 + $0x28] sm:$0xff]
      %v371 = vld [vmem:[%s281 + $0x30] sm:$0xff]
      %v372 = vld [vmem:[%s281 + $0x38] sm:$0xff]
      %v373 = vld [vmem:[%s281 + $0x40] sm:$0xff]
      %v374 = vld [vmem:[%s281 + $0x48] sm:$0xff]
      %v375 = vld [vmem:[%s281 + $0x50] sm:$0xff]
      %v376 = vld [vmem:[%s281 + $0x58] sm:$0xff]
      %v377 = vld [vmem:[%s281 + $0x60] sm:$0xff]
      %v378 = vld [vmem:[%s281 + $0x68] sm:$0xff]
      %v379 = vld [vmem:[%s281 + $0x70] sm:$0xff]
      %v380 = vld [vmem:[%s281 + $0x78] sm:$0xff]
      %v381 = vld [vmem:[%s281 + $0x80] sm:$0xff]
      %v382 = vld [vmem:[%s281 + $0x88] sm:$0xff]
      %v383 = vld [vmem:[%s281 + $0x90] sm:$0xff]
      %v384 = vld [vmem:[%s281 + $0x98] sm:$0xff]
      %v385 = vld [vmem:[%s281 + $0xa0] sm:$0xff]
      %v386 = vld [vmem:[%s281 + $0xa8] sm:$0xff]
      %v387 = vld [vmem:[%s281 + $0xb0] sm:$0xff]
      %v388 = vld [vmem:[%s281 + $0xb8] sm:$0xff]
      %v389 = vld [vmem:[%s281 + $0xc0] sm:$0xff]
      %v390 = vld [vmem:[%s281 + $0xc8] sm:$0xff]
      %v391 = vld [vmem:[%s281 + $0xd0] sm:$0xff]
      %v392 = vld [vmem:[%s281 + $0xd8] sm:$0xff]
      %v393 = vld [vmem:[%s281 + $0xe0] sm:$0xff]
      %v394 = vld [vmem:[%s281 + $0xe8] sm:$0xff]
      %v395 = vld [vmem:[%s281 + $0xf0] sm:$0xff]
      %v396 = vld [vmem:[%s281 + $0xf8] sm:$0xff]
      %v397 = vld [vmem:[%s281 + $0x100] sm:$0xff]
      %v398 = vld [vmem:[%s281 + $0x108] sm:$0xff]
      %v399 = vld [vmem:[%s281 + $0x110] sm:$0xff]
      %v400 = vld [vmem:[%s281 + $0x118] sm:$0xff]
      %v401 = vld [vmem:[%s281 + $0x120] sm:$0xff]
      %v402 = vld [vmem:[%s281 + $0x128] sm:$0xff]
      %v403 = vld [vmem:[%s281 + $0x130] sm:$0xff]
      %v404 = vld [vmem:[%s281 + $0x138] sm:$0xff]
      %v405 = vld [vmem:[%s281 + $0x140] sm:$0xff]
      %v406 = vld [vmem:[%s281 + $0x148] sm:$0xff]
      %v407 = vld [vmem:[%s281 + $0x150] sm:$0xff]
      %v408 = vld [vmem:[%s281 + $0x158] sm:$0xff]
      %v409 = vld [vmem:[%s281 + $0x160] sm:$0xff]
      %v410 = vld [vmem:[%s281 + $0x168] sm:$0xff]
      %v411 = vld [vmem:[%s281 + $0x170] sm:$0xff]
      %v412 = vld [vmem:[%s281 + $0x178] sm:$0xff]
      %v413 = vld [vmem:[%s281 + $0x180] sm:$0xff]
      %v414 = vld [vmem:[%s281 + $0x188] sm:$0xff]
      %v415 = vld [vmem:[%s281 + $0x190] sm:$0xff]
      %v416 = vld [vmem:[%s281 + $0x198] sm:$0xff]
      %v417 = vld [vmem:[%s281 + $0x1a0] sm:$0xff]
      %v418 = vld [vmem:[%s281 + $0x1a8] sm:$0xff]
      %v419 = vld [vmem:[%s281 + $0x1b0] sm:$0xff]
      %v420 = vld [vmem:[%s281 + $0x1b8] sm:$0xff]
      %v421 = vld [vmem:[%s281 + $0x1c0] sm:$0xff]
      %v422 = vld [vmem:[%s281 + $0x1c8] sm:$0xff]
      %v423 = vld [vmem:[%s281 + $0x1d0] sm:$0xff]
      %v424 = vld [vmem:[%s281 + $0x1d8] sm:$0xff]
      %v425 = vld [vmem:[%s281 + $0x1e0] sm:$0xff]
      %v426 = vld [vmem:[%s281 + $0x1e8] sm:$0xff]
      %v427 = vld [vmem:[%s281 + $0x1f0] sm:$0xff]
      %v428 = vld [vmem:[%s281 + $0x1f8] sm:$0xff]
      %v429 = vld [vmem:[%s263] sm:$0xf]
      %v430 = vld [vmem:[%s263 + $0x4] sm:$0xf]
      %v431 = vld [vmem:[%s263 + $0x8] sm:$0xf]
      %v432 = vld [vmem:[%s263 + $0xc] sm:$0xf]
      %v433 = vld [vmem:[%s263 + $0x10] sm:$0xf]
      %v434 = vld [vmem:[%s263 + $0x14] sm:$0xf]
      %v435 = vld [vmem:[%s263 + $0x18] sm:$0xf]
      %v436 = vld [vmem:[%s263 + $0x1c] sm:$0xf]
      %v437 = vld [vmem:[%s263 + $0x20] sm:$0xf]
      %v438 = vld [vmem:[%s263 + $0x24] sm:$0xf]
      %v439 = vld [vmem:[%s263 + $0x28] sm:$0xf]
      %v440 = vld [vmem:[%s263 + $0x2c] sm:$0xf]
      %v441 = vld [vmem:[%s263 + $0x30] sm:$0xf]
      %v442 = vld [vmem:[%s263 + $0x34] sm:$0xf]
      %v443 = vld [vmem:[%s263 + $0x38] sm:$0xf]
      %v444 = vld [vmem:[%s263 + $0x3c] sm:$0xf]
      %v445 = vld [vmem:[%s263 + $0x40] sm:$0xf]
      %v446 = vld [vmem:[%s263 + $0x44] sm:$0xf]
      %v447 = vld [vmem:[%s263 + $0x48] sm:$0xf]
      %v448 = vld [vmem:[%s263 + $0x4c] sm:$0xf]
      %v449 = vld [vmem:[%s263 + $0x50] sm:$0xf]
      %v450 = vld [vmem:[%s263 + $0x54] sm:$0xf]
      %v451 = vld [vmem:[%s263 + $0x58] sm:$0xf]
      %v452 = vld [vmem:[%s263 + $0x5c] sm:$0xf]
      %v453 = vld [vmem:[%s263 + $0x60] sm:$0xf]
      %v454 = vld [vmem:[%s263 + $0x64] sm:$0xf]
      %v455 = vld [vmem:[%s263 + $0x68] sm:$0xf]
      %v456 = vld [vmem:[%s263 + $0x6c] sm:$0xf]
      %v457 = vld [vmem:[%s263 + $0x70] sm:$0xf]
      %v458 = vld [vmem:[%s263 + $0x74] sm:$0xf]
      %v459 = vld [vmem:[%s263 + $0x78] sm:$0xf]
      %v460 = vld [vmem:[%s263 + $0x7c] sm:$0xf]
      %v461 = vld [vmem:[%s263 + $0x80] sm:$0xf]
      %v462 = vld [vmem:[%s263 + $0x84] sm:$0xf]
      %v463 = vld [vmem:[%s263 + $0x88] sm:$0xf]
      %v464 = vld [vmem:[%s263 + $0x8c] sm:$0xf]
      %v465 = vld [vmem:[%s263 + $0x90] sm:$0xf]
      %v466 = vld [vmem:[%s263 + $0x94] sm:$0xf]
      %v467 = vld [vmem:[%s263 + $0x98] sm:$0xf]
      %v468 = vld [vmem:[%s263 + $0x9c] sm:$0xf]
      %v469 = vld [vmem:[%s263 + $0xa0] sm:$0xf]
      %v470 = vld [vmem:[%s263 + $0xa4] sm:$0xf]
      %v471 = vld [vmem:[%s263 + $0xa8] sm:$0xf]
      %v472 = vld [vmem:[%s263 + $0xac] sm:$0xf]
      %v473 = vld [vmem:[%s263 + $0xb0] sm:$0xf]
      %v474 = vld [vmem:[%s263 + $0xb4] sm:$0xf]
      %v475 = vld [vmem:[%s263 + $0xb8] sm:$0xf]
      %v476 = vld [vmem:[%s263 + $0xbc] sm:$0xf]
      %v477 = vld [vmem:[%s263 + $0xc0] sm:$0xf]
      %v478 = vld [vmem:[%s263 + $0xc4] sm:$0xf]
      %v479 = vld [vmem:[%s263 + $0xc8] sm:$0xf]
      %v480 = vld [vmem:[%s263 + $0xcc] sm:$0xf]
      %v481 = vld [vmem:[%s263 + $0xd0] sm:$0xf]
      %v482 = vld [vmem:[%s263 + $0xd4] sm:$0xf]
      %v483 = vld [vmem:[%s263 + $0xd8] sm:$0xf]
      %v484 = vld [vmem:[%s263 + $0xdc] sm:$0xf]
      %v485 = vld [vmem:[%s263 + $0xe0] sm:$0xf]
      %v486 = vld [vmem:[%s263 + $0xe4] sm:$0xf]
      %v487 = vld [vmem:[%s263 + $0xe8] sm:$0xf]
      %v488 = vld [vmem:[%s263 + $0xec] sm:$0xf]
      %v489 = vld [vmem:[%s263 + $0xf0] sm:$0xf]
      %v490 = vld [vmem:[%s263 + $0xf4] sm:$0xf]
      %v491 = vld [vmem:[%s263 + $0xf8] sm:$0xf]
      %v492 = vld [vmem:[%s263 + $0xfc] sm:$0xf]
      %v493 = vld [vmem:[%s272] sm:$0xf]
      %v494 = vld [vmem:[%s272 + $0x4] sm:$0xf]
      %v495 = vld [vmem:[%s272 + $0x8] sm:$0xf]
      %v496 = vld [vmem:[%s272 + $0xc] sm:$0xf]
      %v497 = vld [vmem:[%s272 + $0x10] sm:$0xf]
      %v498 = vld [vmem:[%s272 + $0x14] sm:$0xf]
      %v499 = vld [vmem:[%s272 + $0x18] sm:$0xf]
      %v500 = vld [vmem:[%s272 + $0x1c] sm:$0xf]
      %v501 = vld [vmem:[%s272 + $0x20] sm:$0xf]
      %v502 = vld [vmem:[%s272 + $0x24] sm:$0xf]
      %v503 = vld [vmem:[%s272 + $0x28] sm:$0xf]
      %v504 = vld [vmem:[%s272 + $0x2c] sm:$0xf]
      %v505 = vld [vmem:[%s272 + $0x30] sm:$0xf]
      %v506 = vld [vmem:[%s272 + $0x34] sm:$0xf]
      %v507 = vld [vmem:[%s272 + $0x38] sm:$0xf]
      %v508 = vld [vmem:[%s272 + $0x3c] sm:$0xf]
      %v573 = vunpack.c.l.b16 %v429
      %v574 = vunpack.c.l.b16 %v430
      %v575 = vunpack.c.l.b16 %v431
      %v576 = vunpack.c.l.b16 %v432
      %v577 = vunpack.c.l.b16 %v433
      %v578 = vunpack.c.l.b16 %v434
      %v579 = vunpack.c.l.b16 %v435
      %v580 = vunpack.c.l.b16 %v436
      %v581 = vunpack.c.l.b16 %v437
      %v582 = vunpack.c.l.b16 %v438
      %v583 = vunpack.c.l.b16 %v439
      %v584 = vunpack.c.l.b16 %v440
      %v585 = vunpack.c.l.b16 %v441
      %v586 = vunpack.c.l.b16 %v442
      %v587 = vunpack.c.l.b16 %v443
      %v588 = vunpack.c.l.b16 %v444
      %v589 = vunpack.c.l.b16 %v445
      %v590 = vunpack.c.l.b16 %v446
      %v591 = vunpack.c.l.b16 %v447
      %v592 = vunpack.c.l.b16 %v448
      %v593 = vunpack.c.l.b16 %v449
      %v594 = vunpack.c.l.b16 %v450
      %v595 = vunpack.c.l.b16 %v451
      %v596 = vunpack.c.l.b16 %v452
      %v597 = vunpack.c.l.b16 %v453
      %v598 = vunpack.c.l.b16 %v454
      %v599 = vunpack.c.l.b16 %v455
      %v600 = vunpack.c.l.b16 %v456
      %v601 = vunpack.c.l.b16 %v457
      %v602 = vunpack.c.l.b16 %v458
      %v603 = vunpack.c.l.b16 %v459
      %v604 = vunpack.c.l.b16 %v460
      %v605 = vunpack.c.l.b16 %v461
      %v606 = vunpack.c.l.b16 %v462
      %v607 = vunpack.c.l.b16 %v463
      %v608 = vunpack.c.l.b16 %v464
      %v609 = vunpack.c.l.b16 %v465
      %v610 = vunpack.c.l.b16 %v466
      %v611 = vunpack.c.l.b16 %v467
      %v612 = vunpack.c.l.b16 %v468
      %v613 = vunpack.c.l.b16 %v469
      %v614 = vunpack.c.l.b16 %v470
      %v615 = vunpack.c.l.b16 %v471
      %v616 = vunpack.c.l.b16 %v472
      %v617 = vunpack.c.l.b16 %v473
      %v618 = vunpack.c.l.b16 %v474
      %v619 = vunpack.c.l.b16 %v475
      %v620 = vunpack.c.l.b16 %v476
      %v621 = vunpack.c.l.b16 %v477
      %v622 = vunpack.c.l.b16 %v478
      %v623 = vunpack.c.l.b16 %v479
      %v624 = vunpack.c.l.b16 %v480
      %v625 = vunpack.c.l.b16 %v481
      %v626 = vunpack.c.l.b16 %v482
      %v627 = vunpack.c.l.b16 %v483
      %v628 = vunpack.c.l.b16 %v484
      %v629 = vunpack.c.l.b16 %v485
      %v630 = vunpack.c.l.b16 %v486
      %v631 = vunpack.c.l.b16 %v487
      %v632 = vunpack.c.l.b16 %v488
      %v633 = vunpack.c.l.b16 %v489
      %v634 = vunpack.c.l.b16 %v490
      %v635 = vunpack.c.l.b16 %v491
      %v636 = vunpack.c.l.b16 %v492
      %v637 = vpack.c.b16 %v574, %v573
      %v638 = vpack.c.b16 %v576, %v575
      %v639 = vpack.c.b16 %v578, %v577
      %v640 = vpack.c.b16 %v580, %v579
      %v641 = vpack.c.b16 %v582, %v581
      %v642 = vpack.c.b16 %v584, %v583
      %v643 = vpack.c.b16 %v586, %v585
      %v644 = vpack.c.b16 %v588, %v587
      %v645 = vpack.c.b16 %v590, %v589
      %v646 = vpack.c.b16 %v592, %v591
      %v647 = vpack.c.b16 %v594, %v593
      %v648 = vpack.c.b16 %v596, %v595
      %v649 = vpack.c.b16 %v598, %v597
      %v650 = vpack.c.b16 %v600, %v599
      %v651 = vpack.c.b16 %v602, %v601
      %v652 = vpack.c.b16 %v604, %v603
      %v653 = vpack.c.b16 %v606, %v605
      %v654 = vpack.c.b16 %v608, %v607
      %v655 = vpack.c.b16 %v610, %v609
      %v656 = vpack.c.b16 %v612, %v611
      %v657 = vpack.c.b16 %v614, %v613
      %v658 = vpack.c.b16 %v616, %v615
      %v659 = vpack.c.b16 %v618, %v617
      %v660 = vpack.c.b16 %v620, %v619
      %v661 = vpack.c.b16 %v622, %v621
      %v662 = vpack.c.b16 %v624, %v623
      %v663 = vpack.c.b16 %v626, %v625
      %v664 = vpack.c.b16 %v628, %v627
      %v665 = vpack.c.b16 %v630, %v629
      %v666 = vpack.c.b16 %v632, %v631
      %v667 = vpack.c.b16 %v634, %v633
      %v668 = vpack.c.b16 %v636, %v635
      %v717 = vunpack.c.l.b16 %v493
      %v718 = vunpack.c.l.b16 %v494
      %v719 = vunpack.c.l.b16 %v495
      %v720 = vunpack.c.l.b16 %v496
      %v721 = vunpack.c.l.b16 %v497
      %v722 = vunpack.c.l.b16 %v498
      %v723 = vunpack.c.l.b16 %v499
      %v724 = vunpack.c.l.b16 %v500
      %v725 = vunpack.c.l.b16 %v501
      %v726 = vunpack.c.l.b16 %v502
      %v727 = vunpack.c.l.b16 %v503
      %v728 = vunpack.c.l.b16 %v504
      %v729 = vunpack.c.l.b16 %v505
      %v730 = vunpack.c.l.b16 %v506
      %v731 = vunpack.c.l.b16 %v507
      %v732 = vunpack.c.l.b16 %v508
      %v733 = vpack.c.b16 %v718, %v717
      %v734 = vpack.c.b16 %v720, %v719
      %v735 = vpack.c.b16 %v722, %v721
      %v736 = vpack.c.b16 %v724, %v723
      %v737 = vpack.c.b16 %v726, %v725
      %v738 = vpack.c.b16 %v728, %v727
      %v739 = vpack.c.b16 %v730, %v729
      %v740 = vpack.c.b16 %v732, %v731
      %749 = vmatprep.subr.bf16.mxu0 0
      %750 = vmatpush1.bf16.msra.mxu0 %v733
      %751 = vmatprep.subr.bf16.mxu0 0
      %752 = vmatpush1.bf16.msra.mxu0 %v734
      %753 = vmatprep.subr.bf16.mxu0 0
      %754 = vmatpush1.bf16.msra.mxu0 %v735
      %755 = vmatprep.subr.bf16.mxu0 0
      %756 = vmatpush1.bf16.msra.mxu0 %v736
      %757 = vmatprep.subr.bf16.mxu0 0
      %758 = vmatpush1.bf16.msra.mxu0 %v737
      %759 = vmatprep.subr.bf16.mxu0 0
      %760 = vmatpush1.bf16.msra.mxu0 %v738
      %761 = vmatprep.subr.bf16.mxu0 0
      %762 = vmatpush1.bf16.msra.mxu0 %v739
      %763 = vmatprep.subr.bf16.mxu0 0
      %764 = vmatpush1.bf16.msra.mxu0 %v740
      %765 = vmatprep.subr.bf16.mxu0 0
      %766 = vmatpush1.bf16.msra.mxu0 0
      %767 = vmatprep.subr.bf16.mxu0 0
      %768 = vmatpush1.bf16.msra.mxu0 0
      %769 = vmatprep.subr.bf16.mxu0 0
      %770 = vmatpush1.bf16.msra.mxu0 0
      %771 = vmatprep.subr.bf16.mxu0 0
      %772 = vmatpush1.bf16.msra.mxu0 0
      %773 = vmatprep.subr.bf16.mxu0 0
      %774 = vmatpush1.bf16.msra.mxu0 0
      %775 = vmatprep.subr.bf16.mxu0 0
      %776 = vmatpush1.bf16.msra.mxu0 0
      %777 = vmatprep.subr.bf16.mxu0 0
      %778 = vmatpush1.bf16.msra.mxu0 0
      %779 = vmatprep.subr.bf16.mxu0 0
      %780 = vmatpush1.bf16.msra.mxu0 0
      %781 = vmatprep.mubr.bf16.mxu0 0
      %782 = vmatmul.mubr.bf16.gmra.mrb[0].mxu0 %v637
      %v783 = vpop.f32.mrb[0].mxu0
      %v784 = vadd.f32 0.0, %v783
      %v785 = vpop.f32.mrb[0].mxu0
      %v786 = vpop.f32.mrb[0].mxu0
      %v787 = vadd.f32 0.0, %v786
      %v788 = vpop.f32.mrb[0].mxu0
      %789 = vmatprep.mubr.bf16.mxu0 0
      %790 = vmatmul.mubr.bf16.gmra.mrb[0].mxu0 %v638
      %v791 = vpop.f32.mrb[0].mxu0
      %v792 = vadd.f32 0.0, %v791
      %v793 = vpop.f32.mrb[0].mxu0
      %v794 = vpop.f32.mrb[0].mxu0
      %v795 = vadd.f32 0.0, %v794
      %v796 = vpop.f32.mrb[0].mxu0
      %797 = vmatprep.mubr.bf16.mxu0 0
      %798 = vmatmul.mubr.bf16.gmra.mrb[0].mxu0 %v639
      %v799 = vpop.f32.mrb[0].mxu0
      %v800 = vadd.f32 0.0, %v799
      %v801 = vpop.f32.mrb[0].mxu0
      %v802 = vpop.f32.mrb[0].mxu0
      %v803 = vadd.f32 0.0, %v802
      %v804 = vpop.f32.mrb[0].mxu0
      %805 = vmatprep.mubr.bf16.mxu0 0
      %806 = vmatmul.mubr.bf16.gmra.mrb[0].mxu0 %v640
      %v807 = vpop.f32.mrb[0].mxu0
      %v808 = vadd.f32 0.0, %v807
      %v809 = vpop.f32.mrb[0].mxu0
      %v810 = vpop.f32.mrb[0].mxu0
      %v811 = vadd.f32 0.0, %v810
      %v812 = vpop.f32.mrb[0].mxu0
      %813 = vmatprep.mubr.bf16.mxu0 0
      %814 = vmatmul.mubr.bf16.gmra.mrb[0].mxu0 %v641
      %v815 = vpop.f32.mrb[0].mxu0
      %v816 = vadd.f32 0.0, %v815
      %v817 = vpop.f32.mrb[0].mxu0
      %v818 = vpop.f32.mrb[0].mxu0
      %v819 = vadd.f32 0.0, %v818
      %v820 = vpop.f32.mrb[0].mxu0
      %821 = vmatprep.mubr.bf16.mxu0 0
      %822 = vmatmul.mubr.bf16.gmra.mrb[0].mxu0 %v642
      %v823 = vpop.f32.mrb[0].mxu0
      %v824 = vadd.f32 0.0, %v823
      %v825 = vpop.f32.mrb[0].mxu0
      %v826 = vpop.f32.mrb[0].mxu0
      %v827 = vadd.f32 0.0, %v826
      %v828 = vpop.f32.mrb[0].mxu0
      %829 = vmatprep.mubr.bf16.mxu0 0
      %830 = vmatmul.mubr.bf16.gmra.mrb[0].mxu0 %v643
      %v831 = vpop.f32.mrb[0].mxu0
      %v832 = vadd.f32 0.0, %v831
      %v833 = vpop.f32.mrb[0].mxu0
      %v834 = vpop.f32.mrb[0].mxu0
      %v835 = vadd.f32 0.0, %v834
      %v836 = vpop.f32.mrb[0].mxu0
      %837 = vmatprep.mubr.bf16.mxu0 0
      %838 = vmatmul.mubr.bf16.gmra.mrb[0].mxu0 %v644
      %v839 = vpop.f32.mrb[0].mxu0
      %v840 = vadd.f32 0.0, %v839
      %v841 = vpop.f32.mrb[0].mxu0
      %v842 = vpop.f32.mrb[0].mxu0
      %v843 = vadd.f32 0.0, %v842
      %v844 = vpop.f32.mrb[0].mxu0
      %845 = vmatprep.mubr.bf16.mxu0 0
      %846 = vmatmul.mubr.bf16.gmra.mrb[0].mxu0 %v645
      %v847 = vpop.f32.mrb[0].mxu0
      %v848 = vadd.f32 0.0, %v847
      %v849 = vpop.f32.mrb[0].mxu0
      %v850 = vpop.f32.mrb[0].mxu0
      %v851 = vadd.f32 0.0, %v850
      %v852 = vpop.f32.mrb[0].mxu0
      %853 = vmatprep.mubr.bf16.mxu0 0
      %854 = vmatmul.mubr.bf16.gmra.mrb[0].mxu0 %v646
      %v855 = vpop.f32.mrb[0].mxu0
      %v856 = vadd.f32 0.0, %v855
      %v857 = vpop.f32.mrb[0].mxu0
      %v858 = vpop.f32.mrb[0].mxu0
      %v859 = vadd.f32 0.0, %v858
      %v860 = vpop.f32.mrb[0].mxu0
      %861 = vmatprep.mubr.bf16.mxu0 0
      %862 = vmatmul.mubr.bf16.gmra.mrb[0].mxu0 %v647
      %v863 = vpop.f32.mrb[0].mxu0
      %v864 = vadd.f32 0.0, %v863
      %v865 = vpop.f32.mrb[0].mxu0
      %v866 = vpop.f32.mrb[0].mxu0
      %v867 = vadd.f32 0.0, %v866
      %v868 = vpop.f32.mrb[0].mxu0
      %869 = vmatprep.mubr.bf16.mxu0 0
      %870 = vmatmul.mubr.bf16.gmra.mrb[0].mxu0 %v648
      %v871 = vpop.f32.mrb[0].mxu0
      %v872 = vadd.f32 0.0, %v871
      %v873 = vpop.f32.mrb[0].mxu0
      %v874 = vpop.f32.mrb[0].mxu0
      %v875 = vadd.f32 0.0, %v874
      %v876 = vpop.f32.mrb[0].mxu0
      %877 = vmatprep.mubr.bf16.mxu0 0
      %878 = vmatmul.mubr.bf16.gmra.mrb[0].mxu0 %v649
      %v879 = vpop.f32.mrb[0].mxu0
      %v880 = vadd.f32 0.0, %v879
      %v881 = vpop.f32.mrb[0].mxu0
      %v882 = vpop.f32.mrb[0].mxu0
      %v883 = vadd.f32 0.0, %v882
      %v884 = vpop.f32.mrb[0].mxu0
      %885 = vmatprep.mubr.bf16.mxu0 0
      %886 = vmatmul.mubr.bf16.gmra.mrb[0].mxu0 %v650
      %v887 = vpop.f32.mrb[0].mxu0
      %v888 = vadd.f32 0.0, %v887
      %v889 = vpop.f32.mrb[0].mxu0
      %v890 = vpop.f32.mrb[0].mxu0
      %v891 = vadd.f32 0.0, %v890
      %v892 = vpop.f32.mrb[0].mxu0
      %893 = vmatprep.mubr.bf16.mxu0 0
      %894 = vmatmul.mubr.bf16.gmra.mrb[0].mxu0 %v651
      %v895 = vpop.f32.mrb[0].mxu0
      %v896 = vadd.f32 0.0, %v895
      %v897 = vpop.f32.mrb[0].mxu0
      %v898 = vpop.f32.mrb[0].mxu0
      %v899 = vadd.f32 0.0, %v898
      %v900 = vpop.f32.mrb[0].mxu0
      %901 = vmatprep.mubr.bf16.mxu0 0
      %902 = vmatmul.mubr.bf16.gmra.mrb[0].mxu0 %v652
      %v903 = vpop.f32.mrb[0].mxu0
      %v904 = vadd.f32 0.0, %v903
      %v905 = vpop.f32.mrb[0].mxu0
      %v906 = vpop.f32.mrb[0].mxu0
      %v907 = vadd.f32 0.0, %v906
      %v908 = vpop.f32.mrb[0].mxu0
      %909 = vmatprep.mubr.bf16.mxu0 0
      %910 = vmatmul.mubr.bf16.gmra.mrb[0].mxu0 %v653
      %v911 = vpop.f32.mrb[0].mxu0
      %v912 = vadd.f32 0.0, %v911
      %v913 = vpop.f32.mrb[0].mxu0
      %v914 = vpop.f32.mrb[0].mxu0
      %v915 = vadd.f32 0.0, %v914
      %v916 = vpop.f32.mrb[0].mxu0
      %917 = vmatprep.mubr.bf16.mxu0 0
      %918 = vmatmul.mubr.bf16.gmra.mrb[0].mxu0 %v654
      %v919 = vpop.f32.mrb[0].mxu0
      %v920 = vadd.f32 0.0, %v919
      %v921 = vpop.f32.mrb[0].mxu0
      %v922 = vpop.f32.mrb[0].mxu0
      %v923 = vadd.f32 0.0, %v922
      %v924 = vpop.f32.mrb[0].mxu0
      %925 = vmatprep.mubr.bf16.mxu0 0
      %926 = vmatmul.mubr.bf16.gmra.mrb[0].mxu0 %v655
      %v927 = vpop.f32.mrb[0].mxu0
      %v928 = vadd.f32 0.0, %v927
      %v929 = vpop.f32.mrb[0].mxu0
      %v930 = vpop.f32.mrb[0].mxu0
      %v931 = vadd.f32 0.0, %v930
      %v932 = vpop.f32.mrb[0].mxu0
      %933 = vmatprep.mubr.bf16.mxu0 0
      %934 = vmatmul.mubr.bf16.gmra.mrb[0].mxu0 %v656
      %v935 = vpop.f32.mrb[0].mxu0
      %v936 = vadd.f32 0.0, %v935
      %v937 = vpop.f32.mrb[0].mxu0
      %v938 = vpop.f32.mrb[0].mxu0
      %v939 = vadd.f32 0.0, %v938
      %v940 = vpop.f32.mrb[0].mxu0
      %941 = vmatprep.mubr.bf16.mxu0 0
      %942 = vmatmul.mubr.bf16.gmra.mrb[0].mxu0 %v657
      %v943 = vpop.f32.mrb[0].mxu0
      %v944 = vadd.f32 0.0, %v943
      %v945 = vpop.f32.mrb[0].mxu0
      %v946 = vpop.f32.mrb[0].mxu0
      %v947 = vadd.f32 0.0, %v946
      %v948 = vpop.f32.mrb[0].mxu0
      %949 = vmatprep.mubr.bf16.mxu0 0
      %950 = vmatmul.mubr.bf16.gmra.mrb[0].mxu0 %v658
      %v951 = vpop.f32.mrb[0].mxu0
      %v952 = vadd.f32 0.0, %v951
      %v953 = vpop.f32.mrb[0].mxu0
      %v954 = vpop.f32.mrb[0].mxu0
      %v955 = vadd.f32 0.0, %v954
      %v956 = vpop.f32.mrb[0].mxu0
      %957 = vmatprep.mubr.bf16.mxu0 0
      %958 = vmatmul.mubr.bf16.gmra.mrb[0].mxu0 %v659
      %v959 = vpop.f32.mrb[0].mxu0
      %v960 = vadd.f32 0.0, %v959
      %v961 = vpop.f32.mrb[0].mxu0
      %v962 = vpop.f32.mrb[0].mxu0
      %v963 = vadd.f32 0.0, %v962
      %v964 = vpop.f32.mrb[0].mxu0
      %965 = vmatprep.mubr.bf16.mxu0 0
      %966 = vmatmul.mubr.bf16.gmra.mrb[0].mxu0 %v660
      %v967 = vpop.f32.mrb[0].mxu0
      %v968 = vadd.f32 0.0, %v967
      %v969 = vpop.f32.mrb[0].mxu0
      %v970 = vpop.f32.mrb[0].mxu0
      %v971 = vadd.f32 0.0, %v970
      %v972 = vpop.f32.mrb[0].mxu0
      %973 = vmatprep.mubr.bf16.mxu0 0
      %974 = vmatmul.mubr.bf16.gmra.mrb[0].mxu0 %v661
      %v975 = vpop.f32.mrb[0].mxu0
      %v976 = vadd.f32 0.0, %v975
      %v977 = vpop.f32.mrb[0].mxu0
      %v978 = vpop.f32.mrb[0].mxu0
      %v979 = vadd.f32 0.0, %v978
      %v980 = vpop.f32.mrb[0].mxu0
      %981 = vmatprep.mubr.bf16.mxu0 0
      %982 = vmatmul.mubr.bf16.gmra.mrb[0].mxu0 %v662
      %v983 = vpop.f32.mrb[0].mxu0
      %v984 = vadd.f32 0.0, %v983
      %v985 = vpop.f32.mrb[0].mxu0
      %v986 = vpop.f32.mrb[0].mxu0
      %v987 = vadd.f32 0.0, %v986
      %v988 = vpop.f32.mrb[0].mxu0
      %989 = vmatprep.mubr.bf16.mxu0 0
      %990 = vmatmul.mubr.bf16.gmra.mrb[0].mxu0 %v663
      %v991 = vpop.f32.mrb[0].mxu0
      %v992 = vadd.f32 0.0, %v991
      %v993 = vpop.f32.mrb[0].mxu0
      %v994 = vpop.f32.mrb[0].mxu0
      %v995 = vadd.f32 0.0, %v994
      %v996 = vpop.f32.mrb[0].mxu0
      %997 = vmatprep.mubr.bf16.mxu0 0
      %998 = vmatmul.mubr.bf16.gmra.mrb[0].mxu0 %v664
      %v999 = vpop.f32.mrb[0].mxu0
      %v1000 = vadd.f32 0.0, %v999
      %v1001 = vpop.f32.mrb[0].mxu0
      %v1002 = vpop.f32.mrb[0].mxu0
      %v1003 = vadd.f32 0.0, %v1002
      %v1004 = vpop.f32.mrb[0].mxu0
      %1005 = vmatprep.mubr.bf16.mxu0 0
      %1006 = vmatmul.mubr.bf16.gmra.mrb[0].mxu0 %v665
      %v1007 = vpop.f32.mrb[0].mxu0
      %v1008 = vadd.f32 0.0, %v1007
      %v1009 = vpop.f32.mrb[0].mxu0
      %v1010 = vpop.f32.mrb[0].mxu0
      %v1011 = vadd.f32 0.0, %v1010
      %v1012 = vpop.f32.mrb[0].mxu0
      %1013 = vmatprep.mubr.bf16.mxu0 0
      %1014 = vmatmul.mubr.bf16.gmra.mrb[0].mxu0 %v666
      %v1015 = vpop.f32.mrb[0].mxu0
      %v1016 = vadd.f32 0.0, %v1015
      %v1017 = vpop.f32.mrb[0].mxu0
      %v1018 = vpop.f32.mrb[0].mxu0
      %v1019 = vadd.f32 0.0, %v1018
      %v1020 = vpop.f32.mrb[0].mxu0
      %1021 = vmatprep.mubr.bf16.mxu0 0
      %1022 = vmatmul.mubr.bf16.gmra.mrb[0].mxu0 %v667
      %v1023 = vpop.f32.mrb[0].mxu0
      %v1024 = vadd.f32 0.0, %v1023
      %v1025 = vpop.f32.mrb[0].mxu0
      %v1026 = vpop.f32.mrb[0].mxu0
      %v1027 = vadd.f32 0.0, %v1026
      %v1028 = vpop.f32.mrb[0].mxu0
      %1029 = vmatprep.mubr.bf16.mxu0 0
      %1030 = vmatmul.mubr.bf16.gmra.mrb[0].mxu0 %v668
      %v1031 = vpop.f32.mrb[0].mxu0
      %v1032 = vadd.f32 0.0, %v1031
      %v1033 = vpop.f32.mrb[0].mxu0
      %v1034 = vpop.f32.mrb[0].mxu0
      %v1035 = vadd.f32 0.0, %v1034
      %v1036 = vpop.f32.mrb[0].mxu0
      %1037 = vdwg.mxu0
      %v1038 = vadd.f32 %v365, %v784
      %v1039 = vadd.f32 %v366, %v787
      %v1040 = vadd.f32 %v367, %v792
      %v1041 = vadd.f32 %v368, %v795
      %v1042 = vadd.f32 %v369, %v800
      %v1043 = vadd.f32 %v370, %v803
      %v1044 = vadd.f32 %v371, %v808
      %v1045 = vadd.f32 %v372, %v811
      %v1046 = vadd.f32 %v373, %v816
      %v1047 = vadd.f32 %v374, %v819
      %v1048 = vadd.f32 %v375, %v824
      %v1049 = vadd.f32 %v376, %v827
      %v1050 = vadd.f32 %v377, %v832
      %v1051 = vadd.f32 %v378, %v835
      %v1052 = vadd.f32 %v379, %v840
      %v1053 = vadd.f32 %v380, %v843
      %v1054 = vadd.f32 %v381, %v848
      %v1055 = vadd.f32 %v382, %v851
      %v1056 = vadd.f32 %v383, %v856
      %v1057 = vadd.f32 %v384, %v859
      %v1058 = vadd.f32 %v385, %v864
      %v1059 = vadd.f32 %v386, %v867
      %v1060 = vadd.f32 %v387, %v872
      %v1061 = vadd.f32 %v388, %v875
      %v1062 = vadd.f32 %v389, %v880
      %v1063 = vadd.f32 %v390, %v883
      %v1064 = vadd.f32 %v391, %v888
      %v1065 = vadd.f32 %v392, %v891
      %v1066 = vadd.f32 %v393, %v896
      %v1067 = vadd.f32 %v394, %v899
      %v1068 = vadd.f32 %v395, %v904
      %v1069 = vadd.f32 %v396, %v907
      %v1070 = vadd.f32 %v397, %v912
      %v1071 = vadd.f32 %v398, %v915
      %v1072 = vadd.f32 %v399, %v920
      %v1073 = vadd.f32 %v400, %v923
      %v1074 = vadd.f32 %v401, %v928
      %v1075 = vadd.f32 %v402, %v931
      %v1076 = vadd.f32 %v403, %v936
      %v1077 = vadd.f32 %v404, %v939
      %v1078 = vadd.f32 %v405, %v944
      %v1079 = vadd.f32 %v406, %v947
      %v1080 = vadd.f32 %v407, %v952
      %v1081 = vadd.f32 %v408, %v955
      %v1082 = vadd.f32 %v409, %v960
      %v1083 = vadd.f32 %v410, %v963
      %v1084 = vadd.f32 %v411, %v968
      %v1085 = vadd.f32 %v412, %v971
      %v1086 = vadd.f32 %v413, %v976
      %v1087 = vadd.f32 %v414, %v979
      %v1088 = vadd.f32 %v415, %v984
      %v1089 = vadd.f32 %v416, %v987
      %v1090 = vadd.f32 %v417, %v992
      %v1091 = vadd.f32 %v418, %v995
      %v1092 = vadd.f32 %v419, %v1000
      %v1093 = vadd.f32 %v420, %v1003
      %v1094 = vadd.f32 %v421, %v1008
      %v1095 = vadd.f32 %v422, %v1011
      %v1096 = vadd.f32 %v423, %v1016
      %v1097 = vadd.f32 %v424, %v1019
      %v1098 = vadd.f32 %v425, %v1024
      %v1099 = vadd.f32 %v426, %v1027
      %v1100 = vadd.f32 %v427, %v1032
      %v1101 = vadd.f32 %v428, %v1035
      %1102 = vst [vmem:[%s281] sm:$0xff] %v1038
      %1103 = vst [vmem:[%s281 + $0x8] sm:$0xff] %v1039
      %1104 = vst [vmem:[%s281 + $0x10] sm:$0xff] %v1040
      %1105 = vst [vmem:[%s281 + $0x18] sm:$0xff] %v1041
      %1106 = vst [vmem:[%s281 + $0x20] sm:$0xff] %v1042
      %1107 = vst [vmem:[%s281 + $0x28] sm:$0xff] %v1043
      %1108 = vst [vmem:[%s281 + $0x30] sm:$0xff] %v1044
      %1109 = vst [vmem:[%s281 + $0x38] sm:$0xff] %v1045
      %1110 = vst [vmem:[%s281 + $0x40] sm:$0xff] %v1046
      %1111 = vst [vmem:[%s281 + $0x48] sm:$0xff] %v1047
      %1112 = vst [vmem:[%s281 + $0x50] sm:$0xff] %v1048
      %1113 = vst [vmem:[%s281 + $0x58] sm:$0xff] %v1049
      %1114 = vst [vmem:[%s281 + $0x60] sm:$0xff] %v1050
      %1115 = vst [vmem:[%s281 + $0x68] sm:$0xff] %v1051
      %1116 = vst [vmem:[%s281 + $0x70] sm:$0xff] %v1052
      %1117 = vst [vmem:[%s281 + $0x78] sm:$0xff] %v1053
      %1118 = vst [vmem:[%s281 + $0x80] sm:$0xff] %v1054
      %1119 = vst [vmem:[%s281 + $0x88] sm:$0xff] %v1055
      %1120 = vst [vmem:[%s281 + $0x90] sm:$0xff] %v1056
      %1121 = vst [vmem:[%s281 + $0x98] sm:$0xff] %v1057
      %1122 = vst [vmem:[%s281 + $0xa0] sm:$0xff] %v1058
      %1123 = vst [vmem:[%s281 + $0xa8] sm:$0xff] %v1059
      %1124 = vst [vmem:[%s281 + $0xb0] sm:$0xff] %v1060
      %1125 = vst [vmem:[%s281 + $0xb8] sm:$0xff] %v1061
      %1126 = vst [vmem:[%s281 + $0xc0] sm:$0xff] %v1062
      %1127 = vst [vmem:[%s281 + $0xc8] sm:$0xff] %v1063
      %1128 = vst [vmem:[%s281 + $0xd0] sm:$0xff] %v1064
      %1129 = vst [vmem:[%s281 + $0xd8] sm:$0xff] %v1065
      %1130 = vst [vmem:[%s281 + $0xe0] sm:$0xff] %v1066
      %1131 = vst [vmem:[%s281 + $0xe8] sm:$0xff] %v1067
      %1132 = vst [vmem:[%s281 + $0xf0] sm:$0xff] %v1068
      %1133 = vst [vmem:[%s281 + $0xf8] sm:$0xff] %v1069
      %1134 = vst [vmem:[%s281 + $0x100] sm:$0xff] %v1070
      %1135 = vst [vmem:[%s281 + $0x108] sm:$0xff] %v1071
      %1136 = vst [vmem:[%s281 + $0x110] sm:$0xff] %v1072
      %1137 = vst [vmem:[%s281 + $0x118] sm:$0xff] %v1073
      %1138 = vst [vmem:[%s281 + $0x120] sm:$0xff] %v1074
      %1139 = vst [vmem:[%s281 + $0x128] sm:$0xff] %v1075
      %1140 = vst [vmem:[%s281 + $0x130] sm:$0xff] %v1076
      %1141 = vst [vmem:[%s281 + $0x138] sm:$0xff] %v1077
      %1142 = vst [vmem:[%s281 + $0x140] sm:$0xff] %v1078
      %1143 = vst [vmem:[%s281 + $0x148] sm:$0xff] %v1079
      %1144 = vst [vmem:[%s281 + $0x150] sm:$0xff] %v1080
      %1145 = vst [vmem:[%s281 + $0x158] sm:$0xff] %v1081
      %1146 = vst [vmem:[%s281 + $0x160] sm:$0xff] %v1082
      %1147 = vst [vmem:[%s281 + $0x168] sm:$0xff] %v1083
      %1148 = vst [vmem:[%s281 + $0x170] sm:$0xff] %v1084
      %1149 = vst [vmem:[%s281 + $0x178] sm:$0xff] %v1085
      %1150 = vst [vmem:[%s281 + $0x180] sm:$0xff] %v1086
      %1151 = vst [vmem:[%s281 + $0x188] sm:$0xff] %v1087
      %1152 = vst [vmem:[%s281 + $0x190] sm:$0xff] %v1088
      %1153 = vst [vmem:[%s281 + $0x198] sm:$0xff] %v1089
      %1154 = vst [vmem:[%s281 + $0x1a0] sm:$0xff] %v1090
      %1155 = vst [vmem:[%s281 + $0x1a8] sm:$0xff] %v1091
      %1156 = vst [vmem:[%s281 + $0x1b0] sm:$0xff] %v1092
      %1157 = vst [vmem:[%s281 + $0x1b8] sm:$0xff] %v1093
      %1158 = vst [vmem:[%s281 + $0x1c0] sm:$0xff] %v1094
      %1159 = vst [vmem:[%s281 + $0x1c8] sm:$0xff] %v1095
      %1160 = vst [vmem:[%s281 + $0x1d0] sm:$0xff] %v1096
      %1161 = vst [vmem:[%s281 + $0x1d8] sm:$0xff] %v1097
      %1162 = vst [vmem:[%s281 + $0x1e0] sm:$0xff] %v1098
      %1163 = vst [vmem:[%s281 + $0x1e8] sm:$0xff] %v1099
      %1164 = vst [vmem:[%s281 + $0x1f0] sm:$0xff] %v1100
      %1165 = vst [vmem:[%s281 + $0x1f8] sm:$0xff] %v1101
      // Predicated region
      $region37: #{bottleneck3d_forward.8} parent=27 // pred_check
        %p1166 = pneg %p290
      $region38: #{bottleneck3d_forward.8} parent=27 // pred_check_branch
        %1168 = sbr.rel (%p1166) target = $region40
      $region39: #{bottleneck3d_forward.8} parent=27 // pred_region
        %v1169 = vld [vmem:[%s281] sm:$0xff]
        %v1170 = vld [vmem:[%s281 + $0x8] sm:$0xff]
        %v1171 = vld [vmem:[%s281 + $0x10] sm:$0xff]
        %v1172 = vld [vmem:[%s281 + $0x18] sm:$0xff]
        %v1173 = vld [vmem:[%s281 + $0x20] sm:$0xff]
        %v1174 = vld [vmem:[%s281 + $0x28] sm:$0xff]
        %v1175 = vld [vmem:[%s281 + $0x30] sm:$0xff]
        %v1176 = vld [vmem:[%s281 + $0x38] sm:$0xff]
        %v1177 = vld [vmem:[%s281 + $0x40] sm:$0xff]
        %v1178 = vld [vmem:[%s281 + $0x48] sm:$0xff]
        %v1179 = vld [vmem:[%s281 + $0x50] sm:$0xff]
        %v1180 = vld [vmem:[%s281 + $0x58] sm:$0xff]
        %v1181 = vld [vmem:[%s281 + $0x60] sm:$0xff]
        %v1182 = vld [vmem:[%s281 + $0x68] sm:$0xff]
        %v1183 = vld [vmem:[%s281 + $0x70] sm:$0xff]
        %v1184 = vld [vmem:[%s281 + $0x78] sm:$0xff]
        %v1185 = vld [vmem:[%s281 + $0x80] sm:$0xff]
        %v1186 = vld [vmem:[%s281 + $0x88] sm:$0xff]
        %v1187 = vld [vmem:[%s281 + $0x90] sm:$0xff]
        %v1188 = vld [vmem:[%s281 + $0x98] sm:$0xff]
        %v1189 = vld [vmem:[%s281 + $0xa0] sm:$0xff]
        %v1190 = vld [vmem:[%s281 + $0xa8] sm:$0xff]
        %v1191 = vld [vmem:[%s281 + $0xb0] sm:$0xff]
        %v1192 = vld [vmem:[%s281 + $0xb8] sm:$0xff]
        %v1193 = vld [vmem:[%s281 + $0xc0] sm:$0xff]
        %v1194 = vld [vmem:[%s281 + $0xc8] sm:$0xff]
        %v1195 = vld [vmem:[%s281 + $0xd0] sm:$0xff]
        %v1196 = vld [vmem:[%s281 + $0xd8] sm:$0xff]
        %v1197 = vld [vmem:[%s281 + $0xe0] sm:$0xff]
        %v1198 = vld [vmem:[%s281 + $0xe8] sm:$0xff]
        %v1199 = vld [vmem:[%s281 + $0xf0] sm:$0xff]
        %v1200 = vld [vmem:[%s281 + $0xf8] sm:$0xff]
        %v1201 = vld [vmem:[%s281 + $0x100] sm:$0xff]
        %v1202 = vld [vmem:[%s281 + $0x108] sm:$0xff]
        %v1203 = vld [vmem:[%s281 + $0x110] sm:$0xff]
        %v1204 = vld [vmem:[%s281 + $0x118] sm:$0xff]
        %v1205 = vld [vmem:[%s281 + $0x120] sm:$0xff]
        %v1206 = vld [vmem:[%s281 + $0x128] sm:$0xff]
        %v1207 = vld [vmem:[%s281 + $0x130] sm:$0xff]
        %v1208 = vld [vmem:[%s281 + $0x138] sm:$0xff]
        %v1209 = vld [vmem:[%s281 + $0x140] sm:$0xff]
        %v1210 = vld [vmem:[%s281 + $0x148] sm:$0xff]
        %v1211 = vld [vmem:[%s281 + $0x150] sm:$0xff]
        %v1212 = vld [vmem:[%s281 + $0x158] sm:$0xff]
        %v1213 = vld [vmem:[%s281 + $0x160] sm:$0xff]
        %v1214 = vld [vmem:[%s281 + $0x168] sm:$0xff]
        %v1215 = vld [vmem:[%s281 + $0x170] sm:$0xff]
        %v1216 = vld [vmem:[%s281 + $0x178] sm:$0xff]
        %v1217 = vld [vmem:[%s281 + $0x180] sm:$0xff]
        %v1218 = vld [vmem:[%s281 + $0x188] sm:$0xff]
        %v1219 = vld [vmem:[%s281 + $0x190] sm:$0xff]
        %v1220 = vld [vmem:[%s281 + $0x198] sm:$0xff]
        %v1221 = vld [vmem:[%s281 + $0x1a0] sm:$0xff]
        %v1222 = vld [vmem:[%s281 + $0x1a8] sm:$0xff]
        %v1223 = vld [vmem:[%s281 + $0x1b0] sm:$0xff]
        %v1224 = vld [vmem:[%s281 + $0x1b8] sm:$0xff]
        %v1225 = vld [vmem:[%s281 + $0x1c0] sm:$0xff]
        %v1226 = vld [vmem:[%s281 + $0x1c8] sm:$0xff]
        %v1227 = vld [vmem:[%s281 + $0x1d0] sm:$0xff]
        %v1228 = vld [vmem:[%s281 + $0x1d8] sm:$0xff]
        %v1229 = vld [vmem:[%s281 + $0x1e0] sm:$0xff]
        %v1230 = vld [vmem:[%s281 + $0x1e8] sm:$0xff]
        %v1231 = vld [vmem:[%s281 + $0x1f0] sm:$0xff]
        %v1232 = vld [vmem:[%s281 + $0x1f8] sm:$0xff]
        %v1233 = vld [vmem:[%s285] sm:$0x1]
        %v1234 = vadd.f32 %v1169, %v1170
        %v1235 = vadd.f32 %v1234, %v1171
        %v1236 = vadd.f32 %v1235, %v1172
        %v1237 = vadd.f32 %v1236, %v1173
        %v1238 = vadd.f32 %v1237, %v1174
        %v1239 = vadd.f32 %v1238, %v1175
        %v1240 = vadd.f32 %v1239, %v1176
        %v1241 = vadd.f32 %v1240, %v1177
        %v1242 = vadd.f32 %v1241, %v1178
        %v1243 = vadd.f32 %v1242, %v1179
        %v1244 = vadd.f32 %v1243, %v1180
        %v1245 = vadd.f32 %v1244, %v1181
        %v1246 = vadd.f32 %v1245, %v1182
        %v1247 = vadd.f32 %v1246, %v1183
        %v1248 = vadd.f32 %v1247, %v1184
        %v1249 = vadd.f32 %v1248, %v1185
        %v1250 = vadd.f32 %v1249, %v1186
        %v1251 = vadd.f32 %v1250, %v1187
        %v1252 = vadd.f32 %v1251, %v1188
        %v1253 = vadd.f32 %v1252, %v1189
        %v1254 = vadd.f32 %v1253, %v1190
        %v1255 = vadd.f32 %v1254, %v1191
        %v1256 = vadd.f32 %v1255, %v1192
        %v1257 = vadd.f32 %v1256, %v1193
        %v1258 = vadd.f32 %v1257, %v1194
        %v1259 = vadd.f32 %v1258, %v1195
        %v1260 = vadd.f32 %v1259, %v1196
        %v1261 = vadd.f32 %v1260, %v1197
        %v1262 = vadd.f32 %v1261, %v1198
        %v1263 = vadd.f32 %v1262, %v1199
        %v1264 = vadd.f32 %v1263, %v1200
        %v1265 = vadd.f32 %v1264, %v1201
        %v1266 = vadd.f32 %v1265, %v1202
        %v1267 = vadd.f32 %v1266, %v1203
        %v1268 = vadd.f32 %v1267, %v1204
        %v1269 = vadd.f32 %v1268, %v1205
        %v1270 = vadd.f32 %v1269, %v1206
        %v1271 = vadd.f32 %v1270, %v1207
        %v1272 = vadd.f32 %v1271, %v1208
        %v1273 = vadd.f32 %v1272, %v1209
        %v1274 = vadd.f32 %v1273, %v1210
        %v1275 = vadd.f32 %v1274, %v1211
        %v1276 = vadd.f32 %v1275, %v1212
        %v1277 = vadd.f32 %v1276, %v1213
        %v1278 = vadd.f32 %v1277, %v1214
        %v1279 = vadd.f32 %v1278, %v1215
        %v1280 = vadd.f32 %v1279, %v1216
        %v1281 = vadd.f32 %v1280, %v1217
        %v1282 = vadd.f32 %v1281, %v1218
        %v1283 = vadd.f32 %v1282, %v1219
        %v1284 = vadd.f32 %v1283, %v1220
        %v1285 = vadd.f32 %v1284, %v1221
        %v1286 = vadd.f32 %v1285, %v1222
        %v1287 = vadd.f32 %v1286, %v1223
        %v1288 = vadd.f32 %v1287, %v1224
        %v1289 = vadd.f32 %v1288, %v1225
        %v1290 = vadd.f32 %v1289, %v1226
        %v1291 = vadd.f32 %v1290, %v1227
        %v1292 = vadd.f32 %v1291, %v1228
        %v1293 = vadd.f32 %v1292, %v1229
        %v1294 = vadd.f32 %v1293, %v1230
        %v1295 = vadd.f32 %v1294, %v1231
        %v1296 = vadd.f32 %v1295, %v1232
        %v1297 = vrot.slane %v1296, 4
        %v1298 = vadd.f32 %v1296, %v1297
        %v1299 = vrot.slane %v1298, 2
        %v1300 = vadd.f32 %v1298, %v1299
        %v1301 = vrot.slane %v1300, 1
        %v1302 = vadd.f32 %v1300, %v1301
        %v1303 = vadd.f32 %v1233, %v1302
        %1304 = vst [vmem:[%s285] sm:$0x1] %v1303
        %v1305 = vld [vmem:[%s288] sm:$0x1]
        %v1306 = vmul.f32 %v1169, %v1169
        %v1307 = vmul.f32 %v1170, %v1170
        %v1308 = vmul.f32 %v1171, %v1171
        %v1309 = vmul.f32 %v1172, %v1172
        %v1310 = vmul.f32 %v1173, %v1173
        %v1311 = vmul.f32 %v1174, %v1174
        %v1312 = vmul.f32 %v1175, %v1175
        %v1313 = vmul.f32 %v1176, %v1176
        %v1314 = vmul.f32 %v1177, %v1177
        %v1315 = vmul.f32 %v1178, %v1178
        %v1316 = vmul.f32 %v1179, %v1179
        %v1317 = vmul.f32 %v1180, %v1180
        %v1318 = vmul.f32 %v1181, %v1181
        %v1319 = vmul.f32 %v1182, %v1182
        %v1320 = vmul.f32 %v1183, %v1183
        %v1321 = vmul.f32 %v1184, %v1184
        %v1322 = vmul.f32 %v1185, %v1185
        %v1323 = vmul.f32 %v1186, %v1186
        %v1324 = vmul.f32 %v1187, %v1187
        %v1325 = vmul.f32 %v1188, %v1188
        %v1326 = vmul.f32 %v1189, %v1189
        %v1327 = vmul.f32 %v1190, %v1190
        %v1328 = vmul.f32 %v1191, %v1191
        %v1329 = vmul.f32 %v1192, %v1192
        %v1330 = vmul.f32 %v1193, %v1193
        %v1331 = vmul.f32 %v1194, %v1194
        %v1332 = vmul.f32 %v1195, %v1195
        %v1333 = vmul.f32 %v1196, %v1196
        %v1334 = vmul.f32 %v1197, %v1197
        %v1335 = vmul.f32 %v1198, %v1198
        %v1336 = vmul.f32 %v1199, %v1199
        %v1337 = vmul.f32 %v1200, %v1200
        %v1338 = vmul.f32 %v1201, %v1201
        %v1339 = vmul.f32 %v1202, %v1202
        %v1340 = vmul.f32 %v1203, %v1203
        %v1341 = vmul.f32 %v1204, %v1204
        %v1342 = vmul.f32 %v1205, %v1205
        %v1343 = vmul.f32 %v1206, %v1206
        %v1344 = vmul.f32 %v1207, %v1207
        %v1345 = vmul.f32 %v1208, %v1208
        %v1346 = vmul.f32 %v1209, %v1209
        %v1347 = vmul.f32 %v1210, %v1210
        %v1348 = vmul.f32 %v1211, %v1211
        %v1349 = vmul.f32 %v1212, %v1212
        %v1350 = vmul.f32 %v1213, %v1213
        %v1351 = vmul.f32 %v1214, %v1214
        %v1352 = vmul.f32 %v1215, %v1215
        %v1353 = vmul.f32 %v1216, %v1216
        %v1354 = vmul.f32 %v1217, %v1217
        %v1355 = vmul.f32 %v1218, %v1218
        %v1356 = vmul.f32 %v1219, %v1219
        %v1357 = vmul.f32 %v1220, %v1220
        %v1358 = vmul.f32 %v1221, %v1221
        %v1359 = vmul.f32 %v1222, %v1222
        %v1360 = vmul.f32 %v1223, %v1223
        %v1361 = vmul.f32 %v1224, %v1224
        %v1362 = vmul.f32 %v1225, %v1225
        %v1363 = vmul.f32 %v1226, %v1226
        %v1364 = vmul.f32 %v1227, %v1227
        %v1365 = vmul.f32 %v1228, %v1228
        %v1366 = vmul.f32 %v1229, %v1229
        %v1367 = vmul.f32 %v1230, %v1230
        %v1368 = vmul.f32 %v1231, %v1231
        %v1369 = vmul.f32 %v1232, %v1232
        %v1370 = vadd.f32 %v1306, %v1307
        %v1371 = vadd.f32 %v1370, %v1308
        %v1372 = vadd.f32 %v1371, %v1309
        %v1373 = vadd.f32 %v1372, %v1310
        %v1374 = vadd.f32 %v1373, %v1311
        %v1375 = vadd.f32 %v1374, %v1312
        %v1376 = vadd.f32 %v1375, %v1313
        %v1377 = vadd.f32 %v1376, %v1314
        %v1378 = vadd.f32 %v1377, %v1315
        %v1379 = vadd.f32 %v1378, %v1316
        %v1380 = vadd.f32 %v1379, %v1317
        %v1381 = vadd.f32 %v1380, %v1318
        %v1382 = vadd.f32 %v1381, %v1319
        %v1383 = vadd.f32 %v1382, %v1320
        %v1384 = vadd.f32 %v1383, %v1321
        %v1385 = vadd.f32 %v1384, %v1322
        %v1386 = vadd.f32 %v1385, %v1323
        %v1387 = vadd.f32 %v1386, %v1324
        %v1388 = vadd.f32 %v1387, %v1325
        %v1389 = vadd.f32 %v1388, %v1326
        %v1390 = vadd.f32 %v1389, %v1327
        %v1391 = vadd.f32 %v1390, %v1328
        %v1392 = vadd.f32 %v1391, %v1329
        %v1393 = vadd.f32 %v1392, %v1330
        %v1394 = vadd.f32 %v1393, %v1331
        %v1395 = vadd.f32 %v1394, %v1332
        %v1396 = vadd.f32 %v1395, %v1333
        %v1397 = vadd.f32 %v1396, %v1334
        %v1398 = vadd.f32 %v1397, %v1335
        %v1399 = vadd.f32 %v1398, %v1336
        %v1400 = vadd.f32 %v1399, %v1337
        %v1401 = vadd.f32 %v1400, %v1338
        %v1402 = vadd.f32 %v1401, %v1339
        %v1403 = vadd.f32 %v1402, %v1340
        %v1404 = vadd.f32 %v1403, %v1341
        %v1405 = vadd.f32 %v1404, %v1342
        %v1406 = vadd.f32 %v1405, %v1343
        %v1407 = vadd.f32 %v1406, %v1344
        %v1408 = vadd.f32 %v1407, %v1345
        %v1409 = vadd.f32 %v1408, %v1346
        %v1410 = vadd.f32 %v1409, %v1347
        %v1411 = vadd.f32 %v1410, %v1348
        %v1412 = vadd.f32 %v1411, %v1349
        %v1413 = vadd.f32 %v1412, %v1350
        %v1414 = vadd.f32 %v1413, %v1351
        %v1415 = vadd.f32 %v1414, %v1352
        %v1416 = vadd.f32 %v1415, %v1353
        %v1417 = vadd.f32 %v1416, %v1354
        %v1418 = vadd.f32 %v1417, %v1355
        %v1419 = vadd.f32 %v1418, %v1356
        %v1420 = vadd.f32 %v1419, %v1357
        %v1421 = vadd.f32 %v1420, %v1358
        %v1422 = vadd.f32 %v1421, %v1359
        %v1423 = vadd.f32 %v1422, %v1360
        %v1424 = vadd.f32 %v1423, %v1361
        %v1425 = vadd.f32 %v1424, %v1362
        %v1426 = vadd.f32 %v1425, %v1363
        %v1427 = vadd.f32 %v1426, %v1364
        %v1428 = vadd.f32 %v1427, %v1365
        %v1429 = vadd.f32 %v1428, %v1366
        %v1430 = vadd.f32 %v1429, %v1367
        %v1431 = vadd.f32 %v1430, %v1368
        %v1432 = vadd.f32 %v1431, %v1369
        %v1433 = vrot.slane %v1432, 4
        %v1434 = vadd.f32 %v1432, %v1433
        %v1435 = vrot.slane %v1434, 2
        %v1436 = vadd.f32 %v1434, %v1435
        %v1437 = vrot.slane %v1436, 1
        %v1438 = vadd.f32 %v1436, %v1437
        %v1439 = vadd.f32 %v1305, %v1438
        %1440 = vst [vmem:[%s288] sm:$0x1] %v1439
      $region40: #{bottleneck3d_forward.8} parent=27 // pred_fallthru
        _
      %s1441 = smul.u32 64, %s22
      %p1442 = scmp.lt.s32.totalorder %s1441, 127
      %s1443 = scalar_select %p1442, %s1441, 127
      %p1444 = scmp.lt.s32.totalorder %s21, 0
      %s1445 = scalar_select %p1444, %s21, 0
      %s1446 = sadd.s32 %s1445, %s1443
      %s1447 = smul.addr %s1446, 8
      %s1448 = scalar_lea.vmem %s2, %s1447
      %p1449 = scmp.lt.s32.totalorder %s21, 0
      %s1450 = scalar_select %p1449, %s21, 0
      %s1451 = scalar_lea.vmem %s3, %s1450
      %p1452 = scmp.lt.s32.totalorder %s21, 0
      %s1453 = scalar_select %p1452, %s21, 0
      %s1454 = scalar_lea.vmem %s4, %s1453
      // Predicated region
      $region41: #{bottleneck3d_forward.8} parent=27 // pred_check
        %p1455 = pneg %p111
      $region42: #{bottleneck3d_forward.8} parent=27 // pred_check_branch
        %1457 = sbr.rel (%p1455) target = $region44
      $region43: #{bottleneck3d_forward.8} parent=27 // pred_region
        %s1458 = smul.u32 64, %s22
      $region44: #{bottleneck3d_forward.8} parent=27 // pred_fallthru
        _
      // Predicated region
      $region45: #{bottleneck3d_forward.8} parent=27 // pred_check
        %p1459 = pneg %p137
      $region46: #{bottleneck3d_forward.8} parent=27 // pred_check_branch
        %1461 = sbr.rel (%p1459) target = $region48
      $region47: #{bottleneck3d_forward.8} parent=27 // pred_region
        _
      $region48: #{bottleneck3d_forward.8} parent=27 // pred_fallthru
        _
      // Predicated region
      $region49: #{bottleneck3d_forward.8} parent=27 // pred_check
        %p1462 = pneg %p163
      $region50: #{bottleneck3d_forward.8} parent=27 // pred_check_branch
        %1464 = sbr.rel (%p1462) target = $region52
      $region51: #{bottleneck3d_forward.8} parent=27 // pred_region
        _
      $region52: #{bottleneck3d_forward.8} parent=27 // pred_fallthru
        _
      // Predicated region
      $region53: #{bottleneck3d_forward.8} parent=27 // pred_check
        %p1465 = pneg %p137
      $region54: #{bottleneck3d_forward.8} parent=27 // pred_check_branch
        %1467 = sbr.rel (%p1465) target = $region56
      $region55: #{bottleneck3d_forward.8} parent=27 // pred_region
        %p1468 = scmp.lt.s32.totalorder %s21, 0
        %s1469 = scalar_select %p1468, %s21, 0
        %s1470 = scalar_lea.vmem %s3, %s1469
      $region56: #{bottleneck3d_forward.8} parent=27 // pred_fallthru
        _
      // Predicated region
      $region57: #{bottleneck3d_forward.8} parent=27 // pred_check
        %p1471 = pneg %p163
      $region58: #{bottleneck3d_forward.8} parent=27 // pred_check_branch
        %1473 = sbr.rel (%p1471) target = $region60
      $region59: #{bottleneck3d_forward.8} parent=27 // pred_region
        %p1474 = scmp.lt.s32.totalorder %s21, 0
        %s1475 = scalar_select %p1474, %s21, 0
        %s1476 = scalar_lea.vmem %s4, %s1475
      $region60: #{bottleneck3d_forward.8} parent=27 // pred_fallthru
        _
    $region28: #{bottleneck3d_forward.8} parent=5 // pred_fallthru
      _
    %p1477 = scmp.le.s32.totalorder 2, %s11
    // Predicated region
    $region61: #{bottleneck3d_forward.8} parent=5 // pred_check
      %p1478 = pneg %p1477
    $region62: #{bottleneck3d_forward.8} parent=5 // pred_check_branch
      %1480 = sbr.rel (%p1478) target = $region64
    $region63: #{bottleneck3d_forward.8} parent=5 // pred_region
      %s1481 = ssub.s32 %s11, 2
      // Predicated region
      $region65: #{bottleneck3d_forward.8} parent=63 // pred_check
        %p1482 = pneg %p117
      $region66: #{bottleneck3d_forward.8} parent=63 // pred_check_branch
        %1484 = sbr.rel (%p1482) target = $region68
      $region67: #{bottleneck3d_forward.8} parent=63 // pred_region
        %s1485 = smul.u32 64, %s25
        %p1486 = scmp.lt.s32.totalorder %s1485, 127
        %s1487 = scalar_select %p1486, %s1485, 127
        %p1488 = scmp.lt.s32.totalorder %s24, 0
        %s1489 = scalar_select %p1488, %s24, 0
        %s1490 = sadd.s32 %s1489, %s1487
        %s1491 = smul.addr %s1490, 8
        %s1492 = scalar_lea.vmem %s2, %s1491
      $region68: #{bottleneck3d_forward.8} parent=63 // pred_fallthru
        _
    $region64: #{bottleneck3d_forward.8} parent=5 // pred_fallthru
      _
  $region6: #{bottleneck3d_forward.8} parent=0 // loop_footer
    %s15 = sadd.s32 1, %s11
  $region7: #{bottleneck3d_forward.8} parent=0 // loop_footer_branch
    %10 = sbr.rel target = $region3
  $region8: #{bottleneck3d_forward.8} parent=0 // loop_exit
    _

// kernel: bottleneck3d_forward.11
$region0: #{bottleneck3d_forward.11}
  #allocation0 [shape = 'u32[]', space=smem, size = 0x4, offset = 0x4, fixed_abs, tag = 'smem constant byte address 0x4 - core index']
  #allocation1 [shape = 'u32[144,128]{1,0:T(1,128)}', space=vmem, size = 0x12000, scoped, tag = 'internal scratch']
  %s0 = inlined_call_operand.vmem [shape: f32[256,64], index: 0, kind: input, shape index: {}]
  %s1 = inlined_call_operand.vmem [shape: f32[1,64], index: 1, kind: input, shape index: {}]
  %s2 = inlined_call_operand.vmem [shape: f32[1,64], index: 2, kind: input, shape index: {}]
  %s3 = inlined_call_operand.vmem [shape: f32[256,64], index: 3, kind: output, shape index: {}]
  %s4 = sld [smem:[#allocation0]]
  $region22: #{bottleneck3d_forward.11} parent=0
    _
  %s6 = ssub.s32 1, %s4
  %s7 = scalar_select 0, %s6, %s4
  // Predicated region
  $region2: #{bottleneck3d_forward.11} parent=0 // pred_check
    _
  $region3: #{bottleneck3d_forward.11} parent=0 // pred_check_branch
    %9 = sbr.rel (0) target = $region5
  $region4: #{bottleneck3d_forward.11} parent=0 // pred_region
    _
  $region5: #{bottleneck3d_forward.11} parent=0 // pred_fallthru
    _
  // Predicated region
  $region6: #{bottleneck3d_forward.11} parent=0 // pred_check
    _
  $region7: #{bottleneck3d_forward.11} parent=0 // pred_check_branch
    %11 = sbr.rel (0) target = $region9
  $region8: #{bottleneck3d_forward.11} parent=0 // pred_region
    _
  $region9: #{bottleneck3d_forward.11} parent=0 // pred_fallthru
    _
  // Predicated region
  $region10: #{bottleneck3d_forward.11} parent=0 // pred_check
    _
  $region11: #{bottleneck3d_forward.11} parent=0 // pred_check_branch
    %13 = sbr.rel (0) target = $region13
  $region12: #{bottleneck3d_forward.11} parent=0 // pred_region
    _
  $region13: #{bottleneck3d_forward.11} parent=0 // pred_fallthru
    _
  %v14 = vld [vmem:[%s0] sm:$0xff]
  %v15 = vld [vmem:[%s0 + $0x8] sm:$0xff]
  %v16 = vld [vmem:[%s0 + $0x10] sm:$0xff]
  %v17 = vld [vmem:[%s0 + $0x18] sm:$0xff]
  %v18 = vld [vmem:[%s0 + $0x20] sm:$0xff]
  %v19 = vld [vmem:[%s0 + $0x28] sm:$0xff]
  %v20 = vld [vmem:[%s0 + $0x30] sm:$0xff]
  %v21 = vld [vmem:[%s0 + $0x38] sm:$0xff]
  %v22 = vld [vmem:[%s0 + $0x40] sm:$0xff]
  %v23 = vld [vmem:[%s0 + $0x48] sm:$0xff]
  %v24 = vld [vmem:[%s0 + $0x50] sm:$0xff]
  %v25 = vld [vmem:[%s0 + $0x58] sm:$0xff]
  %v26 = vld [vmem:[%s0 + $0x60] sm:$0xff]
  %v27 = vld [vmem:[%s0 + $0x68] sm:$0xff]
  %v28 = vld [vmem:[%s0 + $0x70] sm:$0xff]
  %v29 = vld [vmem:[%s0 + $0x78] sm:$0xff]
  %v30 = vld [vmem:[%s0 + $0x80] sm:$0xff]
  %v31 = vld [vmem:[%s0 + $0x88] sm:$0xff]
  %v32 = vld [vmem:[%s0 + $0x90] sm:$0xff]
  %v33 = vld [vmem:[%s0 + $0x98] sm:$0xff]
  %v34 = vld [vmem:[%s0 + $0xa0] sm:$0xff]
  %v35 = vld [vmem:[%s0 + $0xa8] sm:$0xff]
  %v36 = vld [vmem:[%s0 + $0xb0] sm:$0xff]
  %v37 = vld [vmem:[%s0 + $0xb8] sm:$0xff]
  %v38 = vld [vmem:[%s0 + $0xc0] sm:$0xff]
  %v39 = vld [vmem:[%s0 + $0xc8] sm:$0xff]
  %v40 = vld [vmem:[%s0 + $0xd0] sm:$0xff]
  %v41 = vld [vmem:[%s0 + $0xd8] sm:$0xff]
  %v42 = vld [vmem:[%s0 + $0xe0] sm:$0xff]
  %v43 = vld [vmem:[%s0 + $0xe8] sm:$0xff]
  %v44 = vld [vmem:[%s0 + $0xf0] sm:$0xff]
  %v45 = vld [vmem:[%s0 + $0xf8] sm:$0xff]
  %v46 = vld [vmem:[%s1] sm:$0x1]
  %v48 = vlaneseq
  %v49 = vshrl.u32 %v48, 7
  %v50 = vsub.s32 0, %v49
  %v51 = vrot.slane %v46, %v50
  %v53 = vmul.f32 %v14, %v51
  %v54 = vmul.f32 %v15, %v51
  %v55 = vmul.f32 %v16, %v51
  %v56 = vmul.f32 %v17, %v51
  %v57 = vmul.f32 %v18, %v51
  %v58 = vmul.f32 %v19, %v51
  %v59 = vmul.f32 %v20, %v51
  %v60 = vmul.f32 %v21, %v51
  %v61 = vmul.f32 %v22, %v51
  %v62 = vmul.f32 %v23, %v51
  %v63 = vmul.f32 %v24, %v51
  %v64 = vmul.f32 %v25, %v51
  %v65 = vmul.f32 %v26, %v51
  %v66 = vmul.f32 %v27, %v51
  %v67 = vmul.f32 %v28, %v51
  %v68 = vmul.f32 %v29, %v51
  %v69 = vmul.f32 %v30, %v51
  %v70 = vmul.f32 %v31, %v51
  %v71 = vmul.f32 %v32, %v51
  %v72 = vmul.f32 %v33, %v51
  %v73 = vmul.f32 %v34, %v51
  %v74 = vmul.f32 %v35, %v51
  %v75 = vmul.f32 %v36, %v51
  %v76 = vmul.f32 %v37, %v51
  %v77 = vmul.f32 %v38, %v51
  %v78 = vmul.f32 %v39, %v51
  %v79 = vmul.f32 %v40, %v51
  %v80 = vmul.f32 %v41, %v51
  %v81 = vmul.f32 %v42, %v51
  %v82 = vmul.f32 %v43, %v51
  %v83 = vmul.f32 %v44, %v51
  %v84 = vmul.f32 %v45, %v51
  %v85 = vld [vmem:[%s2] sm:$0x1]
  %v87 = vlaneseq
  %v88 = vshrl.u32 %v87, 7
  %v89 = vsub.s32 0, %v88
  %v90 = vrot.slane %v85, %v89
  %v92 = vadd.f32 %v53, %v90
  %v93 = vadd.f32 %v54, %v90
  %v94 = vadd.f32 %v55, %v90
  %v95 = vadd.f32 %v56, %v90
  %v96 = vadd.f32 %v57, %v90
  %v97 = vadd.f32 %v58, %v90
  %v98 = vadd.f32 %v59, %v90
  %v99 = vadd.f32 %v60, %v90
  %v100 = vadd.f32 %v61, %v90
  %v101 = vadd.f32 %v62, %v90
  %v102 = vadd.f32 %v63, %v90
  %v103 = vadd.f32 %v64, %v90
  %v104 = vadd.f32 %v65, %v90
  %v105 = vadd.f32 %v66, %v90
  %v106 = vadd.f32 %v67, %v90
  %v107 = vadd.f32 %v68, %v90
  %v108 = vadd.f32 %v69, %v90
  %v109 = vadd.f32 %v70, %v90
  %v110 = vadd.f32 %v71, %v90
  %v111 = vadd.f32 %v72, %v90
  %v112 = vadd.f32 %v73, %v90
  %v113 = vadd.f32 %v74, %v90
  %v114 = vadd.f32 %v75, %v90
  %v115 = vadd.f32 %v76, %v90
  %v116 = vadd.f32 %v77, %v90
  %v117 = vadd.f32 %v78, %v90
  %v118 = vadd.f32 %v79, %v90
  %v119 = vadd.f32 %v80, %v90
  %v120 = vadd.f32 %v81, %v90
  %v121 = vadd.f32 %v82, %v90
  %v122 = vadd.f32 %v83, %v90
  %v123 = vadd.f32 %v84, %v90
  %v124 = vmax.f32 %v92, 0.0
  %v125 = vmax.f32 %v93, 0.0
  %v126 = vmax.f32 %v94, 0.0
  %v127 = vmax.f32 %v95, 0.0
  %v128 = vmax.f32 %v96, 0.0
  %v129 = vmax.f32 %v97, 0.0
  %v130 = vmax.f32 %v98, 0.0
  %v131 = vmax.f32 %v99, 0.0
  %v132 = vmax.f32 %v100, 0.0
  %v133 = vmax.f32 %v101, 0.0
  %v134 = vmax.f32 %v102, 0.0
  %v135 = vmax.f32 %v103, 0.0
  %v136 = vmax.f32 %v104, 0.0
  %v137 = vmax.f32 %v105, 0.0
  %v138 = vmax.f32 %v106, 0.0
  %v139 = vmax.f32 %v107, 0.0
  %v140 = vmax.f32 %v108, 0.0
  %v141 = vmax.f32 %v109, 0.0
  %v142 = vmax.f32 %v110, 0.0
  %v143 = vmax.f32 %v111, 0.0
  %v144 = vmax.f32 %v112, 0.0
  %v145 = vmax.f32 %v113, 0.0
  %v146 = vmax.f32 %v114, 0.0
  %v147 = vmax.f32 %v115, 0.0
  %v148 = vmax.f32 %v116, 0.0
  %v149 = vmax.f32 %v117, 0.0
  %v150 = vmax.f32 %v118, 0.0
  %v151 = vmax.f32 %v119, 0.0
  %v152 = vmax.f32 %v120, 0.0
  %v153 = vmax.f32 %v121, 0.0
  %v154 = vmax.f32 %v122, 0.0
  %v155 = vmax.f32 %v123, 0.0
  %vm156 = vcmask 523264
  %157 = vst.msk [vmem:[%s3] sm:$0xff] %vm156, %v124
  %158 = vst.msk [vmem:[%s3 + $0x8] sm:$0xff] %vm156, %v125
  %159 = vst.msk [vmem:[%s3 + $0x10] sm:$0xff] %vm156, %v126
  %160 = vst.msk [vmem:[%s3 + $0x18] sm:$0xff] %vm156, %v127
  %161 = vst.msk [vmem:[%s3 + $0x20] sm:$0xff] %vm156, %v128
  %162 = vst.msk [vmem:[%s3 + $0x28] sm:$0xff] %vm156, %v129
  %163 = vst.msk [vmem:[%s3 + $0x30] sm:$0xff] %vm156, %v130
  %164 = vst.msk [vmem:[%s3 + $0x38] sm:$0xff] %vm156, %v131
  %165 = vst.msk [vmem:[%s3 + $0x40] sm:$0xff] %vm156, %v132
  %166 = vst.msk [vmem:[%s3 + $0x48] sm:$0xff] %vm156, %v133
  %167 = vst.msk [vmem:[%s3 + $0x50] sm:$0xff] %vm156, %v134
  %168 = vst.msk [vmem:[%s3 + $0x58] sm:$0xff] %vm156, %v135
  %169 = vst.msk [vmem:[%s3 + $0x60] sm:$0xff] %vm156, %v136
  %170 = vst.msk [vmem:[%s3 + $0x68] sm:$0xff] %vm156, %v137
  %171 = vst.msk [vmem:[%s3 + $0x70] sm:$0xff] %vm156, %v138
  %172 = vst.msk [vmem:[%s3 + $0x78] sm:$0xff] %vm156, %v139
  %173 = vst.msk [vmem:[%s3 + $0x80] sm:$0xff] %vm156, %v140
  %174 = vst.msk [vmem:[%s3 + $0x88] sm:$0xff] %vm156, %v141
  %175 = vst.msk [vmem:[%s3 + $0x90] sm:$0xff] %vm156, %v142
  %176 = vst.msk [vmem:[%s3 + $0x98] sm:$0xff] %vm156, %v143
  %177 = vst.msk [vmem:[%s3 + $0xa0] sm:$0xff] %vm156, %v144
  %178 = vst.msk [vmem:[%s3 + $0xa8] sm:$0xff] %vm156, %v145
  %179 = vst.msk [vmem:[%s3 + $0xb0] sm:$0xff] %vm156, %v146
  %180 = vst.msk [vmem:[%s3 + $0xb8] sm:$0xff] %vm156, %v147
  %181 = vst.msk [vmem:[%s3 + $0xc0] sm:$0xff] %vm156, %v148
  %182 = vst.msk [vmem:[%s3 + $0xc8] sm:$0xff] %vm156, %v149
  %183 = vst.msk [vmem:[%s3 + $0xd0] sm:$0xff] %vm156, %v150
  %184 = vst.msk [vmem:[%s3 + $0xd8] sm:$0xff] %vm156, %v151
  %185 = vst.msk [vmem:[%s3 + $0xe0] sm:$0xff] %vm156, %v152
  %186 = vst.msk [vmem:[%s3 + $0xe8] sm:$0xff] %vm156, %v153
  %187 = vst.msk [vmem:[%s3 + $0xf0] sm:$0xff] %vm156, %v154
  %188 = vst.msk [vmem:[%s3 + $0xf8] sm:$0xff] %vm156, %v155
  // Predicated region
  $region14: #{bottleneck3d_forward.11} parent=0 // pred_check
    _
  $region15: #{bottleneck3d_forward.11} parent=0 // pred_check_branch
    %190 = sbr.rel (0) target = $region17
  $region16: #{bottleneck3d_forward.11} parent=0 // pred_region
    _
  $region17: #{bottleneck3d_forward.11} parent=0 // pred_fallthru
    _
  // Predicated region
  $region18: #{bottleneck3d_forward.11} parent=0 // pred_check
    _
  $region19: #{bottleneck3d_forward.11} parent=0 // pred_check_branch
    %192 = sbr.rel (0) target = $region21
  $region20: #{bottleneck3d_forward.11} parent=0 // pred_region
    _
  $region21: #{bottleneck3d_forward.11} parent=0 // pred_fallthru
    _

// kernel: bottleneck3d_forward.10
$region0: #{bottleneck3d_forward.10}
  #allocation0 [shape = 'u32[]', space=smem, size = 0x4, offset = 0x4, fixed_abs, tag = 'smem constant byte address 0x4 - core index']
  #allocation1 [shape = 'u32[144,128]{1,0:T(1,128)}', space=vmem, size = 0x12000, scoped, tag = 'internal scratch']
  %s0 = inlined_call_operand.vmem [shape: bf16[256,640], index: 0, kind: input, shape index: {}]
  %s1 = inlined_call_operand.vmem [shape: bf16[640,128], index: 1, kind: input, shape index: {}]
  %s2 = inlined_call_operand.vmem [shape: f32[256,128], index: 2, kind: output, shape index: {0}]
  %s3 = inlined_call_operand.vmem [shape: f32[1,128], index: 3, kind: output, shape index: {1}]
  %s4 = inlined_call_operand.vmem [shape: f32[1,128], index: 4, kind: output, shape index: {2}]
  %5 = xla_tuple %s2, %s3, %s4
  %s6 = sld [smem:[#allocation0]]
  $region110: #{bottleneck3d_forward.10} parent=0
    _
  %s8 = ssub.s32 1, %s6
  %s9 = scalar_select 0, %s8, %s6
  $region1: #{bottleneck3d_forward.10} parent=0
    #allocation2 [shape = 'u8[131072]{0}', space=vmem, size = 0x20000, scoped, tag = 'input window, operand 0']
    loop: start=0, step=1, limit=7
    $region2: #{bottleneck3d_forward.10} parent=1 // loop_pre_header
      _
    $region3: #{bottleneck3d_forward.10} parent=1 // loop_header
      %s11 = sphi 0, %s15
      %p12 = scmp.ge.s32.totalorder %s11, 7
      %s18 = sphi 0, %s37
      %s19 = sphi 0, %s33
      %s20 = sphi 0, %s29
      %s21 = sphi 0, %s18
      %s22 = sphi 0, %s19
      %s23 = sphi 0, %s20
      %s24 = sphi 0, %s21
      %s25 = sphi 0, %s22
      %s26 = sphi 0, %s23
      %s42 = sphi 0, %s44
      %s45 = sphi 0, %s42
      %s46 = sphi 0, %s45
      %s62 = sphi 0, %s46
      %s70 = sphi 0, %s72
      %s73 = sphi 0, %s70
      %s74 = sphi 0, %s73
      %s90 = sphi 0, %s74
      %s98 = sphi 0, %s100
      %s101 = sphi 0, %s98
      %s102 = sphi 0, %s101
      %s118 = sphi 0, %s102
      %s124 = sphi 0, %s126
      %s127 = sphi 0, %s124
      %s128 = sphi 0, %s127
      %s144 = sphi 0, %s128
      %s150 = sphi 0, %s152
      %s153 = sphi 0, %s150
      %s154 = sphi 0, %s153
      %s170 = sphi 0, %s154
    $region4: #{bottleneck3d_forward.10} parent=1 // loop_header_branch
      %14 = sbr.rel (%p12) target = $region8
    $region5: #{bottleneck3d_forward.10} parent=1 // loop_body
      %s16 = ssub.s32 %s11, 1
      %s17 = ssub.s32 %s11, 2
      %s27 = sadd.s32 1, %s20
      %p28 = scmp.ge.s32.totalorder %s27, 5
      %s29 = scalar_select %p28, 0, %s27
      %s30 = sadd.s32 1, %s19
      %s31 = scalar_select %p28, %s30, %s19
      %p32 = scmp.ge.s32.totalorder %s31, 1
      %s33 = scalar_select %p32, 0, %s31
      %s34 = sadd.s32 1, %s18
      %s35 = scalar_select %p32, %s34, %s18
      %p36 = scmp.ge.s32.totalorder %s35, 1
      %s37 = scalar_select %p36, 0, %s35
      %s38 = ssub.s32 %s19, %s33
      %s39 = ssub.s32 %s20, %s29
      %s40 = sor.u32 %s38, %s39
      %p41 = scmp.eq.s32.totalorder %s40, 0
      %s43 = sadd.s32 %s42, 1
      %s44 = scalar_select %p41, %s42, %s43
      %p47 = pneg %p41
      %p48 = scmp.eq.s32.totalorder %s11, 4
      %p49 = por %p47, %p48
      %p50 = scmp.ne.s32.totalorder %s42, %s45
      %p51 = scmp.eq.s32.totalorder %s11, 0
      %p52 = por %p50, %p51
      %p53 = scmp.ne.s32.totalorder %s42, %s45
      %p54 = scmp.eq.s32.totalorder %s16, 4
      %p55 = por %p53, %p54
      %p56 = scmp.ne.s32.totalorder %s45, %s46
      %p57 = scmp.eq.s32.totalorder %s16, 0
      %p58 = por %p56, %p57
      %p59 = scmp.ne.s32.totalorder %s45, %s46
      %p60 = scmp.eq.s32.totalorder %s17, 4
      %p61 = por %p59, %p60
      %p63 = scmp.ne.s32.totalorder %s46, %s62
      %p64 = scmp.eq.s32.totalorder %s17, 0
      %p65 = por %p63, %p64
      %s66 = ssub.s32 %s20, %s29
      %s67 = ssub.s32 %s18, %s37
      %s68 = sor.u32 %s66, %s67
      %p69 = scmp.eq.s32.totalorder %s68, 0
      %s71 = sadd.s32 %s70, 1
      %s72 = scalar_select %p69, %s70, %s71
      %p75 = pneg %p69
      %p76 = scmp.eq.s32.totalorder %s11, 4
      %p77 = por %p75, %p76
      %p78 = scmp.ne.s32.totalorder %s70, %s73
      %p79 = scmp.eq.s32.totalorder %s11, 0
      %p80 = por %p78, %p79
      %p81 = scmp.ne.s32.totalorder %s70, %s73
      %p82 = scmp.eq.s32.totalorder %s16, 4
      %p83 = por %p81, %p82
      %p84 = scmp.ne.s32.totalorder %s73, %s74
      %p85 = scmp.eq.s32.totalorder %s16, 0
      %p86 = por %p84, %p85
      %p87 = scmp.ne.s32.totalorder %s73, %s74
      %p88 = scmp.eq.s32.totalorder %s17, 4
      %p89 = por %p87, %p88
      %p91 = scmp.ne.s32.totalorder %s74, %s90
      %p92 = scmp.eq.s32.totalorder %s17, 0
      %p93 = por %p91, %p92
      %s94 = ssub.s32 %s19, %s33
      %s95 = ssub.s32 %s18, %s37
      %s96 = sor.u32 %s94, %s95
      %p97 = scmp.eq.s32.totalorder %s96, 0
      %s99 = sadd.s32 %s98, 1
      %s100 = scalar_select %p97, %s98, %s99
      %p103 = pneg %p97
      %p104 = scmp.eq.s32.totalorder %s11, 4
      %p105 = por %p103, %p104
      %p106 = scmp.ne.s32.totalorder %s98, %s101
      %p107 = scmp.eq.s32.totalorder %s11, 0
      %p108 = por %p106, %p107
      %p109 = scmp.ne.s32.totalorder %s98, %s101
      %p110 = scmp.eq.s32.totalorder %s16, 4
      %p111 = por %p109, %p110
      %p112 = scmp.ne.s32.totalorder %s101, %s102
      %p113 = scmp.eq.s32.totalorder %s16, 0
      %p114 = por %p112, %p113
      %p115 = scmp.ne.s32.totalorder %s101, %s102
      %p116 = scmp.eq.s32.totalorder %s17, 4
      %p117 = por %p115, %p116
      %p119 = scmp.ne.s32.totalorder %s102, %s118
      %p120 = scmp.eq.s32.totalorder %s17, 0
      %p121 = por %p119, %p120
      %s122 = ssub.s32 %s18, %s37
      %p123 = scmp.eq.s32.totalorder %s122, 0
      %s125 = sadd.s32 %s124, 1
      %s126 = scalar_select %p123, %s124, %s125
      %p129 = pneg %p123
      %p130 = scmp.eq.s32.totalorder %s11, 4
      %p131 = por %p129, %p130
      %p132 = scmp.ne.s32.totalorder %s124, %s127
      %p133 = scmp.eq.s32.totalorder %s11, 0
      %p134 = por %p132, %p133
      %p135 = scmp.ne.s32.totalorder %s124, %s127
      %p136 = scmp.eq.s32.totalorder %s16, 4
      %p137 = por %p135, %p136
      %p138 = scmp.ne.s32.totalorder %s127, %s128
      %p139 = scmp.eq.s32.totalorder %s16, 0
      %p140 = por %p138, %p139
      %p141 = scmp.ne.s32.totalorder %s127, %s128
      %p142 = scmp.eq.s32.totalorder %s17, 4
      %p143 = por %p141, %p142
      %p145 = scmp.ne.s32.totalorder %s128, %s144
      %p146 = scmp.eq.s32.totalorder %s17, 0
      %p147 = por %p145, %p146
      %s148 = ssub.s32 %s18, %s37
      %p149 = scmp.eq.s32.totalorder %s148, 0
      %s151 = sadd.s32 %s150, 1
      %s152 = scalar_select %p149, %s150, %s151
      %p155 = pneg %p149
      %p156 = scmp.eq.s32.totalorder %s11, 4
      %p157 = por %p155, %p156
      %p158 = scmp.ne.s32.totalorder %s150, %s153
      %p159 = scmp.eq.s32.totalorder %s11, 0
      %p160 = por %p158, %p159
      %p161 = scmp.ne.s32.totalorder %s150, %s153
      %p162 = scmp.eq.s32.totalorder %s16, 4
      %p163 = por %p161, %p162
      %p164 = scmp.ne.s32.totalorder %s153, %s154
      %p165 = scmp.eq.s32.totalorder %s16, 0
      %p166 = por %p164, %p165
      %p167 = scmp.ne.s32.totalorder %s153, %s154
      %p168 = scmp.eq.s32.totalorder %s17, 4
      %p169 = por %p167, %p168
      %p171 = scmp.ne.s32.totalorder %s154, %s170
      %p172 = scmp.eq.s32.totalorder %s17, 0
      %p173 = por %p171, %p172
      %p174 = scmp.le.s32.totalorder 1, %s11
      %p175 = scmp.lt.s32.totalorder %s11, 6
      %p176 = pnand %p174, %p175
      %p177 = pneg %p176
      // Predicated region
      $region9: #{bottleneck3d_forward.10} parent=5 // pred_check
        _
      $region10: #{bottleneck3d_forward.10} parent=5 // pred_check_branch
        %179 = sbr.rel (%p176) target = $region12
      $region11: #{bottleneck3d_forward.10} parent=5 // pred_region
        %s180 = ssub.s32 %s11, 1
      $region12: #{bottleneck3d_forward.10} parent=5 // pred_fallthru
        _
      %p181 = scmp.lt.s32.totalorder %s11, 5
      // Predicated region
      $region13: #{bottleneck3d_forward.10} parent=5 // pred_check
        %p182 = pneg %p181
      $region14: #{bottleneck3d_forward.10} parent=5 // pred_check_branch
        %184 = sbr.rel (%p182) target = $region16
      $region15: #{bottleneck3d_forward.10} parent=5 // pred_region
        // Predicated region
        $region17: #{bottleneck3d_forward.10} parent=15 // pred_check
          %p185 = pneg %p52
        $region18: #{bottleneck3d_forward.10} parent=15 // pred_check_branch
          %187 = sbr.rel (%p185) target = $region20
        $region19: #{bottleneck3d_forward.10} parent=15 // pred_region
          %s188 = sand.u32 %s42, 1
          %s189 = sand.u32 %s42, 1
          %s190 = smul.addr %s189, 128
          %s191 = scalar_lea.vmem [#allocation2], %s190
          %s192 = smul.u32 32, %s19
          %s193 = smul.addr %s192, 5
          %s194 = sadd.s32 %s20, %s193
          %s195 = smul.addr %s194, 4
          %s196 = scalar_lea.vmem %s0, %s195
          // Predicated region
          $region21: #{bottleneck3d_forward.10} parent=19 // pred_check
            _
          $region22: #{bottleneck3d_forward.10} parent=19 // pred_check_branch
            %198 = sbr.rel (0) target = $region24
          $region23: #{bottleneck3d_forward.10} parent=19 // pred_region
            // Predicated region
            $region25: #{bottleneck3d_forward.10} parent=23 // pred_check
              _
            $region26: #{bottleneck3d_forward.10} parent=23 // pred_check_branch
              %200 = sbr.rel target = $region28
            $region27: #{bottleneck3d_forward.10} parent=23 // pred_region
              // Predicated region
              $region40: #{bottleneck3d_forward.10} parent=27 // pred_check
                _
              $region41: #{bottleneck3d_forward.10} parent=27 // pred_check_branch
                %277 = sbr.rel (0) target = $region43
              $region42: #{bottleneck3d_forward.10} parent=27 // pred_region
                loop: start=0, step=1, limit=1
                $region44: #{bottleneck3d_forward.10} parent=42 // loop_pre_header
                  _
                $region45: #{bottleneck3d_forward.10} parent=42 // loop_header
                  %s279 = sphi 0, %s283
                  %p280 = scmp.ge.s32.totalorder %s279, 1
                  %s284 = sphi %s196, %s196
                  %s285 = sphi %s191, %s191
                $region46: #{bottleneck3d_forward.10} parent=42 // loop_header_branch
                  %282 = sbr.rel (%p280) target = $region50
                $region47: #{bottleneck3d_forward.10} parent=42 // loop_body
                  _
                $region48: #{bottleneck3d_forward.10} parent=42 // loop_footer
                  %s283 = sadd.s32 1, %s279
                $region49: #{bottleneck3d_forward.10} parent=42 // loop_footer_branch
                  %278 = sbr.rel target = $region45
                $region50: #{bottleneck3d_forward.10} parent=42 // loop_exit
                  _
                loop: start=0, step=1, limit=1
                $region51: #{bottleneck3d_forward.10} parent=42 // loop_pre_header
                  _
                $region52: #{bottleneck3d_forward.10} parent=42 // loop_header
                  %s288 = sphi 0, %s292
                  %p289 = scmp.ge.s32.totalorder %s288, 1
                  %s293 = sphi %s196, %s196
                  %s294 = sphi %s191, %s191
                $region53: #{bottleneck3d_forward.10} parent=42 // loop_header_branch
                  %291 = sbr.rel (%p289) target = $region57
                $region54: #{bottleneck3d_forward.10} parent=42 // loop_body
                  %v295 = vld [vmem:[%s293] sm:$0xf]
                  %296 = vst [vmem:[%s294] sm:$0xf] %v295
                  %v297 = vld [vmem:[%s293 + $0x14] sm:$0xf]
                  %298 = vst [vmem:[%s294 + $0x4] sm:$0xf] %v297
                  %v299 = vld [vmem:[%s293 + $0x28] sm:$0xf]
                  %300 = vst [vmem:[%s294 + $0x8] sm:$0xf] %v299
                  %v301 = vld [vmem:[%s293 + $0x3c] sm:$0xf]
                  %302 = vst [vmem:[%s294 + $0xc] sm:$0xf] %v301
                  %v303 = vld [vmem:[%s293 + $0x50] sm:$0xf]
                  %304 = vst [vmem:[%s294 + $0x10] sm:$0xf] %v303
                  %v305 = vld [vmem:[%s293 + $0x64] sm:$0xf]
                  %306 = vst [vmem:[%s294 + $0x14] sm:$0xf] %v305
                  %v307 = vld [vmem:[%s293 + $0x78] sm:$0xf]
                  %308 = vst [vmem:[%s294 + $0x18] sm:$0xf] %v307
                  %v309 = vld [vmem:[%s293 + $0x8c] sm:$0xf]
                  %310 = vst [vmem:[%s294 + $0x1c] sm:$0xf] %v309
                  %v311 = vld [vmem:[%s293 + $0xa0] sm:$0xf]
                  %312 = vst [vmem:[%s294 + $0x20] sm:$0xf] %v311
                  %v313 = vld [vmem:[%s293 + $0xb4] sm:$0xf]
                  %314 = vst [vmem:[%s294 + $0x24] sm:$0xf] %v313
                  %v315 = vld [vmem:[%s293 + $0xc8] sm:$0xf]
                  %316 = vst [vmem:[%s294 + $0x28] sm:$0xf] %v315
                  %v317 = vld [vmem:[%s293 + $0xdc] sm:$0xf]
                  %318 = vst [vmem:[%s294 + $0x2c] sm:$0xf] %v317
                  %v319 = vld [vmem:[%s293 + $0xf0] sm:$0xf]
                  %320 = vst [vmem:[%s294 + $0x30] sm:$0xf] %v319
                  %v321 = vld [vmem:[%s293 + $0x104] sm:$0xf]
                  %322 = vst [vmem:[%s294 + $0x34] sm:$0xf] %v321
                  %v323 = vld [vmem:[%s293 + $0x118] sm:$0xf]
                  %324 = vst [vmem:[%s294 + $0x38] sm:$0xf] %v323
                  %v325 = vld [vmem:[%s293 + $0x12c] sm:$0xf]
                  %326 = vst [vmem:[%s294 + $0x3c] sm:$0xf] %v325
                  %v327 = vld [vmem:[%s293 + $0x140] sm:$0xf]
                  %328 = vst [vmem:[%s294 + $0x40] sm:$0xf] %v327
                  %v329 = vld [vmem:[%s293 + $0x154] sm:$0xf]
                  %330 = vst [vmem:[%s294 + $0x44] sm:$0xf] %v329
                  %v331 = vld [vmem:[%s293 + $0x168] sm:$0xf]
                  %332 = vst [vmem:[%s294 + $0x48] sm:$0xf] %v331
                  %v333 = vld [vmem:[%s293 + $0x17c] sm:$0xf]
                  %334 = vst [vmem:[%s294 + $0x4c] sm:$0xf] %v333
                  %v335 = vld [vmem:[%s293 + $0x190] sm:$0xf]
                  %336 = vst [vmem:[%s294 + $0x50] sm:$0xf] %v335
                  %v337 = vld [vmem:[%s293 + $0x1a4] sm:$0xf]
                  %338 = vst [vmem:[%s294 + $0x54] sm:$0xf] %v337
                  %v339 = vld [vmem:[%s293 + $0x1b8] sm:$0xf]
                  %340 = vst [vmem:[%s294 + $0x58] sm:$0xf] %v339
                  %v341 = vld [vmem:[%s293 + $0x1cc] sm:$0xf]
                  %342 = vst [vmem:[%s294 + $0x5c] sm:$0xf] %v341
                  %v343 = vld [vmem:[%s293 + $0x1e0] sm:$0xf]
                  %344 = vst [vmem:[%s294 + $0x60] sm:$0xf] %v343
                  %v345 = vld [vmem:[%s293 + $0x1f4] sm:$0xf]
                  %346 = vst [vmem:[%s294 + $0x64] sm:$0xf] %v345
                  %v347 = vld [vmem:[%s293 + $0x208] sm:$0xf]
                  %348 = vst [vmem:[%s294 + $0x68] sm:$0xf] %v347
                  %v349 = vld [vmem:[%s293 + $0x21c] sm:$0xf]
                  %350 = vst [vmem:[%s294 + $0x6c] sm:$0xf] %v349
                  %v351 = vld [vmem:[%s293 + $0x230] sm:$0xf]
                  %352 = vst [vmem:[%s294 + $0x70] sm:$0xf] %v351
                  %v353 = vld [vmem:[%s293 + $0x244] sm:$0xf]
                  %354 = vst [vmem:[%s294 + $0x74] sm:$0xf] %v353
                  %v355 = vld [vmem:[%s293 + $0x258] sm:$0xf]
                  %356 = vst [vmem:[%s294 + $0x78] sm:$0xf] %v355
                  %v357 = vld [vmem:[%s293 + $0x26c] sm:$0xf]
                  %358 = vst [vmem:[%s294 + $0x7c] sm:$0xf] %v357
                $region55: #{bottleneck3d_forward.10} parent=42 // loop_footer
                  %s292 = sadd.s32 1, %s288
                $region56: #{bottleneck3d_forward.10} parent=42 // loop_footer_branch
                  %287 = sbr.rel target = $region52
                $region57: #{bottleneck3d_forward.10} parent=42 // loop_exit
                  _
              $region43: #{bottleneck3d_forward.10} parent=27 // pred_fallthru
                _
            $region28: #{bottleneck3d_forward.10} parent=23 // pred_fallthru
              _
            // Predicated region
            $region29: #{bottleneck3d_forward.10} parent=23 // pred_check
              _
            $region30: #{bottleneck3d_forward.10} parent=23 // pred_check_branch
              %202 = sbr.rel (0) target = $region32
            $region31: #{bottleneck3d_forward.10} parent=23 // pred_region
              loop: start=0, step=1, limit=1
              $region33: #{bottleneck3d_forward.10} parent=31 // loop_pre_header
                _
              $region34: #{bottleneck3d_forward.10} parent=31 // loop_header
                %s205 = sphi 0, %s209
                %p206 = scmp.ge.s32.totalorder %s205, 1
                %s210 = sphi %s196, %s196
                %s211 = sphi %s191, %s191
              $region35: #{bottleneck3d_forward.10} parent=31 // loop_header_branch
                %208 = sbr.rel (%p206) target = $region39
              $region36: #{bottleneck3d_forward.10} parent=31 // loop_body
                %v212 = vld [vmem:[%s210] sm:$0xf]
                %213 = vst [vmem:[%s211] sm:$0xf] %v212
                %v214 = vld [vmem:[%s210 + $0x14] sm:$0xf]
                %215 = vst [vmem:[%s211 + $0x4] sm:$0xf] %v214
                %v216 = vld [vmem:[%s210 + $0x28] sm:$0xf]
                %217 = vst [vmem:[%s211 + $0x8] sm:$0xf] %v216
                %v218 = vld [vmem:[%s210 + $0x3c] sm:$0xf]
                %219 = vst [vmem:[%s211 + $0xc] sm:$0xf] %v218
                %v220 = vld [vmem:[%s210 + $0x50] sm:$0xf]
                %221 = vst [vmem:[%s211 + $0x10] sm:$0xf] %v220
                %v222 = vld [vmem:[%s210 + $0x64] sm:$0xf]
                %223 = vst [vmem:[%s211 + $0x14] sm:$0xf] %v222
                %v224 = vld [vmem:[%s210 + $0x78] sm:$0xf]
                %225 = vst [vmem:[%s211 + $0x18] sm:$0xf] %v224
                %v226 = vld [vmem:[%s210 + $0x8c] sm:$0xf]
                %227 = vst [vmem:[%s211 + $0x1c] sm:$0xf] %v226
                %v228 = vld [vmem:[%s210 + $0xa0] sm:$0xf]
                %229 = vst [vmem:[%s211 + $0x20] sm:$0xf] %v228
                %v230 = vld [vmem:[%s210 + $0xb4] sm:$0xf]
                %231 = vst [vmem:[%s211 + $0x24] sm:$0xf] %v230
                %v232 = vld [vmem:[%s210 + $0xc8] sm:$0xf]
                %233 = vst [vmem:[%s211 + $0x28] sm:$0xf] %v232
                %v234 = vld [vmem:[%s210 + $0xdc] sm:$0xf]
                %235 = vst [vmem:[%s211 + $0x2c] sm:$0xf] %v234
                %v236 = vld [vmem:[%s210 + $0xf0] sm:$0xf]
                %237 = vst [vmem:[%s211 + $0x30] sm:$0xf] %v236
                %v238 = vld [vmem:[%s210 + $0x104] sm:$0xf]
                %239 = vst [vmem:[%s211 + $0x34] sm:$0xf] %v238
                %v240 = vld [vmem:[%s210 + $0x118] sm:$0xf]
                %241 = vst [vmem:[%s211 + $0x38] sm:$0xf] %v240
                %v242 = vld [vmem:[%s210 + $0x12c] sm:$0xf]
                %243 = vst [vmem:[%s211 + $0x3c] sm:$0xf] %v242
                %v244 = vld [vmem:[%s210 + $0x140] sm:$0xf]
                %245 = vst [vmem:[%s211 + $0x40] sm:$0xf] %v244
                %v246 = vld [vmem:[%s210 + $0x154] sm:$0xf]
                %247 = vst [vmem:[%s211 + $0x44] sm:$0xf] %v246
                %v248 = vld [vmem:[%s210 + $0x168] sm:$0xf]
                %249 = vst [vmem:[%s211 + $0x48] sm:$0xf] %v248
                %v250 = vld [vmem:[%s210 + $0x17c] sm:$0xf]
                %251 = vst [vmem:[%s211 + $0x4c] sm:$0xf] %v250
                %v252 = vld [vmem:[%s210 + $0x190] sm:$0xf]
                %253 = vst [vmem:[%s211 + $0x50] sm:$0xf] %v252
                %v254 = vld [vmem:[%s210 + $0x1a4] sm:$0xf]
                %255 = vst [vmem:[%s211 + $0x54] sm:$0xf] %v254
                %v256 = vld [vmem:[%s210 + $0x1b8] sm:$0xf]
                %257 = vst [vmem:[%s211 + $0x58] sm:$0xf] %v256
                %v258 = vld [vmem:[%s210 + $0x1cc] sm:$0xf]
                %259 = vst [vmem:[%s211 + $0x5c] sm:$0xf] %v258
                %v260 = vld [vmem:[%s210 + $0x1e0] sm:$0xf]
                %261 = vst [vmem:[%s211 + $0x60] sm:$0xf] %v260
                %v262 = vld [vmem:[%s210 + $0x1f4] sm:$0xf]
                %263 = vst [vmem:[%s211 + $0x64] sm:$0xf] %v262
                %v264 = vld [vmem:[%s210 + $0x208] sm:$0xf]
                %265 = vst [vmem:[%s211 + $0x68] sm:$0xf] %v264
                %v266 = vld [vmem:[%s210 + $0x21c] sm:$0xf]
                %267 = vst [vmem:[%s211 + $0x6c] sm:$0xf] %v266
                %v268 = vld [vmem:[%s210 + $0x230] sm:$0xf]
                %269 = vst [vmem:[%s211 + $0x70] sm:$0xf] %v268
                %v270 = vld [vmem:[%s210 + $0x244] sm:$0xf]
                %271 = vst [vmem:[%s211 + $0x74] sm:$0xf] %v270
                %v272 = vld [vmem:[%s210 + $0x258] sm:$0xf]
                %273 = vst [vmem:[%s211 + $0x78] sm:$0xf] %v272
                %v274 = vld [vmem:[%s210 + $0x26c] sm:$0xf]
                %275 = vst [vmem:[%s211 + $0x7c] sm:$0xf] %v274
              $region37: #{bottleneck3d_forward.10} parent=31 // loop_footer
                %s209 = sadd.s32 1, %s205
              $region38: #{bottleneck3d_forward.10} parent=31 // loop_footer_branch
                %204 = sbr.rel target = $region34
              $region39: #{bottleneck3d_forward.10} parent=31 // loop_exit
                _
            $region32: #{bottleneck3d_forward.10} parent=23 // pred_fallthru
              _
          $region24: #{bottleneck3d_forward.10} parent=19 // pred_fallthru
            _
          %359 = vnop
        $region20: #{bottleneck3d_forward.10} parent=15 // pred_fallthru
          _
        // Predicated region
        $region58: #{bottleneck3d_forward.10} parent=15 // pred_check
          %p360 = pneg %p80
        $region59: #{bottleneck3d_forward.10} parent=15 // pred_check_branch
          %362 = sbr.rel (%p360) target = $region61
        $region60: #{bottleneck3d_forward.10} parent=15 // pred_region
          %s363 = smul.u32 16, %s20
          %p364 = scmp.lt.s32.totalorder %s363, 79
          %s365 = scalar_select %p364, %s363, 79
          %p366 = scmp.lt.s32.totalorder %s18, 0
          %s367 = scalar_select %p366, %s18, 0
          %s368 = sadd.s32 %s367, %s365
          %s369 = smul.addr %s368, 4
          %s370 = scalar_lea.vmem %s1, %s369
          %s371 = smul.u32 16, %s20
        $region61: #{bottleneck3d_forward.10} parent=15 // pred_fallthru
          _
      $region16: #{bottleneck3d_forward.10} parent=5 // pred_fallthru
        _
      %p372 = scmp.le.s32.totalorder 1, %s11
      %p373 = scmp.lt.s32.totalorder %s11, 6
      %p374 = pnand %p372, %p373
      %p375 = pneg %p374
      // Predicated region
      $region62: #{bottleneck3d_forward.10} parent=5 // pred_check
        _
      $region63: #{bottleneck3d_forward.10} parent=5 // pred_check_branch
        %377 = sbr.rel (%p374) target = $region65
      $region64: #{bottleneck3d_forward.10} parent=5 // pred_region
        %s378 = ssub.s32 %s11, 1
        %s379 = sand.u32 %s45, 1
        %s380 = sand.u32 %s45, 1
        %s381 = smul.addr %s380, 128
        %s382 = scalar_lea.vmem [#allocation2], %s381
        // Predicated region
        $region66: #{bottleneck3d_forward.10} parent=64 // pred_check
          %p383 = pneg %p58
        $region67: #{bottleneck3d_forward.10} parent=64 // pred_check_branch
          %385 = sbr.rel (%p383) target = $region69
        $region68: #{bottleneck3d_forward.10} parent=64 // pred_region
          _
        $region69: #{bottleneck3d_forward.10} parent=64 // pred_fallthru
          _
        %s386 = sand.u32 %s45, 1
        %s387 = sand.u32 %s45, 1
        %s388 = smul.addr %s387, 128
        %s389 = scalar_lea.vmem [#allocation2], %s388
        %p390 = pneg %p58
        %p391 = pneg %p55
        %s392 = smul.u32 16, %s23
        %p393 = scmp.lt.s32.totalorder %s392, 79
        %s394 = scalar_select %p393, %s392, 79
        %p395 = scmp.lt.s32.totalorder %s21, 0
        %s396 = scalar_select %p395, %s21, 0
        %s397 = sadd.s32 %s396, %s394
        %s398 = smul.addr %s397, 4
        %s399 = scalar_lea.vmem %s1, %s398
        %p400 = pneg %p86
        %p401 = pneg %p83
        %p402 = pneg %p114
        %p403 = pneg %p111
        %s404 = smul.u32 32, %s22
        %p405 = scmp.lt.s32.totalorder %s404, 31
        %s406 = scalar_select %p405, %s404, 31
        %p407 = scmp.lt.s32.totalorder %s21, 0
        %s408 = scalar_select %p407, %s21, 0
        %s409 = sadd.s32 %s408, %s406
        %s410 = smul.addr %s409, 8
        %s411 = scalar_lea.vmem %s2, %s410
        %p412 = pneg %p140
        %p413 = pneg %p137
        %p414 = scmp.lt.s32.totalorder %s21, 0
        %s415 = scalar_select %p414, %s21, 0
        %s416 = scalar_lea.vmem %s3, %s415
        %p417 = pneg %p166
        %p418 = pneg %p163
        %p419 = scmp.lt.s32.totalorder %s21, 0
        %s420 = scalar_select %p419, %s21, 0
        %s421 = scalar_lea.vmem %s4, %s420
        %s422 = smul.u32 32, %s22
        %s423 = smul.u32 16, %s23
        %p424 = scmp.lt.s32.totalorder %s423, 79
        %s425 = scalar_select %p424, %s423, 79
        %p426 = scmp.lt.s32.totalorder %s21, 0
        %s427 = scalar_select %p426, %s21, 0
        %s428 = sadd.s32 %s427, %s425
        %s429 = smul.addr %s428, 4
        %s430 = scalar_lea.vmem %s1, %s429
        %s431 = smul.u32 16, %s23
        %s432 = smul.u32 32, %s22
        %p433 = scmp.lt.s32.totalorder %s432, 31
        %s434 = scalar_select %p433, %s432, 31
        %p435 = scmp.lt.s32.totalorder %s21, 0
        %s436 = scalar_select %p435, %s21, 0
        %s437 = sadd.s32 %s436, %s434
        %s438 = smul.addr %s437, 8
        %s439 = scalar_lea.vmem %s2, %s438
        %s440 = smul.u32 32, %s22
        %p441 = scmp.lt.s32.totalorder %s21, 0
        %s442 = scalar_select %p441, %s21, 0
        %s443 = scalar_lea.vmem %s3, %s442
        %p444 = scmp.lt.s32.totalorder %s21, 0
        %s445 = scalar_select %p444, %s21, 0
        %s446 = scalar_lea.vmem %s4, %s445
        %p448 = scmp.eq.s32.totalorder %s23, 0
        // Predicated region
        $region70: #{bottleneck3d_forward.10} parent=64 // pred_check
          %p449 = pneg %p448
        $region71: #{bottleneck3d_forward.10} parent=64 // pred_check_branch
          %451 = sbr.rel (%p449) target = $region73
        $region72: #{bottleneck3d_forward.10} parent=64 // pred_region
          %452 = vst [vmem:[%s439] sm:$0xff] 0.0
          %453 = vst [vmem:[%s439 + $0x8] sm:$0xff] 0.0
          %454 = vst [vmem:[%s439 + $0x10] sm:$0xff] 0.0
          %455 = vst [vmem:[%s439 + $0x18] sm:$0xff] 0.0
          %456 = vst [vmem:[%s439 + $0x20] sm:$0xff] 0.0
          %457 = vst [vmem:[%s439 + $0x28] sm:$0xff] 0.0
          %458 = vst [vmem:[%s439 + $0x30] sm:$0xff] 0.0
          %459 = vst [vmem:[%s439 + $0x38] sm:$0xff] 0.0
          %460 = vst [vmem:[%s439 + $0x40] sm:$0xff] 0.0
          %461 = vst [vmem:[%s439 + $0x48] sm:$0xff] 0.0
          %462 = vst [vmem:[%s439 + $0x50] sm:$0xff] 0.0
          %463 = vst [vmem:[%s439 + $0x58] sm:$0xff] 0.0
          %464 = vst [vmem:[%s439 + $0x60] sm:$0xff] 0.0
          %465 = vst [vmem:[%s439 + $0x68] sm:$0xff] 0.0
          %466 = vst [vmem:[%s439 + $0x70] sm:$0xff] 0.0
          %467 = vst [vmem:[%s439 + $0x78] sm:$0xff] 0.0
          %468 = vst [vmem:[%s439 + $0x80] sm:$0xff] 0.0
          %469 = vst [vmem:[%s439 + $0x88] sm:$0xff] 0.0
          %470 = vst [vmem:[%s439 + $0x90] sm:$0xff] 0.0
          %471 = vst [vmem:[%s439 + $0x98] sm:$0xff] 0.0
          %472 = vst [vmem:[%s439 + $0xa0] sm:$0xff] 0.0
          %473 = vst [vmem:[%s439 + $0xa8] sm:$0xff] 0.0
          %474 = vst [vmem:[%s439 + $0xb0] sm:$0xff] 0.0
          %475 = vst [vmem:[%s439 + $0xb8] sm:$0xff] 0.0
          %476 = vst [vmem:[%s439 + $0xc0] sm:$0xff] 0.0
          %477 = vst [vmem:[%s439 + $0xc8] sm:$0xff] 0.0
          %478 = vst [vmem:[%s439 + $0xd0] sm:$0xff] 0.0
          %479 = vst [vmem:[%s439 + $0xd8] sm:$0xff] 0.0
          %480 = vst [vmem:[%s439 + $0xe0] sm:$0xff] 0.0
          %481 = vst [vmem:[%s439 + $0xe8] sm:$0xff] 0.0
          %482 = vst [vmem:[%s439 + $0xf0] sm:$0xff] 0.0
          %483 = vst [vmem:[%s439 + $0xf8] sm:$0xff] 0.0
        $region73: #{bottleneck3d_forward.10} parent=64 // pred_fallthru
          _
        %p484 = scmp.eq.s32.totalorder %s22, 0
        %p485 = pnand %p484, %p448
        %p486 = pneg %p485
        // Predicated region
        $region74: #{bottleneck3d_forward.10} parent=64 // pred_check
          _
        $region75: #{bottleneck3d_forward.10} parent=64 // pred_check_branch
          %488 = sbr.rel (%p485) target = $region77
        $region76: #{bottleneck3d_forward.10} parent=64 // pred_region
          %489 = vst [vmem:[%s443] sm:$0x1] 0.0
          %490 = vst [vmem:[%s446] sm:$0x1] 0.0
        $region77: #{bottleneck3d_forward.10} parent=64 // pred_fallthru
          _
        %v491 = vld [vmem:[%s439] sm:$0xff]
        %v492 = vld [vmem:[%s439 + $0x8] sm:$0xff]
        %v493 = vld [vmem:[%s439 + $0x10] sm:$0xff]
        %v494 = vld [vmem:[%s439 + $0x18] sm:$0xff]
        %v495 = vld [vmem:[%s439 + $0x20] sm:$0xff]
        %v496 = vld [vmem:[%s439 + $0x28] sm:$0xff]
        %v497 = vld [vmem:[%s439 + $0x30] sm:$0xff]
        %v498 = vld [vmem:[%s439 + $0x38] sm:$0xff]
        %v499 = vld [vmem:[%s439 + $0x40] sm:$0xff]
        %v500 = vld [vmem:[%s439 + $0x48] sm:$0xff]
        %v501 = vld [vmem:[%s439 + $0x50] sm:$0xff]
        %v502 = vld [vmem:[%s439 + $0x58] sm:$0xff]
        %v503 = vld [vmem:[%s439 + $0x60] sm:$0xff]
        %v504 = vld [vmem:[%s439 + $0x68] sm:$0xff]
        %v505 = vld [vmem:[%s439 + $0x70] sm:$0xff]
        %v506 = vld [vmem:[%s439 + $0x78] sm:$0xff]
        %v507 = vld [vmem:[%s439 + $0x80] sm:$0xff]
        %v508 = vld [vmem:[%s439 + $0x88] sm:$0xff]
        %v509 = vld [vmem:[%s439 + $0x90] sm:$0xff]
        %v510 = vld [vmem:[%s439 + $0x98] sm:$0xff]
        %v511 = vld [vmem:[%s439 + $0xa0] sm:$0xff]
        %v512 = vld [vmem:[%s439 + $0xa8] sm:$0xff]
        %v513 = vld [vmem:[%s439 + $0xb0] sm:$0xff]
        %v514 = vld [vmem:[%s439 + $0xb8] sm:$0xff]
        %v515 = vld [vmem:[%s439 + $0xc0] sm:$0xff]
        %v516 = vld [vmem:[%s439 + $0xc8] sm:$0xff]
        %v517 = vld [vmem:[%s439 + $0xd0] sm:$0xff]
        %v518 = vld [vmem:[%s439 + $0xd8] sm:$0xff]
        %v519 = vld [vmem:[%s439 + $0xe0] sm:$0xff]
        %v520 = vld [vmem:[%s439 + $0xe8] sm:$0xff]
        %v521 = vld [vmem:[%s439 + $0xf0] sm:$0xff]
        %v522 = vld [vmem:[%s439 + $0xf8] sm:$0xff]
        %v523 = vld [vmem:[%s382] sm:$0xf]
        %v524 = vld [vmem:[%s382 + $0x4] sm:$0xf]
        %v525 = vld [vmem:[%s382 + $0x8] sm:$0xf]
        %v526 = vld [vmem:[%s382 + $0xc] sm:$0xf]
        %v527 = vld [vmem:[%s382 + $0x10] sm:$0xf]
        %v528 = vld [vmem:[%s382 + $0x14] sm:$0xf]
        %v529 = vld [vmem:[%s382 + $0x18] sm:$0xf]
        %v530 = vld [vmem:[%s382 + $0x1c] sm:$0xf]
        %v531 = vld [vmem:[%s382 + $0x20] sm:$0xf]
        %v532 = vld [vmem:[%s382 + $0x24] sm:$0xf]
        %v533 = vld [vmem:[%s382 + $0x28] sm:$0xf]
        %v534 = vld [vmem:[%s382 + $0x2c] sm:$0xf]
        %v535 = vld [vmem:[%s382 + $0x30] sm:$0xf]
        %v536 = vld [vmem:[%s382 + $0x34] sm:$0xf]
        %v537 = vld [vmem:[%s382 + $0x38] sm:$0xf]
        %v538 = vld [vmem:[%s382 + $0x3c] sm:$0xf]
        %v539 = vld [vmem:[%s382 + $0x40] sm:$0xf]
        %v540 = vld [vmem:[%s382 + $0x44] sm:$0xf]
        %v541 = vld [vmem:[%s382 + $0x48] sm:$0xf]
        %v542 = vld [vmem:[%s382 + $0x4c] sm:$0xf]
        %v543 = vld [vmem:[%s382 + $0x50] sm:$0xf]
        %v544 = vld [vmem:[%s382 + $0x54] sm:$0xf]
        %v545 = vld [vmem:[%s382 + $0x58] sm:$0xf]
        %v546 = vld [vmem:[%s382 + $0x5c] sm:$0xf]
        %v547 = vld [vmem:[%s382 + $0x60] sm:$0xf]
        %v548 = vld [vmem:[%s382 + $0x64] sm:$0xf]
        %v549 = vld [vmem:[%s382 + $0x68] sm:$0xf]
        %v550 = vld [vmem:[%s382 + $0x6c] sm:$0xf]
        %v551 = vld [vmem:[%s382 + $0x70] sm:$0xf]
        %v552 = vld [vmem:[%s382 + $0x74] sm:$0xf]
        %v553 = vld [vmem:[%s382 + $0x78] sm:$0xf]
        %v554 = vld [vmem:[%s382 + $0x7c] sm:$0xf]
        %v555 = vld [vmem:[%s430] sm:$0xf]
        %v556 = vld [vmem:[%s430 + $0x4] sm:$0xf]
        %v557 = vld [vmem:[%s430 + $0x8] sm:$0xf]
        %v558 = vld [vmem:[%s430 + $0xc] sm:$0xf]
        %v559 = vld [vmem:[%s430 + $0x10] sm:$0xf]
        %v560 = vld [vmem:[%s430 + $0x14] sm:$0xf]
        %v561 = vld [vmem:[%s430 + $0x18] sm:$0xf]
        %v562 = vld [vmem:[%s430 + $0x1c] sm:$0xf]
        %v563 = vld [vmem:[%s430 + $0x20] sm:$0xf]
        %v564 = vld [vmem:[%s430 + $0x24] sm:$0xf]
        %v565 = vld [vmem:[%s430 + $0x28] sm:$0xf]
        %v566 = vld [vmem:[%s430 + $0x2c] sm:$0xf]
        %v567 = vld [vmem:[%s430 + $0x30] sm:$0xf]
        %v568 = vld [vmem:[%s430 + $0x34] sm:$0xf]
        %v569 = vld [vmem:[%s430 + $0x38] sm:$0xf]
        %v570 = vld [vmem:[%s430 + $0x3c] sm:$0xf]
        %v603 = vunpack.c.l.b16 %v523
        %v604 = vunpack.c.l.b16 %v524
        %v605 = vunpack.c.l.b16 %v525
        %v606 = vunpack.c.l.b16 %v526
        %v607 = vunpack.c.l.b16 %v527
        %v608 = vunpack.c.l.b16 %v528
        %v609 = vunpack.c.l.b16 %v529
        %v610 = vunpack.c.l.b16 %v530
        %v611 = vunpack.c.l.b16 %v531
        %v612 = vunpack.c.l.b16 %v532
        %v613 = vunpack.c.l.b16 %v533
        %v614 = vunpack.c.l.b16 %v534
        %v615 = vunpack.c.l.b16 %v535
        %v616 = vunpack.c.l.b16 %v536
        %v617 = vunpack.c.l.b16 %v537
        %v618 = vunpack.c.l.b16 %v538
        %v619 = vunpack.c.l.b16 %v539
        %v620 = vunpack.c.l.b16 %v540
        %v621 = vunpack.c.l.b16 %v541
        %v622 = vunpack.c.l.b16 %v542
        %v623 = vunpack.c.l.b16 %v543
        %v624 = vunpack.c.l.b16 %v544
        %v625 = vunpack.c.l.b16 %v545
        %v626 = vunpack.c.l.b16 %v546
        %v627 = vunpack.c.l.b16 %v547
        %v628 = vunpack.c.l.b16 %v548
        %v629 = vunpack.c.l.b16 %v549
        %v630 = vunpack.c.l.b16 %v550
        %v631 = vunpack.c.l.b16 %v551
        %v632 = vunpack.c.l.b16 %v552
        %v633 = vunpack.c.l.b16 %v553
        %v634 = vunpack.c.l.b16 %v554
        %v635 = vpack.c.b16 %v604, %v603
        %v636 = vpack.c.b16 %v606, %v605
        %v637 = vpack.c.b16 %v608, %v607
        %v638 = vpack.c.b16 %v610, %v609
        %v639 = vpack.c.b16 %v612, %v611
        %v640 = vpack.c.b16 %v614, %v613
        %v641 = vpack.c.b16 %v616, %v615
        %v642 = vpack.c.b16 %v618, %v617
        %v643 = vpack.c.b16 %v620, %v619
        %v644 = vpack.c.b16 %v622, %v621
        %v645 = vpack.c.b16 %v624, %v623
        %v646 = vpack.c.b16 %v626, %v625
        %v647 = vpack.c.b16 %v628, %v627
        %v648 = vpack.c.b16 %v630, %v629
        %v649 = vpack.c.b16 %v632, %v631
        %v650 = vpack.c.b16 %v634, %v633
        %v683 = vunpack.c.l.b16 %v555
        %v684 = vunpack.c.l.b16 %v556
        %v685 = vunpack.c.l.b16 %v557
        %v686 = vunpack.c.l.b16 %v558
        %v687 = vunpack.c.l.b16 %v559
        %v688 = vunpack.c.l.b16 %v560
        %v689 = vunpack.c.l.b16 %v561
        %v690 = vunpack.c.l.b16 %v562
        %v691 = vunpack.c.l.b16 %v563
        %v692 = vunpack.c.l.b16 %v564
        %v693 = vunpack.c.l.b16 %v565
        %v694 = vunpack.c.l.b16 %v566
        %v695 = vunpack.c.l.b16 %v567
        %v696 = vunpack.c.l.b16 %v568
        %v697 = vunpack.c.l.b16 %v569
        %v698 = vunpack.c.l.b16 %v570
        %v699 = vpack.c.b16 %v684, %v683
        %v700 = vpack.c.b16 %v686, %v685
        %v701 = vpack.c.b16 %v688, %v687
        %v702 = vpack.c.b16 %v690, %v689
        %v703 = vpack.c.b16 %v692, %v691
        %v704 = vpack.c.b16 %v694, %v693
        %v705 = vpack.c.b16 %v696, %v695
        %v706 = vpack.c.b16 %v698, %v697
        %715 = vmatprep.subr.bf16.mxu0 0
        %716 = vmatpush1.bf16.msra.mxu0 %v699
        %717 = vmatprep.subr.bf16.mxu0 0
        %718 = vmatpush1.bf16.msra.mxu0 %v700
        %719 = vmatprep.subr.bf16.mxu0 0
        %720 = vmatpush1.bf16.msra.mxu0 %v701
        %721 = vmatprep.subr.bf16.mxu0 0
        %722 = vmatpush1.bf16.msra.mxu0 %v702
        %723 = vmatprep.subr.bf16.mxu0 0
        %724 = vmatpush1.bf16.msra.mxu0 %v703
        %725 = vmatprep.subr.bf16.mxu0 0
        %726 = vmatpush1.bf16.msra.mxu0 %v704
        %727 = vmatprep.subr.bf16.mxu0 0
        %728 = vmatpush1.bf16.msra.mxu0 %v705
        %729 = vmatprep.subr.bf16.mxu0 0
        %730 = vmatpush1.bf16.msra.mxu0 %v706
        %731 = vmatprep.subr.bf16.mxu0 0
        %732 = vmatpush1.bf16.msra.mxu0 0
        %733 = vmatprep.subr.bf16.mxu0 0
        %734 = vmatpush1.bf16.msra.mxu0 0
        %735 = vmatprep.subr.bf16.mxu0 0
        %736 = vmatpush1.bf16.msra.mxu0 0
        %737 = vmatprep.subr.bf16.mxu0 0
        %738 = vmatpush1.bf16.msra.mxu0 0
        %739 = vmatprep.subr.bf16.mxu0 0
        %740 = vmatpush1.bf16.msra.mxu0 0
        %741 = vmatprep.subr.bf16.mxu0 0
        %742 = vmatpush1.bf16.msra.mxu0 0
        %743 = vmatprep.subr.bf16.mxu0 0
        %744 = vmatpush1.bf16.msra.mxu0 0
        %745 = vmatprep.subr.bf16.mxu0 0
        %746 = vmatpush1.bf16.msra.mxu0 0
        %747 = vmatprep.mubr.bf16.mxu0 0
        %748 = vmatmul.mubr.bf16.gmra.mrb[0].mxu0 %v635
        %v749 = vpop.f32.mrb[0].mxu0
        %v750 = vadd.f32 0.0, %v749
        %v751 = vpop.f32.mrb[0].mxu0
        %v752 = vpop.f32.mrb[0].mxu0
        %v753 = vadd.f32 0.0, %v752
        %v754 = vpop.f32.mrb[0].mxu0
        %755 = vmatprep.mubr.bf16.mxu0 0
        %756 = vmatmul.mubr.bf16.gmra.mrb[0].mxu0 %v636
        %v757 = vpop.f32.mrb[0].mxu0
        %v758 = vadd.f32 0.0, %v757
        %v759 = vpop.f32.mrb[0].mxu0
        %v760 = vpop.f32.mrb[0].mxu0
        %v761 = vadd.f32 0.0, %v760
        %v762 = vpop.f32.mrb[0].mxu0
        %763 = vmatprep.mubr.bf16.mxu0 0
        %764 = vmatmul.mubr.bf16.gmra.mrb[0].mxu0 %v637
        %v765 = vpop.f32.mrb[0].mxu0
        %v766 = vadd.f32 0.0, %v765
        %v767 = vpop.f32.mrb[0].mxu0
        %v768 = vpop.f32.mrb[0].mxu0
        %v769 = vadd.f32 0.0, %v768
        %v770 = vpop.f32.mrb[0].mxu0
        %771 = vmatprep.mubr.bf16.mxu0 0
        %772 = vmatmul.mubr.bf16.gmra.mrb[0].mxu0 %v638
        %v773 = vpop.f32.mrb[0].mxu0
        %v774 = vadd.f32 0.0, %v773
        %v775 = vpop.f32.mrb[0].mxu0
        %v776 = vpop.f32.mrb[0].mxu0
        %v777 = vadd.f32 0.0, %v776
        %v778 = vpop.f32.mrb[0].mxu0
        %779 = vmatprep.mubr.bf16.mxu0 0
        %780 = vmatmul.mubr.bf16.gmra.mrb[0].mxu0 %v639
        %v781 = vpop.f32.mrb[0].mxu0
        %v782 = vadd.f32 0.0, %v781
        %v783 = vpop.f32.mrb[0].mxu0
        %v784 = vpop.f32.mrb[0].mxu0
        %v785 = vadd.f32 0.0, %v784
        %v786 = vpop.f32.mrb[0].mxu0
        %787 = vmatprep.mubr.bf16.mxu0 0
        %788 = vmatmul.mubr.bf16.gmra.mrb[0].mxu0 %v640
        %v789 = vpop.f32.mrb[0].mxu0
        %v790 = vadd.f32 0.0, %v789
        %v791 = vpop.f32.mrb[0].mxu0
        %v792 = vpop.f32.mrb[0].mxu0
        %v793 = vadd.f32 0.0, %v792
        %v794 = vpop.f32.mrb[0].mxu0
        %795 = vmatprep.mubr.bf16.mxu0 0
        %796 = vmatmul.mubr.bf16.gmra.mrb[0].mxu0 %v641
        %v797 = vpop.f32.mrb[0].mxu0
        %v798 = vadd.f32 0.0, %v797
        %v799 = vpop.f32.mrb[0].mxu0
        %v800 = vpop.f32.mrb[0].mxu0
        %v801 = vadd.f32 0.0, %v800
        %v802 = vpop.f32.mrb[0].mxu0
        %803 = vmatprep.mubr.bf16.mxu0 0
        %804 = vmatmul.mubr.bf16.gmra.mrb[0].mxu0 %v642
        %v805 = vpop.f32.mrb[0].mxu0
        %v806 = vadd.f32 0.0, %v805
        %v807 = vpop.f32.mrb[0].mxu0
        %v808 = vpop.f32.mrb[0].mxu0
        %v809 = vadd.f32 0.0, %v808
        %v810 = vpop.f32.mrb[0].mxu0
        %811 = vmatprep.mubr.bf16.mxu0 0
        %812 = vmatmul.mubr.bf16.gmra.mrb[0].mxu0 %v643
        %v813 = vpop.f32.mrb[0].mxu0
        %v814 = vadd.f32 0.0, %v813
        %v815 = vpop.f32.mrb[0].mxu0
        %v816 = vpop.f32.mrb[0].mxu0
        %v817 = vadd.f32 0.0, %v816
        %v818 = vpop.f32.mrb[0].mxu0
        %819 = vmatprep.mubr.bf16.mxu0 0
        %820 = vmatmul.mubr.bf16.gmra.mrb[0].mxu0 %v644
        %v821 = vpop.f32.mrb[0].mxu0
        %v822 = vadd.f32 0.0, %v821
        %v823 = vpop.f32.mrb[0].mxu0
        %v824 = vpop.f32.mrb[0].mxu0
        %v825 = vadd.f32 0.0, %v824
        %v826 = vpop.f32.mrb[0].mxu0
        %827 = vmatprep.mubr.bf16.mxu0 0
        %828 = vmatmul.mubr.bf16.gmra.mrb[0].mxu0 %v645
        %v829 = vpop.f32.mrb[0].mxu0
        %v830 = vadd.f32 0.0, %v829
        %v831 = vpop.f32.mrb[0].mxu0
        %v832 = vpop.f32.mrb[0].mxu0
        %v833 = vadd.f32 0.0, %v832
        %v834 = vpop.f32.mrb[0].mxu0
        %835 = vmatprep.mubr.bf16.mxu0 0
        %836 = vmatmul.mubr.bf16.gmra.mrb[0].mxu0 %v646
        %v837 = vpop.f32.mrb[0].mxu0
        %v838 = vadd.f32 0.0, %v837
        %v839 = vpop.f32.mrb[0].mxu0
        %v840 = vpop.f32.mrb[0].mxu0
        %v841 = vadd.f32 0.0, %v840
        %v842 = vpop.f32.mrb[0].mxu0
        %843 = vmatprep.mubr.bf16.mxu0 0
        %844 = vmatmul.mubr.bf16.gmra.mrb[0].mxu0 %v647
        %v845 = vpop.f32.mrb[0].mxu0
        %v846 = vadd.f32 0.0, %v845
        %v847 = vpop.f32.mrb[0].mxu0
        %v848 = vpop.f32.mrb[0].mxu0
        %v849 = vadd.f32 0.0, %v848
        %v850 = vpop.f32.mrb[0].mxu0
        %851 = vmatprep.mubr.bf16.mxu0 0
        %852 = vmatmul.mubr.bf16.gmra.mrb[0].mxu0 %v648
        %v853 = vpop.f32.mrb[0].mxu0
        %v854 = vadd.f32 0.0, %v853
        %v855 = vpop.f32.mrb[0].mxu0
        %v856 = vpop.f32.mrb[0].mxu0
        %v857 = vadd.f32 0.0, %v856
        %v858 = vpop.f32.mrb[0].mxu0
        %859 = vmatprep.mubr.bf16.mxu0 0
        %860 = vmatmul.mubr.bf16.gmra.mrb[0].mxu0 %v649
        %v861 = vpop.f32.mrb[0].mxu0
        %v862 = vadd.f32 0.0, %v861
        %v863 = vpop.f32.mrb[0].mxu0
        %v864 = vpop.f32.mrb[0].mxu0
        %v865 = vadd.f32 0.0, %v864
        %v866 = vpop.f32.mrb[0].mxu0
        %867 = vmatprep.mubr.bf16.mxu0 0
        %868 = vmatmul.mubr.bf16.gmra.mrb[0].mxu0 %v650
        %v869 = vpop.f32.mrb[0].mxu0
        %v870 = vadd.f32 0.0, %v869
        %v871 = vpop.f32.mrb[0].mxu0
        %v872 = vpop.f32.mrb[0].mxu0
        %v873 = vadd.f32 0.0, %v872
        %v874 = vpop.f32.mrb[0].mxu0
        %875 = vdwg.mxu0
        %v876 = vadd.f32 %v491, %v750
        %v877 = vadd.f32 %v492, %v753
        %v878 = vadd.f32 %v493, %v758
        %v879 = vadd.f32 %v494, %v761
        %v880 = vadd.f32 %v495, %v766
        %v881 = vadd.f32 %v496, %v769
        %v882 = vadd.f32 %v497, %v774
        %v883 = vadd.f32 %v498, %v777
        %v884 = vadd.f32 %v499, %v782
        %v885 = vadd.f32 %v500, %v785
        %v886 = vadd.f32 %v501, %v790
        %v887 = vadd.f32 %v502, %v793
        %v888 = vadd.f32 %v503, %v798
        %v889 = vadd.f32 %v504, %v801
        %v890 = vadd.f32 %v505, %v806
        %v891 = vadd.f32 %v506, %v809
        %v892 = vadd.f32 %v507, %v814
        %v893 = vadd.f32 %v508, %v817
        %v894 = vadd.f32 %v509, %v822
        %v895 = vadd.f32 %v510, %v825
        %v896 = vadd.f32 %v511, %v830
        %v897 = vadd.f32 %v512, %v833
        %v898 = vadd.f32 %v513, %v838
        %v899 = vadd.f32 %v514, %v841
        %v900 = vadd.f32 %v515, %v846
        %v901 = vadd.f32 %v516, %v849
        %v902 = vadd.f32 %v517, %v854
        %v903 = vadd.f32 %v518, %v857
        %v904 = vadd.f32 %v519, %v862
        %v905 = vadd.f32 %v520, %v865
        %v906 = vadd.f32 %v521, %v870
        %v907 = vadd.f32 %v522, %v873
        %908 = vst [vmem:[%s439] sm:$0xff] %v876
        %909 = vst [vmem:[%s439 + $0x8] sm:$0xff] %v877
        %910 = vst [vmem:[%s439 + $0x10] sm:$0xff] %v878
        %911 = vst [vmem:[%s439 + $0x18] sm:$0xff] %v879
        %912 = vst [vmem:[%s439 + $0x20] sm:$0xff] %v880
        %913 = vst [vmem:[%s439 + $0x28] sm:$0xff] %v881
        %914 = vst [vmem:[%s439 + $0x30] sm:$0xff] %v882
        %915 = vst [vmem:[%s439 + $0x38] sm:$0xff] %v883
        %916 = vst [vmem:[%s439 + $0x40] sm:$0xff] %v884
        %917 = vst [vmem:[%s439 + $0x48] sm:$0xff] %v885
        %918 = vst [vmem:[%s439 + $0x50] sm:$0xff] %v886
        %919 = vst [vmem:[%s439 + $0x58] sm:$0xff] %v887
        %920 = vst [vmem:[%s439 + $0x60] sm:$0xff] %v888
        %921 = vst [vmem:[%s439 + $0x68] sm:$0xff] %v889
        %922 = vst [vmem:[%s439 + $0x70] sm:$0xff] %v890
        %923 = vst [vmem:[%s439 + $0x78] sm:$0xff] %v891
        %924 = vst [vmem:[%s439 + $0x80] sm:$0xff] %v892
        %925 = vst [vmem:[%s439 + $0x88] sm:$0xff] %v893
        %926 = vst [vmem:[%s439 + $0x90] sm:$0xff] %v894
        %927 = vst [vmem:[%s439 + $0x98] sm:$0xff] %v895
        %928 = vst [vmem:[%s439 + $0xa0] sm:$0xff] %v896
        %929 = vst [vmem:[%s439 + $0xa8] sm:$0xff] %v897
        %930 = vst [vmem:[%s439 + $0xb0] sm:$0xff] %v898
        %931 = vst [vmem:[%s439 + $0xb8] sm:$0xff] %v899
        %932 = vst [vmem:[%s439 + $0xc0] sm:$0xff] %v900
        %933 = vst [vmem:[%s439 + $0xc8] sm:$0xff] %v901
        %934 = vst [vmem:[%s439 + $0xd0] sm:$0xff] %v902
        %935 = vst [vmem:[%s439 + $0xd8] sm:$0xff] %v903
        %936 = vst [vmem:[%s439 + $0xe0] sm:$0xff] %v904
        %937 = vst [vmem:[%s439 + $0xe8] sm:$0xff] %v905
        %938 = vst [vmem:[%s439 + $0xf0] sm:$0xff] %v906
        %939 = vst [vmem:[%s439 + $0xf8] sm:$0xff] %v907
        %p940 = scmp.eq.s32.totalorder %s23, 4
        // Predicated region
        $region78: #{bottleneck3d_forward.10} parent=64 // pred_check
          %p941 = pneg %p940
        $region79: #{bottleneck3d_forward.10} parent=64 // pred_check_branch
          %943 = sbr.rel (%p941) target = $region81
        $region80: #{bottleneck3d_forward.10} parent=64 // pred_region
          %v944 = vld [vmem:[%s439] sm:$0xff]
          %v945 = vld [vmem:[%s439 + $0x8] sm:$0xff]
          %v946 = vld [vmem:[%s439 + $0x10] sm:$0xff]
          %v947 = vld [vmem:[%s439 + $0x18] sm:$0xff]
          %v948 = vld [vmem:[%s439 + $0x20] sm:$0xff]
          %v949 = vld [vmem:[%s439 + $0x28] sm:$0xff]
          %v950 = vld [vmem:[%s439 + $0x30] sm:$0xff]
          %v951 = vld [vmem:[%s439 + $0x38] sm:$0xff]
          %v952 = vld [vmem:[%s439 + $0x40] sm:$0xff]
          %v953 = vld [vmem:[%s439 + $0x48] sm:$0xff]
          %v954 = vld [vmem:[%s439 + $0x50] sm:$0xff]
          %v955 = vld [vmem:[%s439 + $0x58] sm:$0xff]
          %v956 = vld [vmem:[%s439 + $0x60] sm:$0xff]
          %v957 = vld [vmem:[%s439 + $0x68] sm:$0xff]
          %v958 = vld [vmem:[%s439 + $0x70] sm:$0xff]
          %v959 = vld [vmem:[%s439 + $0x78] sm:$0xff]
          %v960 = vld [vmem:[%s439 + $0x80] sm:$0xff]
          %v961 = vld [vmem:[%s439 + $0x88] sm:$0xff]
          %v962 = vld [vmem:[%s439 + $0x90] sm:$0xff]
          %v963 = vld [vmem:[%s439 + $0x98] sm:$0xff]
          %v964 = vld [vmem:[%s439 + $0xa0] sm:$0xff]
          %v965 = vld [vmem:[%s439 + $0xa8] sm:$0xff]
          %v966 = vld [vmem:[%s439 + $0xb0] sm:$0xff]
          %v967 = vld [vmem:[%s439 + $0xb8] sm:$0xff]
          %v968 = vld [vmem:[%s439 + $0xc0] sm:$0xff]
          %v969 = vld [vmem:[%s439 + $0xc8] sm:$0xff]
          %v970 = vld [vmem:[%s439 + $0xd0] sm:$0xff]
          %v971 = vld [vmem:[%s439 + $0xd8] sm:$0xff]
          %v972 = vld [vmem:[%s439 + $0xe0] sm:$0xff]
          %v973 = vld [vmem:[%s439 + $0xe8] sm:$0xff]
          %v974 = vld [vmem:[%s439 + $0xf0] sm:$0xff]
          %v975 = vld [vmem:[%s439 + $0xf8] sm:$0xff]
          %v976 = vld [vmem:[%s443] sm:$0x1]
          %v977 = vadd.f32 %v944, %v945
          %v978 = vadd.f32 %v977, %v946
          %v979 = vadd.f32 %v978, %v947
          %v980 = vadd.f32 %v979, %v948
          %v981 = vadd.f32 %v980, %v949
          %v982 = vadd.f32 %v981, %v950
          %v983 = vadd.f32 %v982, %v951
          %v984 = vadd.f32 %v983, %v952
          %v985 = vadd.f32 %v984, %v953
          %v986 = vadd.f32 %v985, %v954
          %v987 = vadd.f32 %v986, %v955
          %v988 = vadd.f32 %v987, %v956
          %v989 = vadd.f32 %v988, %v957
          %v990 = vadd.f32 %v989, %v958
          %v991 = vadd.f32 %v990, %v959
          %v992 = vadd.f32 %v991, %v960
          %v993 = vadd.f32 %v992, %v961
          %v994 = vadd.f32 %v993, %v962
          %v995 = vadd.f32 %v994, %v963
          %v996 = vadd.f32 %v995, %v964
          %v997 = vadd.f32 %v996, %v965
          %v998 = vadd.f32 %v997, %v966
          %v999 = vadd.f32 %v998, %v967
          %v1000 = vadd.f32 %v999, %v968
          %v1001 = vadd.f32 %v1000, %v969
          %v1002 = vadd.f32 %v1001, %v970
          %v1003 = vadd.f32 %v1002, %v971
          %v1004 = vadd.f32 %v1003, %v972
          %v1005 = vadd.f32 %v1004, %v973
          %v1006 = vadd.f32 %v1005, %v974
          %v1007 = vadd.f32 %v1006, %v975
          %v1008 = vrot.slane %v1007, 4
          %v1009 = vadd.f32 %v1007, %v1008
          %v1010 = vrot.slane %v1009, 2
          %v1011 = vadd.f32 %v1009, %v1010
          %v1012 = vrot.slane %v1011, 1
          %v1013 = vadd.f32 %v1011, %v1012
          %v1014 = vadd.f32 %v976, %v1013
          %1015 = vst [vmem:[%s443] sm:$0x1] %v1014
          %v1016 = vld [vmem:[%s446] sm:$0x1]
          %v1017 = vmul.f32 %v944, %v944
          %v1018 = vmul.f32 %v945, %v945
          %v1019 = vmul.f32 %v946, %v946
          %v1020 = vmul.f32 %v947, %v947
          %v1021 = vmul.f32 %v948, %v948
          %v1022 = vmul.f32 %v949, %v949
          %v1023 = vmul.f32 %v950, %v950
          %v1024 = vmul.f32 %v951, %v951
          %v1025 = vmul.f32 %v952, %v952
          %v1026 = vmul.f32 %v953, %v953
          %v1027 = vmul.f32 %v954, %v954
          %v1028 = vmul.f32 %v955, %v955
          %v1029 = vmul.f32 %v956, %v956
          %v1030 = vmul.f32 %v957, %v957
          %v1031 = vmul.f32 %v958, %v958
          %v1032 = vmul.f32 %v959, %v959
          %v1033 = vmul.f32 %v960, %v960
          %v1034 = vmul.f32 %v961, %v961
          %v1035 = vmul.f32 %v962, %v962
          %v1036 = vmul.f32 %v963, %v963
          %v1037 = vmul.f32 %v964, %v964
          %v1038 = vmul.f32 %v965, %v965
          %v1039 = vmul.f32 %v966, %v966
          %v1040 = vmul.f32 %v967, %v967
          %v1041 = vmul.f32 %v968, %v968
          %v1042 = vmul.f32 %v969, %v969
          %v1043 = vmul.f32 %v970, %v970
          %v1044 = vmul.f32 %v971, %v971
          %v1045 = vmul.f32 %v972, %v972
          %v1046 = vmul.f32 %v973, %v973
          %v1047 = vmul.f32 %v974, %v974
          %v1048 = vmul.f32 %v975, %v975
          %v1049 = vadd.f32 %v1017, %v1018
          %v1050 = vadd.f32 %v1049, %v1019
          %v1051 = vadd.f32 %v1050, %v1020
          %v1052 = vadd.f32 %v1051, %v1021
          %v1053 = vadd.f32 %v1052, %v1022
          %v1054 = vadd.f32 %v1053, %v1023
          %v1055 = vadd.f32 %v1054, %v1024
          %v1056 = vadd.f32 %v1055, %v1025
          %v1057 = vadd.f32 %v1056, %v1026
          %v1058 = vadd.f32 %v1057, %v1027
          %v1059 = vadd.f32 %v1058, %v1028
          %v1060 = vadd.f32 %v1059, %v1029
          %v1061 = vadd.f32 %v1060, %v1030
          %v1062 = vadd.f32 %v1061, %v1031
          %v1063 = vadd.f32 %v1062, %v1032
          %v1064 = vadd.f32 %v1063, %v1033
          %v1065 = vadd.f32 %v1064, %v1034
          %v1066 = vadd.f32 %v1065, %v1035
          %v1067 = vadd.f32 %v1066, %v1036
          %v1068 = vadd.f32 %v1067, %v1037
          %v1069 = vadd.f32 %v1068, %v1038
          %v1070 = vadd.f32 %v1069, %v1039
          %v1071 = vadd.f32 %v1070, %v1040
          %v1072 = vadd.f32 %v1071, %v1041
          %v1073 = vadd.f32 %v1072, %v1042
          %v1074 = vadd.f32 %v1073, %v1043
          %v1075 = vadd.f32 %v1074, %v1044
          %v1076 = vadd.f32 %v1075, %v1045
          %v1077 = vadd.f32 %v1076, %v1046
          %v1078 = vadd.f32 %v1077, %v1047
          %v1079 = vadd.f32 %v1078, %v1048
          %v1080 = vrot.slane %v1079, 4
          %v1081 = vadd.f32 %v1079, %v1080
          %v1082 = vrot.slane %v1081, 2
          %v1083 = vadd.f32 %v1081, %v1082
          %v1084 = vrot.slane %v1083, 1
          %v1085 = vadd.f32 %v1083, %v1084
          %v1086 = vadd.f32 %v1016, %v1085
          %1087 = vst [vmem:[%s446] sm:$0x1] %v1086
        $region81: #{bottleneck3d_forward.10} parent=64 // pred_fallthru
          _
        %s1088 = smul.u32 32, %s22
        %p1089 = scmp.lt.s32.totalorder %s1088, 31
        %s1090 = scalar_select %p1089, %s1088, 31
        %p1091 = scmp.lt.s32.totalorder %s21, 0
        %s1092 = scalar_select %p1091, %s21, 0
        %s1093 = sadd.s32 %s1092, %s1090
        %s1094 = smul.addr %s1093, 8
        %s1095 = scalar_lea.vmem %s2, %s1094
        %p1096 = scmp.lt.s32.totalorder %s21, 0
        %s1097 = scalar_select %p1096, %s21, 0
        %s1098 = scalar_lea.vmem %s3, %s1097
        %p1099 = scmp.lt.s32.totalorder %s21, 0
        %s1100 = scalar_select %p1099, %s21, 0
        %s1101 = scalar_lea.vmem %s4, %s1100
        // Predicated region
        $region82: #{bottleneck3d_forward.10} parent=64 // pred_check
          %p1102 = pneg %p111
        $region83: #{bottleneck3d_forward.10} parent=64 // pred_check_branch
          %1104 = sbr.rel (%p1102) target = $region85
        $region84: #{bottleneck3d_forward.10} parent=64 // pred_region
          %s1105 = smul.u32 32, %s22
        $region85: #{bottleneck3d_forward.10} parent=64 // pred_fallthru
          _
        // Predicated region
        $region86: #{bottleneck3d_forward.10} parent=64 // pred_check
          %p1106 = pneg %p137
        $region87: #{bottleneck3d_forward.10} parent=64 // pred_check_branch
          %1108 = sbr.rel (%p1106) target = $region89
        $region88: #{bottleneck3d_forward.10} parent=64 // pred_region
          _
        $region89: #{bottleneck3d_forward.10} parent=64 // pred_fallthru
          _
        // Predicated region
        $region90: #{bottleneck3d_forward.10} parent=64 // pred_check
          %p1109 = pneg %p163
        $region91: #{bottleneck3d_forward.10} parent=64 // pred_check_branch
          %1111 = sbr.rel (%p1109) target = $region93
        $region92: #{bottleneck3d_forward.10} parent=64 // pred_region
          _
        $region93: #{bottleneck3d_forward.10} parent=64 // pred_fallthru
          _
        // Predicated region
        $region94: #{bottleneck3d_forward.10} parent=64 // pred_check
          %p1112 = pneg %p111
        $region95: #{bottleneck3d_forward.10} parent=64 // pred_check_branch
          %1114 = sbr.rel (%p1112) target = $region97
        $region96: #{bottleneck3d_forward.10} parent=64 // pred_region
          %s1115 = smul.u32 32, %s22
          %p1116 = scmp.lt.s32.totalorder %s1115, 31
          %s1117 = scalar_select %p1116, %s1115, 31
          %p1118 = scmp.lt.s32.totalorder %s21, 0
          %s1119 = scalar_select %p1118, %s21, 0
          %s1120 = sadd.s32 %s1119, %s1117
          %s1121 = smul.addr %s1120, 8
          %s1122 = scalar_lea.vmem %s2, %s1121
        $region97: #{bottleneck3d_forward.10} parent=64 // pred_fallthru
          _
        // Predicated region
        $region98: #{bottleneck3d_forward.10} parent=64 // pred_check
          %p1123 = pneg %p137
        $region99: #{bottleneck3d_forward.10} parent=64 // pred_check_branch
          %1125 = sbr.rel (%p1123) target = $region101
        $region100: #{bottleneck3d_forward.10} parent=64 // pred_region
          %p1126 = scmp.lt.s32.totalorder %s21, 0
          %s1127 = scalar_select %p1126, %s21, 0
          %s1128 = scalar_lea.vmem %s3, %s1127
        $region101: #{bottleneck3d_forward.10} parent=64 // pred_fallthru
          _
        // Predicated region
        $region102: #{bottleneck3d_forward.10} parent=64 // pred_check
          %p1129 = pneg %p163
        $region103: #{bottleneck3d_forward.10} parent=64 // pred_check_branch
          %1131 = sbr.rel (%p1129) target = $region105
        $region104: #{bottleneck3d_forward.10} parent=64 // pred_region
          %p1132 = scmp.lt.s32.totalorder %s21, 0
          %s1133 = scalar_select %p1132, %s21, 0
          %s1134 = scalar_lea.vmem %s4, %s1133
        $region105: #{bottleneck3d_forward.10} parent=64 // pred_fallthru
          _
      $region65: #{bottleneck3d_forward.10} parent=5 // pred_fallthru
        _
      %p1135 = scmp.le.s32.totalorder 2, %s11
      // Predicated region
      $region106: #{bottleneck3d_forward.10} parent=5 // pred_check
        %p1136 = pneg %p1135
      $region107: #{bottleneck3d_forward.10} parent=5 // pred_check_branch
        %1138 = sbr.rel (%p1136) target = $region109
      $region108: #{bottleneck3d_forward.10} parent=5 // pred_region
        %s1139 = ssub.s32 %s11, 2
      $region109: #{bottleneck3d_forward.10} parent=5 // pred_fallthru
        _
    $region6: #{bottleneck3d_forward.10} parent=1 // loop_footer
      %s15 = sadd.s32 1, %s11
    $region7: #{bottleneck3d_forward.10} parent=1 // loop_footer_branch
      %10 = sbr.rel target = $region3
    $region8: #{bottleneck3d_forward.10} parent=1 // loop_exit
      _

// kernel: bottleneck3d_forward.14
$region0: #{bottleneck3d_forward.14}
  #allocation0 [shape = 'u32[]', space=smem, size = 0x4, offset = 0x4, fixed_abs, tag = 'smem constant byte address 0x4 - core index']
  #allocation1 [shape = 'u32[144,128]{1,0:T(1,128)}', space=vmem, size = 0x12000, scoped, tag = 'internal scratch']
  %s0 = inlined_call_operand.vmem [shape: bf16[256,128], index: 0, kind: input, shape index: {}]
  %s1 = inlined_call_operand.vmem [shape: bf16[128,256], index: 1, kind: input, shape index: {}]
  %s2 = inlined_call_operand.vmem [shape: f32[256,256], index: 2, kind: output, shape index: {0}]
  %s3 = inlined_call_operand.vmem [shape: f32[1,256], index: 3, kind: output, shape index: {1}]
  %s4 = inlined_call_operand.vmem [shape: f32[1,256], index: 4, kind: output, shape index: {2}]
  %5 = xla_tuple %s2, %s3, %s4
  %s6 = sld [smem:[#allocation0]]
  $region46: #{bottleneck3d_forward.14} parent=0
    _
  %s8 = ssub.s32 1, %s6
  %s9 = scalar_select 0, %s8, %s6
  // Predicated region
  $region2: #{bottleneck3d_forward.14} parent=0 // pred_check
    _
  $region3: #{bottleneck3d_forward.14} parent=0 // pred_check_branch
    %11 = sbr.rel (0) target = $region5
  $region4: #{bottleneck3d_forward.14} parent=0 // pred_region
    _
  $region5: #{bottleneck3d_forward.14} parent=0 // pred_fallthru
    _
  // Predicated region
  $region6: #{bottleneck3d_forward.14} parent=0 // pred_check
    _
  $region7: #{bottleneck3d_forward.14} parent=0 // pred_check_branch
    %13 = sbr.rel (0) target = $region9
  $region8: #{bottleneck3d_forward.14} parent=0 // pred_region
    _
  $region9: #{bottleneck3d_forward.14} parent=0 // pred_fallthru
    _
  %p15 = scmp.eq.s32.totalorder 0, 0
  // Predicated region
  $region10: #{bottleneck3d_forward.14} parent=0 // pred_check
    %p16 = pneg %p15
  $region11: #{bottleneck3d_forward.14} parent=0 // pred_check_branch
    %18 = sbr.rel (%p16) target = $region13
  $region12: #{bottleneck3d_forward.14} parent=0 // pred_region
    %19 = vst [vmem:[%s2] sm:$0xff] 0.0
    %20 = vst [vmem:[%s2 + $0x8] sm:$0xff] 0.0
    %21 = vst [vmem:[%s2 + $0x10] sm:$0xff] 0.0
    %22 = vst [vmem:[%s2 + $0x18] sm:$0xff] 0.0
    %23 = vst [vmem:[%s2 + $0x20] sm:$0xff] 0.0
    %24 = vst [vmem:[%s2 + $0x28] sm:$0xff] 0.0
    %25 = vst [vmem:[%s2 + $0x30] sm:$0xff] 0.0
    %26 = vst [vmem:[%s2 + $0x38] sm:$0xff] 0.0
    %27 = vst [vmem:[%s2 + $0x40] sm:$0xff] 0.0
    %28 = vst [vmem:[%s2 + $0x48] sm:$0xff] 0.0
    %29 = vst [vmem:[%s2 + $0x50] sm:$0xff] 0.0
    %30 = vst [vmem:[%s2 + $0x58] sm:$0xff] 0.0
    %31 = vst [vmem:[%s2 + $0x60] sm:$0xff] 0.0
    %32 = vst [vmem:[%s2 + $0x68] sm:$0xff] 0.0
    %33 = vst [vmem:[%s2 + $0x70] sm:$0xff] 0.0
    %34 = vst [vmem:[%s2 + $0x78] sm:$0xff] 0.0
    %35 = vst [vmem:[%s2 + $0x80] sm:$0xff] 0.0
    %36 = vst [vmem:[%s2 + $0x88] sm:$0xff] 0.0
    %37 = vst [vmem:[%s2 + $0x90] sm:$0xff] 0.0
    %38 = vst [vmem:[%s2 + $0x98] sm:$0xff] 0.0
    %39 = vst [vmem:[%s2 + $0xa0] sm:$0xff] 0.0
    %40 = vst [vmem:[%s2 + $0xa8] sm:$0xff] 0.0
    %41 = vst [vmem:[%s2 + $0xb0] sm:$0xff] 0.0
    %42 = vst [vmem:[%s2 + $0xb8] sm:$0xff] 0.0
    %43 = vst [vmem:[%s2 + $0xc0] sm:$0xff] 0.0
    %44 = vst [vmem:[%s2 + $0xc8] sm:$0xff] 0.0
    %45 = vst [vmem:[%s2 + $0xd0] sm:$0xff] 0.0
    %46 = vst [vmem:[%s2 + $0xd8] sm:$0xff] 0.0
    %47 = vst [vmem:[%s2 + $0xe0] sm:$0xff] 0.0
    %48 = vst [vmem:[%s2 + $0xe8] sm:$0xff] 0.0
    %49 = vst [vmem:[%s2 + $0xf0] sm:$0xff] 0.0
    %50 = vst [vmem:[%s2 + $0xf8] sm:$0xff] 0.0
    %51 = vst [vmem:[%s2 + $0x100] sm:$0xff] 0.0
    %52 = vst [vmem:[%s2 + $0x108] sm:$0xff] 0.0
    %53 = vst [vmem:[%s2 + $0x110] sm:$0xff] 0.0
    %54 = vst [vmem:[%s2 + $0x118] sm:$0xff] 0.0
    %55 = vst [vmem:[%s2 + $0x120] sm:$0xff] 0.0
    %56 = vst [vmem:[%s2 + $0x128] sm:$0xff] 0.0
    %57 = vst [vmem:[%s2 + $0x130] sm:$0xff] 0.0
    %58 = vst [vmem:[%s2 + $0x138] sm:$0xff] 0.0
    %59 = vst [vmem:[%s2 + $0x140] sm:$0xff] 0.0
    %60 = vst [vmem:[%s2 + $0x148] sm:$0xff] 0.0
    %61 = vst [vmem:[%s2 + $0x150] sm:$0xff] 0.0
    %62 = vst [vmem:[%s2 + $0x158] sm:$0xff] 0.0
    %63 = vst [vmem:[%s2 + $0x160] sm:$0xff] 0.0
    %64 = vst [vmem:[%s2 + $0x168] sm:$0xff] 0.0
    %65 = vst [vmem:[%s2 + $0x170] sm:$0xff] 0.0
    %66 = vst [vmem:[%s2 + $0x178] sm:$0xff] 0.0
    %67 = vst [vmem:[%s2 + $0x180] sm:$0xff] 0.0
    %68 = vst [vmem:[%s2 + $0x188] sm:$0xff] 0.0
    %69 = vst [vmem:[%s2 + $0x190] sm:$0xff] 0.0
    %70 = vst [vmem:[%s2 + $0x198] sm:$0xff] 0.0
    %71 = vst [vmem:[%s2 + $0x1a0] sm:$0xff] 0.0
    %72 = vst [vmem:[%s2 + $0x1a8] sm:$0xff] 0.0
    %73 = vst [vmem:[%s2 + $0x1b0] sm:$0xff] 0.0
    %74 = vst [vmem:[%s2 + $0x1b8] sm:$0xff] 0.0
    %75 = vst [vmem:[%s2 + $0x1c0] sm:$0xff] 0.0
    %76 = vst [vmem:[%s2 + $0x1c8] sm:$0xff] 0.0
    %77 = vst [vmem:[%s2 + $0x1d0] sm:$0xff] 0.0
    %78 = vst [vmem:[%s2 + $0x1d8] sm:$0xff] 0.0
    %79 = vst [vmem:[%s2 + $0x1e0] sm:$0xff] 0.0
    %80 = vst [vmem:[%s2 + $0x1e8] sm:$0xff] 0.0
    %81 = vst [vmem:[%s2 + $0x1f0] sm:$0xff] 0.0
    %82 = vst [vmem:[%s2 + $0x1f8] sm:$0xff] 0.0
  $region13: #{bottleneck3d_forward.14} parent=0 // pred_fallthru
    _
  %p83 = scmp.eq.s32.totalorder 0, 0
  %p84 = pnand %p83, %p15
  %p85 = pneg %p84
  // Predicated region
  $region14: #{bottleneck3d_forward.14} parent=0 // pred_check
    _
  $region15: #{bottleneck3d_forward.14} parent=0 // pred_check_branch
    %87 = sbr.rel (%p84) target = $region17
  $region16: #{bottleneck3d_forward.14} parent=0 // pred_region
    %v88 = vlaneseq
    %vm89 = vcmp.ge.s32.totalorder %v88, 0
    %vm90 = vcmp.lt.s32.totalorder %v88, 256
    %vm91 = vmand %vm89, %vm90
    %92 = vst.msk [vmem:[%s3] sm:$0x3] %vm91, 0.0
    %93 = vst.msk [vmem:[%s4] sm:$0x3] %vm91, 0.0
  $region17: #{bottleneck3d_forward.14} parent=0 // pred_fallthru
    _
  %v94 = vld [vmem:[%s2] sm:$0xff]
  %v95 = vld [vmem:[%s2 + $0x8] sm:$0xff]
  %v96 = vld [vmem:[%s2 + $0x10] sm:$0xff]
  %v97 = vld [vmem:[%s2 + $0x18] sm:$0xff]
  %v98 = vld [vmem:[%s2 + $0x20] sm:$0xff]
  %v99 = vld [vmem:[%s2 + $0x28] sm:$0xff]
  %v100 = vld [vmem:[%s2 + $0x30] sm:$0xff]
  %v101 = vld [vmem:[%s2 + $0x38] sm:$0xff]
  %v102 = vld [vmem:[%s2 + $0x40] sm:$0xff]
  %v103 = vld [vmem:[%s2 + $0x48] sm:$0xff]
  %v104 = vld [vmem:[%s2 + $0x50] sm:$0xff]
  %v105 = vld [vmem:[%s2 + $0x58] sm:$0xff]
  %v106 = vld [vmem:[%s2 + $0x60] sm:$0xff]
  %v107 = vld [vmem:[%s2 + $0x68] sm:$0xff]
  %v108 = vld [vmem:[%s2 + $0x70] sm:$0xff]
  %v109 = vld [vmem:[%s2 + $0x78] sm:$0xff]
  %v110 = vld [vmem:[%s2 + $0x80] sm:$0xff]
  %v111 = vld [vmem:[%s2 + $0x88] sm:$0xff]
  %v112 = vld [vmem:[%s2 + $0x90] sm:$0xff]
  %v113 = vld [vmem:[%s2 + $0x98] sm:$0xff]
  %v114 = vld [vmem:[%s2 + $0xa0] sm:$0xff]
  %v115 = vld [vmem:[%s2 + $0xa8] sm:$0xff]
  %v116 = vld [vmem:[%s2 + $0xb0] sm:$0xff]
  %v117 = vld [vmem:[%s2 + $0xb8] sm:$0xff]
  %v118 = vld [vmem:[%s2 + $0xc0] sm:$0xff]
  %v119 = vld [vmem:[%s2 + $0xc8] sm:$0xff]
  %v120 = vld [vmem:[%s2 + $0xd0] sm:$0xff]
  %v121 = vld [vmem:[%s2 + $0xd8] sm:$0xff]
  %v122 = vld [vmem:[%s2 + $0xe0] sm:$0xff]
  %v123 = vld [vmem:[%s2 + $0xe8] sm:$0xff]
  %v124 = vld [vmem:[%s2 + $0xf0] sm:$0xff]
  %v125 = vld [vmem:[%s2 + $0xf8] sm:$0xff]
  %v126 = vld [vmem:[%s2 + $0x100] sm:$0xff]
  %v127 = vld [vmem:[%s2 + $0x108] sm:$0xff]
  %v128 = vld [vmem:[%s2 + $0x110] sm:$0xff]
  %v129 = vld [vmem:[%s2 + $0x118] sm:$0xff]
  %v130 = vld [vmem:[%s2 + $0x120] sm:$0xff]
  %v131 = vld [vmem:[%s2 + $0x128] sm:$0xff]
  %v132 = vld [vmem:[%s2 + $0x130] sm:$0xff]
  %v133 = vld [vmem:[%s2 + $0x138] sm:$0xff]
  %v134 = vld [vmem:[%s2 + $0x140] sm:$0xff]
  %v135 = vld [vmem:[%s2 + $0x148] sm:$0xff]
  %v136 = vld [vmem:[%s2 + $0x150] sm:$0xff]
  %v137 = vld [vmem:[%s2 + $0x158] sm:$0xff]
  %v138 = vld [vmem:[%s2 + $0x160] sm:$0xff]
  %v139 = vld [vmem:[%s2 + $0x168] sm:$0xff]
  %v140 = vld [vmem:[%s2 + $0x170] sm:$0xff]
  %v141 = vld [vmem:[%s2 + $0x178] sm:$0xff]
  %v142 = vld [vmem:[%s2 + $0x180] sm:$0xff]
  %v143 = vld [vmem:[%s2 + $0x188] sm:$0xff]
  %v144 = vld [vmem:[%s2 + $0x190] sm:$0xff]
  %v145 = vld [vmem:[%s2 + $0x198] sm:$0xff]
  %v146 = vld [vmem:[%s2 + $0x1a0] sm:$0xff]
  %v147 = vld [vmem:[%s2 + $0x1a8] sm:$0xff]
  %v148 = vld [vmem:[%s2 + $0x1b0] sm:$0xff]
  %v149 = vld [vmem:[%s2 + $0x1b8] sm:$0xff]
  %v150 = vld [vmem:[%s2 + $0x1c0] sm:$0xff]
  %v151 = vld [vmem:[%s2 + $0x1c8] sm:$0xff]
  %v152 = vld [vmem:[%s2 + $0x1d0] sm:$0xff]
  %v153 = vld [vmem:[%s2 + $0x1d8] sm:$0xff]
  %v154 = vld [vmem:[%s2 + $0x1e0] sm:$0xff]
  %v155 = vld [vmem:[%s2 + $0x1e8] sm:$0xff]
  %v156 = vld [vmem:[%s2 + $0x1f0] sm:$0xff]
  %v157 = vld [vmem:[%s2 + $0x1f8] sm:$0xff]
  %v158 = vld [vmem:[%s0] sm:$0xf]
  %v159 = vld [vmem:[%s0 + $0x4] sm:$0xf]
  %v160 = vld [vmem:[%s0 + $0x8] sm:$0xf]
  %v161 = vld [vmem:[%s0 + $0xc] sm:$0xf]
  %v162 = vld [vmem:[%s0 + $0x10] sm:$0xf]
  %v163 = vld [vmem:[%s0 + $0x14] sm:$0xf]
  %v164 = vld [vmem:[%s0 + $0x18] sm:$0xf]
  %v165 = vld [vmem:[%s0 + $0x1c] sm:$0xf]
  %v166 = vld [vmem:[%s0 + $0x20] sm:$0xf]
  %v167 = vld [vmem:[%s0 + $0x24] sm:$0xf]
  %v168 = vld [vmem:[%s0 + $0x28] sm:$0xf]
  %v169 = vld [vmem:[%s0 + $0x2c] sm:$0xf]
  %v170 = vld [vmem:[%s0 + $0x30] sm:$0xf]
  %v171 = vld [vmem:[%s0 + $0x34] sm:$0xf]
  %v172 = vld [vmem:[%s0 + $0x38] sm:$0xf]
  %v173 = vld [vmem:[%s0 + $0x3c] sm:$0xf]
  %v174 = vld [vmem:[%s0 + $0x40] sm:$0xf]
  %v175 = vld [vmem:[%s0 + $0x44] sm:$0xf]
  %v176 = vld [vmem:[%s0 + $0x48] sm:$0xf]
  %v177 = vld [vmem:[%s0 + $0x4c] sm:$0xf]
  %v178 = vld [vmem:[%s0 + $0x50] sm:$0xf]
  %v179 = vld [vmem:[%s0 + $0x54] sm:$0xf]
  %v180 = vld [vmem:[%s0 + $0x58] sm:$0xf]
  %v181 = vld [vmem:[%s0 + $0x5c] sm:$0xf]
  %v182 = vld [vmem:[%s0 + $0x60] sm:$0xf]
  %v183 = vld [vmem:[%s0 + $0x64] sm:$0xf]
  %v184 = vld [vmem:[%s0 + $0x68] sm:$0xf]
  %v185 = vld [vmem:[%s0 + $0x6c] sm:$0xf]
  %v186 = vld [vmem:[%s0 + $0x70] sm:$0xf]
  %v187 = vld [vmem:[%s0 + $0x74] sm:$0xf]
  %v188 = vld [vmem:[%s0 + $0x78] sm:$0xf]
  %v189 = vld [vmem:[%s0 + $0x7c] sm:$0xf]
  %v190 = vld [vmem:[%s1] sm:$0xff]
  %v191 = vld [vmem:[%s1 + $0x8] sm:$0xff]
  %v192 = vld [vmem:[%s1 + $0x10] sm:$0xff]
  %v193 = vld [vmem:[%s1 + $0x18] sm:$0xff]
  %v194 = vld [vmem:[%s1 + $0x20] sm:$0xff]
  %v195 = vld [vmem:[%s1 + $0x28] sm:$0xff]
  %v196 = vld [vmem:[%s1 + $0x30] sm:$0xff]
  %v197 = vld [vmem:[%s1 + $0x38] sm:$0xff]
  %v198 = vld [vmem:[%s1 + $0x40] sm:$0xff]
  %v199 = vld [vmem:[%s1 + $0x48] sm:$0xff]
  %v200 = vld [vmem:[%s1 + $0x50] sm:$0xff]
  %v201 = vld [vmem:[%s1 + $0x58] sm:$0xff]
  %v202 = vld [vmem:[%s1 + $0x60] sm:$0xff]
  %v203 = vld [vmem:[%s1 + $0x68] sm:$0xff]
  %v204 = vld [vmem:[%s1 + $0x70] sm:$0xff]
  %v205 = vld [vmem:[%s1 + $0x78] sm:$0xff]
  %v238 = vunpack.c.l.b16 %v158
  %v239 = vunpack.c.l.b16 %v159
  %v240 = vunpack.c.l.b16 %v160
  %v241 = vunpack.c.l.b16 %v161
  %v242 = vunpack.c.l.b16 %v162
  %v243 = vunpack.c.l.b16 %v163
  %v244 = vunpack.c.l.b16 %v164
  %v245 = vunpack.c.l.b16 %v165
  %v246 = vunpack.c.l.b16 %v166
  %v247 = vunpack.c.l.b16 %v167
  %v248 = vunpack.c.l.b16 %v168
  %v249 = vunpack.c.l.b16 %v169
  %v250 = vunpack.c.l.b16 %v170
  %v251 = vunpack.c.l.b16 %v171
  %v252 = vunpack.c.l.b16 %v172
  %v253 = vunpack.c.l.b16 %v173
  %v254 = vunpack.c.l.b16 %v174
  %v255 = vunpack.c.l.b16 %v175
  %v256 = vunpack.c.l.b16 %v176
  %v257 = vunpack.c.l.b16 %v177
  %v258 = vunpack.c.l.b16 %v178
  %v259 = vunpack.c.l.b16 %v179
  %v260 = vunpack.c.l.b16 %v180
  %v261 = vunpack.c.l.b16 %v181
  %v262 = vunpack.c.l.b16 %v182
  %v263 = vunpack.c.l.b16 %v183
  %v264 = vunpack.c.l.b16 %v184
  %v265 = vunpack.c.l.b16 %v185
  %v266 = vunpack.c.l.b16 %v186
  %v267 = vunpack.c.l.b16 %v187
  %v268 = vunpack.c.l.b16 %v188
  %v269 = vunpack.c.l.b16 %v189
  %v270 = vpack.c.b16 %v239, %v238
  %v271 = vpack.c.b16 %v241, %v240
  %v272 = vpack.c.b16 %v243, %v242
  %v273 = vpack.c.b16 %v245, %v244
  %v274 = vpack.c.b16 %v247, %v246
  %v275 = vpack.c.b16 %v249, %v248
  %v276 = vpack.c.b16 %v251, %v250
  %v277 = vpack.c.b16 %v253, %v252
  %v278 = vpack.c.b16 %v255, %v254
  %v279 = vpack.c.b16 %v257, %v256
  %v280 = vpack.c.b16 %v259, %v258
  %v281 = vpack.c.b16 %v261, %v260
  %v282 = vpack.c.b16 %v263, %v262
  %v283 = vpack.c.b16 %v265, %v264
  %v284 = vpack.c.b16 %v267, %v266
  %v285 = vpack.c.b16 %v269, %v268
  %v318 = vunpack.c.l.b16 %v190
  %v319 = vunpack.c.h.b16 %v190
  %v320 = vunpack.c.l.b16 %v191
  %v321 = vunpack.c.h.b16 %v191
  %v322 = vunpack.c.l.b16 %v192
  %v323 = vunpack.c.h.b16 %v192
  %v324 = vunpack.c.l.b16 %v193
  %v325 = vunpack.c.h.b16 %v193
  %v326 = vunpack.c.l.b16 %v194
  %v327 = vunpack.c.h.b16 %v194
  %v328 = vunpack.c.l.b16 %v195
  %v329 = vunpack.c.h.b16 %v195
  %v330 = vunpack.c.l.b16 %v196
  %v331 = vunpack.c.h.b16 %v196
  %v332 = vunpack.c.l.b16 %v197
  %v333 = vunpack.c.h.b16 %v197
  %v334 = vunpack.c.l.b16 %v198
  %v335 = vunpack.c.h.b16 %v198
  %v336 = vunpack.c.l.b16 %v199
  %v337 = vunpack.c.h.b16 %v199
  %v338 = vunpack.c.l.b16 %v200
  %v339 = vunpack.c.h.b16 %v200
  %v340 = vunpack.c.l.b16 %v201
  %v341 = vunpack.c.h.b16 %v201
  %v342 = vunpack.c.l.b16 %v202
  %v343 = vunpack.c.h.b16 %v202
  %v344 = vunpack.c.l.b16 %v203
  %v345 = vunpack.c.h.b16 %v203
  %v346 = vunpack.c.l.b16 %v204
  %v347 = vunpack.c.h.b16 %v204
  %v348 = vunpack.c.l.b16 %v205
  %v349 = vunpack.c.h.b16 %v205
  %v350 = vpack.c.b16 %v320, %v318
  %v351 = vpack.c.b16 %v321, %v319
  %v352 = vpack.c.b16 %v324, %v322
  %v353 = vpack.c.b16 %v325, %v323
  %v354 = vpack.c.b16 %v328, %v326
  %v355 = vpack.c.b16 %v329, %v327
  %v356 = vpack.c.b16 %v332, %v330
  %v357 = vpack.c.b16 %v333, %v331
  %v358 = vpack.c.b16 %v336, %v334
  %v359 = vpack.c.b16 %v337, %v335
  %v360 = vpack.c.b16 %v340, %v338
  %v361 = vpack.c.b16 %v341, %v339
  %v362 = vpack.c.b16 %v344, %v342
  %v363 = vpack.c.b16 %v345, %v343
  %v364 = vpack.c.b16 %v348, %v346
  %v365 = vpack.c.b16 %v349, %v347
  %382 = vmatprep.subr.bf16.mxu0 %v351
  %383 = vmatpush1.bf16.msra.mxu0 %v350
  %384 = vmatprep.subr.bf16.mxu0 %v353
  %385 = vmatpush1.bf16.msra.mxu0 %v352
  %386 = vmatprep.subr.bf16.mxu0 %v355
  %387 = vmatpush1.bf16.msra.mxu0 %v354
  %388 = vmatprep.subr.bf16.mxu0 %v357
  %389 = vmatpush1.bf16.msra.mxu0 %v356
  %390 = vmatprep.subr.bf16.mxu0 %v359
  %391 = vmatpush1.bf16.msra.mxu0 %v358
  %392 = vmatprep.subr.bf16.mxu0 %v361
  %393 = vmatpush1.bf16.msra.mxu0 %v360
  %394 = vmatprep.subr.bf16.mxu0 %v363
  %395 = vmatpush1.bf16.msra.mxu0 %v362
  %396 = vmatprep.subr.bf16.mxu0 %v365
  %397 = vmatpush1.bf16.msra.mxu0 %v364
  %398 = vmatprep.subr.bf16.mxu0 0
  %399 = vmatpush1.bf16.msra.mxu0 0
  %400 = vmatprep.subr.bf16.mxu0 0
  %401 = vmatpush1.bf16.msra.mxu0 0
  %402 = vmatprep.subr.bf16.mxu0 0
  %403 = vmatpush1.bf16.msra.mxu0 0
  %404 = vmatprep.subr.bf16.mxu0 0
  %405 = vmatpush1.bf16.msra.mxu0 0
  %406 = vmatprep.subr.bf16.mxu0 0
  %407 = vmatpush1.bf16.msra.mxu0 0
  %408 = vmatprep.subr.bf16.mxu0 0
  %409 = vmatpush1.bf16.msra.mxu0 0
  %410 = vmatprep.subr.bf16.mxu0 0
  %411 = vmatpush1.bf16.msra.mxu0 0
  %412 = vmatprep.subr.bf16.mxu0 0
  %413 = vmatpush1.bf16.msra.mxu0 0
  %414 = vmatprep.mubr.bf16.mxu0 0
  %415 = vmatmul.mubr.bf16.gmra.mrb[0].mxu0 %v270
  %v416 = vpop.f32.mrb[0].mxu0
  %v417 = vadd.f32 0.0, %v416
  %v418 = vpop.f32.mrb[0].mxu0
  %v419 = vadd.f32 0.0, %v418
  %v420 = vpop.f32.mrb[0].mxu0
  %v421 = vadd.f32 0.0, %v420
  %v422 = vpop.f32.mrb[0].mxu0
  %v423 = vadd.f32 0.0, %v422
  %424 = vmatprep.mubr.bf16.mxu0 0
  %425 = vmatmul.mubr.bf16.gmra.mrb[0].mxu0 %v271
  %v426 = vpop.f32.mrb[0].mxu0
  %v427 = vadd.f32 0.0, %v426
  %v428 = vpop.f32.mrb[0].mxu0
  %v429 = vadd.f32 0.0, %v428
  %v430 = vpop.f32.mrb[0].mxu0
  %v431 = vadd.f32 0.0, %v430
  %v432 = vpop.f32.mrb[0].mxu0
  %v433 = vadd.f32 0.0, %v432
  %434 = vmatprep.mubr.bf16.mxu0 0
  %435 = vmatmul.mubr.bf16.gmra.mrb[0].mxu0 %v272
  %v436 = vpop.f32.mrb[0].mxu0
  %v437 = vadd.f32 0.0, %v436
  %v438 = vpop.f32.mrb[0].mxu0
  %v439 = vadd.f32 0.0, %v438
  %v440 = vpop.f32.mrb[0].mxu0
  %v441 = vadd.f32 0.0, %v440
  %v442 = vpop.f32.mrb[0].mxu0
  %v443 = vadd.f32 0.0, %v442
  %444 = vmatprep.mubr.bf16.mxu0 0
  %445 = vmatmul.mubr.bf16.gmra.mrb[0].mxu0 %v273
  %v446 = vpop.f32.mrb[0].mxu0
  %v447 = vadd.f32 0.0, %v446
  %v448 = vpop.f32.mrb[0].mxu0
  %v449 = vadd.f32 0.0, %v448
  %v450 = vpop.f32.mrb[0].mxu0
  %v451 = vadd.f32 0.0, %v450
  %v452 = vpop.f32.mrb[0].mxu0
  %v453 = vadd.f32 0.0, %v452
  %454 = vmatprep.mubr.bf16.mxu0 0
  %455 = vmatmul.mubr.bf16.gmra.mrb[0].mxu0 %v274
  %v456 = vpop.f32.mrb[0].mxu0
  %v457 = vadd.f32 0.0, %v456
  %v458 = vpop.f32.mrb[0].mxu0
  %v459 = vadd.f32 0.0, %v458
  %v460 = vpop.f32.mrb[0].mxu0
  %v461 = vadd.f32 0.0, %v460
  %v462 = vpop.f32.mrb[0].mxu0
  %v463 = vadd.f32 0.0, %v462
  %464 = vmatprep.mubr.bf16.mxu0 0
  %465 = vmatmul.mubr.bf16.gmra.mrb[0].mxu0 %v275
  %v466 = vpop.f32.mrb[0].mxu0
  %v467 = vadd.f32 0.0, %v466
  %v468 = vpop.f32.mrb[0].mxu0
  %v469 = vadd.f32 0.0, %v468
  %v470 = vpop.f32.mrb[0].mxu0
  %v471 = vadd.f32 0.0, %v470
  %v472 = vpop.f32.mrb[0].mxu0
  %v473 = vadd.f32 0.0, %v472
  %474 = vmatprep.mubr.bf16.mxu0 0
  %475 = vmatmul.mubr.bf16.gmra.mrb[0].mxu0 %v276
  %v476 = vpop.f32.mrb[0].mxu0
  %v477 = vadd.f32 0.0, %v476
  %v478 = vpop.f32.mrb[0].mxu0
  %v479 = vadd.f32 0.0, %v478
  %v480 = vpop.f32.mrb[0].mxu0
  %v481 = vadd.f32 0.0, %v480
  %v482 = vpop.f32.mrb[0].mxu0
  %v483 = vadd.f32 0.0, %v482
  %484 = vmatprep.mubr.bf16.mxu0 0
  %485 = vmatmul.mubr.bf16.gmra.mrb[0].mxu0 %v277
  %v486 = vpop.f32.mrb[0].mxu0
  %v487 = vadd.f32 0.0, %v486
  %v488 = vpop.f32.mrb[0].mxu0
  %v489 = vadd.f32 0.0, %v488
  %v490 = vpop.f32.mrb[0].mxu0
  %v491 = vadd.f32 0.0, %v490
  %v492 = vpop.f32.mrb[0].mxu0
  %v493 = vadd.f32 0.0, %v492
  %494 = vmatprep.mubr.bf16.mxu0 0
  %495 = vmatmul.mubr.bf16.gmra.mrb[0].mxu0 %v278
  %v496 = vpop.f32.mrb[0].mxu0
  %v497 = vadd.f32 0.0, %v496
  %v498 = vpop.f32.mrb[0].mxu0
  %v499 = vadd.f32 0.0, %v498
  %v500 = vpop.f32.mrb[0].mxu0
  %v501 = vadd.f32 0.0, %v500
  %v502 = vpop.f32.mrb[0].mxu0
  %v503 = vadd.f32 0.0, %v502
  %504 = vmatprep.mubr.bf16.mxu0 0
  %505 = vmatmul.mubr.bf16.gmra.mrb[0].mxu0 %v279
  %v506 = vpop.f32.mrb[0].mxu0
  %v507 = vadd.f32 0.0, %v506
  %v508 = vpop.f32.mrb[0].mxu0
  %v509 = vadd.f32 0.0, %v508
  %v510 = vpop.f32.mrb[0].mxu0
  %v511 = vadd.f32 0.0, %v510
  %v512 = vpop.f32.mrb[0].mxu0
  %v513 = vadd.f32 0.0, %v512
  %514 = vmatprep.mubr.bf16.mxu0 0
  %515 = vmatmul.mubr.bf16.gmra.mrb[0].mxu0 %v280
  %v516 = vpop.f32.mrb[0].mxu0
  %v517 = vadd.f32 0.0, %v516
  %v518 = vpop.f32.mrb[0].mxu0
  %v519 = vadd.f32 0.0, %v518
  %v520 = vpop.f32.mrb[0].mxu0
  %v521 = vadd.f32 0.0, %v520
  %v522 = vpop.f32.mrb[0].mxu0
  %v523 = vadd.f32 0.0, %v522
  %524 = vmatprep.mubr.bf16.mxu0 0
  %525 = vmatmul.mubr.bf16.gmra.mrb[0].mxu0 %v281
  %v526 = vpop.f32.mrb[0].mxu0
  %v527 = vadd.f32 0.0, %v526
  %v528 = vpop.f32.mrb[0].mxu0
  %v529 = vadd.f32 0.0, %v528
  %v530 = vpop.f32.mrb[0].mxu0
  %v531 = vadd.f32 0.0, %v530
  %v532 = vpop.f32.mrb[0].mxu0
  %v533 = vadd.f32 0.0, %v532
  %534 = vmatprep.mubr.bf16.mxu0 0
  %535 = vmatmul.mubr.bf16.gmra.mrb[0].mxu0 %v282
  %v536 = vpop.f32.mrb[0].mxu0
  %v537 = vadd.f32 0.0, %v536
  %v538 = vpop.f32.mrb[0].mxu0
  %v539 = vadd.f32 0.0, %v538
  %v540 = vpop.f32.mrb[0].mxu0
  %v541 = vadd.f32 0.0, %v540
  %v542 = vpop.f32.mrb[0].mxu0
  %v543 = vadd.f32 0.0, %v542
  %544 = vmatprep.mubr.bf16.mxu0 0
  %545 = vmatmul.mubr.bf16.gmra.mrb[0].mxu0 %v283
  %v546 = vpop.f32.mrb[0].mxu0
  %v547 = vadd.f32 0.0, %v546
  %v548 = vpop.f32.mrb[0].mxu0
  %v549 = vadd.f32 0.0, %v548
  %v550 = vpop.f32.mrb[0].mxu0
  %v551 = vadd.f32 0.0, %v550
  %v552 = vpop.f32.mrb[0].mxu0
  %v553 = vadd.f32 0.0, %v552
  %554 = vmatprep.mubr.bf16.mxu0 0
  %555 = vmatmul.mubr.bf16.gmra.mrb[0].mxu0 %v284
  %v556 = vpop.f32.mrb[0].mxu0
  %v557 = vadd.f32 0.0, %v556
  %v558 = vpop.f32.mrb[0].mxu0
  %v559 = vadd.f32 0.0, %v558
  %v560 = vpop.f32.mrb[0].mxu0
  %v561 = vadd.f32 0.0, %v560
  %v562 = vpop.f32.mrb[0].mxu0
  %v563 = vadd.f32 0.0, %v562
  %564 = vmatprep.mubr.bf16.mxu0 0
  %565 = vmatmul.mubr.bf16.gmra.mrb[0].mxu0 %v285
  %v566 = vpop.f32.mrb[0].mxu0
  %v567 = vadd.f32 0.0, %v566
  %v568 = vpop.f32.mrb[0].mxu0
  %v569 = vadd.f32 0.0, %v568
  %v570 = vpop.f32.mrb[0].mxu0
  %v571 = vadd.f32 0.0, %v570
  %v572 = vpop.f32.mrb[0].mxu0
  %v573 = vadd.f32 0.0, %v572
  %574 = vdwg.mxu0
  %v575 = vadd.f32 %v94, %v417
  %v576 = vadd.f32 %v95, %v419
  %v577 = vadd.f32 %v96, %v421
  %v578 = vadd.f32 %v97, %v423
  %v579 = vadd.f32 %v98, %v427
  %v580 = vadd.f32 %v99, %v429
  %v581 = vadd.f32 %v100, %v431
  %v582 = vadd.f32 %v101, %v433
  %v583 = vadd.f32 %v102, %v437
  %v584 = vadd.f32 %v103, %v439
  %v585 = vadd.f32 %v104, %v441
  %v586 = vadd.f32 %v105, %v443
  %v587 = vadd.f32 %v106, %v447
  %v588 = vadd.f32 %v107, %v449
  %v589 = vadd.f32 %v108, %v451
  %v590 = vadd.f32 %v109, %v453
  %v591 = vadd.f32 %v110, %v457
  %v592 = vadd.f32 %v111, %v459
  %v593 = vadd.f32 %v112, %v461
  %v594 = vadd.f32 %v113, %v463
  %v595 = vadd.f32 %v114, %v467
  %v596 = vadd.f32 %v115, %v469
  %v597 = vadd.f32 %v116, %v471
  %v598 = vadd.f32 %v117, %v473
  %v599 = vadd.f32 %v118, %v477
  %v600 = vadd.f32 %v119, %v479
  %v601 = vadd.f32 %v120, %v481
  %v602 = vadd.f32 %v121, %v483
  %v603 = vadd.f32 %v122, %v487
  %v604 = vadd.f32 %v123, %v489
  %v605 = vadd.f32 %v124, %v491
  %v606 = vadd.f32 %v125, %v493
  %v607 = vadd.f32 %v126, %v497
  %v608 = vadd.f32 %v127, %v499
  %v609 = vadd.f32 %v128, %v501
  %v610 = vadd.f32 %v129, %v503
  %v611 = vadd.f32 %v130, %v507
  %v612 = vadd.f32 %v131, %v509
  %v613 = vadd.f32 %v132, %v511
  %v614 = vadd.f32 %v133, %v513
  %v615 = vadd.f32 %v134, %v517
  %v616 = vadd.f32 %v135, %v519
  %v617 = vadd.f32 %v136, %v521
  %v618 = vadd.f32 %v137, %v523
  %v619 = vadd.f32 %v138, %v527
  %v620 = vadd.f32 %v139, %v529
  %v621 = vadd.f32 %v140, %v531
  %v622 = vadd.f32 %v141, %v533
  %v623 = vadd.f32 %v142, %v537
  %v624 = vadd.f32 %v143, %v539
  %v625 = vadd.f32 %v144, %v541
  %v626 = vadd.f32 %v145, %v543
  %v627 = vadd.f32 %v146, %v547
  %v628 = vadd.f32 %v147, %v549
  %v629 = vadd.f32 %v148, %v551
  %v630 = vadd.f32 %v149, %v553
  %v631 = vadd.f32 %v150, %v557
  %v632 = vadd.f32 %v151, %v559
  %v633 = vadd.f32 %v152, %v561
  %v634 = vadd.f32 %v153, %v563
  %v635 = vadd.f32 %v154, %v567
  %v636 = vadd.f32 %v155, %v569
  %v637 = vadd.f32 %v156, %v571
  %v638 = vadd.f32 %v157, %v573
  %639 = vst [vmem:[%s2] sm:$0xff] %v575
  %640 = vst [vmem:[%s2 + $0x8] sm:$0xff] %v576
  %641 = vst [vmem:[%s2 + $0x10] sm:$0xff] %v577
  %642 = vst [vmem:[%s2 + $0x18] sm:$0xff] %v578
  %643 = vst [vmem:[%s2 + $0x20] sm:$0xff] %v579
  %644 = vst [vmem:[%s2 + $0x28] sm:$0xff] %v580
  %645 = vst [vmem:[%s2 + $0x30] sm:$0xff] %v581
  %646 = vst [vmem:[%s2 + $0x38] sm:$0xff] %v582
  %647 = vst [vmem:[%s2 + $0x40] sm:$0xff] %v583
  %648 = vst [vmem:[%s2 + $0x48] sm:$0xff] %v584
  %649 = vst [vmem:[%s2 + $0x50] sm:$0xff] %v585
  %650 = vst [vmem:[%s2 + $0x58] sm:$0xff] %v586
  %651 = vst [vmem:[%s2 + $0x60] sm:$0xff] %v587
  %652 = vst [vmem:[%s2 + $0x68] sm:$0xff] %v588
  %653 = vst [vmem:[%s2 + $0x70] sm:$0xff] %v589
  %654 = vst [vmem:[%s2 + $0x78] sm:$0xff] %v590
  %655 = vst [vmem:[%s2 + $0x80] sm:$0xff] %v591
  %656 = vst [vmem:[%s2 + $0x88] sm:$0xff] %v592
  %657 = vst [vmem:[%s2 + $0x90] sm:$0xff] %v593
  %658 = vst [vmem:[%s2 + $0x98] sm:$0xff] %v594
  %659 = vst [vmem:[%s2 + $0xa0] sm:$0xff] %v595
  %660 = vst [vmem:[%s2 + $0xa8] sm:$0xff] %v596
  %661 = vst [vmem:[%s2 + $0xb0] sm:$0xff] %v597
  %662 = vst [vmem:[%s2 + $0xb8] sm:$0xff] %v598
  %663 = vst [vmem:[%s2 + $0xc0] sm:$0xff] %v599
  %664 = vst [vmem:[%s2 + $0xc8] sm:$0xff] %v600
  %665 = vst [vmem:[%s2 + $0xd0] sm:$0xff] %v601
  %666 = vst [vmem:[%s2 + $0xd8] sm:$0xff] %v602
  %667 = vst [vmem:[%s2 + $0xe0] sm:$0xff] %v603
  %668 = vst [vmem:[%s2 + $0xe8] sm:$0xff] %v604
  %669 = vst [vmem:[%s2 + $0xf0] sm:$0xff] %v605
  %670 = vst [vmem:[%s2 + $0xf8] sm:$0xff] %v606
  %671 = vst [vmem:[%s2 + $0x100] sm:$0xff] %v607
  %672 = vst [vmem:[%s2 + $0x108] sm:$0xff] %v608
  %673 = vst [vmem:[%s2 + $0x110] sm:$0xff] %v609
  %674 = vst [vmem:[%s2 + $0x118] sm:$0xff] %v610
  %675 = vst [vmem:[%s2 + $0x120] sm:$0xff] %v611
  %676 = vst [vmem:[%s2 + $0x128] sm:$0xff] %v612
  %677 = vst [vmem:[%s2 + $0x130] sm:$0xff] %v613
  %678 = vst [vmem:[%s2 + $0x138] sm:$0xff] %v614
  %679 = vst [vmem:[%s2 + $0x140] sm:$0xff] %v615
  %680 = vst [vmem:[%s2 + $0x148] sm:$0xff] %v616
  %681 = vst [vmem:[%s2 + $0x150] sm:$0xff] %v617
  %682 = vst [vmem:[%s2 + $0x158] sm:$0xff] %v618
  %683 = vst [vmem:[%s2 + $0x160] sm:$0xff] %v619
  %684 = vst [vmem:[%s2 + $0x168] sm:$0xff] %v620
  %685 = vst [vmem:[%s2 + $0x170] sm:$0xff] %v621
  %686 = vst [vmem:[%s2 + $0x178] sm:$0xff] %v622
  %687 = vst [vmem:[%s2 + $0x180] sm:$0xff] %v623
  %688 = vst [vmem:[%s2 + $0x188] sm:$0xff] %v624
  %689 = vst [vmem:[%s2 + $0x190] sm:$0xff] %v625
  %690 = vst [vmem:[%s2 + $0x198] sm:$0xff] %v626
  %691 = vst [vmem:[%s2 + $0x1a0] sm:$0xff] %v627
  %692 = vst [vmem:[%s2 + $0x1a8] sm:$0xff] %v628
  %693 = vst [vmem:[%s2 + $0x1b0] sm:$0xff] %v629
  %694 = vst [vmem:[%s2 + $0x1b8] sm:$0xff] %v630
  %695 = vst [vmem:[%s2 + $0x1c0] sm:$0xff] %v631
  %696 = vst [vmem:[%s2 + $0x1c8] sm:$0xff] %v632
  %697 = vst [vmem:[%s2 + $0x1d0] sm:$0xff] %v633
  %698 = vst [vmem:[%s2 + $0x1d8] sm:$0xff] %v634
  %699 = vst [vmem:[%s2 + $0x1e0] sm:$0xff] %v635
  %700 = vst [vmem:[%s2 + $0x1e8] sm:$0xff] %v636
  %701 = vst [vmem:[%s2 + $0x1f0] sm:$0xff] %v637
  %702 = vst [vmem:[%s2 + $0x1f8] sm:$0xff] %v638
  // Predicated region
  $region18: #{bottleneck3d_forward.14} parent=0 // pred_check
    %p703 = pneg %p15
  $region19: #{bottleneck3d_forward.14} parent=0 // pred_check_branch
    %705 = sbr.rel (%p703) target = $region21
  $region20: #{bottleneck3d_forward.14} parent=0 // pred_region
    %v706 = vld [vmem:[%s2] sm:$0xff]
    %v707 = vld [vmem:[%s2 + $0x8] sm:$0xff]
    %v708 = vld [vmem:[%s2 + $0x10] sm:$0xff]
    %v709 = vld [vmem:[%s2 + $0x18] sm:$0xff]
    %v710 = vld [vmem:[%s2 + $0x20] sm:$0xff]
    %v711 = vld [vmem:[%s2 + $0x28] sm:$0xff]
    %v712 = vld [vmem:[%s2 + $0x30] sm:$0xff]
    %v713 = vld [vmem:[%s2 + $0x38] sm:$0xff]
    %v714 = vld [vmem:[%s2 + $0x40] sm:$0xff]
    %v715 = vld [vmem:[%s2 + $0x48] sm:$0xff]
    %v716 = vld [vmem:[%s2 + $0x50] sm:$0xff]
    %v717 = vld [vmem:[%s2 + $0x58] sm:$0xff]
    %v718 = vld [vmem:[%s2 + $0x60] sm:$0xff]
    %v719 = vld [vmem:[%s2 + $0x68] sm:$0xff]
    %v720 = vld [vmem:[%s2 + $0x70] sm:$0xff]
    %v721 = vld [vmem:[%s2 + $0x78] sm:$0xff]
    %v722 = vld [vmem:[%s2 + $0x80] sm:$0xff]
    %v723 = vld [vmem:[%s2 + $0x88] sm:$0xff]
    %v724 = vld [vmem:[%s2 + $0x90] sm:$0xff]
    %v725 = vld [vmem:[%s2 + $0x98] sm:$0xff]
    %v726 = vld [vmem:[%s2 + $0xa0] sm:$0xff]
    %v727 = vld [vmem:[%s2 + $0xa8] sm:$0xff]
    %v728 = vld [vmem:[%s2 + $0xb0] sm:$0xff]
    %v729 = vld [vmem:[%s2 + $0xb8] sm:$0xff]
    %v730 = vld [vmem:[%s2 + $0xc0] sm:$0xff]
    %v731 = vld [vmem:[%s2 + $0xc8] sm:$0xff]
    %v732 = vld [vmem:[%s2 + $0xd0] sm:$0xff]
    %v733 = vld [vmem:[%s2 + $0xd8] sm:$0xff]
    %v734 = vld [vmem:[%s2 + $0xe0] sm:$0xff]
    %v735 = vld [vmem:[%s2 + $0xe8] sm:$0xff]
    %v736 = vld [vmem:[%s2 + $0xf0] sm:$0xff]
    %v737 = vld [vmem:[%s2 + $0xf8] sm:$0xff]
    %v738 = vld [vmem:[%s2 + $0x100] sm:$0xff]
    %v739 = vld [vmem:[%s2 + $0x108] sm:$0xff]
    %v740 = vld [vmem:[%s2 + $0x110] sm:$0xff]
    %v741 = vld [vmem:[%s2 + $0x118] sm:$0xff]
    %v742 = vld [vmem:[%s2 + $0x120] sm:$0xff]
    %v743 = vld [vmem:[%s2 + $0x128] sm:$0xff]
    %v744 = vld [vmem:[%s2 + $0x130] sm:$0xff]
    %v745 = vld [vmem:[%s2 + $0x138] sm:$0xff]
    %v746 = vld [vmem:[%s2 + $0x140] sm:$0xff]
    %v747 = vld [vmem:[%s2 + $0x148] sm:$0xff]
    %v748 = vld [vmem:[%s2 + $0x150] sm:$0xff]
    %v749 = vld [vmem:[%s2 + $0x158] sm:$0xff]
    %v750 = vld [vmem:[%s2 + $0x160] sm:$0xff]
    %v751 = vld [vmem:[%s2 + $0x168] sm:$0xff]
    %v752 = vld [vmem:[%s2 + $0x170] sm:$0xff]
    %v753 = vld [vmem:[%s2 + $0x178] sm:$0xff]
    %v754 = vld [vmem:[%s2 + $0x180] sm:$0xff]
    %v755 = vld [vmem:[%s2 + $0x188] sm:$0xff]
    %v756 = vld [vmem:[%s2 + $0x190] sm:$0xff]
    %v757 = vld [vmem:[%s2 + $0x198] sm:$0xff]
    %v758 = vld [vmem:[%s2 + $0x1a0] sm:$0xff]
    %v759 = vld [vmem:[%s2 + $0x1a8] sm:$0xff]
    %v760 = vld [vmem:[%s2 + $0x1b0] sm:$0xff]
    %v761 = vld [vmem:[%s2 + $0x1b8] sm:$0xff]
    %v762 = vld [vmem:[%s2 + $0x1c0] sm:$0xff]
    %v763 = vld [vmem:[%s2 + $0x1c8] sm:$0xff]
    %v764 = vld [vmem:[%s2 + $0x1d0] sm:$0xff]
    %v765 = vld [vmem:[%s2 + $0x1d8] sm:$0xff]
    %v766 = vld [vmem:[%s2 + $0x1e0] sm:$0xff]
    %v767 = vld [vmem:[%s2 + $0x1e8] sm:$0xff]
    %v768 = vld [vmem:[%s2 + $0x1f0] sm:$0xff]
    %v769 = vld [vmem:[%s2 + $0x1f8] sm:$0xff]
    %v770 = vld [vmem:[%s3] sm:$0x3]
    %v771 = vadd.f32 %v706, %v708
    %v772 = vadd.f32 %v771, %v710
    %v773 = vadd.f32 %v772, %v712
    %v774 = vadd.f32 %v773, %v714
    %v775 = vadd.f32 %v774, %v716
    %v776 = vadd.f32 %v775, %v718
    %v777 = vadd.f32 %v776, %v720
    %v778 = vadd.f32 %v777, %v722
    %v779 = vadd.f32 %v778, %v724
    %v780 = vadd.f32 %v779, %v726
    %v781 = vadd.f32 %v780, %v728
    %v782 = vadd.f32 %v781, %v730
    %v783 = vadd.f32 %v782, %v732
    %v784 = vadd.f32 %v783, %v734
    %v785 = vadd.f32 %v784, %v736
    %v786 = vadd.f32 %v785, %v738
    %v787 = vadd.f32 %v786, %v740
    %v788 = vadd.f32 %v787, %v742
    %v789 = vadd.f32 %v788, %v744
    %v790 = vadd.f32 %v789, %v746
    %v791 = vadd.f32 %v790, %v748
    %v792 = vadd.f32 %v791, %v750
    %v793 = vadd.f32 %v792, %v752
    %v794 = vadd.f32 %v793, %v754
    %v795 = vadd.f32 %v794, %v756
    %v796 = vadd.f32 %v795, %v758
    %v797 = vadd.f32 %v796, %v760
    %v798 = vadd.f32 %v797, %v762
    %v799 = vadd.f32 %v798, %v764
    %v800 = vadd.f32 %v799, %v766
    %v801 = vadd.f32 %v800, %v768
    %v802 = vrot.slane %v801, 4
    %v803 = vadd.f32 %v801, %v802
    %v804 = vrot.slane %v803, 2
    %v805 = vadd.f32 %v803, %v804
    %v806 = vrot.slane %v805, 1
    %v807 = vadd.f32 %v805, %v806
    %v808 = vadd.f32 %v707, %v709
    %v809 = vadd.f32 %v808, %v711
    %v810 = vadd.f32 %v809, %v713
    %v811 = vadd.f32 %v810, %v715
    %v812 = vadd.f32 %v811, %v717
    %v813 = vadd.f32 %v812, %v719
    %v814 = vadd.f32 %v813, %v721
    %v815 = vadd.f32 %v814, %v723
    %v816 = vadd.f32 %v815, %v725
    %v817 = vadd.f32 %v816, %v727
    %v818 = vadd.f32 %v817, %v729
    %v819 = vadd.f32 %v818, %v731
    %v820 = vadd.f32 %v819, %v733
    %v821 = vadd.f32 %v820, %v735
    %v822 = vadd.f32 %v821, %v737
    %v823 = vadd.f32 %v822, %v739
    %v824 = vadd.f32 %v823, %v741
    %v825 = vadd.f32 %v824, %v743
    %v826 = vadd.f32 %v825, %v745
    %v827 = vadd.f32 %v826, %v747
    %v828 = vadd.f32 %v827, %v749
    %v829 = vadd.f32 %v828, %v751
    %v830 = vadd.f32 %v829, %v753
    %v831 = vadd.f32 %v830, %v755
    %v832 = vadd.f32 %v831, %v757
    %v833 = vadd.f32 %v832, %v759
    %v834 = vadd.f32 %v833, %v761
    %v835 = vadd.f32 %v834, %v763
    %v836 = vadd.f32 %v835, %v765
    %v837 = vadd.f32 %v836, %v767
    %v838 = vadd.f32 %v837, %v769
    %v839 = vrot.slane %v838, 4
    %v840 = vadd.f32 %v838, %v839
    %v841 = vrot.slane %v840, 2
    %v842 = vadd.f32 %v840, %v841
    %v843 = vrot.slane %v842, 1
    %v844 = vadd.f32 %v842, %v843
    %v847 = vcombine.low %v807, %v844
    %v849 = vunpack.c.l.s4 1966171168
    %v850 = vunpack.c.0.s8 %v849
    %v851 = vlaneseq
    %v852 = vshrl.u32 %v851, 7
    %v853 = vsub.s32 %v850, %v852
    %v854 = vrot.slane %v847, %v853
    %v856 = vunpack.c.l.s4 1966171168
    %v857 = vunpack.c.0.s8 %v856
    %v858 = vlaneseq
    %v859 = vshrl.u32 %v858, 7
    %v860 = vsub.s32 %v857, %v859
    %v861 = vrot.slane %v854, %v860
    %v863 = vadd.f32 %v770, %v861
    %v864 = vlaneseq
    %vm865 = vcmp.ge.s32.totalorder %v864, 0
    %vm866 = vcmp.lt.s32.totalorder %v864, 256
    %vm867 = vmand %vm865, %vm866
    %868 = vst.msk [vmem:[%s3] sm:$0x3] %vm867, %v863
    %v869 = vld [vmem:[%s4] sm:$0x3]
    %v870 = vmul.f32 %v706, %v706
    %v871 = vmul.f32 %v707, %v707
    %v872 = vmul.f32 %v708, %v708
    %v873 = vmul.f32 %v709, %v709
    %v874 = vmul.f32 %v710, %v710
    %v875 = vmul.f32 %v711, %v711
    %v876 = vmul.f32 %v712, %v712
    %v877 = vmul.f32 %v713, %v713
    %v878 = vmul.f32 %v714, %v714
    %v879 = vmul.f32 %v715, %v715
    %v880 = vmul.f32 %v716, %v716
    %v881 = vmul.f32 %v717, %v717
    %v882 = vmul.f32 %v718, %v718
    %v883 = vmul.f32 %v719, %v719
    %v884 = vmul.f32 %v720, %v720
    %v885 = vmul.f32 %v721, %v721
    %v886 = vmul.f32 %v722, %v722
    %v887 = vmul.f32 %v723, %v723
    %v888 = vmul.f32 %v724, %v724
    %v889 = vmul.f32 %v725, %v725
    %v890 = vmul.f32 %v726, %v726
    %v891 = vmul.f32 %v727, %v727
    %v892 = vmul.f32 %v728, %v728
    %v893 = vmul.f32 %v729, %v729
    %v894 = vmul.f32 %v730, %v730
    %v895 = vmul.f32 %v731, %v731
    %v896 = vmul.f32 %v732, %v732
    %v897 = vmul.f32 %v733, %v733
    %v898 = vmul.f32 %v734, %v734
    %v899 = vmul.f32 %v735, %v735
    %v900 = vmul.f32 %v736, %v736
    %v901 = vmul.f32 %v737, %v737
    %v902 = vmul.f32 %v738, %v738
    %v903 = vmul.f32 %v739, %v739
    %v904 = vmul.f32 %v740, %v740
    %v905 = vmul.f32 %v741, %v741
    %v906 = vmul.f32 %v742, %v742
    %v907 = vmul.f32 %v743, %v743
    %v908 = vmul.f32 %v744, %v744
    %v909 = vmul.f32 %v745, %v745
    %v910 = vmul.f32 %v746, %v746
    %v911 = vmul.f32 %v747, %v747
    %v912 = vmul.f32 %v748, %v748
    %v913 = vmul.f32 %v749, %v749
    %v914 = vmul.f32 %v750, %v750
    %v915 = vmul.f32 %v751, %v751
    %v916 = vmul.f32 %v752, %v752
    %v917 = vmul.f32 %v753, %v753
    %v918 = vmul.f32 %v754, %v754
    %v919 = vmul.f32 %v755, %v755
    %v920 = vmul.f32 %v756, %v756
    %v921 = vmul.f32 %v757, %v757
    %v922 = vmul.f32 %v758, %v758
    %v923 = vmul.f32 %v759, %v759
    %v924 = vmul.f32 %v760, %v760
    %v925 = vmul.f32 %v761, %v761
    %v926 = vmul.f32 %v762, %v762
    %v927 = vmul.f32 %v763, %v763
    %v928 = vmul.f32 %v764, %v764
    %v929 = vmul.f32 %v765, %v765
    %v930 = vmul.f32 %v766, %v766
    %v931 = vmul.f32 %v767, %v767
    %v932 = vmul.f32 %v768, %v768
    %v933 = vmul.f32 %v769, %v769
    %v934 = vadd.f32 %v870, %v872
    %v935 = vadd.f32 %v934, %v874
    %v936 = vadd.f32 %v935, %v876
    %v937 = vadd.f32 %v936, %v878
    %v938 = vadd.f32 %v937, %v880
    %v939 = vadd.f32 %v938, %v882
    %v940 = vadd.f32 %v939, %v884
    %v941 = vadd.f32 %v940, %v886
    %v942 = vadd.f32 %v941, %v888
    %v943 = vadd.f32 %v942, %v890
    %v944 = vadd.f32 %v943, %v892
    %v945 = vadd.f32 %v944, %v894
    %v946 = vadd.f32 %v945, %v896
    %v947 = vadd.f32 %v946, %v898
    %v948 = vadd.f32 %v947, %v900
    %v949 = vadd.f32 %v948, %v902
    %v950 = vadd.f32 %v949, %v904
    %v951 = vadd.f32 %v950, %v906
    %v952 = vadd.f32 %v951, %v908
    %v953 = vadd.f32 %v952, %v910
    %v954 = vadd.f32 %v953, %v912
    %v955 = vadd.f32 %v954, %v914
    %v956 = vadd.f32 %v955, %v916
    %v957 = vadd.f32 %v956, %v918
    %v958 = vadd.f32 %v957, %v920
    %v959 = vadd.f32 %v958, %v922
    %v960 = vadd.f32 %v959, %v924
    %v961 = vadd.f32 %v960, %v926
    %v962 = vadd.f32 %v961, %v928
    %v963 = vadd.f32 %v962, %v930
    %v964 = vadd.f32 %v963, %v932
    %v965 = vrot.slane %v964, 4
    %v966 = vadd.f32 %v964, %v965
    %v967 = vrot.slane %v966, 2
    %v968 = vadd.f32 %v966, %v967
    %v969 = vrot.slane %v968, 1
    %v970 = vadd.f32 %v968, %v969
    %v971 = vadd.f32 %v871, %v873
    %v972 = vadd.f32 %v971, %v875
    %v973 = vadd.f32 %v972, %v877
    %v974 = vadd.f32 %v973, %v879
    %v975 = vadd.f32 %v974, %v881
    %v976 = vadd.f32 %v975, %v883
    %v977 = vadd.f32 %v976, %v885
    %v978 = vadd.f32 %v977, %v887
    %v979 = vadd.f32 %v978, %v889
    %v980 = vadd.f32 %v979, %v891
    %v981 = vadd.f32 %v980, %v893
    %v982 = vadd.f32 %v981, %v895
    %v983 = vadd.f32 %v982, %v897
    %v984 = vadd.f32 %v983, %v899
    %v985 = vadd.f32 %v984, %v901
    %v986 = vadd.f32 %v985, %v903
    %v987 = vadd.f32 %v986, %v905
    %v988 = vadd.f32 %v987, %v907
    %v989 = vadd.f32 %v988, %v909
    %v990 = vadd.f32 %v989, %v911
    %v991 = vadd.f32 %v990, %v913
    %v992 = vadd.f32 %v991, %v915
    %v993 = vadd.f32 %v992, %v917
    %v994 = vadd.f32 %v993, %v919
    %v995 = vadd.f32 %v994, %v921
    %v996 = vadd.f32 %v995, %v923
    %v997 = vadd.f32 %v996, %v925
    %v998 = vadd.f32 %v997, %v927
    %v999 = vadd.f32 %v998, %v929
    %v1000 = vadd.f32 %v999, %v931
    %v1001 = vadd.f32 %v1000, %v933
    %v1002 = vrot.slane %v1001, 4
    %v1003 = vadd.f32 %v1001, %v1002
    %v1004 = vrot.slane %v1003, 2
    %v1005 = vadd.f32 %v1003, %v1004
    %v1006 = vrot.slane %v1005, 1
    %v1007 = vadd.f32 %v1005, %v1006
    %v1010 = vcombine.low %v970, %v1007
    %v1012 = vunpack.c.l.s4 1966171168
    %v1013 = vunpack.c.0.s8 %v1012
    %v1014 = vlaneseq
    %v1015 = vshrl.u32 %v1014, 7
    %v1016 = vsub.s32 %v1013, %v1015
    %v1017 = vrot.slane %v1010, %v1016
    %v1019 = vunpack.c.l.s4 1966171168
    %v1020 = vunpack.c.0.s8 %v1019
    %v1021 = vlaneseq
    %v1022 = vshrl.u32 %v1021, 7
    %v1023 = vsub.s32 %v1020, %v1022
    %v1024 = vrot.slane %v1017, %v1023
    %v1026 = vadd.f32 %v869, %v1024
    %1027 = vst.msk [vmem:[%s4] sm:$0x3] %vm867, %v1026
  $region21: #{bottleneck3d_forward.14} parent=0 // pred_fallthru
    _
  // Predicated region
  $region22: #{bottleneck3d_forward.14} parent=0 // pred_check
    _
  $region23: #{bottleneck3d_forward.14} parent=0 // pred_check_branch
    %1029 = sbr.rel (0) target = $region25
  $region24: #{bottleneck3d_forward.14} parent=0 // pred_region
    _
  $region25: #{bottleneck3d_forward.14} parent=0 // pred_fallthru
    _
  // Predicated region
  $region26: #{bottleneck3d_forward.14} parent=0 // pred_check
    _
  $region27: #{bottleneck3d_forward.14} parent=0 // pred_check_branch
    %1031 = sbr.rel (0) target = $region29
  $region28: #{bottleneck3d_forward.14} parent=0 // pred_region
    _
  $region29: #{bottleneck3d_forward.14} parent=0 // pred_fallthru
    _
  // Predicated region
  $region30: #{bottleneck3d_forward.14} parent=0 // pred_check
    _
  $region31: #{bottleneck3d_forward.14} parent=0 // pred_check_branch
    %1033 = sbr.rel (0) target = $region33
  $region32: #{bottleneck3d_forward.14} parent=0 // pred_region
    _
  $region33: #{bottleneck3d_forward.14} parent=0 // pred_fallthru
    _
  // Predicated region
  $region34: #{bottleneck3d_forward.14} parent=0 // pred_check
    _
  $region35: #{bottleneck3d_forward.14} parent=0 // pred_check_branch
    %1035 = sbr.rel (0) target = $region37
  $region36: #{bottleneck3d_forward.14} parent=0 // pred_region
    _
  $region37: #{bottleneck3d_forward.14} parent=0 // pred_fallthru
    _
  // Predicated region
  $region38: #{bottleneck3d_forward.14} parent=0 // pred_check
    _
  $region39: #{bottleneck3d_forward.14} parent=0 // pred_check_branch
    %1037 = sbr.rel (0) target = $region41
  $region40: #{bottleneck3d_forward.14} parent=0 // pred_region
    _
  $region41: #{bottleneck3d_forward.14} parent=0 // pred_fallthru
    _
  // Predicated region
  $region42: #{bottleneck3d_forward.14} parent=0 // pred_check
    _
  $region43: #{bottleneck3d_forward.14} parent=0 // pred_check_branch
    %1039 = sbr.rel (0) target = $region45
  $region44: #{bottleneck3d_forward.14} parent=0 // pred_region
    _
  $region45: #{bottleneck3d_forward.14} parent=0 // pred_fallthru
    _

// kernel: bottleneck3d_forward.13
$region0: #{bottleneck3d_forward.13}
  #allocation0 [shape = 'u32[]', space=smem, size = 0x4, offset = 0x4, fixed_abs, tag = 'smem constant byte address 0x4 - core index']
  #allocation1 [shape = 'u32[144,128]{1,0:T(1,128)}', space=vmem, size = 0x12000, scoped, tag = 'internal scratch']
  %s0 = inlined_call_operand.vmem [shape: f32[256,256], index: 0, kind: input, shape index: {}]
  %s1 = inlined_call_operand.vmem [shape: f32[1,256], index: 1, kind: input, shape index: {}]
  %s2 = inlined_call_operand.vmem [shape: f32[1,256], index: 2, kind: input, shape index: {}]
  %s3 = inlined_call_operand.vmem [shape: f32[256,256], index: 3, kind: output, shape index: {}]
  %s4 = sld [smem:[#allocation0]]
  $region22: #{bottleneck3d_forward.13} parent=0
    _
  %s6 = ssub.s32 1, %s4
  %s7 = scalar_select 0, %s6, %s4
  // Predicated region
  $region2: #{bottleneck3d_forward.13} parent=0 // pred_check
    _
  $region3: #{bottleneck3d_forward.13} parent=0 // pred_check_branch
    %9 = sbr.rel (0) target = $region5
  $region4: #{bottleneck3d_forward.13} parent=0 // pred_region
    _
  $region5: #{bottleneck3d_forward.13} parent=0 // pred_fallthru
    _
  // Predicated region
  $region6: #{bottleneck3d_forward.13} parent=0 // pred_check
    _
  $region7: #{bottleneck3d_forward.13} parent=0 // pred_check_branch
    %11 = sbr.rel (0) target = $region9
  $region8: #{bottleneck3d_forward.13} parent=0 // pred_region
    _
  $region9: #{bottleneck3d_forward.13} parent=0 // pred_fallthru
    _
  // Predicated region
  $region10: #{bottleneck3d_forward.13} parent=0 // pred_check
    _
  $region11: #{bottleneck3d_forward.13} parent=0 // pred_check_branch
    %13 = sbr.rel (0) target = $region13
  $region12: #{bottleneck3d_forward.13} parent=0 // pred_region
    _
  $region13: #{bottleneck3d_forward.13} parent=0 // pred_fallthru
    _
  %v14 = vld [vmem:[%s0] sm:$0xff]
  %v15 = vld [vmem:[%s0 + $0x8] sm:$0xff]
  %v16 = vld [vmem:[%s0 + $0x10] sm:$0xff]
  %v17 = vld [vmem:[%s0 + $0x18] sm:$0xff]
  %v18 = vld [vmem:[%s0 + $0x20] sm:$0xff]
  %v19 = vld [vmem:[%s0 + $0x28] sm:$0xff]
  %v20 = vld [vmem:[%s0 + $0x30] sm:$0xff]
  %v21 = vld [vmem:[%s0 + $0x38] sm:$0xff]
  %v22 = vld [vmem:[%s0 + $0x40] sm:$0xff]
  %v23 = vld [vmem:[%s0 + $0x48] sm:$0xff]
  %v24 = vld [vmem:[%s0 + $0x50] sm:$0xff]
  %v25 = vld [vmem:[%s0 + $0x58] sm:$0xff]
  %v26 = vld [vmem:[%s0 + $0x60] sm:$0xff]
  %v27 = vld [vmem:[%s0 + $0x68] sm:$0xff]
  %v28 = vld [vmem:[%s0 + $0x70] sm:$0xff]
  %v29 = vld [vmem:[%s0 + $0x78] sm:$0xff]
  %v30 = vld [vmem:[%s0 + $0x80] sm:$0xff]
  %v31 = vld [vmem:[%s0 + $0x88] sm:$0xff]
  %v32 = vld [vmem:[%s0 + $0x90] sm:$0xff]
  %v33 = vld [vmem:[%s0 + $0x98] sm:$0xff]
  %v34 = vld [vmem:[%s0 + $0xa0] sm:$0xff]
  %v35 = vld [vmem:[%s0 + $0xa8] sm:$0xff]
  %v36 = vld [vmem:[%s0 + $0xb0] sm:$0xff]
  %v37 = vld [vmem:[%s0 + $0xb8] sm:$0xff]
  %v38 = vld [vmem:[%s0 + $0xc0] sm:$0xff]
  %v39 = vld [vmem:[%s0 + $0xc8] sm:$0xff]
  %v40 = vld [vmem:[%s0 + $0xd0] sm:$0xff]
  %v41 = vld [vmem:[%s0 + $0xd8] sm:$0xff]
  %v42 = vld [vmem:[%s0 + $0xe0] sm:$0xff]
  %v43 = vld [vmem:[%s0 + $0xe8] sm:$0xff]
  %v44 = vld [vmem:[%s0 + $0xf0] sm:$0xff]
  %v45 = vld [vmem:[%s0 + $0xf8] sm:$0xff]
  %v46 = vld [vmem:[%s0 + $0x100] sm:$0xff]
  %v47 = vld [vmem:[%s0 + $0x108] sm:$0xff]
  %v48 = vld [vmem:[%s0 + $0x110] sm:$0xff]
  %v49 = vld [vmem:[%s0 + $0x118] sm:$0xff]
  %v50 = vld [vmem:[%s0 + $0x120] sm:$0xff]
  %v51 = vld [vmem:[%s0 + $0x128] sm:$0xff]
  %v52 = vld [vmem:[%s0 + $0x130] sm:$0xff]
  %v53 = vld [vmem:[%s0 + $0x138] sm:$0xff]
  %v54 = vld [vmem:[%s0 + $0x140] sm:$0xff]
  %v55 = vld [vmem:[%s0 + $0x148] sm:$0xff]
  %v56 = vld [vmem:[%s0 + $0x150] sm:$0xff]
  %v57 = vld [vmem:[%s0 + $0x158] sm:$0xff]
  %v58 = vld [vmem:[%s0 + $0x160] sm:$0xff]
  %v59 = vld [vmem:[%s0 + $0x168] sm:$0xff]
  %v60 = vld [vmem:[%s0 + $0x170] sm:$0xff]
  %v61 = vld [vmem:[%s0 + $0x178] sm:$0xff]
  %v62 = vld [vmem:[%s0 + $0x180] sm:$0xff]
  %v63 = vld [vmem:[%s0 + $0x188] sm:$0xff]
  %v64 = vld [vmem:[%s0 + $0x190] sm:$0xff]
  %v65 = vld [vmem:[%s0 + $0x198] sm:$0xff]
  %v66 = vld [vmem:[%s0 + $0x1a0] sm:$0xff]
  %v67 = vld [vmem:[%s0 + $0x1a8] sm:$0xff]
  %v68 = vld [vmem:[%s0 + $0x1b0] sm:$0xff]
  %v69 = vld [vmem:[%s0 + $0x1b8] sm:$0xff]
  %v70 = vld [vmem:[%s0 + $0x1c0] sm:$0xff]
  %v71 = vld [vmem:[%s0 + $0x1c8] sm:$0xff]
  %v72 = vld [vmem:[%s0 + $0x1d0] sm:$0xff]
  %v73 = vld [vmem:[%s0 + $0x1d8] sm:$0xff]
  %v74 = vld [vmem:[%s0 + $0x1e0] sm:$0xff]
  %v75 = vld [vmem:[%s0 + $0x1e8] sm:$0xff]
  %v76 = vld [vmem:[%s0 + $0x1f0] sm:$0xff]
  %v77 = vld [vmem:[%s0 + $0x1f8] sm:$0xff]
  %v78 = vld [vmem:[%s1] sm:$0x3]
  %v80 = vlaneseq
  %v81 = vshrl.u32 %v80, 7
  %v82 = vsub.s32 0, %v81
  %v83 = vrot.slane %v78, %v82
  %v84 = vlaneseq
  %v85 = vshrl.u32 %v84, 7
  %v86 = vsub.s32 1, %v85
  %v87 = vrot.slane %v78, %v86
  %v90 = vmul.f32 %v14, %v83
  %v91 = vmul.f32 %v15, %v87
  %v92 = vmul.f32 %v16, %v83
  %v93 = vmul.f32 %v17, %v87
  %v94 = vmul.f32 %v18, %v83
  %v95 = vmul.f32 %v19, %v87
  %v96 = vmul.f32 %v20, %v83
  %v97 = vmul.f32 %v21, %v87
  %v98 = vmul.f32 %v22, %v83
  %v99 = vmul.f32 %v23, %v87
  %v100 = vmul.f32 %v24, %v83
  %v101 = vmul.f32 %v25, %v87
  %v102 = vmul.f32 %v26, %v83
  %v103 = vmul.f32 %v27, %v87
  %v104 = vmul.f32 %v28, %v83
  %v105 = vmul.f32 %v29, %v87
  %v106 = vmul.f32 %v30, %v83
  %v107 = vmul.f32 %v31, %v87
  %v108 = vmul.f32 %v32, %v83
  %v109 = vmul.f32 %v33, %v87
  %v110 = vmul.f32 %v34, %v83
  %v111 = vmul.f32 %v35, %v87
  %v112 = vmul.f32 %v36, %v83
  %v113 = vmul.f32 %v37, %v87
  %v114 = vmul.f32 %v38, %v83
  %v115 = vmul.f32 %v39, %v87
  %v116 = vmul.f32 %v40, %v83
  %v117 = vmul.f32 %v41, %v87
  %v118 = vmul.f32 %v42, %v83
  %v119 = vmul.f32 %v43, %v87
  %v120 = vmul.f32 %v44, %v83
  %v121 = vmul.f32 %v45, %v87
  %v122 = vmul.f32 %v46, %v83
  %v123 = vmul.f32 %v47, %v87
  %v124 = vmul.f32 %v48, %v83
  %v125 = vmul.f32 %v49, %v87
  %v126 = vmul.f32 %v50, %v83
  %v127 = vmul.f32 %v51, %v87
  %v128 = vmul.f32 %v52, %v83
  %v129 = vmul.f32 %v53, %v87
  %v130 = vmul.f32 %v54, %v83
  %v131 = vmul.f32 %v55, %v87
  %v132 = vmul.f32 %v56, %v83
  %v133 = vmul.f32 %v57, %v87
  %v134 = vmul.f32 %v58, %v83
  %v135 = vmul.f32 %v59, %v87
  %v136 = vmul.f32 %v60, %v83
  %v137 = vmul.f32 %v61, %v87
  %v138 = vmul.f32 %v62, %v83
  %v139 = vmul.f32 %v63, %v87
  %v140 = vmul.f32 %v64, %v83
  %v141 = vmul.f32 %v65, %v87
  %v142 = vmul.f32 %v66, %v83
  %v143 = vmul.f32 %v67, %v87
  %v144 = vmul.f32 %v68, %v83
  %v145 = vmul.f32 %v69, %v87
  %v146 = vmul.f32 %v70, %v83
  %v147 = vmul.f32 %v71, %v87
  %v148 = vmul.f32 %v72, %v83
  %v149 = vmul.f32 %v73, %v87
  %v150 = vmul.f32 %v74, %v83
  %v151 = vmul.f32 %v75, %v87
  %v152 = vmul.f32 %v76, %v83
  %v153 = vmul.f32 %v77, %v87
  %v154 = vld [vmem:[%s2] sm:$0x3]
  %v156 = vlaneseq
  %v157 = vshrl.u32 %v156, 7
  %v158 = vsub.s32 0, %v157
  %v159 = vrot.slane %v154, %v158
  %v160 = vlaneseq
  %v161 = vshrl.u32 %v160, 7
  %v162 = vsub.s32 1, %v161
  %v163 = vrot.slane %v154, %v162
  %v166 = vadd.f32 %v90, %v159
  %v167 = vadd.f32 %v91, %v163
  %v168 = vadd.f32 %v92, %v159
  %v169 = vadd.f32 %v93, %v163
  %v170 = vadd.f32 %v94, %v159
  %v171 = vadd.f32 %v95, %v163
  %v172 = vadd.f32 %v96, %v159
  %v173 = vadd.f32 %v97, %v163
  %v174 = vadd.f32 %v98, %v159
  %v175 = vadd.f32 %v99, %v163
  %v176 = vadd.f32 %v100, %v159
  %v177 = vadd.f32 %v101, %v163
  %v178 = vadd.f32 %v102, %v159
  %v179 = vadd.f32 %v103, %v163
  %v180 = vadd.f32 %v104, %v159
  %v181 = vadd.f32 %v105, %v163
  %v182 = vadd.f32 %v106, %v159
  %v183 = vadd.f32 %v107, %v163
  %v184 = vadd.f32 %v108, %v159
  %v185 = vadd.f32 %v109, %v163
  %v186 = vadd.f32 %v110, %v159
  %v187 = vadd.f32 %v111, %v163
  %v188 = vadd.f32 %v112, %v159
  %v189 = vadd.f32 %v113, %v163
  %v190 = vadd.f32 %v114, %v159
  %v191 = vadd.f32 %v115, %v163
  %v192 = vadd.f32 %v116, %v159
  %v193 = vadd.f32 %v117, %v163
  %v194 = vadd.f32 %v118, %v159
  %v195 = vadd.f32 %v119, %v163
  %v196 = vadd.f32 %v120, %v159
  %v197 = vadd.f32 %v121, %v163
  %v198 = vadd.f32 %v122, %v159
  %v199 = vadd.f32 %v123, %v163
  %v200 = vadd.f32 %v124, %v159
  %v201 = vadd.f32 %v125, %v163
  %v202 = vadd.f32 %v126, %v159
  %v203 = vadd.f32 %v127, %v163
  %v204 = vadd.f32 %v128, %v159
  %v205 = vadd.f32 %v129, %v163
  %v206 = vadd.f32 %v130, %v159
  %v207 = vadd.f32 %v131, %v163
  %v208 = vadd.f32 %v132, %v159
  %v209 = vadd.f32 %v133, %v163
  %v210 = vadd.f32 %v134, %v159
  %v211 = vadd.f32 %v135, %v163
  %v212 = vadd.f32 %v136, %v159
  %v213 = vadd.f32 %v137, %v163
  %v214 = vadd.f32 %v138, %v159
  %v215 = vadd.f32 %v139, %v163
  %v216 = vadd.f32 %v140, %v159
  %v217 = vadd.f32 %v141, %v163
  %v218 = vadd.f32 %v142, %v159
  %v219 = vadd.f32 %v143, %v163
  %v220 = vadd.f32 %v144, %v159
  %v221 = vadd.f32 %v145, %v163
  %v222 = vadd.f32 %v146, %v159
  %v223 = vadd.f32 %v147, %v163
  %v224 = vadd.f32 %v148, %v159
  %v225 = vadd.f32 %v149, %v163
  %v226 = vadd.f32 %v150, %v159
  %v227 = vadd.f32 %v151, %v163
  %v228 = vadd.f32 %v152, %v159
  %v229 = vadd.f32 %v153, %v163
  %230 = vst [vmem:[%s3] sm:$0xff] %v166
  %231 = vst [vmem:[%s3 + $0x8] sm:$0xff] %v167
  %232 = vst [vmem:[%s3 + $0x10] sm:$0xff] %v168
  %233 = vst [vmem:[%s3 + $0x18] sm:$0xff] %v169
  %234 = vst [vmem:[%s3 + $0x20] sm:$0xff] %v170
  %235 = vst [vmem:[%s3 + $0x28] sm:$0xff] %v171
  %236 = vst [vmem:[%s3 + $0x30] sm:$0xff] %v172
  %237 = vst [vmem:[%s3 + $0x38] sm:$0xff] %v173
  %238 = vst [vmem:[%s3 + $0x40] sm:$0xff] %v174
  %239 = vst [vmem:[%s3 + $0x48] sm:$0xff] %v175
  %240 = vst [vmem:[%s3 + $0x50] sm:$0xff] %v176
  %241 = vst [vmem:[%s3 + $0x58] sm:$0xff] %v177
  %242 = vst [vmem:[%s3 + $0x60] sm:$0xff] %v178
  %243 = vst [vmem:[%s3 + $0x68] sm:$0xff] %v179
  %244 = vst [vmem:[%s3 + $0x70] sm:$0xff] %v180
  %245 = vst [vmem:[%s3 + $0x78] sm:$0xff] %v181
  %246 = vst [vmem:[%s3 + $0x80] sm:$0xff] %v182
  %247 = vst [vmem:[%s3 + $0x88] sm:$0xff] %v183
  %248 = vst [vmem:[%s3 + $0x90] sm:$0xff] %v184
  %249 = vst [vmem:[%s3 + $0x98] sm:$0xff] %v185
  %250 = vst [vmem:[%s3 + $0xa0] sm:$0xff] %v186
  %251 = vst [vmem:[%s3 + $0xa8] sm:$0xff] %v187
  %252 = vst [vmem:[%s3 + $0xb0] sm:$0xff] %v188
  %253 = vst [vmem:[%s3 + $0xb8] sm:$0xff] %v189
  %254 = vst [vmem:[%s3 + $0xc0] sm:$0xff] %v190
  %255 = vst [vmem:[%s3 + $0xc8] sm:$0xff] %v191
  %256 = vst [vmem:[%s3 + $0xd0] sm:$0xff] %v192
  %257 = vst [vmem:[%s3 + $0xd8] sm:$0xff] %v193
  %258 = vst [vmem:[%s3 + $0xe0] sm:$0xff] %v194
  %259 = vst [vmem:[%s3 + $0xe8] sm:$0xff] %v195
  %260 = vst [vmem:[%s3 + $0xf0] sm:$0xff] %v196
  %261 = vst [vmem:[%s3 + $0xf8] sm:$0xff] %v197
  %262 = vst [vmem:[%s3 + $0x100] sm:$0xff] %v198
  %263 = vst [vmem:[%s3 + $0x108] sm:$0xff] %v199
  %264 = vst [vmem:[%s3 + $0x110] sm:$0xff] %v200
  %265 = vst [vmem:[%s3 + $0x118] sm:$0xff] %v201
  %266 = vst [vmem:[%s3 + $0x120] sm:$0xff] %v202
  %267 = vst [vmem:[%s3 + $0x128] sm:$0xff] %v203
  %268 = vst [vmem:[%s3 + $0x130] sm:$0xff] %v204
  %269 = vst [vmem:[%s3 + $0x138] sm:$0xff] %v205
  %270 = vst [vmem:[%s3 + $0x140] sm:$0xff] %v206
  %271 = vst [vmem:[%s3 + $0x148] sm:$0xff] %v207
  %272 = vst [vmem:[%s3 + $0x150] sm:$0xff] %v208
  %273 = vst [vmem:[%s3 + $0x158] sm:$0xff] %v209
  %274 = vst [vmem:[%s3 + $0x160] sm:$0xff] %v210
  %275 = vst [vmem:[%s3 + $0x168] sm:$0xff] %v211
  %276 = vst [vmem:[%s3 + $0x170] sm:$0xff] %v212
  %277 = vst [vmem:[%s3 + $0x178] sm:$0xff] %v213
  %278 = vst [vmem:[%s3 + $0x180] sm:$0xff] %v214
  %279 = vst [vmem:[%s3 + $0x188] sm:$0xff] %v215
  %280 = vst [vmem:[%s3 + $0x190] sm:$0xff] %v216
  %281 = vst [vmem:[%s3 + $0x198] sm:$0xff] %v217
  %282 = vst [vmem:[%s3 + $0x1a0] sm:$0xff] %v218
  %283 = vst [vmem:[%s3 + $0x1a8] sm:$0xff] %v219
  %284 = vst [vmem:[%s3 + $0x1b0] sm:$0xff] %v220
  %285 = vst [vmem:[%s3 + $0x1b8] sm:$0xff] %v221
  %286 = vst [vmem:[%s3 + $0x1c0] sm:$0xff] %v222
  %287 = vst [vmem:[%s3 + $0x1c8] sm:$0xff] %v223
  %288 = vst [vmem:[%s3 + $0x1d0] sm:$0xff] %v224
  %289 = vst [vmem:[%s3 + $0x1d8] sm:$0xff] %v225
  %290 = vst [vmem:[%s3 + $0x1e0] sm:$0xff] %v226
  %291 = vst [vmem:[%s3 + $0x1e8] sm:$0xff] %v227
  %292 = vst [vmem:[%s3 + $0x1f0] sm:$0xff] %v228
  %293 = vst [vmem:[%s3 + $0x1f8] sm:$0xff] %v229
  // Predicated region
  $region14: #{bottleneck3d_forward.13} parent=0 // pred_check
    _
  $region15: #{bottleneck3d_forward.13} parent=0 // pred_check_branch
    %295 = sbr.rel (0) target = $region17
  $region16: #{bottleneck3d_forward.13} parent=0 // pred_region
    _
  $region17: #{bottleneck3d_forward.13} parent=0 // pred_fallthru
    _
  // Predicated region
  $region18: #{bottleneck3d_forward.13} parent=0 // pred_check
    _
  $region19: #{bottleneck3d_forward.13} parent=0 // pred_check_branch
    %297 = sbr.rel (0) target = $region21
  $region20: #{bottleneck3d_forward.13} parent=0 // pred_region
    _
  $region21: #{bottleneck3d_forward.13} parent=0 // pred_fallthru
    _

// kernel: bottleneck3d_forward.15
$region0: #{bottleneck3d_forward.15}
  #allocation0 [shape = 'u32[]', space=smem, size = 0x4, offset = 0x4, fixed_abs, tag = 'smem constant byte address 0x4 - core index']
  #allocation1 [shape = 'u32[144,128]{1,0:T(1,128)}', space=vmem, size = 0x12000, scoped, tag = 'internal scratch']
  %s0 = inlined_call_operand.vmem [shape: f32[256,256], index: 0, kind: input, shape index: {}]
  %s1 = inlined_call_operand.vmem [shape: f32[1,256], index: 1, kind: input, shape index: {}]
  %s2 = inlined_call_operand.vmem [shape: f32[1,256], index: 2, kind: input, shape index: {}]
  %s3 = inlined_call_operand.vmem [shape: f32[256,256], index: 3, kind: input, shape index: {}]
  %s4 = inlined_call_operand.hbm [shape: f32[256,256], index: 4, kind: output, shape index: {}]
  %s5 = sld [smem:[#allocation0]]
  $region26: #{bottleneck3d_forward.15} parent=0
    _
  %s7 = ssub.s32 1, %s5
  %s8 = scalar_select 0, %s7, %s5
  $region1: #{bottleneck3d_forward.15} parent=0
    #allocation2 [shape = 'u8[262144]{0}', space=vmem, size = 0x40000, scoped, tag = 'output window, operand 0, single buffered']
    #allocation3 [shape = 's32[1]{0}', space=sflag, size = 0x4, scoped, tag = 'scoped memory for bottleneck3d_forward.15']
    %9 = vsyncpa [#allocation3], 0
    // Predicated region
    $region2: #{bottleneck3d_forward.15} parent=1 // pred_check
      _
    $region3: #{bottleneck3d_forward.15} parent=1 // pred_check_branch
      %11 = sbr.rel (0) target = $region5
    $region4: #{bottleneck3d_forward.15} parent=1 // pred_region
      _
    $region5: #{bottleneck3d_forward.15} parent=1 // pred_fallthru
      _
    // Predicated region
    $region6: #{bottleneck3d_forward.15} parent=1 // pred_check
      _
    $region7: #{bottleneck3d_forward.15} parent=1 // pred_check_branch
      %13 = sbr.rel (0) target = $region9
    $region8: #{bottleneck3d_forward.15} parent=1 // pred_region
      _
    $region9: #{bottleneck3d_forward.15} parent=1 // pred_fallthru
      _
    // Predicated region
    $region10: #{bottleneck3d_forward.15} parent=1 // pred_check
      _
    $region11: #{bottleneck3d_forward.15} parent=1 // pred_check_branch
      %15 = sbr.rel (0) target = $region13
    $region12: #{bottleneck3d_forward.15} parent=1 // pred_region
      _
    $region13: #{bottleneck3d_forward.15} parent=1 // pred_fallthru
      _
    // Predicated region
    $region14: #{bottleneck3d_forward.15} parent=1 // pred_check
      _
    $region15: #{bottleneck3d_forward.15} parent=1 // pred_check_branch
      %17 = sbr.rel (0) target = $region17
    $region16: #{bottleneck3d_forward.15} parent=1 // pred_region
      _
    $region17: #{bottleneck3d_forward.15} parent=1 // pred_fallthru
      _
    %v18 = vld [vmem:[%s0] sm:$0xff]
    %v19 = vld [vmem:[%s0 + $0x8] sm:$0xff]
    %v20 = vld [vmem:[%s0 + $0x10] sm:$0xff]
    %v21 = vld [vmem:[%s0 + $0x18] sm:$0xff]
    %v22 = vld [vmem:[%s0 + $0x20] sm:$0xff]
    %v23 = vld [vmem:[%s0 + $0x28] sm:$0xff]
    %v24 = vld [vmem:[%s0 + $0x30] sm:$0xff]
    %v25 = vld [vmem:[%s0 + $0x38] sm:$0xff]
    %v26 = vld [vmem:[%s0 + $0x40] sm:$0xff]
    %v27 = vld [vmem:[%s0 + $0x48] sm:$0xff]
    %v28 = vld [vmem:[%s0 + $0x50] sm:$0xff]
    %v29 = vld [vmem:[%s0 + $0x58] sm:$0xff]
    %v30 = vld [vmem:[%s0 + $0x60] sm:$0xff]
    %v31 = vld [vmem:[%s0 + $0x68] sm:$0xff]
    %v32 = vld [vmem:[%s0 + $0x70] sm:$0xff]
    %v33 = vld [vmem:[%s0 + $0x78] sm:$0xff]
    %v34 = vld [vmem:[%s0 + $0x80] sm:$0xff]
    %v35 = vld [vmem:[%s0 + $0x88] sm:$0xff]
    %v36 = vld [vmem:[%s0 + $0x90] sm:$0xff]
    %v37 = vld [vmem:[%s0 + $0x98] sm:$0xff]
    %v38 = vld [vmem:[%s0 + $0xa0] sm:$0xff]
    %v39 = vld [vmem:[%s0 + $0xa8] sm:$0xff]
    %v40 = vld [vmem:[%s0 + $0xb0] sm:$0xff]
    %v41 = vld [vmem:[%s0 + $0xb8] sm:$0xff]
    %v42 = vld [vmem:[%s0 + $0xc0] sm:$0xff]
    %v43 = vld [vmem:[%s0 + $0xc8] sm:$0xff]
    %v44 = vld [vmem:[%s0 + $0xd0] sm:$0xff]
    %v45 = vld [vmem:[%s0 + $0xd8] sm:$0xff]
    %v46 = vld [vmem:[%s0 + $0xe0] sm:$0xff]
    %v47 = vld [vmem:[%s0 + $0xe8] sm:$0xff]
    %v48 = vld [vmem:[%s0 + $0xf0] sm:$0xff]
    %v49 = vld [vmem:[%s0 + $0xf8] sm:$0xff]
    %v50 = vld [vmem:[%s0 + $0x100] sm:$0xff]
    %v51 = vld [vmem:[%s0 + $0x108] sm:$0xff]
    %v52 = vld [vmem:[%s0 + $0x110] sm:$0xff]
    %v53 = vld [vmem:[%s0 + $0x118] sm:$0xff]
    %v54 = vld [vmem:[%s0 + $0x120] sm:$0xff]
    %v55 = vld [vmem:[%s0 + $0x128] sm:$0xff]
    %v56 = vld [vmem:[%s0 + $0x130] sm:$0xff]
    %v57 = vld [vmem:[%s0 + $0x138] sm:$0xff]
    %v58 = vld [vmem:[%s0 + $0x140] sm:$0xff]
    %v59 = vld [vmem:[%s0 + $0x148] sm:$0xff]
    %v60 = vld [vmem:[%s0 + $0x150] sm:$0xff]
    %v61 = vld [vmem:[%s0 + $0x158] sm:$0xff]
    %v62 = vld [vmem:[%s0 + $0x160] sm:$0xff]
    %v63 = vld [vmem:[%s0 + $0x168] sm:$0xff]
    %v64 = vld [vmem:[%s0 + $0x170] sm:$0xff]
    %v65 = vld [vmem:[%s0 + $0x178] sm:$0xff]
    %v66 = vld [vmem:[%s0 + $0x180] sm:$0xff]
    %v67 = vld [vmem:[%s0 + $0x188] sm:$0xff]
    %v68 = vld [vmem:[%s0 + $0x190] sm:$0xff]
    %v69 = vld [vmem:[%s0 + $0x198] sm:$0xff]
    %v70 = vld [vmem:[%s0 + $0x1a0] sm:$0xff]
    %v71 = vld [vmem:[%s0 + $0x1a8] sm:$0xff]
    %v72 = vld [vmem:[%s0 + $0x1b0] sm:$0xff]
    %v73 = vld [vmem:[%s0 + $0x1b8] sm:$0xff]
    %v74 = vld [vmem:[%s0 + $0x1c0] sm:$0xff]
    %v75 = vld [vmem:[%s0 + $0x1c8] sm:$0xff]
    %v76 = vld [vmem:[%s0 + $0x1d0] sm:$0xff]
    %v77 = vld [vmem:[%s0 + $0x1d8] sm:$0xff]
    %v78 = vld [vmem:[%s0 + $0x1e0] sm:$0xff]
    %v79 = vld [vmem:[%s0 + $0x1e8] sm:$0xff]
    %v80 = vld [vmem:[%s0 + $0x1f0] sm:$0xff]
    %v81 = vld [vmem:[%s0 + $0x1f8] sm:$0xff]
    %v82 = vld [vmem:[%s1] sm:$0x3]
    %v84 = vlaneseq
    %v85 = vshrl.u32 %v84, 7
    %v86 = vsub.s32 0, %v85
    %v87 = vrot.slane %v82, %v86
    %v88 = vlaneseq
    %v89 = vshrl.u32 %v88, 7
    %v90 = vsub.s32 1, %v89
    %v91 = vrot.slane %v82, %v90
    %v94 = vmul.f32 %v18, %v87
    %v95 = vmul.f32 %v19, %v91
    %v96 = vmul.f32 %v20, %v87
    %v97 = vmul.f32 %v21, %v91
    %v98 = vmul.f32 %v22, %v87
    %v99 = vmul.f32 %v23, %v91
    %v100 = vmul.f32 %v24, %v87
    %v101 = vmul.f32 %v25, %v91
    %v102 = vmul.f32 %v26, %v87
    %v103 = vmul.f32 %v27, %v91
    %v104 = vmul.f32 %v28, %v87
    %v105 = vmul.f32 %v29, %v91
    %v106 = vmul.f32 %v30, %v87
    %v107 = vmul.f32 %v31, %v91
    %v108 = vmul.f32 %v32, %v87
    %v109 = vmul.f32 %v33, %v91
    %v110 = vmul.f32 %v34, %v87
    %v111 = vmul.f32 %v35, %v91
    %v112 = vmul.f32 %v36, %v87
    %v113 = vmul.f32 %v37, %v91
    %v114 = vmul.f32 %v38, %v87
    %v115 = vmul.f32 %v39, %v91
    %v116 = vmul.f32 %v40, %v87
    %v117 = vmul.f32 %v41, %v91
    %v118 = vmul.f32 %v42, %v87
    %v119 = vmul.f32 %v43, %v91
    %v120 = vmul.f32 %v44, %v87
    %v121 = vmul.f32 %v45, %v91
    %v122 = vmul.f32 %v46, %v87
    %v123 = vmul.f32 %v47, %v91
    %v124 = vmul.f32 %v48, %v87
    %v125 = vmul.f32 %v49, %v91
    %v126 = vmul.f32 %v50, %v87
    %v127 = vmul.f32 %v51, %v91
    %v128 = vmul.f32 %v52, %v87
    %v129 = vmul.f32 %v53, %v91
    %v130 = vmul.f32 %v54, %v87
    %v131 = vmul.f32 %v55, %v91
    %v132 = vmul.f32 %v56, %v87
    %v133 = vmul.f32 %v57, %v91
    %v134 = vmul.f32 %v58, %v87
    %v135 = vmul.f32 %v59, %v91
    %v136 = vmul.f32 %v60, %v87
    %v137 = vmul.f32 %v61, %v91
    %v138 = vmul.f32 %v62, %v87
    %v139 = vmul.f32 %v63, %v91
    %v140 = vmul.f32 %v64, %v87
    %v141 = vmul.f32 %v65, %v91
    %v142 = vmul.f32 %v66, %v87
    %v143 = vmul.f32 %v67, %v91
    %v144 = vmul.f32 %v68, %v87
    %v145 = vmul.f32 %v69, %v91
    %v146 = vmul.f32 %v70, %v87
    %v147 = vmul.f32 %v71, %v91
    %v148 = vmul.f32 %v72, %v87
    %v149 = vmul.f32 %v73, %v91
    %v150 = vmul.f32 %v74, %v87
    %v151 = vmul.f32 %v75, %v91
    %v152 = vmul.f32 %v76, %v87
    %v153 = vmul.f32 %v77, %v91
    %v154 = vmul.f32 %v78, %v87
    %v155 = vmul.f32 %v79, %v91
    %v156 = vmul.f32 %v80, %v87
    %v157 = vmul.f32 %v81, %v91
    %v158 = vld [vmem:[%s2] sm:$0x3]
    %v160 = vlaneseq
    %v161 = vshrl.u32 %v160, 7
    %v162 = vsub.s32 0, %v161
    %v163 = vrot.slane %v158, %v162
    %v164 = vlaneseq
    %v165 = vshrl.u32 %v164, 7
    %v166 = vsub.s32 1, %v165
    %v167 = vrot.slane %v158, %v166
    %v170 = vadd.f32 %v94, %v163
    %v171 = vadd.f32 %v95, %v167
    %v172 = vadd.f32 %v96, %v163
    %v173 = vadd.f32 %v97, %v167
    %v174 = vadd.f32 %v98, %v163
    %v175 = vadd.f32 %v99, %v167
    %v176 = vadd.f32 %v100, %v163
    %v177 = vadd.f32 %v101, %v167
    %v178 = vadd.f32 %v102, %v163
    %v179 = vadd.f32 %v103, %v167
    %v180 = vadd.f32 %v104, %v163
    %v181 = vadd.f32 %v105, %v167
    %v182 = vadd.f32 %v106, %v163
    %v183 = vadd.f32 %v107, %v167
    %v184 = vadd.f32 %v108, %v163
    %v185 = vadd.f32 %v109, %v167
    %v186 = vadd.f32 %v110, %v163
    %v187 = vadd.f32 %v111, %v167
    %v188 = vadd.f32 %v112, %v163
    %v189 = vadd.f32 %v113, %v167
    %v190 = vadd.f32 %v114, %v163
    %v191 = vadd.f32 %v115, %v167
    %v192 = vadd.f32 %v116, %v163
    %v193 = vadd.f32 %v117, %v167
    %v194 = vadd.f32 %v118, %v163
    %v195 = vadd.f32 %v119, %v167
    %v196 = vadd.f32 %v120, %v163
    %v197 = vadd.f32 %v121, %v167
    %v198 = vadd.f32 %v122, %v163
    %v199 = vadd.f32 %v123, %v167
    %v200 = vadd.f32 %v124, %v163
    %v201 = vadd.f32 %v125, %v167
    %v202 = vadd.f32 %v126, %v163
    %v203 = vadd.f32 %v127, %v167
    %v204 = vadd.f32 %v128, %v163
    %v205 = vadd.f32 %v129, %v167
    %v206 = vadd.f32 %v130, %v163
    %v207 = vadd.f32 %v131, %v167
    %v208 = vadd.f32 %v132, %v163
    %v209 = vadd.f32 %v133, %v167
    %v210 = vadd.f32 %v134, %v163
    %v211 = vadd.f32 %v135, %v167
    %v212 = vadd.f32 %v136, %v163
    %v213 = vadd.f32 %v137, %v167
    %v214 = vadd.f32 %v138, %v163
    %v215 = vadd.f32 %v139, %v167
    %v216 = vadd.f32 %v140, %v163
    %v217 = vadd.f32 %v141, %v167
    %v218 = vadd.f32 %v142, %v163
    %v219 = vadd.f32 %v143, %v167
    %v220 = vadd.f32 %v144, %v163
    %v221 = vadd.f32 %v145, %v167
    %v222 = vadd.f32 %v146, %v163
    %v223 = vadd.f32 %v147, %v167
    %v224 = vadd.f32 %v148, %v163
    %v225 = vadd.f32 %v149, %v167
    %v226 = vadd.f32 %v150, %v163
    %v227 = vadd.f32 %v151, %v167
    %v228 = vadd.f32 %v152, %v163
    %v229 = vadd.f32 %v153, %v167
    %v230 = vadd.f32 %v154, %v163
    %v231 = vadd.f32 %v155, %v167
    %v232 = vadd.f32 %v156, %v163
    %v233 = vadd.f32 %v157, %v167
    %v234 = vld [vmem:[%s3] sm:$0xff]
    %v235 = vld [vmem:[%s3 + $0x8] sm:$0xff]
    %v236 = vld [vmem:[%s3 + $0x10] sm:$0xff]
    %v237 = vld [vmem:[%s3 + $0x18] sm:$0xff]
    %v238 = vld [vmem:[%s3 + $0x20] sm:$0xff]
    %v239 = vld [vmem:[%s3 + $0x28] sm:$0xff]
    %v240 = vld [vmem:[%s3 + $0x30] sm:$0xff]
    %v241 = vld [vmem:[%s3 + $0x38] sm:$0xff]
    %v242 = vld [vmem:[%s3 + $0x40] sm:$0xff]
    %v243 = vld [vmem:[%s3 + $0x48] sm:$0xff]
    %v244 = vld [vmem:[%s3 + $0x50] sm:$0xff]
    %v245 = vld [vmem:[%s3 + $0x58] sm:$0xff]
    %v246 = vld [vmem:[%s3 + $0x60] sm:$0xff]
    %v247 = vld [vmem:[%s3 + $0x68] sm:$0xff]
    %v248 = vld [vmem:[%s3 + $0x70] sm:$0xff]
    %v249 = vld [vmem:[%s3 + $0x78] sm:$0xff]
    %v250 = vld [vmem:[%s3 + $0x80] sm:$0xff]
    %v251 = vld [vmem:[%s3 + $0x88] sm:$0xff]
    %v252 = vld [vmem:[%s3 + $0x90] sm:$0xff]
    %v253 = vld [vmem:[%s3 + $0x98] sm:$0xff]
    %v254 = vld [vmem:[%s3 + $0xa0] sm:$0xff]
    %v255 = vld [vmem:[%s3 + $0xa8] sm:$0xff]
    %v256 = vld [vmem:[%s3 + $0xb0] sm:$0xff]
    %v257 = vld [vmem:[%s3 + $0xb8] sm:$0xff]
    %v258 = vld [vmem:[%s3 + $0xc0] sm:$0xff]
    %v259 = vld [vmem:[%s3 + $0xc8] sm:$0xff]
    %v260 = vld [vmem:[%s3 + $0xd0] sm:$0xff]
    %v261 = vld [vmem:[%s3 + $0xd8] sm:$0xff]
    %v262 = vld [vmem:[%s3 + $0xe0] sm:$0xff]
    %v263 = vld [vmem:[%s3 + $0xe8] sm:$0xff]
    %v264 = vld [vmem:[%s3 + $0xf0] sm:$0xff]
    %v265 = vld [vmem:[%s3 + $0xf8] sm:$0xff]
    %v266 = vld [vmem:[%s3 + $0x100] sm:$0xff]
    %v267 = vld [vmem:[%s3 + $0x108] sm:$0xff]
    %v268 = vld [vmem:[%s3 + $0x110] sm:$0xff]
    %v269 = vld [vmem:[%s3 + $0x118] sm:$0xff]
    %v270 = vld [vmem:[%s3 + $0x120] sm:$0xff]
    %v271 = vld [vmem:[%s3 + $0x128] sm:$0xff]
    %v272 = vld [vmem:[%s3 + $0x130] sm:$0xff]
    %v273 = vld [vmem:[%s3 + $0x138] sm:$0xff]
    %v274 = vld [vmem:[%s3 + $0x140] sm:$0xff]
    %v275 = vld [vmem:[%s3 + $0x148] sm:$0xff]
    %v276 = vld [vmem:[%s3 + $0x150] sm:$0xff]
    %v277 = vld [vmem:[%s3 + $0x158] sm:$0xff]
    %v278 = vld [vmem:[%s3 + $0x160] sm:$0xff]
    %v279 = vld [vmem:[%s3 + $0x168] sm:$0xff]
    %v280 = vld [vmem:[%s3 + $0x170] sm:$0xff]
    %v281 = vld [vmem:[%s3 + $0x178] sm:$0xff]
    %v282 = vld [vmem:[%s3 + $0x180] sm:$0xff]
    %v283 = vld [vmem:[%s3 + $0x188] sm:$0xff]
    %v284 = vld [vmem:[%s3 + $0x190] sm:$0xff]
    %v285 = vld [vmem:[%s3 + $0x198] sm:$0xff]
    %v286 = vld [vmem:[%s3 + $0x1a0] sm:$0xff]
    %v287 = vld [vmem:[%s3 + $0x1a8] sm:$0xff]
    %v288 = vld [vmem:[%s3 + $0x1b0] sm:$0xff]
    %v289 = vld [vmem:[%s3 + $0x1b8] sm:$0xff]
    %v290 = vld [vmem:[%s3 + $0x1c0] sm:$0xff]
    %v291 = vld [vmem:[%s3 + $0x1c8] sm:$0xff]
    %v292 = vld [vmem:[%s3 + $0x1d0] sm:$0xff]
    %v293 = vld [vmem:[%s3 + $0x1d8] sm:$0xff]
    %v294 = vld [vmem:[%s3 + $0x1e0] sm:$0xff]
    %v295 = vld [vmem:[%s3 + $0x1e8] sm:$0xff]
    %v296 = vld [vmem:[%s3 + $0x1f0] sm:$0xff]
    %v297 = vld [vmem:[%s3 + $0x1f8] sm:$0xff]
    %v298 = vadd.f32 %v170, %v234
    %v299 = vadd.f32 %v171, %v235
    %v300 = vadd.f32 %v172, %v236
    %v301 = vadd.f32 %v173, %v237
    %v302 = vadd.f32 %v174, %v238
    %v303 = vadd.f32 %v175, %v239
    %v304 = vadd.f32 %v176, %v240
    %v305 = vadd.f32 %v177, %v241
    %v306 = vadd.f32 %v178, %v242
    %v307 = vadd.f32 %v179, %v243
    %v308 = vadd.f32 %v180, %v244
    %v309 = vadd.f32 %v181, %v245
    %v310 = vadd.f32 %v182, %v246
    %v311 = vadd.f32 %v183, %v247
    %v312 = vadd.f32 %v184, %v248
    %v313 = vadd.f32 %v185, %v249
    %v314 = vadd.f32 %v186, %v250
    %v315 = vadd.f32 %v187, %v251
    %v316 = vadd.f32 %v188, %v252
    %v317 = vadd.f32 %v189, %v253
    %v318 = vadd.f32 %v190, %v254
    %v319 = vadd.f32 %v191, %v255
    %v320 = vadd.f32 %v192, %v256
    %v321 = vadd.f32 %v193, %v257
    %v322 = vadd.f32 %v194, %v258
    %v323 = vadd.f32 %v195, %v259
    %v324 = vadd.f32 %v196, %v260
    %v325 = vadd.f32 %v197, %v261
    %v326 = vadd.f32 %v198, %v262
    %v327 = vadd.f32 %v199, %v263
    %v328 = vadd.f32 %v200, %v264
    %v329 = vadd.f32 %v201, %v265
    %v330 = vadd.f32 %v202, %v266
    %v331 = vadd.f32 %v203, %v267
    %v332 = vadd.f32 %v204, %v268
    %v333 = vadd.f32 %v205, %v269
    %v334 = vadd.f32 %v206, %v270
    %v335 = vadd.f32 %v207, %v271
    %v336 = vadd.f32 %v208, %v272
    %v337 = vadd.f32 %v209, %v273
    %v338 = vadd.f32 %v210, %v274
    %v339 = vadd.f32 %v211, %v275
    %v340 = vadd.f32 %v212, %v276
    %v341 = vadd.f32 %v213, %v277
    %v342 = vadd.f32 %v214, %v278
    %v343 = vadd.f32 %v215, %v279
    %v344 = vadd.f32 %v216, %v280
    %v345 = vadd.f32 %v217, %v281
    %v346 = vadd.f32 %v218, %v282
    %v347 = vadd.f32 %v219, %v283
    %v348 = vadd.f32 %v220, %v284
    %v349 = vadd.f32 %v221, %v285
    %v350 = vadd.f32 %v222, %v286
    %v351 = vadd.f32 %v223, %v287
    %v352 = vadd.f32 %v224, %v288
    %v353 = vadd.f32 %v225, %v289
    %v354 = vadd.f32 %v226, %v290
    %v355 = vadd.f32 %v227, %v291
    %v356 = vadd.f32 %v228, %v292
    %v357 = vadd.f32 %v229, %v293
    %v358 = vadd.f32 %v230, %v294
    %v359 = vadd.f32 %v231, %v295
    %v360 = vadd.f32 %v232, %v296
    %v361 = vadd.f32 %v233, %v297
    %v362 = vmax.f32 %v298, 0.0
    %v363 = vmax.f32 %v299, 0.0
    %v364 = vmax.f32 %v300, 0.0
    %v365 = vmax.f32 %v301, 0.0
    %v366 = vmax.f32 %v302, 0.0
    %v367 = vmax.f32 %v303, 0.0
    %v368 = vmax.f32 %v304, 0.0
    %v369 = vmax.f32 %v305, 0.0
    %v370 = vmax.f32 %v306, 0.0
    %v371 = vmax.f32 %v307, 0.0
    %v372 = vmax.f32 %v308, 0.0
    %v373 = vmax.f32 %v309, 0.0
    %v374 = vmax.f32 %v310, 0.0
    %v375 = vmax.f32 %v311, 0.0
    %v376 = vmax.f32 %v312, 0.0
    %v377 = vmax.f32 %v313, 0.0
    %v378 = vmax.f32 %v314, 0.0
    %v379 = vmax.f32 %v315, 0.0
    %v380 = vmax.f32 %v316, 0.0
    %v381 = vmax.f32 %v317, 0.0
    %v382 = vmax.f32 %v318, 0.0
    %v383 = vmax.f32 %v319, 0.0
    %v384 = vmax.f32 %v320, 0.0
    %v385 = vmax.f32 %v321, 0.0
    %v386 = vmax.f32 %v322, 0.0
    %v387 = vmax.f32 %v323, 0.0
    %v388 = vmax.f32 %v324, 0.0
    %v389 = vmax.f32 %v325, 0.0
    %v390 = vmax.f32 %v326, 0.0
    %v391 = vmax.f32 %v327, 0.0
    %v392 = vmax.f32 %v328, 0.0
    %v393 = vmax.f32 %v329, 0.0
    %v394 = vmax.f32 %v330, 0.0
    %v395 = vmax.f32 %v331, 0.0
    %v396 = vmax.f32 %v332, 0.0
    %v397 = vmax.f32 %v333, 0.0
    %v398 = vmax.f32 %v334, 0.0
    %v399 = vmax.f32 %v335, 0.0
    %v400 = vmax.f32 %v336, 0.0
    %v401 = vmax.f32 %v337, 0.0
    %v402 = vmax.f32 %v338, 0.0
    %v403 = vmax.f32 %v339, 0.0
    %v404 = vmax.f32 %v340, 0.0
    %v405 = vmax.f32 %v341, 0.0
    %v406 = vmax.f32 %v342, 0.0
    %v407 = vmax.f32 %v343, 0.0
    %v408 = vmax.f32 %v344, 0.0
    %v409 = vmax.f32 %v345, 0.0
    %v410 = vmax.f32 %v346, 0.0
    %v411 = vmax.f32 %v347, 0.0
    %v412 = vmax.f32 %v348, 0.0
    %v413 = vmax.f32 %v349, 0.0
    %v414 = vmax.f32 %v350, 0.0
    %v415 = vmax.f32 %v351, 0.0
    %v416 = vmax.f32 %v352, 0.0
    %v417 = vmax.f32 %v353, 0.0
    %v418 = vmax.f32 %v354, 0.0
    %v419 = vmax.f32 %v355, 0.0
    %v420 = vmax.f32 %v356, 0.0
    %v421 = vmax.f32 %v357, 0.0
    %v422 = vmax.f32 %v358, 0.0
    %v423 = vmax.f32 %v359, 0.0
    %v424 = vmax.f32 %v360, 0.0
    %v425 = vmax.f32 %v361, 0.0
    %426 = vst [vmem:[#allocation2] sm:$0xff] %v362
    %427 = vst [vmem:[#allocation2 + $0x8] sm:$0xff] %v363
    %428 = vst [vmem:[#allocation2 + $0x10] sm:$0xff] %v364
    %429 = vst [vmem:[#allocation2 + $0x18] sm:$0xff] %v365
    %430 = vst [vmem:[#allocation2 + $0x20] sm:$0xff] %v366
    %431 = vst [vmem:[#allocation2 + $0x28] sm:$0xff] %v367
    %432 = vst [vmem:[#allocation2 + $0x30] sm:$0xff] %v368
    %433 = vst [vmem:[#allocation2 + $0x38] sm:$0xff] %v369
    %434 = vst [vmem:[#allocation2 + $0x40] sm:$0xff] %v370
    %435 = vst [vmem:[#allocation2 + $0x48] sm:$0xff] %v371
    %436 = vst [vmem:[#allocation2 + $0x50] sm:$0xff] %v372
    %437 = vst [vmem:[#allocation2 + $0x58] sm:$0xff] %v373
    %438 = vst [vmem:[#allocation2 + $0x60] sm:$0xff] %v374
    %439 = vst [vmem:[#allocation2 + $0x68] sm:$0xff] %v375
    %440 = vst [vmem:[#allocation2 + $0x70] sm:$0xff] %v376
    %441 = vst [vmem:[#allocation2 + $0x78] sm:$0xff] %v377
    %442 = vst [vmem:[#allocation2 + $0x80] sm:$0xff] %v378
    %443 = vst [vmem:[#allocation2 + $0x88] sm:$0xff] %v379
    %444 = vst [vmem:[#allocation2 + $0x90] sm:$0xff] %v380
    %445 = vst [vmem:[#allocation2 + $0x98] sm:$0xff] %v381
    %446 = vst [vmem:[#allocation2 + $0xa0] sm:$0xff] %v382
    %447 = vst [vmem:[#allocation2 + $0xa8] sm:$0xff] %v383
    %448 = vst [vmem:[#allocation2 + $0xb0] sm:$0xff] %v384
    %449 = vst [vmem:[#allocation2 + $0xb8] sm:$0xff] %v385
    %450 = vst [vmem:[#allocation2 + $0xc0] sm:$0xff] %v386
    %451 = vst [vmem:[#allocation2 + $0xc8] sm:$0xff] %v387
    %452 = vst [vmem:[#allocation2 + $0xd0] sm:$0xff] %v388
    %453 = vst [vmem:[#allocation2 + $0xd8] sm:$0xff] %v389
    %454 = vst [vmem:[#allocation2 + $0xe0] sm:$0xff] %v390
    %455 = vst [vmem:[#allocation2 + $0xe8] sm:$0xff] %v391
    %456 = vst [vmem:[#allocation2 + $0xf0] sm:$0xff] %v392
    %457 = vst [vmem:[#allocation2 + $0xf8] sm:$0xff] %v393
    %458 = vst [vmem:[#allocation2 + $0x100] sm:$0xff] %v394
    %459 = vst [vmem:[#allocation2 + $0x108] sm:$0xff] %v395
    %460 = vst [vmem:[#allocation2 + $0x110] sm:$0xff] %v396
    %461 = vst [vmem:[#allocation2 + $0x118] sm:$0xff] %v397
    %462 = vst [vmem:[#allocation2 + $0x120] sm:$0xff] %v398
    %463 = vst [vmem:[#allocation2 + $0x128] sm:$0xff] %v399
    %464 = vst [vmem:[#allocation2 + $0x130] sm:$0xff] %v400
    %465 = vst [vmem:[#allocation2 + $0x138] sm:$0xff] %v401
    %466 = vst [vmem:[#allocation2 + $0x140] sm:$0xff] %v402
    %467 = vst [vmem:[#allocation2 + $0x148] sm:$0xff] %v403
    %468 = vst [vmem:[#allocation2 + $0x150] sm:$0xff] %v404
    %469 = vst [vmem:[#allocation2 + $0x158] sm:$0xff] %v405
    %470 = vst [vmem:[#allocation2 + $0x160] sm:$0xff] %v406
    %471 = vst [vmem:[#allocation2 + $0x168] sm:$0xff] %v407
    %472 = vst [vmem:[#allocation2 + $0x170] sm:$0xff] %v408
    %473 = vst [vmem:[#allocation2 + $0x178] sm:$0xff] %v409
    %474 = vst [vmem:[#allocation2 + $0x180] sm:$0xff] %v410
    %475 = vst [vmem:[#allocation2 + $0x188] sm:$0xff] %v411
    %476 = vst [vmem:[#allocation2 + $0x190] sm:$0xff] %v412
    %477 = vst [vmem:[#allocation2 + $0x198] sm:$0xff] %v413
    %478 = vst [vmem:[#allocation2 + $0x1a0] sm:$0xff] %v414
    %479 = vst [vmem:[#allocation2 + $0x1a8] sm:$0xff] %v415
    %480 = vst [vmem:[#allocation2 + $0x1b0] sm:$0xff] %v416
    %481 = vst [vmem:[#allocation2 + $0x1b8] sm:$0xff] %v417
    %482 = vst [vmem:[#allocation2 + $0x1c0] sm:$0xff] %v418
    %483 = vst [vmem:[#allocation2 + $0x1c8] sm:$0xff] %v419
    %484 = vst [vmem:[#allocation2 + $0x1d0] sm:$0xff] %v420
    %485 = vst [vmem:[#allocation2 + $0x1d8] sm:$0xff] %v421
    %486 = vst [vmem:[#allocation2 + $0x1e0] sm:$0xff] %v422
    %487 = vst [vmem:[#allocation2 + $0x1e8] sm:$0xff] %v423
    %488 = vst [vmem:[#allocation2 + $0x1f0] sm:$0xff] %v424
    %489 = vst [vmem:[#allocation2 + $0x1f8] sm:$0xff] %v425
    // Predicated region
    $region18: #{bottleneck3d_forward.15} parent=1 // pred_check
      _
    $region19: #{bottleneck3d_forward.15} parent=1 // pred_check_branch
      %491 = sbr.rel (0) target = $region21
    $region20: #{bottleneck3d_forward.15} parent=1 // pred_region
      %s493 = ssub.s32 8192, 8192
      %494 = vsyncadd [#allocation3], %s493
      %s495 = sshll.u32 [#allocation2], 4
      %s496 = int_to_ptr.vmem [resolvable:$true] %s495
      %501 = dma.vmem_to_hbm [thread:$0]  %s496, 8192, %s4, [#allocation3], 256, 256, 16
    $region21: #{bottleneck3d_forward.15} parent=1 // pred_fallthru
      _
    // Predicated region
    $region22: #{bottleneck3d_forward.15} parent=1 // pred_check
      _
    $region23: #{bottleneck3d_forward.15} parent=1 // pred_check_branch
      %503 = sbr.rel (0) target = $region25
    $region24: #{bottleneck3d_forward.15} parent=1 // pred_region
      %504 = dma.done [#allocation3], 8192
    $region25: #{bottleneck3d_forward.15} parent=1 // pred_fallthru
      _
    %505 = vsyncpa [#allocation3], 1

</llo_original>
